<compile_context>
chip_gen: v6e
topology: v6e:2x2x1
jax: 0.10.0
libtpu: 0.0.40
codegen_flags: <defaults>
</compile_context>

<pallas_src>
import jax
import jax.numpy as jnp
from jax.experimental import pallas as pl
from jax.experimental.pallas import tpu as pltpu

# ---- synthetic model sizes --------------------------------------------------
B = 2            # batch
CIN = 4          # input channels
H = W = 16       # spatial
C1 = 16          # backbone conv1 channels
C2 = 32          # backbone conv2 channels (features fed to CBAM)
CA_HID = 4       # channel-attention bottleneck (C2 // 8)
SA_K = 7         # spatial-attention kernel size
SA_P = SA_K // 2
ACC_SHAPE = (2, 4)
ACC_DIM = ACC_SHAPE[0] * ACC_SHAPE[1]
MLP_HID = 32
N_ACT = 3


# -----------------------------------------------------------------------------
# Pallas kernel: whole batch in one invocation, everything resident in VMEM.
# -----------------------------------------------------------------------------
def dqn_kernel(x_ref, acct_ref,
               c1w_ref, c1b_ref, c2w_ref, c2b_ref,
               ca1_ref, ca2_ref, sam_ref, sax_ref,
               m1w_ref, m1b_ref, m2w_ref, m2b_ref,
               out_ref,
               pad1, pad2, col1, col2):
    f32 = jnp.float32
    bf16 = jnp.bfloat16
    Bk = x_ref.shape[0]
    BHW = Bk * H * W

    # ---------------- backbone conv1: 3x3 SAME + ReLU (im2col -> 1 matmul) ----
    pad1[...] = jnp.zeros_like(pad1)
    pad1[:, 1:H + 1, 1:W + 1, :] = x_ref[...]
    for t in range(9):
        dy, dx = divmod(t, 3)
        col1[:, t * CIN:(t + 1) * CIN] = (
            pad1[:, dy:dy + H, dx:dx + W, :].reshape(BHW, CIN))
    h1 = jnp.maximum(
        jnp.dot(col1[...].astype(bf16), c1w_ref[...],
                preferred_element_type=f32) + c1b_ref[...], 0.0)       # (BHW, C1)

    # ---------------- backbone conv2: 3x3 SAME + ReLU (im2col -> 1 matmul) ----
    pad2[...] = jnp.zeros_like(pad2)
    pad2[:, 1:H + 1, 1:W + 1, :] = h1.reshape(Bk, H, W, C1)
    for t in range(9):
        dy, dx = divmod(t, 3)
        col2[:, t * C1:(t + 1) * C1] = (
            pad2[:, dy:dy + H, dx:dx + W, :].reshape(BHW, C1))
    feat = jnp.maximum(
        jnp.dot(col2[...].astype(bf16), c2w_ref[...],
                preferred_element_type=f32) + c2b_ref[...], 0.0)       # (BHW, C2)

    featb = feat.reshape(Bk, H * W, C2)                                # (B, HW, C2)

    # ---------------- channel attention: sigmoid(MLP(avg) + MLP(max)) * x -----
    avg_c = jnp.mean(featb, axis=1)                                    # (B, C2)
    max_c = jnp.max(featb, axis=1)                                     # (B, C2)

    def ca_mlp(v):
        mid = jnp.maximum(
            jnp.dot(v, ca1_ref[...], preferred_element_type=f32), 0.0)
        return jnp.dot(mid, ca2_ref[...], preferred_element_type=f32)

    ca = jax.nn.sigmoid(ca_mlp(avg_c) + ca_mlp(max_c))                 # (B, C2)
    featb = featb * ca[:, None, :]

    # ---------------- spatial attention: 7x7 conv as dense Toeplitz matmuls ---
    mean_map = jnp.mean(featb, axis=2)                                 # (B, HW)
    max_map = jnp.max(featb, axis=2)                                   # (B, HW)
    sa = jax.nn.sigmoid(
        jnp.dot(mean_map, sam_ref[...], preferred_element_type=f32)
        + jnp.dot(max_map, sax_ref[...], preferred_element_type=f32))  # (B, HW)
    featb = featb * sa[:, :, None]

    # ---------------- AdaptiveAvgPool2d(1) + concat(account) + MLP ------------
    pooled = jnp.mean(featb, axis=1)                                   # (B, C2)
    acct = acct_ref[...]                                               # (B, ACC_DIM)
    # concat(pooled, acct) @ W1  ==  pooled @ W1[:C2] + acct @ W1[C2:]
    z = (jnp.dot(pooled, m1w_ref[0:C2, :], preferred_element_type=f32)
         + jnp.dot(acct, m1w_ref[C2:C2 + ACC_DIM, :],
                   preferred_element_type=f32)
         + m1b_ref[...])
    z = jnp.maximum(z, 0.0)
    out_ref[...] = (jnp.dot(z, m2w_ref[...], preferred_element_type=f32)
                    + m2b_ref[...])                                    # (B, N_ACT)


# -----------------------------------------------------------------------------
# Host-side glue: fold the 7x7 spatial-attention conv into dense (HW, HW) mats.
#   sa_logit[b, (y,x)] = sum_{y0,x0} mean[b,(y0,x0)]*Km[(y0,x0),(y,x)]
#                      + sum_{y0,x0} max [b,(y0,x0)]*Kx[(y0,x0),(y,x)]
# -----------------------------------------------------------------------------
def build_sa_toeplitz(saw):
    # saw: (SA_K, SA_K, 2, 1) in HWIO
    y0 = jnp.arange(H).reshape(H, 1, 1, 1)
    x0 = jnp.arange(W).reshape(1, W, 1, 1)
    y = jnp.arange(H).reshape(1, 1, H, 1)
    x = jnp.arange(W).reshape(1, 1, 1, W)
    dy = y0 - y + SA_P
    dx = x0 - x + SA_P
    valid = (dy >= 0) & (dy < SA_K) & (dx >= 0) & (dx < SA_K)
    dyc = jnp.clip(dy, 0, SA_K - 1)
    dxc = jnp.clip(dx, 0, SA_K - 1)
    w = saw[:, :, :, 0]                                   # (SA_K, SA_K, 2)
    km = jnp.where(valid, w[dyc, dxc, 0], 0.0).reshape(H * W, H * W)
    kx = jnp.where(valid, w[dyc, dxc, 1], 0.0).reshape(H * W, H * W)
    return km.astype(jnp.float32), kx.astype(jnp.float32)


# -----------------------------------------------------------------------------
# Wrapper: parameter re-packing (glue) + pallas_call
# -----------------------------------------------------------------------------
def dqn_forward(x, account, params):
    c1w, c1b, c2w, c2b, ca1, ca2, saw, m1w, m1b, m2w, m2b = params
    Bx = x.shape[0]
    acct = account.reshape(Bx, -1).astype(jnp.float32)    # torch.flatten(account, 1)

    # re-pack weights for the kernel (pure glue)
    c1w_k = c1w.reshape(9 * CIN, C1).astype(jnp.bfloat16)   # (dy,dx,ci) x co
    c2w_k = c2w.reshape(9 * C1, C2).astype(jnp.bfloat16)
    c1b_k = c1b.reshape(1, C1)
    c2b_k = c2b.reshape(1, C2)
    sam_k, sax_k = build_sa_toeplitz(saw)                   # (HW, HW) each
    m1b_k = m1b.reshape(1, MLP_HID)
    m2b_k = m2b.reshape(1, N_ACT)

    in_specs = [
        pl.BlockSpec((Bx, H, W, CIN), lambda i: (0, 0, 0, 0)),
        pl.BlockSpec((Bx, ACC_DIM), lambda i: (0, 0)),
        pl.BlockSpec((9 * CIN, C1), lambda i: (0, 0)),
        pl.BlockSpec((1, C1), lambda i: (0, 0)),
        pl.BlockSpec((9 * C1, C2), lambda i: (0, 0)),
        pl.BlockSpec((1, C2), lambda i: (0, 0)),
        pl.BlockSpec((C2, CA_HID), lambda i: (0, 0)),
        pl.BlockSpec((CA_HID, C2), lambda i: (0, 0)),
        pl.BlockSpec((H * W, H * W), lambda i: (0, 0)),
        pl.BlockSpec((H * W, H * W), lambda i: (0, 0)),
        pl.BlockSpec((C2 + ACC_DIM, MLP_HID), lambda i: (0, 0)),
        pl.BlockSpec((1, MLP_HID), lambda i: (0, 0)),
        pl.BlockSpec((MLP_HID, N_ACT), lambda i: (0, 0)),
        pl.BlockSpec((1, N_ACT), lambda i: (0, 0)),
    ]
    out_spec = pl.BlockSpec((Bx, N_ACT), lambda i: (0, 0))

    return pl.pallas_call(
        dqn_kernel,
        out_shape=jax.ShapeDtypeStruct((Bx, N_ACT), jnp.float32),
        grid_spec=pltpu.PrefetchScalarGridSpec(
            num_scalar_prefetch=0,
            grid=(1,),                                   # batch fused: 1 step
            in_specs=in_specs,
            out_specs=out_spec,
            scratch_shapes=[
                pltpu.VMEM((Bx, H + 2, W + 2, CIN), jnp.float32),   # padded input
                pltpu.VMEM((Bx, H + 2, W + 2, C1), jnp.float32),    # padded conv1 out
                pltpu.VMEM((Bx * H * W, 9 * CIN), jnp.float32),     # im2col conv1
                pltpu.VMEM((Bx * H * W, 9 * C1), jnp.float32),      # im2col conv2
            ]),
        compiler_params=pltpu.CompilerParams(
            dimension_semantics=("arbitrary",)),
    )(x.astype(jnp.float32), acct, c1w_k, c1b_k, c2w_k, c2b_k,
      ca1, ca2, sam_k, sax_k, m1w, m1b_k, m2w, m2b_k)


# -----------------------------------------------------------------------------
# Deterministic parameter init + pure-JAX reference for verification
# -----------------------------------------------------------------------------
def init_params(key):
    ks = jax.random.split(key, 11)
    s = 0.1
    c1w = jax.random.normal(ks[0], (3, 3, CIN, C1), jnp.float32) * s   # HWIO
    c1b = jax.random.normal(ks[1], (C1,), jnp.float32) * s
    c2w = jax.random.normal(ks[2], (3, 3, C1, C2), jnp.float32) * s
    c2b = jax.random.normal(ks[3], (C2,), jnp.float32) * s
    ca1 = jax.random.normal(ks[4], (C2, CA_HID), jnp.float32) * s
    ca2 = jax.random.normal(ks[5], (CA_HID, C2), jnp.float32) * s
    saw = jax.random.normal(ks[6], (SA_K, SA_K, 2, 1), jnp.float32) * s
    m1w = jax.random.normal(ks[7], (C2 + ACC_DIM, MLP_HID), jnp.float32) * s
    m1b = jax.random.normal(ks[8], (MLP_HID,), jnp.float32) * s
    m2w = jax.random.normal(ks[9], (MLP_HID, N_ACT), jnp.float32) * s
    m2b = jax.random.normal(ks[10], (N_ACT,), jnp.float32) * s
    return (c1w, c1b, c2w, c2b, ca1, ca2, saw, m1w, m1b, m2w, m2b)


def ref_forward(x, account, params):
    c1w, c1b, c2w, c2b, ca1, ca2, saw, m1w, m1b, m2w, m2b = params
    hp = jax.lax.Precision.HIGHEST

    def conv(v, w, b):
        y = jax.lax.conv_general_dilated(
            v, w, (1, 1), 'SAME',
            dimension_numbers=('NHWC', 'HWIO', 'NHWC'), precision=hp)
        return jax.nn.relu(y + b)

    h = conv(x, c1w, c1b)
    h = conv(h, c2w, c2b)
    avg_c = h.mean(axis=(1, 2))
    max_c = h.max(axis=(1, 2))

    def camlp(v):
        return jnp.dot(jax.nn.relu(jnp.dot(v, ca1, precision=hp)), ca2,
                       precision=hp)

    caw = jax.nn.sigmoid(camlp(avg_c) + camlp(max_c))
    h = h * caw[:, None, None, :]
    s = jnp.concatenate([h.mean(axis=3, keepdims=True),
                         h.max(axis=3, keepdims=True)], axis=3)
    s = jax.lax.conv_general_dilated(
        s, saw, (1, 1), 'SAME',
        dimension_numbers=('NHWC', 'HWIO', 'NHWC'), precision=hp)
    h = h * jax.nn.sigmoid(s)
    pooled = h.mean(axis=(1, 2))
    acct = account.reshape(account.shape[0], -1)
    z = jax.nn.relu(jnp.dot(jnp.concatenate([pooled, acct], axis=1), m1w,
                            precision=hp) + m1b)
    return jnp.dot(z, m2w, precision=hp) + m2b


if __name__ == "__main__":
    key = jax.random.PRNGKey(0)
    kx, ka, kp = jax.random.split(key, 3)
    x = jax.random.normal(kx, (B, H, W, CIN), jnp.float32)          # NHWC
    account = jax.random.normal(ka, (B,) + ACC_SHAPE, jnp.float32)  # (B, 2, 4)
    params = init_params(kp)

    q_kernel = jax.block_until_ready(dqn_forward(x, account, params))
    q_ref = jax.block_until_ready(ref_forward(x, account, params))

    # backbone matmuls use bf16 inputs (f32 accumulation) -> slightly looser tol
    if not bool(jnp.allclose(q_kernel, q_ref, atol=5e-3, rtol=2e-2)):
        raise AssertionError(
            f"mismatch: max abs diff {float(jnp.max(jnp.abs(q_kernel - q_ref)))}")
    print("KERNEL_OK")
</pallas_src>

<mosaic_0001>
module attributes {stable_mosaic.version = 11 : i64} {
  func.func @dqn_kernel(%arg0: i32, %arg1: memref<2x16x16x4xf32, #tpu.memory_space<vmem>>, %arg2: memref<2x8xf32, #tpu.memory_space<vmem>>, %arg3: memref<36x16xbf16, #tpu.memory_space<vmem>>, %arg4: memref<1x16xf32, #tpu.memory_space<vmem>>, %arg5: memref<144x32xbf16, #tpu.memory_space<vmem>>, %arg6: memref<1x32xf32, #tpu.memory_space<vmem>>, %arg7: memref<32x4xf32, #tpu.memory_space<vmem>>, %arg8: memref<4x32xf32, #tpu.memory_space<vmem>>, %arg9: memref<256x256xf32, #tpu.memory_space<vmem>>, %arg10: memref<256x256xf32, #tpu.memory_space<vmem>>, %arg11: memref<40x32xf32, #tpu.memory_space<vmem>>, %arg12: memref<1x32xf32, #tpu.memory_space<vmem>>, %arg13: memref<32x3xf32, #tpu.memory_space<vmem>>, %arg14: memref<1x3xf32, #tpu.memory_space<vmem>>, %arg15: memref<2x3xf32, #tpu.memory_space<vmem>>, %arg16: memref<2x18x18x4xf32, #tpu.memory_space<vmem>>, %arg17: memref<2x18x18x16xf32, #tpu.memory_space<vmem>>, %arg18: memref<512x36xf32, #tpu.memory_space<vmem>>, %arg19: memref<512x144xf32, #tpu.memory_space<vmem>>) attributes {dimension_semantics = [#tpu.dimension_semantics<arbitrary>], iteration_bounds = array<i64: 1>, scalar_prefetch = 0 : i64, scratch_operands = 4 : i64, tpu.core_type = #tpu.core_type<tc>, window_params = [{pipeline_mode = #tpu.pipeline_mode<synchronous>, transform_indices = @transform_0, window_bounds = array<i64: 2, 16, 16, 4>}, {pipeline_mode = #tpu.pipeline_mode<synchronous>, transform_indices = @transform_1, window_bounds = array<i64: 2, 8>}, {pipeline_mode = #tpu.pipeline_mode<synchronous>, transform_indices = @transform_2, window_bounds = array<i64: 36, 16>}, {pipeline_mode = #tpu.pipeline_mode<synchronous>, transform_indices = @transform_3, window_bounds = array<i64: 1, 16>}, {pipeline_mode = #tpu.pipeline_mode<synchronous>, transform_indices = @transform_4, window_bounds = array<i64: 144, 32>}, {pipeline_mode = #tpu.pipeline_mode<synchronous>, transform_indices = @transform_5, window_bounds = array<i64: 1, 32>}, {pipeline_mode = #tpu.pipeline_mode<synchronous>, transform_indices = @transform_6, window_bounds = array<i64: 32, 4>}, {pipeline_mode = #tpu.pipeline_mode<synchronous>, transform_indices = @transform_7, window_bounds = array<i64: 4, 32>}, {pipeline_mode = #tpu.pipeline_mode<synchronous>, transform_indices = @transform_8, window_bounds = array<i64: 256, 256>}, {pipeline_mode = #tpu.pipeline_mode<synchronous>, transform_indices = @transform_9, window_bounds = array<i64: 256, 256>}, {pipeline_mode = #tpu.pipeline_mode<synchronous>, transform_indices = @transform_10, window_bounds = array<i64: 40, 32>}, {pipeline_mode = #tpu.pipeline_mode<synchronous>, transform_indices = @transform_11, window_bounds = array<i64: 1, 32>}, {pipeline_mode = #tpu.pipeline_mode<synchronous>, transform_indices = @transform_12, window_bounds = array<i64: 32, 3>}, {pipeline_mode = #tpu.pipeline_mode<synchronous>, transform_indices = @transform_13, window_bounds = array<i64: 1, 3>}, {pipeline_mode = #tpu.pipeline_mode<synchronous>, transform_indices = @transform_14, window_bounds = array<i64: 2, 3>}]} {
    %cst = arith.constant 0.000000e+00 : f32
    %0 = vector.broadcast %cst : f32 to vector<2x18x18x4xf32>
    %c0 = arith.constant 0 : index
    %c0_0 = arith.constant 0 : index
    %c0_1 = arith.constant 0 : index
    %c0_2 = arith.constant 0 : index
    %1 = vector.load %arg16[%c0, %c0_0, %c0_1, %c0_2] : memref<2x18x18x4xf32, #tpu.memory_space<vmem>>, vector<2x18x18x4xf32>
    tpu.vector_store %arg16[%c0, %c0_0, %c0_1, %c0_2], %0 {strides = array<i32>} : memref<2x18x18x4xf32, #tpu.memory_space<vmem>>, vector<2x18x18x4xf32>,
    %c0_3 = arith.constant 0 : index
    %c0_4 = arith.constant 0 : index
    %c0_5 = arith.constant 0 : index
    %c0_6 = arith.constant 0 : index
    %2 = vector.load %arg1[%c0_3, %c0_4, %c0_5, %c0_6] : memref<2x16x16x4xf32, #tpu.memory_space<vmem>>, vector<2x16x16x4xf32>
    %c0_7 = arith.constant 0 : index
    %c1 = arith.constant 1 : index
    %c1_8 = arith.constant 1 : index
    %c0_9 = arith.constant 0 : index
    %3 = vector.load %arg16[%c0_7, %c1, %c1_8, %c0_9] : memref<2x18x18x4xf32, #tpu.memory_space<vmem>>, vector<2x16x16x4xf32>
    tpu.vector_store %arg16[%c0_7, %c1, %c1_8, %c0_9], %2 {strides = array<i32>} : memref<2x18x18x4xf32, #tpu.memory_space<vmem>>, vector<2x16x16x4xf32>,
    %c0_10 = arith.constant 0 : index
    %c0_11 = arith.constant 0 : index
    %c0_12 = arith.constant 0 : index
    %c0_13 = arith.constant 0 : index
    %4 = vector.load %arg16[%c0_10, %c0_11, %c0_12, %c0_13] : memref<2x18x18x4xf32, #tpu.memory_space<vmem>>, vector<2x16x16x4xf32>
    %5 = vector.shape_cast %4 : vector<2x16x16x4xf32> to vector<512x4xf32>
    %c0_14 = arith.constant 0 : index
    %c0_15 = arith.constant 0 : index
    %6 = vector.load %arg18[%c0_14, %c0_15] : memref<512x36xf32, #tpu.memory_space<vmem>>, vector<512x4xf32>
    tpu.vector_store %arg18[%c0_14, %c0_15], %5 {strides = array<i32>} : memref<512x36xf32, #tpu.memory_space<vmem>>, vector<512x4xf32>,
    %c0_16 = arith.constant 0 : index
    %c0_17 = arith.constant 0 : index
    %c1_18 = arith.constant 1 : index
    %c0_19 = arith.constant 0 : index
    %7 = vector.load %arg16[%c0_16, %c0_17, %c1_18, %c0_19] : memref<2x18x18x4xf32, #tpu.memory_space<vmem>>, vector<2x16x16x4xf32>
    %8 = vector.shape_cast %7 : vector<2x16x16x4xf32> to vector<512x4xf32>
    %c0_20 = arith.constant 0 : index
    %c4 = arith.constant 4 : index
    %9 = vector.load %arg18[%c0_20, %c4] : memref<512x36xf32, #tpu.memory_space<vmem>>, vector<512x4xf32>
    tpu.vector_store %arg18[%c0_20, %c4], %8 {strides = array<i32>} : memref<512x36xf32, #tpu.memory_space<vmem>>, vector<512x4xf32>,
    %c0_21 = arith.constant 0 : index
    %c0_22 = arith.constant 0 : index
    %c2 = arith.constant 2 : index
    %c0_23 = arith.constant 0 : index
    %10 = vector.load %arg16[%c0_21, %c0_22, %c2, %c0_23] : memref<2x18x18x4xf32, #tpu.memory_space<vmem>>, vector<2x16x16x4xf32>
    %11 = vector.shape_cast %10 : vector<2x16x16x4xf32> to vector<512x4xf32>
    %c0_24 = arith.constant 0 : index
    %c8 = arith.constant 8 : index
    %12 = vector.load %arg18[%c0_24, %c8] : memref<512x36xf32, #tpu.memory_space<vmem>>, vector<512x4xf32>
    tpu.vector_store %arg18[%c0_24, %c8], %11 {strides = array<i32>} : memref<512x36xf32, #tpu.memory_space<vmem>>, vector<512x4xf32>,
    %c0_25 = arith.constant 0 : index
    %c1_26 = arith.constant 1 : index
    %c0_27 = arith.constant 0 : index
    %c0_28 = arith.constant 0 : index
    %13 = vector.load %arg16[%c0_25, %c1_26, %c0_27, %c0_28] : memref<2x18x18x4xf32, #tpu.memory_space<vmem>>, vector<2x16x16x4xf32>
    %14 = vector.shape_cast %13 : vector<2x16x16x4xf32> to vector<512x4xf32>
    %c0_29 = arith.constant 0 : index
    %c12 = arith.constant 12 : index
    %15 = vector.load %arg18[%c0_29, %c12] : memref<512x36xf32, #tpu.memory_space<vmem>>, vector<512x4xf32>
    tpu.vector_store %arg18[%c0_29, %c12], %14 {strides = array<i32>} : memref<512x36xf32, #tpu.memory_space<vmem>>, vector<512x4xf32>,
    %c0_30 = arith.constant 0 : index
    %c1_31 = arith.constant 1 : index
    %c1_32 = arith.constant 1 : index
    %c0_33 = arith.constant 0 : index
    %16 = vector.load %arg16[%c0_30, %c1_31, %c1_32, %c0_33] : memref<2x18x18x4xf32, #tpu.memory_space<vmem>>, vector<2x16x16x4xf32>
    %17 = vector.shape_cast %16 : vector<2x16x16x4xf32> to vector<512x4xf32>
    %c0_34 = arith.constant 0 : index
    %c16 = arith.constant 16 : index
    %18 = vector.load %arg18[%c0_34, %c16] : memref<512x36xf32, #tpu.memory_space<vmem>>, vector<512x4xf32>
    tpu.vector_store %arg18[%c0_34, %c16], %17 {strides = array<i32>} : memref<512x36xf32, #tpu.memory_space<vmem>>, vector<512x4xf32>,
    %c0_35 = arith.constant 0 : index
    %c1_36 = arith.constant 1 : index
    %c2_37 = arith.constant 2 : index
    %c0_38 = arith.constant 0 : index
    %19 = vector.load %arg16[%c0_35, %c1_36, %c2_37, %c0_38] : memref<2x18x18x4xf32, #tpu.memory_space<vmem>>, vector<2x16x16x4xf32>
    %20 = vector.shape_cast %19 : vector<2x16x16x4xf32> to vector<512x4xf32>
    %c0_39 = arith.constant 0 : index
    %c20 = arith.constant 20 : index
    %21 = vector.load %arg18[%c0_39, %c20] : memref<512x36xf32, #tpu.memory_space<vmem>>, vector<512x4xf32>
    tpu.vector_store %arg18[%c0_39, %c20], %20 {strides = array<i32>} : memref<512x36xf32, #tpu.memory_space<vmem>>, vector<512x4xf32>,
    %c0_40 = arith.constant 0 : index
    %c2_41 = arith.constant 2 : index
    %c0_42 = arith.constant 0 : index
    %c0_43 = arith.constant 0 : index
    %22 = vector.load %arg16[%c0_40, %c2_41, %c0_42, %c0_43] : memref<2x18x18x4xf32, #tpu.memory_space<vmem>>, vector<2x16x16x4xf32>
    %23 = vector.shape_cast %22 : vector<2x16x16x4xf32> to vector<512x4xf32>
    %c0_44 = arith.constant 0 : index
    %c24 = arith.constant 24 : index
    %24 = vector.load %arg18[%c0_44, %c24] : memref<512x36xf32, #tpu.memory_space<vmem>>, vector<512x4xf32>
    tpu.vector_store %arg18[%c0_44, %c24], %23 {strides = array<i32>} : memref<512x36xf32, #tpu.memory_space<vmem>>, vector<512x4xf32>,
    %c0_45 = arith.constant 0 : index
    %c2_46 = arith.constant 2 : index
    %c1_47 = arith.constant 1 : index
    %c0_48 = arith.constant 0 : index
    %25 = vector.load %arg16[%c0_45, %c2_46, %c1_47, %c0_48] : memref<2x18x18x4xf32, #tpu.memory_space<vmem>>, vector<2x16x16x4xf32>
    %26 = vector.shape_cast %25 : vector<2x16x16x4xf32> to vector<512x4xf32>
    %c0_49 = arith.constant 0 : index
    %c28 = arith.constant 28 : index
    %27 = vector.load %arg18[%c0_49, %c28] : memref<512x36xf32, #tpu.memory_space<vmem>>, vector<512x4xf32>
    tpu.vector_store %arg18[%c0_49, %c28], %26 {strides = array<i32>} : memref<512x36xf32, #tpu.memory_space<vmem>>, vector<512x4xf32>,
    %c0_50 = arith.constant 0 : index
    %c2_51 = arith.constant 2 : index
    %c2_52 = arith.constant 2 : index
    %c0_53 = arith.constant 0 : index
    %28 = vector.load %arg16[%c0_50, %c2_51, %c2_52, %c0_53] : memref<2x18x18x4xf32, #tpu.memory_space<vmem>>, vector<2x16x16x4xf32>
    %29 = vector.shape_cast %28 : vector<2x16x16x4xf32> to vector<512x4xf32>
    %c0_54 = arith.constant 0 : index
    %c32 = arith.constant 32 : index
    %30 = vector.load %arg18[%c0_54, %c32] : memref<512x36xf32, #tpu.memory_space<vmem>>, vector<512x4xf32>
    tpu.vector_store %arg18[%c0_54, %c32], %29 {strides = array<i32>} : memref<512x36xf32, #tpu.memory_space<vmem>>, vector<512x4xf32>,
    %c0_55 = arith.constant 0 : index
    %c0_56 = arith.constant 0 : index
    %31 = vector.load %arg18[%c0_55, %c0_56] : memref<512x36xf32, #tpu.memory_space<vmem>>, vector<512x36xf32>
    %32 = arith.truncf %31 : vector<512x36xf32> to vector<512x36xbf16>
    %c0_57 = arith.constant 0 : index
    %c0_58 = arith.constant 0 : index
    %33 = vector.load %arg3[%c0_57, %c0_58] : memref<36x16xbf16, #tpu.memory_space<vmem>>, vector<36x16xbf16>
    %cst_59 = arith.constant dense<0.000000e+00> : vector<512x16xf32>
    %34 = tpu.matmul %32, %33, %cst_59 {dimension_numbers = #tpu.dot_dimension_numbers<[1], [0], [0], [1], [0, 0, 1, 1], [], []>} : vector<512x36xbf16>, vector<36x16xbf16>, vector<512x16xf32> -> vector<512x16xf32>
    %c0_60 = arith.constant 0 : index
    %c0_61 = arith.constant 0 : index
    %35 = vector.load %arg4[%c0_60, %c0_61] : memref<1x16xf32, #tpu.memory_space<vmem>>, vector<1x16xf32>
    %36 = vector.broadcast %35 : vector<1x16xf32> to vector<512x16xf32>
    %37 = arith.addf %34, %36 : vector<512x16xf32>
    %cst_62 = arith.constant 0.000000e+00 : f32
    %38 = vector.broadcast %cst_62 : f32 to vector<512x16xf32>
    %39 = arith.maximumf %37, %38 : vector<512x16xf32>
    %cst_63 = arith.constant 0.000000e+00 : f32
    %40 = vector.broadcast %cst_63 : f32 to vector<2x18x18x16xf32>
    %c0_64 = arith.constant 0 : index
    %c0_65 = arith.constant 0 : index
    %c0_66 = arith.constant 0 : index
    %c0_67 = arith.constant 0 : index
    %41 = vector.load %arg17[%c0_64, %c0_65, %c0_66, %c0_67] : memref<2x18x18x16xf32, #tpu.memory_space<vmem>>, vector<2x18x18x16xf32>
    tpu.vector_store %arg17[%c0_64, %c0_65, %c0_66, %c0_67], %40 {strides = array<i32>} : memref<2x18x18x16xf32, #tpu.memory_space<vmem>>, vector<2x18x18x16xf32>,
    %42 = vector.shape_cast %39 : vector<512x16xf32> to vector<2x16x16x16xf32>
    %c0_68 = arith.constant 0 : index
    %c1_69 = arith.constant 1 : index
    %c1_70 = arith.constant 1 : index
    %c0_71 = arith.constant 0 : index
    %43 = vector.load %arg17[%c0_68, %c1_69, %c1_70, %c0_71] : memref<2x18x18x16xf32, #tpu.memory_space<vmem>>, vector<2x16x16x16xf32>
    tpu.vector_store %arg17[%c0_68, %c1_69, %c1_70, %c0_71], %42 {strides = array<i32>} : memref<2x18x18x16xf32, #tpu.memory_space<vmem>>, vector<2x16x16x16xf32>,
    %c0_72 = arith.constant 0 : index
    %c0_73 = arith.constant 0 : index
    %c0_74 = arith.constant 0 : index
    %c0_75 = arith.constant 0 : index
    %44 = vector.load %arg17[%c0_72, %c0_73, %c0_74, %c0_75] : memref<2x18x18x16xf32, #tpu.memory_space<vmem>>, vector<2x16x16x16xf32>
    %45 = vector.shape_cast %44 : vector<2x16x16x16xf32> to vector<512x16xf32>
    %c0_76 = arith.constant 0 : index
    %c0_77 = arith.constant 0 : index
    %46 = vector.load %arg19[%c0_76, %c0_77] : memref<512x144xf32, #tpu.memory_space<vmem>>, vector<512x16xf32>
    tpu.vector_store %arg19[%c0_76, %c0_77], %45 {strides = array<i32>} : memref<512x144xf32, #tpu.memory_space<vmem>>, vector<512x16xf32>,
    %c0_78 = arith.constant 0 : index
    %c0_79 = arith.constant 0 : index
    %c1_80 = arith.constant 1 : index
    %c0_81 = arith.constant 0 : index
    %47 = vector.load %arg17[%c0_78, %c0_79, %c1_80, %c0_81] : memref<2x18x18x16xf32, #tpu.memory_space<vmem>>, vector<2x16x16x16xf32>
    %48 = vector.shape_cast %47 : vector<2x16x16x16xf32> to vector<512x16xf32>
    %c0_82 = arith.constant 0 : index
    %c16_83 = arith.constant 16 : index
    %49 = vector.load %arg19[%c0_82, %c16_83] : memref<512x144xf32, #tpu.memory_space<vmem>>, vector<512x16xf32>
    tpu.vector_store %arg19[%c0_82, %c16_83], %48 {strides = array<i32>} : memref<512x144xf32, #tpu.memory_space<vmem>>, vector<512x16xf32>,
    %c0_84 = arith.constant 0 : index
    %c0_85 = arith.constant 0 : index
    %c2_86 = arith.constant 2 : index
    %c0_87 = arith.constant 0 : index
    %50 = vector.load %arg17[%c0_84, %c0_85, %c2_86, %c0_87] : memref<2x18x18x16xf32, #tpu.memory_space<vmem>>, vector<2x16x16x16xf32>
    %51 = vector.shape_cast %50 : vector<2x16x16x16xf32> to vector<512x16xf32>
    %c0_88 = arith.constant 0 : index
    %c32_89 = arith.constant 32 : index
    %52 = vector.load %arg19[%c0_88, %c32_89] : memref<512x144xf32, #tpu.memory_space<vmem>>, vector<512x16xf32>
    tpu.vector_store %arg19[%c0_88, %c32_89], %51 {strides = array<i32>} : memref<512x144xf32, #tpu.memory_space<vmem>>, vector<512x16xf32>,
    %c0_90 = arith.constant 0 : index
    %c1_91 = arith.constant 1 : index
    %c0_92 = arith.constant 0 : index
    %c0_93 = arith.constant 0 : index
    %53 = vector.load %arg17[%c0_90, %c1_91, %c0_92, %c0_93] : memref<2x18x18x16xf32, #tpu.memory_space<vmem>>, vector<2x16x16x16xf32>
    %54 = vector.shape_cast %53 : vector<2x16x16x16xf32> to vector<512x16xf32>
    %c0_94 = arith.constant 0 : index
    %c48 = arith.constant 48 : index
    %55 = vector.load %arg19[%c0_94, %c48] : memref<512x144xf32, #tpu.memory_space<vmem>>, vector<512x16xf32>
    tpu.vector_store %arg19[%c0_94, %c48], %54 {strides = array<i32>} : memref<512x144xf32, #tpu.memory_space<vmem>>, vector<512x16xf32>,
    %c0_95 = arith.constant 0 : index
    %c1_96 = arith.constant 1 : index
    %c1_97 = arith.constant 1 : index
    %c0_98 = arith.constant 0 : index
    %56 = vector.load %arg17[%c0_95, %c1_96, %c1_97, %c0_98] : memref<2x18x18x16xf32, #tpu.memory_space<vmem>>, vector<2x16x16x16xf32>
    %57 = vector.shape_cast %56 : vector<2x16x16x16xf32> to vector<512x16xf32>
    %c0_99 = arith.constant 0 : index
    %c64 = arith.constant 64 : index
    %58 = vector.load %arg19[%c0_99, %c64] : memref<512x144xf32, #tpu.memory_space<vmem>>, vector<512x16xf32>
    tpu.vector_store %arg19[%c0_99, %c64], %57 {strides = array<i32>} : memref<512x144xf32, #tpu.memory_space<vmem>>, vector<512x16xf32>,
    %c0_100 = arith.constant 0 : index
    %c1_101 = arith.constant 1 : index
    %c2_102 = arith.constant 2 : index
    %c0_103 = arith.constant 0 : index
    %59 = vector.load %arg17[%c0_100, %c1_101, %c2_102, %c0_103] : memref<2x18x18x16xf32, #tpu.memory_space<vmem>>, vector<2x16x16x16xf32>
    %60 = vector.shape_cast %59 : vector<2x16x16x16xf32> to vector<512x16xf32>
    %c0_104 = arith.constant 0 : index
    %c80 = arith.constant 80 : index
    %61 = vector.load %arg19[%c0_104, %c80] : memref<512x144xf32, #tpu.memory_space<vmem>>, vector<512x16xf32>
    tpu.vector_store %arg19[%c0_104, %c80], %60 {strides = array<i32>} : memref<512x144xf32, #tpu.memory_space<vmem>>, vector<512x16xf32>,
    %c0_105 = arith.constant 0 : index
    %c2_106 = arith.constant 2 : index
    %c0_107 = arith.constant 0 : index
    %c0_108 = arith.constant 0 : index
    %62 = vector.load %arg17[%c0_105, %c2_106, %c0_107, %c0_108] : memref<2x18x18x16xf32, #tpu.memory_space<vmem>>, vector<2x16x16x16xf32>
    %63 = vector.shape_cast %62 : vector<2x16x16x16xf32> to vector<512x16xf32>
    %c0_109 = arith.constant 0 : index
    %c96 = arith.constant 96 : index
    %64 = vector.load %arg19[%c0_109, %c96] : memref<512x144xf32, #tpu.memory_space<vmem>>, vector<512x16xf32>
    tpu.vector_store %arg19[%c0_109, %c96], %63 {strides = array<i32>} : memref<512x144xf32, #tpu.memory_space<vmem>>, vector<512x16xf32>,
    %c0_110 = arith.constant 0 : index
    %c2_111 = arith.constant 2 : index
    %c1_112 = arith.constant 1 : index
    %c0_113 = arith.constant 0 : index
    %65 = vector.load %arg17[%c0_110, %c2_111, %c1_112, %c0_113] : memref<2x18x18x16xf32, #tpu.memory_space<vmem>>, vector<2x16x16x16xf32>
    %66 = vector.shape_cast %65 : vector<2x16x16x16xf32> to vector<512x16xf32>
    %c0_114 = arith.constant 0 : index
    %c112 = arith.constant 112 : index
    %67 = vector.load %arg19[%c0_114, %c112] : memref<512x144xf32, #tpu.memory_space<vmem>>, vector<512x16xf32>
    tpu.vector_store %arg19[%c0_114, %c112], %66 {strides = array<i32>} : memref<512x144xf32, #tpu.memory_space<vmem>>, vector<512x16xf32>,
    %c0_115 = arith.constant 0 : index
    %c2_116 = arith.constant 2 : index
    %c2_117 = arith.constant 2 : index
    %c0_118 = arith.constant 0 : index
    %68 = vector.load %arg17[%c0_115, %c2_116, %c2_117, %c0_118] : memref<2x18x18x16xf32, #tpu.memory_space<vmem>>, vector<2x16x16x16xf32>
    %69 = vector.shape_cast %68 : vector<2x16x16x16xf32> to vector<512x16xf32>
    %c0_119 = arith.constant 0 : index
    %c128 = arith.constant 128 : index
    %70 = vector.load %arg19[%c0_119, %c128] : memref<512x144xf32, #tpu.memory_space<vmem>>, vector<512x16xf32>
    tpu.vector_store %arg19[%c0_119, %c128], %69 {strides = array<i32>} : memref<512x144xf32, #tpu.memory_space<vmem>>, vector<512x16xf32>,
    %c0_120 = arith.constant 0 : index
    %c0_121 = arith.constant 0 : index
    %71 = vector.load %arg19[%c0_120, %c0_121] : memref<512x144xf32, #tpu.memory_space<vmem>>, vector<512x144xf32>
    %72 = arith.truncf %71 : vector<512x144xf32> to vector<512x144xbf16>
    %c0_122 = arith.constant 0 : index
    %c0_123 = arith.constant 0 : index
    %73 = vector.load %arg5[%c0_122, %c0_123] : memref<144x32xbf16, #tpu.memory_space<vmem>>, vector<144x32xbf16>
    %cst_124 = arith.constant dense<0.000000e+00> : vector<512x32xf32>
    %74 = tpu.matmul %72, %73, %cst_124 {dimension_numbers = #tpu.dot_dimension_numbers<[1], [0], [0], [1], [0, 0, 1, 1], [], []>} : vector<512x144xbf16>, vector<144x32xbf16>, vector<512x32xf32> -> vector<512x32xf32>
    %c0_125 = arith.constant 0 : index
    %c0_126 = arith.constant 0 : index
    %75 = vector.load %arg6[%c0_125, %c0_126] : memref<1x32xf32, #tpu.memory_space<vmem>>, vector<1x32xf32>
    %76 = vector.broadcast %75 : vector<1x32xf32> to vector<512x32xf32>
    %77 = arith.addf %74, %76 : vector<512x32xf32>
    %cst_127 = arith.constant 0.000000e+00 : f32
    %78 = vector.broadcast %cst_127 : f32 to vector<512x32xf32>
    %79 = arith.maximumf %77, %78 : vector<512x32xf32>
    %80 = vector.shape_cast %79 : vector<512x32xf32> to vector<2x256x32xf32>
    %cst_128 = arith.constant dense<0.000000e+00> : vector<2x32xf32>
    %81 = vector.multi_reduction <add>, %80, %cst_128 [1] : vector<2x256x32xf32> to vector<2x32xf32>
    %cst_129 = arith.constant 2.560000e+02 : f32
    %82 = vector.broadcast %cst_129 : f32 to vector<2x32xf32>
    %83 = arith.divf %81, %82 : vector<2x32xf32>
    %cst_130 = arith.constant dense<0xFF800000> : vector<2x32xf32>
    %84 = vector.multi_reduction <maximumf>, %80, %cst_130 [1] : vector<2x256x32xf32> to vector<2x32xf32>
    %c0_131 = arith.constant 0 : index
    %c0_132 = arith.constant 0 : index
    %85 = vector.load %arg7[%c0_131, %c0_132] : memref<32x4xf32, #tpu.memory_space<vmem>>, vector<32x4xf32>
    %cst_133 = arith.constant dense<0.000000e+00> : vector<2x4xf32>
    %86 = tpu.matmul %83, %85, %cst_133 {dimension_numbers = #tpu.dot_dimension_numbers<[1], [0], [0], [1], [0, 0, 1, 1], [], []>} : vector<2x32xf32>, vector<32x4xf32>, vector<2x4xf32> -> vector<2x4xf32>
    %cst_134 = arith.constant 0.000000e+00 : f32
    %87 = vector.broadcast %cst_134 : f32 to vector<2x4xf32>
    %88 = arith.maximumf %86, %87 : vector<2x4xf32>
    %c0_135 = arith.constant 0 : index
    %c0_136 = arith.constant 0 : index
    %89 = vector.load %arg8[%c0_135, %c0_136] : memref<4x32xf32, #tpu.memory_space<vmem>>, vector<4x32xf32>
    %cst_137 = arith.constant dense<0.000000e+00> : vector<2x32xf32>
    %90 = tpu.matmul %88, %89, %cst_137 {dimension_numbers = #tpu.dot_dimension_numbers<[1], [0], [0], [1], [0, 0, 1, 1], [], []>} : vector<2x4xf32>, vector<4x32xf32>, vector<2x32xf32> -> vector<2x32xf32>
    %c0_138 = arith.constant 0 : index
    %c0_139 = arith.constant 0 : index
    %91 = vector.load %arg7[%c0_138, %c0_139] : memref<32x4xf32, #tpu.memory_space<vmem>>, vector<32x4xf32>
    %cst_140 = arith.constant dense<0.000000e+00> : vector<2x4xf32>
    %92 = tpu.matmul %84, %91, %cst_140 {dimension_numbers = #tpu.dot_dimension_numbers<[1], [0], [0], [1], [0, 0, 1, 1], [], []>} : vector<2x32xf32>, vector<32x4xf32>, vector<2x4xf32> -> vector<2x4xf32>
    %cst_141 = arith.constant 0.000000e+00 : f32
    %93 = vector.broadcast %cst_141 : f32 to vector<2x4xf32>
    %94 = arith.maximumf %92, %93 : vector<2x4xf32>
    %c0_142 = arith.constant 0 : index
    %c0_143 = arith.constant 0 : index
    %95 = vector.load %arg8[%c0_142, %c0_143] : memref<4x32xf32, #tpu.memory_space<vmem>>, vector<4x32xf32>
    %cst_144 = arith.constant dense<0.000000e+00> : vector<2x32xf32>
    %96 = tpu.matmul %94, %95, %cst_144 {dimension_numbers = #tpu.dot_dimension_numbers<[1], [0], [0], [1], [0, 0, 1, 1], [], []>} : vector<2x4xf32>, vector<4x32xf32>, vector<2x32xf32> -> vector<2x32xf32>
    %97 = arith.addf %90, %96 : vector<2x32xf32>
    %98 = arith.negf %97 : vector<2x32xf32>
    %99 = math.exp %98 : vector<2x32xf32>
    %cst_145 = arith.constant 1.000000e+00 : f32
    %100 = vector.broadcast %cst_145 : f32 to vector<2x32xf32>
    %101 = arith.addf %100, %99 : vector<2x32xf32>
    %102 = arith.divf %100, %101 : vector<2x32xf32>
    %103 = vector.shape_cast %102 : vector<2x32xf32> to vector<2x1x32xf32>
    %104 = vector.broadcast %103 : vector<2x1x32xf32> to vector<2x256x32xf32>
    %105 = arith.mulf %80, %104 : vector<2x256x32xf32>
    %cst_146 = arith.constant dense<0.000000e+00> : vector<2x256xf32>
    %106 = vector.multi_reduction <add>, %105, %cst_146 [2] : vector<2x256x32xf32> to vector<2x256xf32>
    %cst_147 = arith.constant 3.200000e+01 : f32
    %107 = vector.broadcast %cst_147 : f32 to vector<2x256xf32>
    %108 = arith.divf %106, %107 : vector<2x256xf32>
    %cst_148 = arith.constant dense<0xFF800000> : vector<2x256xf32>
    %109 = vector.multi_reduction <maximumf>, %105, %cst_148 [2] : vector<2x256x32xf32> to vector<2x256xf32>
    %c0_149 = arith.constant 0 : index
    %c0_150 = arith.constant 0 : index
    %110 = vector.load %arg9[%c0_149, %c0_150] : memref<256x256xf32, #tpu.memory_space<vmem>>, vector<256x256xf32>
    %cst_151 = arith.constant dense<0.000000e+00> : vector<2x256xf32>
    %111 = tpu.matmul %108, %110, %cst_151 {dimension_numbers = #tpu.dot_dimension_numbers<[1], [0], [0], [1], [0, 0, 1, 1], [], []>} : vector<2x256xf32>, vector<256x256xf32>, vector<2x256xf32> -> vector<2x256xf32>
    %c0_152 = arith.constant 0 : index
    %c0_153 = arith.constant 0 : index
    %112 = vector.load %arg10[%c0_152, %c0_153] : memref<256x256xf32, #tpu.memory_space<vmem>>, vector<256x256xf32>
    %cst_154 = arith.constant dense<0.000000e+00> : vector<2x256xf32>
    %113 = tpu.matmul %109, %112, %cst_154 {dimension_numbers = #tpu.dot_dimension_numbers<[1], [0], [0], [1], [0, 0, 1, 1], [], []>} : vector<2x256xf32>, vector<256x256xf32>, vector<2x256xf32> -> vector<2x256xf32>
    %114 = arith.addf %111, %113 : vector<2x256xf32>
    %115 = arith.negf %114 : vector<2x256xf32>
    %116 = math.exp %115 : vector<2x256xf32>
    %cst_155 = arith.constant 1.000000e+00 : f32
    %117 = vector.broadcast %cst_155 : f32 to vector<2x256xf32>
    %118 = arith.addf %117, %116 : vector<2x256xf32>
    %119 = arith.divf %117, %118 : vector<2x256xf32>
    %120 = vector.shape_cast %119 : vector<2x256xf32> to vector<2x256x1xf32>
    %121 = vector.broadcast %120 : vector<2x256x1xf32> to vector<2x256x32xf32>
    %122 = arith.mulf %105, %121 : vector<2x256x32xf32>
    %cst_156 = arith.constant dense<0.000000e+00> : vector<2x32xf32>
    %123 = vector.multi_reduction <add>, %122, %cst_156 [1] : vector<2x256x32xf32> to vector<2x32xf32>
    %cst_157 = arith.constant 2.560000e+02 : f32
    %124 = vector.broadcast %cst_157 : f32 to vector<2x32xf32>
    %125 = arith.divf %123, %124 : vector<2x32xf32>
    %c0_158 = arith.constant 0 : index
    %c0_159 = arith.constant 0 : index
    %126 = vector.load %arg2[%c0_158, %c0_159] : memref<2x8xf32, #tpu.memory_space<vmem>>, vector<2x8xf32>
    %c0_160 = arith.constant 0 : index
    %c0_161 = arith.constant 0 : index
    %127 = vector.load %arg11[%c0_160, %c0_161] : memref<40x32xf32, #tpu.memory_space<vmem>>, vector<32x32xf32>
    %cst_162 = arith.constant dense<0.000000e+00> : vector<2x32xf32>
    %128 = tpu.matmul %125, %127, %cst_162 {dimension_numbers = #tpu.dot_dimension_numbers<[1], [0], [0], [1], [0, 0, 1, 1], [], []>} : vector<2x32xf32>, vector<32x32xf32>, vector<2x32xf32> -> vector<2x32xf32>
    %c32_163 = arith.constant 32 : index
    %c0_164 = arith.constant 0 : index
    %129 = vector.load %arg11[%c32_163, %c0_164] : memref<40x32xf32, #tpu.memory_space<vmem>>, vector<8x32xf32>
    %cst_165 = arith.constant dense<0.000000e+00> : vector<2x32xf32>
    %130 = tpu.matmul %126, %129, %cst_165 {dimension_numbers = #tpu.dot_dimension_numbers<[1], [0], [0], [1], [0, 0, 1, 1], [], []>} : vector<2x8xf32>, vector<8x32xf32>, vector<2x32xf32> -> vector<2x32xf32>
    %131 = arith.addf %128, %130 : vector<2x32xf32>
    %c0_166 = arith.constant 0 : index
    %c0_167 = arith.constant 0 : index
    %132 = vector.load %arg12[%c0_166, %c0_167] : memref<1x32xf32, #tpu.memory_space<vmem>>, vector<1x32xf32>
    %133 = vector.broadcast %132 : vector<1x32xf32> to vector<2x32xf32>
    %134 = arith.addf %131, %133 : vector<2x32xf32>
    %cst_168 = arith.constant 0.000000e+00 : f32
    %135 = vector.broadcast %cst_168 : f32 to vector<2x32xf32>
    %136 = arith.maximumf %134, %135 : vector<2x32xf32>
    %c0_169 = arith.constant 0 : index
    %c0_170 = arith.constant 0 : index
    %137 = vector.load %arg13[%c0_169, %c0_170] : memref<32x3xf32, #tpu.memory_space<vmem>>, vector<32x3xf32>
    %cst_171 = arith.constant dense<0.000000e+00> : vector<2x3xf32>
    %138 = tpu.matmul %136, %137, %cst_171 {dimension_numbers = #tpu.dot_dimension_numbers<[1], [0], [0], [1], [0, 0, 1, 1], [], []>} : vector<2x32xf32>, vector<32x3xf32>, vector<2x3xf32> -> vector<2x3xf32>
    %c0_172 = arith.constant 0 : index
    %c0_173 = arith.constant 0 : index
    %139 = vector.load %arg14[%c0_172, %c0_173] : memref<1x3xf32, #tpu.memory_space<vmem>>, vector<1x3xf32>
    %140 = vector.broadcast %139 : vector<1x3xf32> to vector<2x3xf32>
    %141 = arith.addf %138, %140 : vector<2x3xf32>
    %c0_174 = arith.constant 0 : index
    %c0_175 = arith.constant 0 : index
    %142 = vector.load %arg15[%c0_174, %c0_175] : memref<2x3xf32, #tpu.memory_space<vmem>>, vector<2x3xf32>
    tpu.vector_store %arg15[%c0_174, %c0_175], %141 {strides = array<i32>} : memref<2x3xf32, #tpu.memory_space<vmem>>, vector<2x3xf32>,
    return
  }
  func.func @transform_0(%arg0: i32) -> (i32, i32, i32, i32) {
    %c0_i32 = arith.constant 0 : i32
    %c0_i32_0 = arith.constant 0 : i32
    %c0_i32_1 = arith.constant 0 : i32
    %c0_i32_2 = arith.constant 0 : i32
    %c0_i32_3 = arith.constant 0 : i32
    return %c0_i32, %c0_i32_0, %c0_i32_1, %c0_i32_2 : i32, i32, i32, i32
  }
  func.func @transform_1(%arg0: i32) -> (i32, i32) {
    %c0_i32 = arith.constant 0 : i32
    %c0_i32_0 = arith.constant 0 : i32
    %c0_i32_1 = arith.constant 0 : i32
    return %c0_i32, %c0_i32_0 : i32, i32
  }
  func.func @transform_2(%arg0: i32) -> (i32, i32) {
    %c0_i32 = arith.constant 0 : i32
    %c0_i32_0 = arith.constant 0 : i32
    %c0_i32_1 = arith.constant 0 : i32
    return %c0_i32, %c0_i32_0 : i32, i32
  }
  func.func @transform_3(%arg0: i32) -> (i32, i32) {
    %c0_i32 = arith.constant 0 : i32
    %c0_i32_0 = arith.constant 0 : i32
    %c0_i32_1 = arith.constant 0 : i32
    return %c0_i32, %c0_i32_0 : i32, i32
  }
  func.func @transform_4(%arg0: i32) -> (i32, i32) {
    %c0_i32 = arith.constant 0 : i32
    %c0_i32_0 = arith.constant 0 : i32
    %c0_i32_1 = arith.constant 0 : i32
    return %c0_i32, %c0_i32_0 : i32, i32
  }
  func.func @transform_5(%arg0: i32) -> (i32, i32) {
    %c0_i32 = arith.constant 0 : i32
    %c0_i32_0 = arith.constant 0 : i32
    %c0_i32_1 = arith.constant 0 : i32
    return %c0_i32, %c0_i32_0 : i32, i32
  }
  func.func @transform_6(%arg0: i32) -> (i32, i32) {
    %c0_i32 = arith.constant 0 : i32
    %c0_i32_0 = arith.constant 0 : i32
    %c0_i32_1 = arith.constant 0 : i32
    return %c0_i32, %c0_i32_0 : i32, i32
  }
  func.func @transform_7(%arg0: i32) -> (i32, i32) {
    %c0_i32 = arith.constant 0 : i32
    %c0_i32_0 = arith.constant 0 : i32
    %c0_i32_1 = arith.constant 0 : i32
    return %c0_i32, %c0_i32_0 : i32, i32
  }
  func.func @transform_8(%arg0: i32) -> (i32, i32) {
    %c0_i32 = arith.constant 0 : i32
    %c0_i32_0 = arith.constant 0 : i32
    %c0_i32_1 = arith.constant 0 : i32
    return %c0_i32, %c0_i32_0 : i32, i32
  }
  func.func @transform_9(%arg0: i32) -> (i32, i32) {
    %c0_i32 = arith.constant 0 : i32
    %c0_i32_0 = arith.constant 0 : i32
    %c0_i32_1 = arith.constant 0 : i32
    return %c0_i32, %c0_i32_0 : i32, i32
  }
  func.func @transform_10(%arg0: i32) -> (i32, i32) {
    %c0_i32 = arith.constant 0 : i32
    %c0_i32_0 = arith.constant 0 : i32
    %c0_i32_1 = arith.constant 0 : i32
    return %c0_i32, %c0_i32_0 : i32, i32
  }
  func.func @transform_11(%arg0: i32) -> (i32, i32) {
    %c0_i32 = arith.constant 0 : i32
    %c0_i32_0 = arith.constant 0 : i32
    %c0_i32_1 = arith.constant 0 : i32
    return %c0_i32, %c0_i32_0 : i32, i32
  }
  func.func @transform_12(%arg0: i32) -> (i32, i32) {
    %c0_i32 = arith.constant 0 : i32
    %c0_i32_0 = arith.constant 0 : i32
    %c0_i32_1 = arith.constant 0 : i32
    return %c0_i32, %c0_i32_0 : i32, i32
  }
  func.func @transform_13(%arg0: i32) -> (i32, i32) {
    %c0_i32 = arith.constant 0 : i32
    %c0_i32_0 = arith.constant 0 : i32
    %c0_i32_1 = arith.constant 0 : i32
    return %c0_i32, %c0_i32_0 : i32, i32
  }
  func.func @transform_14(%arg0: i32) -> (i32, i32) {
    %c0_i32 = arith.constant 0 : i32
    %c0_i32_0 = arith.constant 0 : i32
    %c0_i32_1 = arith.constant 0 : i32
    return %c0_i32, %c0_i32_0 : i32, i32
  }
}

</mosaic_0001>

<llo_original>
// kernel: tpu_custom_call.1
$region0: #{tpu_custom_call.1}
  #allocation0 [shape = 'u32[]', space=smem, size = 0x4, offset = 0x4, fixed_abs, tag = 'smem constant byte address 0x4 - core index']
  #allocation1 [shape = 'u32[144,128]{1,0:T(1,128)}', space=vmem, size = 0x12000, scoped, tag = 'internal scratch']
  #allocation2 [shape = 'f32[2,18,18,4]{3,2,1,0:T(8,128)}', space=vmem, size = 0x6c000, scoped, tag = 'scratch operand']
  #allocation3 [shape = 'f32[2,18,18,16]{3,2,1,0:T(8,128)}', space=vmem, size = 0x6c000, scoped, tag = 'scratch operand']
  #allocation4 [shape = 'f32[512,36]{1,0:T(8,128)}', space=vmem, size = 0x40000, scoped, tag = 'scratch operand']
  #allocation5 [shape = 'f32[512,144]{1,0:T(8,128)}', space=vmem, size = 0x80000, scoped, tag = 'scratch operand']
  %s0 = inlined_call_operand.vmem [shape: f32[2,16,16,4], index: 0, kind: input, shape index: {}]
  %s1 = inlined_call_operand.vmem [shape: f32[2,8], index: 1, kind: input, shape index: {}]
  %s2 = inlined_call_operand.vmem [shape: bf16[36,16], index: 2, kind: input, shape index: {}]
  %s3 = inlined_call_operand.vmem [shape: f32[1,16], index: 3, kind: input, shape index: {}]
  %s4 = inlined_call_operand.vmem [shape: bf16[144,32], index: 4, kind: input, shape index: {}]
  %s5 = inlined_call_operand.vmem [shape: f32[1,32], index: 5, kind: input, shape index: {}]
  %s6 = inlined_call_operand.vmem [shape: f32[32,4], index: 6, kind: input, shape index: {}]
  %s7 = inlined_call_operand.vmem [shape: f32[4,32], index: 7, kind: input, shape index: {}]
  %s8 = inlined_call_operand.vmem [shape: f32[256,256], index: 8, kind: input, shape index: {}]
  %s9 = inlined_call_operand.hbm [shape: f32[256,256], index: 9, kind: input, shape index: {}]
  %s10 = inlined_call_operand.vmem [shape: f32[40,32], index: 10, kind: input, shape index: {}]
  %s11 = inlined_call_operand.vmem [shape: f32[1,32], index: 11, kind: input, shape index: {}]
  %s12 = inlined_call_operand.vmem [shape: f32[32,3], index: 12, kind: input, shape index: {}]
  %s13 = inlined_call_operand.vmem [shape: f32[1,3], index: 13, kind: input, shape index: {}]
  %s14 = inlined_call_operand.hbm [shape: f32[2,3], index: 14, kind: output, shape index: {}]
  %s15 = sld [smem:[#allocation0]]
  $region70: #{tpu_custom_call.1} parent=0
    _
  %s17 = ssub.s32 1, %s15
  %s18 = scalar_select 0, %s17, %s15
  $region1: #{tpu_custom_call.1} parent=0
    #allocation6 [shape = 'u8[262144]{0}', space=vmem, size = 0x40000, scoped, tag = 'input window, operand 9, single buffered']
    #allocation7 [shape = 's32[1]{0}', space=sflag, size = 0x4, scoped, tag = 'scoped memory for tpu_custom_call.1']
    #allocation8 [shape = 's32[1]{0}', space=sflag, size = 0x4, scoped, tag = 'scoped memory for tpu_custom_call.1']
    #allocation9 [shape = 'u8[1024]{0}', space=vmem, size = 0x400, scoped, tag = 'output window, operand 0, single buffered']
    %19 = vsyncpa [#allocation7], 0
    %20 = vsyncpa [#allocation8], 0
    // Predicated region
    $region2: #{tpu_custom_call.1} parent=1 // pred_check
      _
    $region3: #{tpu_custom_call.1} parent=1 // pred_check_branch
      %22 = sbr.rel (0) target = $region5
    $region4: #{tpu_custom_call.1} parent=1 // pred_region
      _
    $region5: #{tpu_custom_call.1} parent=1 // pred_fallthru
      _
    // Predicated region
    $region6: #{tpu_custom_call.1} parent=1 // pred_check
      _
    $region7: #{tpu_custom_call.1} parent=1 // pred_check_branch
      %24 = sbr.rel (0) target = $region9
    $region8: #{tpu_custom_call.1} parent=1 // pred_region
      _
    $region9: #{tpu_custom_call.1} parent=1 // pred_fallthru
      _
    // Predicated region
    $region10: #{tpu_custom_call.1} parent=1 // pred_check
      _
    $region11: #{tpu_custom_call.1} parent=1 // pred_check_branch
      %26 = sbr.rel (0) target = $region13
    $region12: #{tpu_custom_call.1} parent=1 // pred_region
      _
    $region13: #{tpu_custom_call.1} parent=1 // pred_fallthru
      _
    // Predicated region
    $region14: #{tpu_custom_call.1} parent=1 // pred_check
      _
    $region15: #{tpu_custom_call.1} parent=1 // pred_check_branch
      %28 = sbr.rel (0) target = $region17
    $region16: #{tpu_custom_call.1} parent=1 // pred_region
      _
    $region17: #{tpu_custom_call.1} parent=1 // pred_fallthru
      _
    // Predicated region
    $region18: #{tpu_custom_call.1} parent=1 // pred_check
      _
    $region19: #{tpu_custom_call.1} parent=1 // pred_check_branch
      %30 = sbr.rel (0) target = $region21
    $region20: #{tpu_custom_call.1} parent=1 // pred_region
      _
    $region21: #{tpu_custom_call.1} parent=1 // pred_fallthru
      _
    // Predicated region
    $region22: #{tpu_custom_call.1} parent=1 // pred_check
      _
    $region23: #{tpu_custom_call.1} parent=1 // pred_check_branch
      %32 = sbr.rel (0) target = $region25
    $region24: #{tpu_custom_call.1} parent=1 // pred_region
      _
    $region25: #{tpu_custom_call.1} parent=1 // pred_fallthru
      _
    // Predicated region
    $region26: #{tpu_custom_call.1} parent=1 // pred_check
      _
    $region27: #{tpu_custom_call.1} parent=1 // pred_check_branch
      %34 = sbr.rel (0) target = $region29
    $region28: #{tpu_custom_call.1} parent=1 // pred_region
      _
    $region29: #{tpu_custom_call.1} parent=1 // pred_fallthru
      _
    // Predicated region
    $region30: #{tpu_custom_call.1} parent=1 // pred_check
      _
    $region31: #{tpu_custom_call.1} parent=1 // pred_check_branch
      %36 = sbr.rel (0) target = $region33
    $region32: #{tpu_custom_call.1} parent=1 // pred_region
      _
    $region33: #{tpu_custom_call.1} parent=1 // pred_fallthru
      _
    // Predicated region
    $region34: #{tpu_custom_call.1} parent=1 // pred_check
      _
    $region35: #{tpu_custom_call.1} parent=1 // pred_check_branch
      %38 = sbr.rel (0) target = $region37
    $region36: #{tpu_custom_call.1} parent=1 // pred_region
      _
    $region37: #{tpu_custom_call.1} parent=1 // pred_fallthru
      _
    // Predicated region
    $region38: #{tpu_custom_call.1} parent=1 // pred_check
      _
    $region39: #{tpu_custom_call.1} parent=1 // pred_check_branch
      %40 = sbr.rel (0) target = $region41
    $region40: #{tpu_custom_call.1} parent=1 // pred_region
      %s42 = ssub.s32 8192, 8192
      %43 = vsyncadd [#allocation7], %s42
      %s44 = sshll.u32 [#allocation6], 4
      %s45 = int_to_ptr.vmem [resolvable:$true] %s44
      %50 = dma.hbm_to_vmem [thread:$0]  %s9, 8192, %s45, [#allocation7], 256, 256, 16
    $region41: #{tpu_custom_call.1} parent=1 // pred_fallthru
      _
    // Predicated region
    $region42: #{tpu_custom_call.1} parent=1 // pred_check
      _
    $region43: #{tpu_custom_call.1} parent=1 // pred_check_branch
      %52 = sbr.rel (0) target = $region45
    $region44: #{tpu_custom_call.1} parent=1 // pred_region
      _
    $region45: #{tpu_custom_call.1} parent=1 // pred_fallthru
      _
    // Predicated region
    $region46: #{tpu_custom_call.1} parent=1 // pred_check
      _
    $region47: #{tpu_custom_call.1} parent=1 // pred_check_branch
      %54 = sbr.rel (0) target = $region49
    $region48: #{tpu_custom_call.1} parent=1 // pred_region
      _
    $region49: #{tpu_custom_call.1} parent=1 // pred_fallthru
      _
    // Predicated region
    $region50: #{tpu_custom_call.1} parent=1 // pred_check
      _
    $region51: #{tpu_custom_call.1} parent=1 // pred_check_branch
      %56 = sbr.rel (0) target = $region53
    $region52: #{tpu_custom_call.1} parent=1 // pred_region
      _
    $region53: #{tpu_custom_call.1} parent=1 // pred_fallthru
      _
    // Predicated region
    $region54: #{tpu_custom_call.1} parent=1 // pred_check
      _
    $region55: #{tpu_custom_call.1} parent=1 // pred_check_branch
      %58 = sbr.rel (0) target = $region57
    $region56: #{tpu_custom_call.1} parent=1 // pred_region
      _
    $region57: #{tpu_custom_call.1} parent=1 // pred_fallthru
      _
    // Predicated region
    $region58: #{tpu_custom_call.1} parent=1 // pred_check
      _
    $region59: #{tpu_custom_call.1} parent=1 // pred_check_branch
      %60 = sbr.rel (0) target = $region61
    $region60: #{tpu_custom_call.1} parent=1 // pred_region
      %61 = dma.done [#allocation7], 8192
    $region61: #{tpu_custom_call.1} parent=1 // pred_fallthru
      _
    %vm63 = vcmask 31744
    %64 = vst.msk [vmem:[#allocation2] sm:$0xff] %vm63, 0.0
    %65 = vst.msk [vmem:[#allocation2 + $0x8] sm:$0xff] %vm63, 0.0
    %vm66 = vcmask 25600
    %67 = vst.msk [vmem:[#allocation2 + $0x10] sm:$0x3] %vm66, 0.0
    %68 = vst.msk [vmem:[#allocation2 + $0x18] sm:$0xff] %vm63, 0.0
    %69 = vst.msk [vmem:[#allocation2 + $0x20] sm:$0xff] %vm63, 0.0
    %70 = vst.msk [vmem:[#allocation2 + $0x28] sm:$0x3] %vm66, 0.0
    %71 = vst.msk [vmem:[#allocation2 + $0x30] sm:$0xff] %vm63, 0.0
    %72 = vst.msk [vmem:[#allocation2 + $0x38] sm:$0xff] %vm63, 0.0
    %73 = vst.msk [vmem:[#allocation2 + $0x40] sm:$0x3] %vm66, 0.0
    %74 = vst.msk [vmem:[#allocation2 + $0x48] sm:$0xff] %vm63, 0.0
    %75 = vst.msk [vmem:[#allocation2 + $0x50] sm:$0xff] %vm63, 0.0
    %76 = vst.msk [vmem:[#allocation2 + $0x58] sm:$0x3] %vm66, 0.0
    %77 = vst.msk [vmem:[#allocation2 + $0x60] sm:$0xff] %vm63, 0.0
    %78 = vst.msk [vmem:[#allocation2 + $0x68] sm:$0xff] %vm63, 0.0
    %79 = vst.msk [vmem:[#allocation2 + $0x70] sm:$0x3] %vm66, 0.0
    %80 = vst.msk [vmem:[#allocation2 + $0x78] sm:$0xff] %vm63, 0.0
    %81 = vst.msk [vmem:[#allocation2 + $0x80] sm:$0xff] %vm63, 0.0
    %82 = vst.msk [vmem:[#allocation2 + $0x88] sm:$0x3] %vm66, 0.0
    %83 = vst.msk [vmem:[#allocation2 + $0x90] sm:$0xff] %vm63, 0.0
    %84 = vst.msk [vmem:[#allocation2 + $0x98] sm:$0xff] %vm63, 0.0
    %85 = vst.msk [vmem:[#allocation2 + $0xa0] sm:$0x3] %vm66, 0.0
    %86 = vst.msk [vmem:[#allocation2 + $0xa8] sm:$0xff] %vm63, 0.0
    %87 = vst.msk [vmem:[#allocation2 + $0xb0] sm:$0xff] %vm63, 0.0
    %88 = vst.msk [vmem:[#allocation2 + $0xb8] sm:$0x3] %vm66, 0.0
    %89 = vst.msk [vmem:[#allocation2 + $0xc0] sm:$0xff] %vm63, 0.0
    %90 = vst.msk [vmem:[#allocation2 + $0xc8] sm:$0xff] %vm63, 0.0
    %91 = vst.msk [vmem:[#allocation2 + $0xd0] sm:$0x3] %vm66, 0.0
    %92 = vst.msk [vmem:[#allocation2 + $0xd8] sm:$0xff] %vm63, 0.0
    %93 = vst.msk [vmem:[#allocation2 + $0xe0] sm:$0xff] %vm63, 0.0
    %94 = vst.msk [vmem:[#allocation2 + $0xe8] sm:$0x3] %vm66, 0.0
    %95 = vst.msk [vmem:[#allocation2 + $0xf0] sm:$0xff] %vm63, 0.0
    %96 = vst.msk [vmem:[#allocation2 + $0xf8] sm:$0xff] %vm63, 0.0
    %97 = vst.msk [vmem:[#allocation2 + $0x100] sm:$0x3] %vm66, 0.0
    %98 = vst.msk [vmem:[#allocation2 + $0x108] sm:$0xff] %vm63, 0.0
    %99 = vst.msk [vmem:[#allocation2 + $0x110] sm:$0xff] %vm63, 0.0
    %100 = vst.msk [vmem:[#allocation2 + $0x118] sm:$0x3] %vm66, 0.0
    %101 = vst.msk [vmem:[#allocation2 + $0x120] sm:$0xff] %vm63, 0.0
    %102 = vst.msk [vmem:[#allocation2 + $0x128] sm:$0xff] %vm63, 0.0
    %103 = vst.msk [vmem:[#allocation2 + $0x130] sm:$0x3] %vm66, 0.0
    %104 = vst.msk [vmem:[#allocation2 + $0x138] sm:$0xff] %vm63, 0.0
    %105 = vst.msk [vmem:[#allocation2 + $0x140] sm:$0xff] %vm63, 0.0
    %106 = vst.msk [vmem:[#allocation2 + $0x148] sm:$0x3] %vm66, 0.0
    %107 = vst.msk [vmem:[#allocation2 + $0x150] sm:$0xff] %vm63, 0.0
    %108 = vst.msk [vmem:[#allocation2 + $0x158] sm:$0xff] %vm63, 0.0
    %109 = vst.msk [vmem:[#allocation2 + $0x160] sm:$0x3] %vm66, 0.0
    %110 = vst.msk [vmem:[#allocation2 + $0x168] sm:$0xff] %vm63, 0.0
    %111 = vst.msk [vmem:[#allocation2 + $0x170] sm:$0xff] %vm63, 0.0
    %112 = vst.msk [vmem:[#allocation2 + $0x178] sm:$0x3] %vm66, 0.0
    %113 = vst.msk [vmem:[#allocation2 + $0x180] sm:$0xff] %vm63, 0.0
    %114 = vst.msk [vmem:[#allocation2 + $0x188] sm:$0xff] %vm63, 0.0
    %115 = vst.msk [vmem:[#allocation2 + $0x190] sm:$0x3] %vm66, 0.0
    %116 = vst.msk [vmem:[#allocation2 + $0x198] sm:$0xff] %vm63, 0.0
    %117 = vst.msk [vmem:[#allocation2 + $0x1a0] sm:$0xff] %vm63, 0.0
    %118 = vst.msk [vmem:[#allocation2 + $0x1a8] sm:$0x3] %vm66, 0.0
    %119 = vst.msk [vmem:[#allocation2 + $0x1b0] sm:$0xff] %vm63, 0.0
    %120 = vst.msk [vmem:[#allocation2 + $0x1b8] sm:$0xff] %vm63, 0.0
    %121 = vst.msk [vmem:[#allocation2 + $0x1c0] sm:$0x3] %vm66, 0.0
    %122 = vst.msk [vmem:[#allocation2 + $0x1c8] sm:$0xff] %vm63, 0.0
    %123 = vst.msk [vmem:[#allocation2 + $0x1d0] sm:$0xff] %vm63, 0.0
    %124 = vst.msk [vmem:[#allocation2 + $0x1d8] sm:$0x3] %vm66, 0.0
    %125 = vst.msk [vmem:[#allocation2 + $0x1e0] sm:$0xff] %vm63, 0.0
    %126 = vst.msk [vmem:[#allocation2 + $0x1e8] sm:$0xff] %vm63, 0.0
    %127 = vst.msk [vmem:[#allocation2 + $0x1f0] sm:$0x3] %vm66, 0.0
    %128 = vst.msk [vmem:[#allocation2 + $0x1f8] sm:$0xff] %vm63, 0.0
    %129 = vst.msk [vmem:[#allocation2 + $0x200] sm:$0xff] %vm63, 0.0
    %130 = vst.msk [vmem:[#allocation2 + $0x208] sm:$0x3] %vm66, 0.0
    %131 = vst.msk [vmem:[#allocation2 + $0x210] sm:$0xff] %vm63, 0.0
    %132 = vst.msk [vmem:[#allocation2 + $0x218] sm:$0xff] %vm63, 0.0
    %133 = vst.msk [vmem:[#allocation2 + $0x220] sm:$0x3] %vm66, 0.0
    %134 = vst.msk [vmem:[#allocation2 + $0x228] sm:$0xff] %vm63, 0.0
    %135 = vst.msk [vmem:[#allocation2 + $0x230] sm:$0xff] %vm63, 0.0
    %136 = vst.msk [vmem:[#allocation2 + $0x238] sm:$0x3] %vm66, 0.0
    %137 = vst.msk [vmem:[#allocation2 + $0x240] sm:$0xff] %vm63, 0.0
    %138 = vst.msk [vmem:[#allocation2 + $0x248] sm:$0xff] %vm63, 0.0
    %139 = vst.msk [vmem:[#allocation2 + $0x250] sm:$0x3] %vm66, 0.0
    %140 = vst.msk [vmem:[#allocation2 + $0x258] sm:$0xff] %vm63, 0.0
    %141 = vst.msk [vmem:[#allocation2 + $0x260] sm:$0xff] %vm63, 0.0
    %142 = vst.msk [vmem:[#allocation2 + $0x268] sm:$0x3] %vm66, 0.0
    %143 = vst.msk [vmem:[#allocation2 + $0x270] sm:$0xff] %vm63, 0.0
    %144 = vst.msk [vmem:[#allocation2 + $0x278] sm:$0xff] %vm63, 0.0
    %145 = vst.msk [vmem:[#allocation2 + $0x280] sm:$0x3] %vm66, 0.0
    %146 = vst.msk [vmem:[#allocation2 + $0x288] sm:$0xff] %vm63, 0.0
    %147 = vst.msk [vmem:[#allocation2 + $0x290] sm:$0xff] %vm63, 0.0
    %148 = vst.msk [vmem:[#allocation2 + $0x298] sm:$0x3] %vm66, 0.0
    %149 = vst.msk [vmem:[#allocation2 + $0x2a0] sm:$0xff] %vm63, 0.0
    %150 = vst.msk [vmem:[#allocation2 + $0x2a8] sm:$0xff] %vm63, 0.0
    %151 = vst.msk [vmem:[#allocation2 + $0x2b0] sm:$0x3] %vm66, 0.0
    %152 = vst.msk [vmem:[#allocation2 + $0x2b8] sm:$0xff] %vm63, 0.0
    %153 = vst.msk [vmem:[#allocation2 + $0x2c0] sm:$0xff] %vm63, 0.0
    %154 = vst.msk [vmem:[#allocation2 + $0x2c8] sm:$0x3] %vm66, 0.0
    %155 = vst.msk [vmem:[#allocation2 + $0x2d0] sm:$0xff] %vm63, 0.0
    %156 = vst.msk [vmem:[#allocation2 + $0x2d8] sm:$0xff] %vm63, 0.0
    %157 = vst.msk [vmem:[#allocation2 + $0x2e0] sm:$0x3] %vm66, 0.0
    %158 = vst.msk [vmem:[#allocation2 + $0x2e8] sm:$0xff] %vm63, 0.0
    %159 = vst.msk [vmem:[#allocation2 + $0x2f0] sm:$0xff] %vm63, 0.0
    %160 = vst.msk [vmem:[#allocation2 + $0x2f8] sm:$0x3] %vm66, 0.0
    %161 = vst.msk [vmem:[#allocation2 + $0x300] sm:$0xff] %vm63, 0.0
    %162 = vst.msk [vmem:[#allocation2 + $0x308] sm:$0xff] %vm63, 0.0
    %163 = vst.msk [vmem:[#allocation2 + $0x310] sm:$0x3] %vm66, 0.0
    %164 = vst.msk [vmem:[#allocation2 + $0x318] sm:$0xff] %vm63, 0.0
    %165 = vst.msk [vmem:[#allocation2 + $0x320] sm:$0xff] %vm63, 0.0
    %166 = vst.msk [vmem:[#allocation2 + $0x328] sm:$0x3] %vm66, 0.0
    %167 = vst.msk [vmem:[#allocation2 + $0x330] sm:$0xff] %vm63, 0.0
    %168 = vst.msk [vmem:[#allocation2 + $0x338] sm:$0xff] %vm63, 0.0
    %169 = vst.msk [vmem:[#allocation2 + $0x340] sm:$0x3] %vm66, 0.0
    %170 = vst.msk [vmem:[#allocation2 + $0x348] sm:$0xff] %vm63, 0.0
    %171 = vst.msk [vmem:[#allocation2 + $0x350] sm:$0xff] %vm63, 0.0
    %172 = vst.msk [vmem:[#allocation2 + $0x358] sm:$0x3] %vm66, 0.0
    %v173 = vld [vmem:[%s0] sm:$0xff]
    %v174 = vld [vmem:[%s0 + $0x8] sm:$0xff]
    %v175 = vld [vmem:[%s0 + $0x10] sm:$0xff]
    %v176 = vld [vmem:[%s0 + $0x18] sm:$0xff]
    %v177 = vld [vmem:[%s0 + $0x20] sm:$0xff]
    %v178 = vld [vmem:[%s0 + $0x28] sm:$0xff]
    %v179 = vld [vmem:[%s0 + $0x30] sm:$0xff]
    %v180 = vld [vmem:[%s0 + $0x38] sm:$0xff]
    %v181 = vld [vmem:[%s0 + $0x40] sm:$0xff]
    %v182 = vld [vmem:[%s0 + $0x48] sm:$0xff]
    %v183 = vld [vmem:[%s0 + $0x50] sm:$0xff]
    %v184 = vld [vmem:[%s0 + $0x58] sm:$0xff]
    %v185 = vld [vmem:[%s0 + $0x60] sm:$0xff]
    %v186 = vld [vmem:[%s0 + $0x68] sm:$0xff]
    %v187 = vld [vmem:[%s0 + $0x70] sm:$0xff]
    %v188 = vld [vmem:[%s0 + $0x78] sm:$0xff]
    %v189 = vld [vmem:[%s0 + $0x80] sm:$0xff]
    %v190 = vld [vmem:[%s0 + $0x88] sm:$0xff]
    %v191 = vld [vmem:[%s0 + $0x90] sm:$0xff]
    %v192 = vld [vmem:[%s0 + $0x98] sm:$0xff]
    %v193 = vld [vmem:[%s0 + $0xa0] sm:$0xff]
    %v194 = vld [vmem:[%s0 + $0xa8] sm:$0xff]
    %v195 = vld [vmem:[%s0 + $0xb0] sm:$0xff]
    %v196 = vld [vmem:[%s0 + $0xb8] sm:$0xff]
    %v197 = vld [vmem:[%s0 + $0xc0] sm:$0xff]
    %v198 = vld [vmem:[%s0 + $0xc8] sm:$0xff]
    %v199 = vld [vmem:[%s0 + $0xd0] sm:$0xff]
    %v200 = vld [vmem:[%s0 + $0xd8] sm:$0xff]
    %v201 = vld [vmem:[%s0 + $0xe0] sm:$0xff]
    %v202 = vld [vmem:[%s0 + $0xe8] sm:$0xff]
    %v203 = vld [vmem:[%s0 + $0xf0] sm:$0xff]
    %v204 = vld [vmem:[%s0 + $0xf8] sm:$0xff]
    %v205 = vld [vmem:[%s0 + $0x100] sm:$0xff]
    %v206 = vld [vmem:[%s0 + $0x108] sm:$0xff]
    %v207 = vld [vmem:[%s0 + $0x110] sm:$0xff]
    %v208 = vld [vmem:[%s0 + $0x118] sm:$0xff]
    %v209 = vld [vmem:[%s0 + $0x120] sm:$0xff]
    %v210 = vld [vmem:[%s0 + $0x128] sm:$0xff]
    %v211 = vld [vmem:[%s0 + $0x130] sm:$0xff]
    %v212 = vld [vmem:[%s0 + $0x138] sm:$0xff]
    %v213 = vld [vmem:[%s0 + $0x140] sm:$0xff]
    %v214 = vld [vmem:[%s0 + $0x148] sm:$0xff]
    %v215 = vld [vmem:[%s0 + $0x150] sm:$0xff]
    %v216 = vld [vmem:[%s0 + $0x158] sm:$0xff]
    %v217 = vld [vmem:[%s0 + $0x160] sm:$0xff]
    %v218 = vld [vmem:[%s0 + $0x168] sm:$0xff]
    %v219 = vld [vmem:[%s0 + $0x170] sm:$0xff]
    %v220 = vld [vmem:[%s0 + $0x178] sm:$0xff]
    %v221 = vld [vmem:[%s0 + $0x180] sm:$0xff]
    %v222 = vld [vmem:[%s0 + $0x188] sm:$0xff]
    %v223 = vld [vmem:[%s0 + $0x190] sm:$0xff]
    %v224 = vld [vmem:[%s0 + $0x198] sm:$0xff]
    %v225 = vld [vmem:[%s0 + $0x1a0] sm:$0xff]
    %v226 = vld [vmem:[%s0 + $0x1a8] sm:$0xff]
    %v227 = vld [vmem:[%s0 + $0x1b0] sm:$0xff]
    %v228 = vld [vmem:[%s0 + $0x1b8] sm:$0xff]
    %v229 = vld [vmem:[%s0 + $0x1c0] sm:$0xff]
    %v230 = vld [vmem:[%s0 + $0x1c8] sm:$0xff]
    %v231 = vld [vmem:[%s0 + $0x1d0] sm:$0xff]
    %v232 = vld [vmem:[%s0 + $0x1d8] sm:$0xff]
    %v233 = vld [vmem:[%s0 + $0x1e0] sm:$0xff]
    %v234 = vld [vmem:[%s0 + $0x1e8] sm:$0xff]
    %v235 = vld [vmem:[%s0 + $0x1f0] sm:$0xff]
    %v236 = vld [vmem:[%s0 + $0x1f8] sm:$0xff]
    %s237 = scalar_lea.vmem [#allocation2], 24
    %238 = vst.msk [vmem:[%s237 + $0x1] sm:$0xff] %vm63, %v173
    %239 = vst.msk [vmem:[%s237 + $0x9] sm:$0xff] %vm63, %v174
    %240 = vst.msk [vmem:[%s237 + $0x19] sm:$0xff] %vm63, %v175
    %241 = vst.msk [vmem:[%s237 + $0x21] sm:$0xff] %vm63, %v176
    %242 = vst.msk [vmem:[%s237 + $0x31] sm:$0xff] %vm63, %v177
    %243 = vst.msk [vmem:[%s237 + $0x39] sm:$0xff] %vm63, %v178
    %244 = vst.msk [vmem:[%s237 + $0x49] sm:$0xff] %vm63, %v179
    %245 = vst.msk [vmem:[%s237 + $0x51] sm:$0xff] %vm63, %v180
    %246 = vst.msk [vmem:[%s237 + $0x61] sm:$0xff] %vm63, %v181
    %247 = vst.msk [vmem:[%s237 + $0x69] sm:$0xff] %vm63, %v182
    %248 = vst.msk [vmem:[%s237 + $0x79] sm:$0xff] %vm63, %v183
    %249 = vst.msk [vmem:[%s237 + $0x81] sm:$0xff] %vm63, %v184
    %250 = vst.msk [vmem:[%s237 + $0x91] sm:$0xff] %vm63, %v185
    %251 = vst.msk [vmem:[%s237 + $0x99] sm:$0xff] %vm63, %v186
    %252 = vst.msk [vmem:[%s237 + $0xa9] sm:$0xff] %vm63, %v187
    %253 = vst.msk [vmem:[%s237 + $0xb1] sm:$0xff] %vm63, %v188
    %254 = vst.msk [vmem:[%s237 + $0xc1] sm:$0xff] %vm63, %v189
    %255 = vst.msk [vmem:[%s237 + $0xc9] sm:$0xff] %vm63, %v190
    %256 = vst.msk [vmem:[%s237 + $0xd9] sm:$0xff] %vm63, %v191
    %257 = vst.msk [vmem:[%s237 + $0xe1] sm:$0xff] %vm63, %v192
    %258 = vst.msk [vmem:[%s237 + $0xf1] sm:$0xff] %vm63, %v193
    %259 = vst.msk [vmem:[%s237 + $0xf9] sm:$0xff] %vm63, %v194
    %260 = vst.msk [vmem:[%s237 + $0x109] sm:$0xff] %vm63, %v195
    %261 = vst.msk [vmem:[%s237 + $0x111] sm:$0xff] %vm63, %v196
    %262 = vst.msk [vmem:[%s237 + $0x121] sm:$0xff] %vm63, %v197
    %263 = vst.msk [vmem:[%s237 + $0x129] sm:$0xff] %vm63, %v198
    %264 = vst.msk [vmem:[%s237 + $0x139] sm:$0xff] %vm63, %v199
    %265 = vst.msk [vmem:[%s237 + $0x141] sm:$0xff] %vm63, %v200
    %266 = vst.msk [vmem:[%s237 + $0x151] sm:$0xff] %vm63, %v201
    %267 = vst.msk [vmem:[%s237 + $0x159] sm:$0xff] %vm63, %v202
    %268 = vst.msk [vmem:[%s237 + $0x169] sm:$0xff] %vm63, %v203
    %269 = vst.msk [vmem:[%s237 + $0x171] sm:$0xff] %vm63, %v204
    %270 = vst.msk [vmem:[%s237 + $0x1b1] sm:$0xff] %vm63, %v205
    %271 = vst.msk [vmem:[%s237 + $0x1b9] sm:$0xff] %vm63, %v206
    %272 = vst.msk [vmem:[%s237 + $0x1c9] sm:$0xff] %vm63, %v207
    %273 = vst.msk [vmem:[%s237 + $0x1d1] sm:$0xff] %vm63, %v208
    %274 = vst.msk [vmem:[%s237 + $0x1e1] sm:$0xff] %vm63, %v209
    %275 = vst.msk [vmem:[%s237 + $0x1e9] sm:$0xff] %vm63, %v210
    %276 = vst.msk [vmem:[%s237 + $0x1f9] sm:$0xff] %vm63, %v211
    %277 = vst.msk [vmem:[%s237 + $0x201] sm:$0xff] %vm63, %v212
    %278 = vst.msk [vmem:[%s237 + $0x211] sm:$0xff] %vm63, %v213
    %279 = vst.msk [vmem:[%s237 + $0x219] sm:$0xff] %vm63, %v214
    %280 = vst.msk [vmem:[%s237 + $0x229] sm:$0xff] %vm63, %v215
    %281 = vst.msk [vmem:[%s237 + $0x231] sm:$0xff] %vm63, %v216
    %282 = vst.msk [vmem:[%s237 + $0x241] sm:$0xff] %vm63, %v217
    %283 = vst.msk [vmem:[%s237 + $0x249] sm:$0xff] %vm63, %v218
    %284 = vst.msk [vmem:[%s237 + $0x259] sm:$0xff] %vm63, %v219
    %285 = vst.msk [vmem:[%s237 + $0x261] sm:$0xff] %vm63, %v220
    %286 = vst.msk [vmem:[%s237 + $0x271] sm:$0xff] %vm63, %v221
    %287 = vst.msk [vmem:[%s237 + $0x279] sm:$0xff] %vm63, %v222
    %288 = vst.msk [vmem:[%s237 + $0x289] sm:$0xff] %vm63, %v223
    %289 = vst.msk [vmem:[%s237 + $0x291] sm:$0xff] %vm63, %v224
    %290 = vst.msk [vmem:[%s237 + $0x2a1] sm:$0xff] %vm63, %v225
    %291 = vst.msk [vmem:[%s237 + $0x2a9] sm:$0xff] %vm63, %v226
    %292 = vst.msk [vmem:[%s237 + $0x2b9] sm:$0xff] %vm63, %v227
    %293 = vst.msk [vmem:[%s237 + $0x2c1] sm:$0xff] %vm63, %v228
    %294 = vst.msk [vmem:[%s237 + $0x2d1] sm:$0xff] %vm63, %v229
    %295 = vst.msk [vmem:[%s237 + $0x2d9] sm:$0xff] %vm63, %v230
    %296 = vst.msk [vmem:[%s237 + $0x2e9] sm:$0xff] %vm63, %v231
    %297 = vst.msk [vmem:[%s237 + $0x2f1] sm:$0xff] %vm63, %v232
    %298 = vst.msk [vmem:[%s237 + $0x301] sm:$0xff] %vm63, %v233
    %299 = vst.msk [vmem:[%s237 + $0x309] sm:$0xff] %vm63, %v234
    %300 = vst.msk [vmem:[%s237 + $0x319] sm:$0xff] %vm63, %v235
    %301 = vst.msk [vmem:[%s237 + $0x321] sm:$0xff] %vm63, %v236
    %v302 = vld [vmem:[#allocation2] sm:$0xff]
    %v303 = vld [vmem:[#allocation2 + $0x8] sm:$0xff]
    %v304 = vld [vmem:[#allocation2 + $0x18] sm:$0xff]
    %v305 = vld [vmem:[#allocation2 + $0x20] sm:$0xff]
    %v306 = vld [vmem:[#allocation2 + $0x30] sm:$0xff]
    %v307 = vld [vmem:[#allocation2 + $0x38] sm:$0xff]
    %v308 = vld [vmem:[#allocation2 + $0x48] sm:$0xff]
    %v309 = vld [vmem:[#allocation2 + $0x50] sm:$0xff]
    %v310 = vld [vmem:[#allocation2 + $0x60] sm:$0xff]
    %v311 = vld [vmem:[#allocation2 + $0x68] sm:$0xff]
    %v312 = vld [vmem:[#allocation2 + $0x78] sm:$0xff]
    %v313 = vld [vmem:[#allocation2 + $0x80] sm:$0xff]
    %v314 = vld [vmem:[#allocation2 + $0x90] sm:$0xff]
    %v315 = vld [vmem:[#allocation2 + $0x98] sm:$0xff]
    %v316 = vld [vmem:[#allocation2 + $0xa8] sm:$0xff]
    %v317 = vld [vmem:[#allocation2 + $0xb0] sm:$0xff]
    %v318 = vld [vmem:[#allocation2 + $0xc0] sm:$0xff]
    %v319 = vld [vmem:[#allocation2 + $0xc8] sm:$0xff]
    %v320 = vld [vmem:[#allocation2 + $0xd8] sm:$0xff]
    %v321 = vld [vmem:[#allocation2 + $0xe0] sm:$0xff]
    %v322 = vld [vmem:[#allocation2 + $0xf0] sm:$0xff]
    %v323 = vld [vmem:[#allocation2 + $0xf8] sm:$0xff]
    %v324 = vld [vmem:[#allocation2 + $0x108] sm:$0xff]
    %v325 = vld [vmem:[#allocation2 + $0x110] sm:$0xff]
    %v326 = vld [vmem:[#allocation2 + $0x120] sm:$0xff]
    %v327 = vld [vmem:[#allocation2 + $0x128] sm:$0xff]
    %v328 = vld [vmem:[#allocation2 + $0x138] sm:$0xff]
    %v329 = vld [vmem:[#allocation2 + $0x140] sm:$0xff]
    %v330 = vld [vmem:[#allocation2 + $0x150] sm:$0xff]
    %v331 = vld [vmem:[#allocation2 + $0x158] sm:$0xff]
    %v332 = vld [vmem:[#allocation2 + $0x168] sm:$0xff]
    %v333 = vld [vmem:[#allocation2 + $0x170] sm:$0xff]
    %v334 = vld [vmem:[#allocation2 + $0x1b0] sm:$0xff]
    %v335 = vld [vmem:[#allocation2 + $0x1b8] sm:$0xff]
    %v336 = vld [vmem:[#allocation2 + $0x1c8] sm:$0xff]
    %v337 = vld [vmem:[#allocation2 + $0x1d0] sm:$0xff]
    %v338 = vld [vmem:[#allocation2 + $0x1e0] sm:$0xff]
    %v339 = vld [vmem:[#allocation2 + $0x1e8] sm:$0xff]
    %v340 = vld [vmem:[#allocation2 + $0x1f8] sm:$0xff]
    %v341 = vld [vmem:[#allocation2 + $0x200] sm:$0xff]
    %v342 = vld [vmem:[#allocation2 + $0x210] sm:$0xff]
    %v343 = vld [vmem:[#allocation2 + $0x218] sm:$0xff]
    %v344 = vld [vmem:[#allocation2 + $0x228] sm:$0xff]
    %v345 = vld [vmem:[#allocation2 + $0x230] sm:$0xff]
    %v346 = vld [vmem:[#allocation2 + $0x240] sm:$0xff]
    %v347 = vld [vmem:[#allocation2 + $0x248] sm:$0xff]
    %v348 = vld [vmem:[#allocation2 + $0x258] sm:$0xff]
    %v349 = vld [vmem:[#allocation2 + $0x260] sm:$0xff]
    %v350 = vld [vmem:[#allocation2 + $0x270] sm:$0xff]
    %v351 = vld [vmem:[#allocation2 + $0x278] sm:$0xff]
    %v352 = vld [vmem:[#allocation2 + $0x288] sm:$0xff]
    %v353 = vld [vmem:[#allocation2 + $0x290] sm:$0xff]
    %v354 = vld [vmem:[#allocation2 + $0x2a0] sm:$0xff]
    %v355 = vld [vmem:[#allocation2 + $0x2a8] sm:$0xff]
    %v356 = vld [vmem:[#allocation2 + $0x2b8] sm:$0xff]
    %v357 = vld [vmem:[#allocation2 + $0x2c0] sm:$0xff]
    %v358 = vld [vmem:[#allocation2 + $0x2d0] sm:$0xff]
    %v359 = vld [vmem:[#allocation2 + $0x2d8] sm:$0xff]
    %v360 = vld [vmem:[#allocation2 + $0x2e8] sm:$0xff]
    %v361 = vld [vmem:[#allocation2 + $0x2f0] sm:$0xff]
    %v362 = vld [vmem:[#allocation2 + $0x300] sm:$0xff]
    %v363 = vld [vmem:[#allocation2 + $0x308] sm:$0xff]
    %v364 = vld [vmem:[#allocation2 + $0x318] sm:$0xff]
    %v365 = vld [vmem:[#allocation2 + $0x320] sm:$0xff]
    %366 = vst.msk [vmem:[#allocation4] sm:$0xff] %vm63, %v302
    %367 = vst.msk [vmem:[#allocation4 + $0x8] sm:$0xff] %vm63, %v303
    %368 = vst.msk [vmem:[#allocation4 + $0x10] sm:$0xff] %vm63, %v304
    %369 = vst.msk [vmem:[#allocation4 + $0x18] sm:$0xff] %vm63, %v305
    %370 = vst.msk [vmem:[#allocation4 + $0x20] sm:$0xff] %vm63, %v306
    %371 = vst.msk [vmem:[#allocation4 + $0x28] sm:$0xff] %vm63, %v307
    %372 = vst.msk [vmem:[#allocation4 + $0x30] sm:$0xff] %vm63, %v308
    %373 = vst.msk [vmem:[#allocation4 + $0x38] sm:$0xff] %vm63, %v309
    %374 = vst.msk [vmem:[#allocation4 + $0x40] sm:$0xff] %vm63, %v310
    %375 = vst.msk [vmem:[#allocation4 + $0x48] sm:$0xff] %vm63, %v311
    %376 = vst.msk [vmem:[#allocation4 + $0x50] sm:$0xff] %vm63, %v312
    %377 = vst.msk [vmem:[#allocation4 + $0x58] sm:$0xff] %vm63, %v313
    %378 = vst.msk [vmem:[#allocation4 + $0x60] sm:$0xff] %vm63, %v314
    %379 = vst.msk [vmem:[#allocation4 + $0x68] sm:$0xff] %vm63, %v315
    %380 = vst.msk [vmem:[#allocation4 + $0x70] sm:$0xff] %vm63, %v316
    %381 = vst.msk [vmem:[#allocation4 + $0x78] sm:$0xff] %vm63, %v317
    %382 = vst.msk [vmem:[#allocation4 + $0x80] sm:$0xff] %vm63, %v318
    %383 = vst.msk [vmem:[#allocation4 + $0x88] sm:$0xff] %vm63, %v319
    %384 = vst.msk [vmem:[#allocation4 + $0x90] sm:$0xff] %vm63, %v320
    %385 = vst.msk [vmem:[#allocation4 + $0x98] sm:$0xff] %vm63, %v321
    %386 = vst.msk [vmem:[#allocation4 + $0xa0] sm:$0xff] %vm63, %v322
    %387 = vst.msk [vmem:[#allocation4 + $0xa8] sm:$0xff] %vm63, %v323
    %388 = vst.msk [vmem:[#allocation4 + $0xb0] sm:$0xff] %vm63, %v324
    %389 = vst.msk [vmem:[#allocation4 + $0xb8] sm:$0xff] %vm63, %v325
    %390 = vst.msk [vmem:[#allocation4 + $0xc0] sm:$0xff] %vm63, %v326
    %391 = vst.msk [vmem:[#allocation4 + $0xc8] sm:$0xff] %vm63, %v327
    %392 = vst.msk [vmem:[#allocation4 + $0xd0] sm:$0xff] %vm63, %v328
    %393 = vst.msk [vmem:[#allocation4 + $0xd8] sm:$0xff] %vm63, %v329
    %394 = vst.msk [vmem:[#allocation4 + $0xe0] sm:$0xff] %vm63, %v330
    %395 = vst.msk [vmem:[#allocation4 + $0xe8] sm:$0xff] %vm63, %v331
    %396 = vst.msk [vmem:[#allocation4 + $0xf0] sm:$0xff] %vm63, %v332
    %397 = vst.msk [vmem:[#allocation4 + $0xf8] sm:$0xff] %vm63, %v333
    %398 = vst.msk [vmem:[#allocation4 + $0x100] sm:$0xff] %vm63, %v334
    %399 = vst.msk [vmem:[#allocation4 + $0x108] sm:$0xff] %vm63, %v335
    %400 = vst.msk [vmem:[#allocation4 + $0x110] sm:$0xff] %vm63, %v336
    %401 = vst.msk [vmem:[#allocation4 + $0x118] sm:$0xff] %vm63, %v337
    %402 = vst.msk [vmem:[#allocation4 + $0x120] sm:$0xff] %vm63, %v338
    %403 = vst.msk [vmem:[#allocation4 + $0x128] sm:$0xff] %vm63, %v339
    %404 = vst.msk [vmem:[#allocation4 + $0x130] sm:$0xff] %vm63, %v340
    %405 = vst.msk [vmem:[#allocation4 + $0x138] sm:$0xff] %vm63, %v341
    %406 = vst.msk [vmem:[#allocation4 + $0x140] sm:$0xff] %vm63, %v342
    %407 = vst.msk [vmem:[#allocation4 + $0x148] sm:$0xff] %vm63, %v343
    %408 = vst.msk [vmem:[#allocation4 + $0x150] sm:$0xff] %vm63, %v344
    %409 = vst.msk [vmem:[#allocation4 + $0x158] sm:$0xff] %vm63, %v345
    %410 = vst.msk [vmem:[#allocation4 + $0x160] sm:$0xff] %vm63, %v346
    %411 = vst.msk [vmem:[#allocation4 + $0x168] sm:$0xff] %vm63, %v347
    %412 = vst.msk [vmem:[#allocation4 + $0x170] sm:$0xff] %vm63, %v348
    %413 = vst.msk [vmem:[#allocation4 + $0x178] sm:$0xff] %vm63, %v349
    %414 = vst.msk [vmem:[#allocation4 + $0x180] sm:$0xff] %vm63, %v350
    %415 = vst.msk [vmem:[#allocation4 + $0x188] sm:$0xff] %vm63, %v351
    %416 = vst.msk [vmem:[#allocation4 + $0x190] sm:$0xff] %vm63, %v352
    %417 = vst.msk [vmem:[#allocation4 + $0x198] sm:$0xff] %vm63, %v353
    %418 = vst.msk [vmem:[#allocation4 + $0x1a0] sm:$0xff] %vm63, %v354
    %419 = vst.msk [vmem:[#allocation4 + $0x1a8] sm:$0xff] %vm63, %v355
    %420 = vst.msk [vmem:[#allocation4 + $0x1b0] sm:$0xff] %vm63, %v356
    %421 = vst.msk [vmem:[#allocation4 + $0x1b8] sm:$0xff] %vm63, %v357
    %422 = vst.msk [vmem:[#allocation4 + $0x1c0] sm:$0xff] %vm63, %v358
    %423 = vst.msk [vmem:[#allocation4 + $0x1c8] sm:$0xff] %vm63, %v359
    %424 = vst.msk [vmem:[#allocation4 + $0x1d0] sm:$0xff] %vm63, %v360
    %425 = vst.msk [vmem:[#allocation4 + $0x1d8] sm:$0xff] %vm63, %v361
    %426 = vst.msk [vmem:[#allocation4 + $0x1e0] sm:$0xff] %vm63, %v362
    %427 = vst.msk [vmem:[#allocation4 + $0x1e8] sm:$0xff] %vm63, %v363
    %428 = vst.msk [vmem:[#allocation4 + $0x1f0] sm:$0xff] %vm63, %v364
    %429 = vst.msk [vmem:[#allocation4 + $0x1f8] sm:$0xff] %vm63, %v365
    %v430 = vld [vmem:[#allocation2 + $0x1] sm:$0xff]
    %v431 = vld [vmem:[#allocation2 + $0x9] sm:$0xff]
    %v432 = vld [vmem:[#allocation2 + $0x19] sm:$0xff]
    %v433 = vld [vmem:[#allocation2 + $0x21] sm:$0xff]
    %v434 = vld [vmem:[#allocation2 + $0x31] sm:$0xff]
    %v435 = vld [vmem:[#allocation2 + $0x39] sm:$0xff]
    %v436 = vld [vmem:[#allocation2 + $0x49] sm:$0xff]
    %v437 = vld [vmem:[#allocation2 + $0x51] sm:$0xff]
    %v438 = vld [vmem:[#allocation2 + $0x61] sm:$0xff]
    %v439 = vld [vmem:[#allocation2 + $0x69] sm:$0xff]
    %v440 = vld [vmem:[#allocation2 + $0x79] sm:$0xff]
    %v441 = vld [vmem:[#allocation2 + $0x81] sm:$0xff]
    %v442 = vld [vmem:[#allocation2 + $0x91] sm:$0xff]
    %v443 = vld [vmem:[#allocation2 + $0x99] sm:$0xff]
    %v444 = vld [vmem:[#allocation2 + $0xa9] sm:$0xff]
    %v445 = vld [vmem:[#allocation2 + $0xb1] sm:$0xff]
    %v446 = vld [vmem:[#allocation2 + $0xc1] sm:$0xff]
    %v447 = vld [vmem:[#allocation2 + $0xc9] sm:$0xff]
    %v448 = vld [vmem:[#allocation2 + $0xd9] sm:$0xff]
    %v449 = vld [vmem:[#allocation2 + $0xe1] sm:$0xff]
    %v450 = vld [vmem:[#allocation2 + $0xf1] sm:$0xff]
    %v451 = vld [vmem:[#allocation2 + $0xf9] sm:$0xff]
    %v452 = vld [vmem:[#allocation2 + $0x109] sm:$0xff]
    %v453 = vld [vmem:[#allocation2 + $0x111] sm:$0xff]
    %v454 = vld [vmem:[#allocation2 + $0x121] sm:$0xff]
    %v455 = vld [vmem:[#allocation2 + $0x129] sm:$0xff]
    %v456 = vld [vmem:[#allocation2 + $0x139] sm:$0xff]
    %v457 = vld [vmem:[#allocation2 + $0x141] sm:$0xff]
    %v458 = vld [vmem:[#allocation2 + $0x151] sm:$0xff]
    %v459 = vld [vmem:[#allocation2 + $0x159] sm:$0xff]
    %v460 = vld [vmem:[#allocation2 + $0x169] sm:$0xff]
    %v461 = vld [vmem:[#allocation2 + $0x171] sm:$0xff]
    %v462 = vld [vmem:[#allocation2 + $0x1b1] sm:$0xff]
    %v463 = vld [vmem:[#allocation2 + $0x1b9] sm:$0xff]
    %v464 = vld [vmem:[#allocation2 + $0x1c9] sm:$0xff]
    %v465 = vld [vmem:[#allocation2 + $0x1d1] sm:$0xff]
    %v466 = vld [vmem:[#allocation2 + $0x1e1] sm:$0xff]
    %v467 = vld [vmem:[#allocation2 + $0x1e9] sm:$0xff]
    %v468 = vld [vmem:[#allocation2 + $0x1f9] sm:$0xff]
    %v469 = vld [vmem:[#allocation2 + $0x201] sm:$0xff]
    %v470 = vld [vmem:[#allocation2 + $0x211] sm:$0xff]
    %v471 = vld [vmem:[#allocation2 + $0x219] sm:$0xff]
    %v472 = vld [vmem:[#allocation2 + $0x229] sm:$0xff]
    %v473 = vld [vmem:[#allocation2 + $0x231] sm:$0xff]
    %v474 = vld [vmem:[#allocation2 + $0x241] sm:$0xff]
    %v475 = vld [vmem:[#allocation2 + $0x249] sm:$0xff]
    %v476 = vld [vmem:[#allocation2 + $0x259] sm:$0xff]
    %v477 = vld [vmem:[#allocation2 + $0x261] sm:$0xff]
    %v478 = vld [vmem:[#allocation2 + $0x271] sm:$0xff]
    %v479 = vld [vmem:[#allocation2 + $0x279] sm:$0xff]
    %v480 = vld [vmem:[#allocation2 + $0x289] sm:$0xff]
    %v481 = vld [vmem:[#allocation2 + $0x291] sm:$0xff]
    %v482 = vld [vmem:[#allocation2 + $0x2a1] sm:$0xff]
    %v483 = vld [vmem:[#allocation2 + $0x2a9] sm:$0xff]
    %v484 = vld [vmem:[#allocation2 + $0x2b9] sm:$0xff]
    %v485 = vld [vmem:[#allocation2 + $0x2c1] sm:$0xff]
    %v486 = vld [vmem:[#allocation2 + $0x2d1] sm:$0xff]
    %v487 = vld [vmem:[#allocation2 + $0x2d9] sm:$0xff]
    %v488 = vld [vmem:[#allocation2 + $0x2e9] sm:$0xff]
    %v489 = vld [vmem:[#allocation2 + $0x2f1] sm:$0xff]
    %v490 = vld [vmem:[#allocation2 + $0x301] sm:$0xff]
    %v491 = vld [vmem:[#allocation2 + $0x309] sm:$0xff]
    %v492 = vld [vmem:[#allocation2 + $0x319] sm:$0xff]
    %v493 = vld [vmem:[#allocation2 + $0x321] sm:$0xff]
    %558 = vrot.lane.b32.xlu0 %v430, 4
    %v559 = vpop.permute.xlu0 %558
    %560 = vrot.lane.b32.xlu0 %v431, 4
    %v561 = vpop.permute.xlu0 %560
    %562 = vrot.lane.b32.xlu0 %v432, 4
    %v563 = vpop.permute.xlu0 %562
    %564 = vrot.lane.b32.xlu0 %v433, 4
    %v565 = vpop.permute.xlu0 %564
    %566 = vrot.lane.b32.xlu0 %v434, 4
    %v567 = vpop.permute.xlu0 %566
    %568 = vrot.lane.b32.xlu0 %v435, 4
    %v569 = vpop.permute.xlu0 %568
    %570 = vrot.lane.b32.xlu0 %v436, 4
    %v571 = vpop.permute.xlu0 %570
    %572 = vrot.lane.b32.xlu0 %v437, 4
    %v573 = vpop.permute.xlu0 %572
    %574 = vrot.lane.b32.xlu0 %v438, 4
    %v575 = vpop.permute.xlu0 %574
    %576 = vrot.lane.b32.xlu0 %v439, 4
    %v577 = vpop.permute.xlu0 %576
    %578 = vrot.lane.b32.xlu0 %v440, 4
    %v579 = vpop.permute.xlu0 %578
    %580 = vrot.lane.b32.xlu0 %v441, 4
    %v581 = vpop.permute.xlu0 %580
    %582 = vrot.lane.b32.xlu0 %v442, 4
    %v583 = vpop.permute.xlu0 %582
    %584 = vrot.lane.b32.xlu0 %v443, 4
    %v585 = vpop.permute.xlu0 %584
    %586 = vrot.lane.b32.xlu0 %v444, 4
    %v587 = vpop.permute.xlu0 %586
    %588 = vrot.lane.b32.xlu0 %v445, 4
    %v589 = vpop.permute.xlu0 %588
    %590 = vrot.lane.b32.xlu0 %v446, 4
    %v591 = vpop.permute.xlu0 %590
    %592 = vrot.lane.b32.xlu0 %v447, 4
    %v593 = vpop.permute.xlu0 %592
    %594 = vrot.lane.b32.xlu0 %v448, 4
    %v595 = vpop.permute.xlu0 %594
    %596 = vrot.lane.b32.xlu0 %v449, 4
    %v597 = vpop.permute.xlu0 %596
    %598 = vrot.lane.b32.xlu0 %v450, 4
    %v599 = vpop.permute.xlu0 %598
    %600 = vrot.lane.b32.xlu0 %v451, 4
    %v601 = vpop.permute.xlu0 %600
    %602 = vrot.lane.b32.xlu0 %v452, 4
    %v603 = vpop.permute.xlu0 %602
    %604 = vrot.lane.b32.xlu0 %v453, 4
    %v605 = vpop.permute.xlu0 %604
    %606 = vrot.lane.b32.xlu0 %v454, 4
    %v607 = vpop.permute.xlu0 %606
    %608 = vrot.lane.b32.xlu0 %v455, 4
    %v609 = vpop.permute.xlu0 %608
    %610 = vrot.lane.b32.xlu0 %v456, 4
    %v611 = vpop.permute.xlu0 %610
    %612 = vrot.lane.b32.xlu0 %v457, 4
    %v613 = vpop.permute.xlu0 %612
    %614 = vrot.lane.b32.xlu0 %v458, 4
    %v615 = vpop.permute.xlu0 %614
    %616 = vrot.lane.b32.xlu0 %v459, 4
    %v617 = vpop.permute.xlu0 %616
    %618 = vrot.lane.b32.xlu0 %v460, 4
    %v619 = vpop.permute.xlu0 %618
    %620 = vrot.lane.b32.xlu0 %v461, 4
    %v621 = vpop.permute.xlu0 %620
    %622 = vrot.lane.b32.xlu0 %v462, 4
    %v623 = vpop.permute.xlu0 %622
    %624 = vrot.lane.b32.xlu0 %v463, 4
    %v625 = vpop.permute.xlu0 %624
    %626 = vrot.lane.b32.xlu0 %v464, 4
    %v627 = vpop.permute.xlu0 %626
    %628 = vrot.lane.b32.xlu0 %v465, 4
    %v629 = vpop.permute.xlu0 %628
    %630 = vrot.lane.b32.xlu0 %v466, 4
    %v631 = vpop.permute.xlu0 %630
    %632 = vrot.lane.b32.xlu0 %v467, 4
    %v633 = vpop.permute.xlu0 %632
    %634 = vrot.lane.b32.xlu0 %v468, 4
    %v635 = vpop.permute.xlu0 %634
    %636 = vrot.lane.b32.xlu0 %v469, 4
    %v637 = vpop.permute.xlu0 %636
    %638 = vrot.lane.b32.xlu0 %v470, 4
    %v639 = vpop.permute.xlu0 %638
    %640 = vrot.lane.b32.xlu0 %v471, 4
    %v641 = vpop.permute.xlu0 %640
    %642 = vrot.lane.b32.xlu0 %v472, 4
    %v643 = vpop.permute.xlu0 %642
    %644 = vrot.lane.b32.xlu0 %v473, 4
    %v645 = vpop.permute.xlu0 %644
    %646 = vrot.lane.b32.xlu0 %v474, 4
    %v647 = vpop.permute.xlu0 %646
    %648 = vrot.lane.b32.xlu0 %v475, 4
    %v649 = vpop.permute.xlu0 %648
    %650 = vrot.lane.b32.xlu0 %v476, 4
    %v651 = vpop.permute.xlu0 %650
    %652 = vrot.lane.b32.xlu0 %v477, 4
    %v653 = vpop.permute.xlu0 %652
    %654 = vrot.lane.b32.xlu0 %v478, 4
    %v655 = vpop.permute.xlu0 %654
    %656 = vrot.lane.b32.xlu0 %v479, 4
    %v657 = vpop.permute.xlu0 %656
    %658 = vrot.lane.b32.xlu0 %v480, 4
    %v659 = vpop.permute.xlu0 %658
    %660 = vrot.lane.b32.xlu0 %v481, 4
    %v661 = vpop.permute.xlu0 %660
    %662 = vrot.lane.b32.xlu0 %v482, 4
    %v663 = vpop.permute.xlu0 %662
    %664 = vrot.lane.b32.xlu0 %v483, 4
    %v665 = vpop.permute.xlu0 %664
    %666 = vrot.lane.b32.xlu0 %v484, 4
    %v667 = vpop.permute.xlu0 %666
    %668 = vrot.lane.b32.xlu0 %v485, 4
    %v669 = vpop.permute.xlu0 %668
    %670 = vrot.lane.b32.xlu0 %v486, 4
    %v671 = vpop.permute.xlu0 %670
    %672 = vrot.lane.b32.xlu0 %v487, 4
    %v673 = vpop.permute.xlu0 %672
    %674 = vrot.lane.b32.xlu0 %v488, 4
    %v675 = vpop.permute.xlu0 %674
    %676 = vrot.lane.b32.xlu0 %v489, 4
    %v677 = vpop.permute.xlu0 %676
    %678 = vrot.lane.b32.xlu0 %v490, 4
    %v679 = vpop.permute.xlu0 %678
    %680 = vrot.lane.b32.xlu0 %v491, 4
    %v681 = vpop.permute.xlu0 %680
    %682 = vrot.lane.b32.xlu0 %v492, 4
    %v683 = vpop.permute.xlu0 %682
    %684 = vrot.lane.b32.xlu0 %v493, 4
    %v685 = vpop.permute.xlu0 %684
    %vm750 = vcmask 64544
    %751 = vst.msk [vmem:[#allocation4] sm:$0xff] %vm750, %v559
    %752 = vst.msk [vmem:[#allocation4 + $0x8] sm:$0xff] %vm750, %v561
    %753 = vst.msk [vmem:[#allocation4 + $0x10] sm:$0xff] %vm750, %v563
    %754 = vst.msk [vmem:[#allocation4 + $0x18] sm:$0xff] %vm750, %v565
    %755 = vst.msk [vmem:[#allocation4 + $0x20] sm:$0xff] %vm750, %v567
    %756 = vst.msk [vmem:[#allocation4 + $0x28] sm:$0xff] %vm750, %v569
    %757 = vst.msk [vmem:[#allocation4 + $0x30] sm:$0xff] %vm750, %v571
    %758 = vst.msk [vmem:[#allocation4 + $0x38] sm:$0xff] %vm750, %v573
    %759 = vst.msk [vmem:[#allocation4 + $0x40] sm:$0xff] %vm750, %v575
    %760 = vst.msk [vmem:[#allocation4 + $0x48] sm:$0xff] %vm750, %v577
    %761 = vst.msk [vmem:[#allocation4 + $0x50] sm:$0xff] %vm750, %v579
    %762 = vst.msk [vmem:[#allocation4 + $0x58] sm:$0xff] %vm750, %v581
    %763 = vst.msk [vmem:[#allocation4 + $0x60] sm:$0xff] %vm750, %v583
    %764 = vst.msk [vmem:[#allocation4 + $0x68] sm:$0xff] %vm750, %v585
    %765 = vst.msk [vmem:[#allocation4 + $0x70] sm:$0xff] %vm750, %v587
    %766 = vst.msk [vmem:[#allocation4 + $0x78] sm:$0xff] %vm750, %v589
    %767 = vst.msk [vmem:[#allocation4 + $0x80] sm:$0xff] %vm750, %v591
    %768 = vst.msk [vmem:[#allocation4 + $0x88] sm:$0xff] %vm750, %v593
    %769 = vst.msk [vmem:[#allocation4 + $0x90] sm:$0xff] %vm750, %v595
    %770 = vst.msk [vmem:[#allocation4 + $0x98] sm:$0xff] %vm750, %v597
    %771 = vst.msk [vmem:[#allocation4 + $0xa0] sm:$0xff] %vm750, %v599
    %772 = vst.msk [vmem:[#allocation4 + $0xa8] sm:$0xff] %vm750, %v601
    %773 = vst.msk [vmem:[#allocation4 + $0xb0] sm:$0xff] %vm750, %v603
    %774 = vst.msk [vmem:[#allocation4 + $0xb8] sm:$0xff] %vm750, %v605
    %775 = vst.msk [vmem:[#allocation4 + $0xc0] sm:$0xff] %vm750, %v607
    %776 = vst.msk [vmem:[#allocation4 + $0xc8] sm:$0xff] %vm750, %v609
    %777 = vst.msk [vmem:[#allocation4 + $0xd0] sm:$0xff] %vm750, %v611
    %778 = vst.msk [vmem:[#allocation4 + $0xd8] sm:$0xff] %vm750, %v613
    %779 = vst.msk [vmem:[#allocation4 + $0xe0] sm:$0xff] %vm750, %v615
    %780 = vst.msk [vmem:[#allocation4 + $0xe8] sm:$0xff] %vm750, %v617
    %781 = vst.msk [vmem:[#allocation4 + $0xf0] sm:$0xff] %vm750, %v619
    %782 = vst.msk [vmem:[#allocation4 + $0xf8] sm:$0xff] %vm750, %v621
    %783 = vst.msk [vmem:[#allocation4 + $0x100] sm:$0xff] %vm750, %v623
    %784 = vst.msk [vmem:[#allocation4 + $0x108] sm:$0xff] %vm750, %v625
    %785 = vst.msk [vmem:[#allocation4 + $0x110] sm:$0xff] %vm750, %v627
    %786 = vst.msk [vmem:[#allocation4 + $0x118] sm:$0xff] %vm750, %v629
    %787 = vst.msk [vmem:[#allocation4 + $0x120] sm:$0xff] %vm750, %v631
    %788 = vst.msk [vmem:[#allocation4 + $0x128] sm:$0xff] %vm750, %v633
    %789 = vst.msk [vmem:[#allocation4 + $0x130] sm:$0xff] %vm750, %v635
    %790 = vst.msk [vmem:[#allocation4 + $0x138] sm:$0xff] %vm750, %v637
    %791 = vst.msk [vmem:[#allocation4 + $0x140] sm:$0xff] %vm750, %v639
    %792 = vst.msk [vmem:[#allocation4 + $0x148] sm:$0xff] %vm750, %v641
    %793 = vst.msk [vmem:[#allocation4 + $0x150] sm:$0xff] %vm750, %v643
    %794 = vst.msk [vmem:[#allocation4 + $0x158] sm:$0xff] %vm750, %v645
    %795 = vst.msk [vmem:[#allocation4 + $0x160] sm:$0xff] %vm750, %v647
    %796 = vst.msk [vmem:[#allocation4 + $0x168] sm:$0xff] %vm750, %v649
    %797 = vst.msk [vmem:[#allocation4 + $0x170] sm:$0xff] %vm750, %v651
    %798 = vst.msk [vmem:[#allocation4 + $0x178] sm:$0xff] %vm750, %v653
    %799 = vst.msk [vmem:[#allocation4 + $0x180] sm:$0xff] %vm750, %v655
    %800 = vst.msk [vmem:[#allocation4 + $0x188] sm:$0xff] %vm750, %v657
    %801 = vst.msk [vmem:[#allocation4 + $0x190] sm:$0xff] %vm750, %v659
    %802 = vst.msk [vmem:[#allocation4 + $0x198] sm:$0xff] %vm750, %v661
    %803 = vst.msk [vmem:[#allocation4 + $0x1a0] sm:$0xff] %vm750, %v663
    %804 = vst.msk [vmem:[#allocation4 + $0x1a8] sm:$0xff] %vm750, %v665
    %805 = vst.msk [vmem:[#allocation4 + $0x1b0] sm:$0xff] %vm750, %v667
    %806 = vst.msk [vmem:[#allocation4 + $0x1b8] sm:$0xff] %vm750, %v669
    %807 = vst.msk [vmem:[#allocation4 + $0x1c0] sm:$0xff] %vm750, %v671
    %808 = vst.msk [vmem:[#allocation4 + $0x1c8] sm:$0xff] %vm750, %v673
    %809 = vst.msk [vmem:[#allocation4 + $0x1d0] sm:$0xff] %vm750, %v675
    %810 = vst.msk [vmem:[#allocation4 + $0x1d8] sm:$0xff] %vm750, %v677
    %811 = vst.msk [vmem:[#allocation4 + $0x1e0] sm:$0xff] %vm750, %v679
    %812 = vst.msk [vmem:[#allocation4 + $0x1e8] sm:$0xff] %vm750, %v681
    %813 = vst.msk [vmem:[#allocation4 + $0x1f0] sm:$0xff] %vm750, %v683
    %814 = vst.msk [vmem:[#allocation4 + $0x1f8] sm:$0xff] %vm750, %v685
    %v815 = vld [vmem:[#allocation2 + $0x2] sm:$0xff]
    %v816 = vld [vmem:[#allocation2 + $0xa] sm:$0xff]
    %v817 = vld [vmem:[#allocation2 + $0x1a] sm:$0xff]
    %v818 = vld [vmem:[#allocation2 + $0x22] sm:$0xff]
    %v819 = vld [vmem:[#allocation2 + $0x32] sm:$0xff]
    %v820 = vld [vmem:[#allocation2 + $0x3a] sm:$0xff]
    %v821 = vld [vmem:[#allocation2 + $0x4a] sm:$0xff]
    %v822 = vld [vmem:[#allocation2 + $0x52] sm:$0xff]
    %v823 = vld [vmem:[#allocation2 + $0x62] sm:$0xff]
    %v824 = vld [vmem:[#allocation2 + $0x6a] sm:$0xff]
    %v825 = vld [vmem:[#allocation2 + $0x7a] sm:$0xff]
    %v826 = vld [vmem:[#allocation2 + $0x82] sm:$0xff]
    %v827 = vld [vmem:[#allocation2 + $0x92] sm:$0xff]
    %v828 = vld [vmem:[#allocation2 + $0x9a] sm:$0xff]
    %v829 = vld [vmem:[#allocation2 + $0xaa] sm:$0xff]
    %v830 = vld [vmem:[#allocation2 + $0xb2] sm:$0xff]
    %v831 = vld [vmem:[#allocation2 + $0xc2] sm:$0xff]
    %v832 = vld [vmem:[#allocation2 + $0xca] sm:$0xff]
    %v833 = vld [vmem:[#allocation2 + $0xda] sm:$0xff]
    %v834 = vld [vmem:[#allocation2 + $0xe2] sm:$0xff]
    %v835 = vld [vmem:[#allocation2 + $0xf2] sm:$0xff]
    %v836 = vld [vmem:[#allocation2 + $0xfa] sm:$0xff]
    %v837 = vld [vmem:[#allocation2 + $0x10a] sm:$0xff]
    %v838 = vld [vmem:[#allocation2 + $0x112] sm:$0xff]
    %v839 = vld [vmem:[#allocation2 + $0x122] sm:$0xff]
    %v840 = vld [vmem:[#allocation2 + $0x12a] sm:$0xff]
    %v841 = vld [vmem:[#allocation2 + $0x13a] sm:$0xff]
    %v842 = vld [vmem:[#allocation2 + $0x142] sm:$0xff]
    %v843 = vld [vmem:[#allocation2 + $0x152] sm:$0xff]
    %v844 = vld [vmem:[#allocation2 + $0x15a] sm:$0xff]
    %v845 = vld [vmem:[#allocation2 + $0x16a] sm:$0xff]
    %v846 = vld [vmem:[#allocation2 + $0x172] sm:$0xff]
    %v847 = vld [vmem:[#allocation2 + $0x1b2] sm:$0xff]
    %v848 = vld [vmem:[#allocation2 + $0x1ba] sm:$0xff]
    %v849 = vld [vmem:[#allocation2 + $0x1ca] sm:$0xff]
    %v850 = vld [vmem:[#allocation2 + $0x1d2] sm:$0xff]
    %v851 = vld [vmem:[#allocation2 + $0x1e2] sm:$0xff]
    %v852 = vld [vmem:[#allocation2 + $0x1ea] sm:$0xff]
    %v853 = vld [vmem:[#allocation2 + $0x1fa] sm:$0xff]
    %v854 = vld [vmem:[#allocation2 + $0x202] sm:$0xff]
    %v855 = vld [vmem:[#allocation2 + $0x212] sm:$0xff]
    %v856 = vld [vmem:[#allocation2 + $0x21a] sm:$0xff]
    %v857 = vld [vmem:[#allocation2 + $0x22a] sm:$0xff]
    %v858 = vld [vmem:[#allocation2 + $0x232] sm:$0xff]
    %v859 = vld [vmem:[#allocation2 + $0x242] sm:$0xff]
    %v860 = vld [vmem:[#allocation2 + $0x24a] sm:$0xff]
    %v861 = vld [vmem:[#allocation2 + $0x25a] sm:$0xff]
    %v862 = vld [vmem:[#allocation2 + $0x262] sm:$0xff]
    %v863 = vld [vmem:[#allocation2 + $0x272] sm:$0xff]
    %v864 = vld [vmem:[#allocation2 + $0x27a] sm:$0xff]
    %v865 = vld [vmem:[#allocation2 + $0x28a] sm:$0xff]
    %v866 = vld [vmem:[#allocation2 + $0x292] sm:$0xff]
    %v867 = vld [vmem:[#allocation2 + $0x2a2] sm:$0xff]
    %v868 = vld [vmem:[#allocation2 + $0x2aa] sm:$0xff]
    %v869 = vld [vmem:[#allocation2 + $0x2ba] sm:$0xff]
    %v870 = vld [vmem:[#allocation2 + $0x2c2] sm:$0xff]
    %v871 = vld [vmem:[#allocation2 + $0x2d2] sm:$0xff]
    %v872 = vld [vmem:[#allocation2 + $0x2da] sm:$0xff]
    %v873 = vld [vmem:[#allocation2 + $0x2ea] sm:$0xff]
    %v874 = vld [vmem:[#allocation2 + $0x2f2] sm:$0xff]
    %v875 = vld [vmem:[#allocation2 + $0x302] sm:$0xff]
    %v876 = vld [vmem:[#allocation2 + $0x30a] sm:$0xff]
    %v877 = vld [vmem:[#allocation2 + $0x31a] sm:$0xff]
    %v878 = vld [vmem:[#allocation2 + $0x322] sm:$0xff]
    %943 = vrot.lane.b32.xlu0 %v815, 8
    %v944 = vpop.permute.xlu0 %943
    %945 = vrot.lane.b32.xlu0 %v816, 8
    %v946 = vpop.permute.xlu0 %945
    %947 = vrot.lane.b32.xlu0 %v817, 8
    %v948 = vpop.permute.xlu0 %947
    %949 = vrot.lane.b32.xlu0 %v818, 8
    %v950 = vpop.permute.xlu0 %949
    %951 = vrot.lane.b32.xlu0 %v819, 8
    %v952 = vpop.permute.xlu0 %951
    %953 = vrot.lane.b32.xlu0 %v820, 8
    %v954 = vpop.permute.xlu0 %953
    %955 = vrot.lane.b32.xlu0 %v821, 8
    %v956 = vpop.permute.xlu0 %955
    %957 = vrot.lane.b32.xlu0 %v822, 8
    %v958 = vpop.permute.xlu0 %957
    %959 = vrot.lane.b32.xlu0 %v823, 8
    %v960 = vpop.permute.xlu0 %959
    %961 = vrot.lane.b32.xlu0 %v824, 8
    %v962 = vpop.permute.xlu0 %961
    %963 = vrot.lane.b32.xlu0 %v825, 8
    %v964 = vpop.permute.xlu0 %963
    %965 = vrot.lane.b32.xlu0 %v826, 8
    %v966 = vpop.permute.xlu0 %965
    %967 = vrot.lane.b32.xlu0 %v827, 8
    %v968 = vpop.permute.xlu0 %967
    %969 = vrot.lane.b32.xlu0 %v828, 8
    %v970 = vpop.permute.xlu0 %969
    %971 = vrot.lane.b32.xlu0 %v829, 8
    %v972 = vpop.permute.xlu0 %971
    %973 = vrot.lane.b32.xlu0 %v830, 8
    %v974 = vpop.permute.xlu0 %973
    %975 = vrot.lane.b32.xlu0 %v831, 8
    %v976 = vpop.permute.xlu0 %975
    %977 = vrot.lane.b32.xlu0 %v832, 8
    %v978 = vpop.permute.xlu0 %977
    %979 = vrot.lane.b32.xlu0 %v833, 8
    %v980 = vpop.permute.xlu0 %979
    %981 = vrot.lane.b32.xlu0 %v834, 8
    %v982 = vpop.permute.xlu0 %981
    %983 = vrot.lane.b32.xlu0 %v835, 8
    %v984 = vpop.permute.xlu0 %983
    %985 = vrot.lane.b32.xlu0 %v836, 8
    %v986 = vpop.permute.xlu0 %985
    %987 = vrot.lane.b32.xlu0 %v837, 8
    %v988 = vpop.permute.xlu0 %987
    %989 = vrot.lane.b32.xlu0 %v838, 8
    %v990 = vpop.permute.xlu0 %989
    %991 = vrot.lane.b32.xlu0 %v839, 8
    %v992 = vpop.permute.xlu0 %991
    %993 = vrot.lane.b32.xlu0 %v840, 8
    %v994 = vpop.permute.xlu0 %993
    %995 = vrot.lane.b32.xlu0 %v841, 8
    %v996 = vpop.permute.xlu0 %995
    %997 = vrot.lane.b32.xlu0 %v842, 8
    %v998 = vpop.permute.xlu0 %997
    %999 = vrot.lane.b32.xlu0 %v843, 8
    %v1000 = vpop.permute.xlu0 %999
    %1001 = vrot.lane.b32.xlu0 %v844, 8
    %v1002 = vpop.permute.xlu0 %1001
    %1003 = vrot.lane.b32.xlu0 %v845, 8
    %v1004 = vpop.permute.xlu0 %1003
    %1005 = vrot.lane.b32.xlu0 %v846, 8
    %v1006 = vpop.permute.xlu0 %1005
    %1007 = vrot.lane.b32.xlu0 %v847, 8
    %v1008 = vpop.permute.xlu0 %1007
    %1009 = vrot.lane.b32.xlu0 %v848, 8
    %v1010 = vpop.permute.xlu0 %1009
    %1011 = vrot.lane.b32.xlu0 %v849, 8
    %v1012 = vpop.permute.xlu0 %1011
    %1013 = vrot.lane.b32.xlu0 %v850, 8
    %v1014 = vpop.permute.xlu0 %1013
    %1015 = vrot.lane.b32.xlu0 %v851, 8
    %v1016 = vpop.permute.xlu0 %1015
    %1017 = vrot.lane.b32.xlu0 %v852, 8
    %v1018 = vpop.permute.xlu0 %1017
    %1019 = vrot.lane.b32.xlu0 %v853, 8
    %v1020 = vpop.permute.xlu0 %1019
    %1021 = vrot.lane.b32.xlu0 %v854, 8
    %v1022 = vpop.permute.xlu0 %1021
    %1023 = vrot.lane.b32.xlu0 %v855, 8
    %v1024 = vpop.permute.xlu0 %1023
    %1025 = vrot.lane.b32.xlu0 %v856, 8
    %v1026 = vpop.permute.xlu0 %1025
    %1027 = vrot.lane.b32.xlu0 %v857, 8
    %v1028 = vpop.permute.xlu0 %1027
    %1029 = vrot.lane.b32.xlu0 %v858, 8
    %v1030 = vpop.permute.xlu0 %1029
    %1031 = vrot.lane.b32.xlu0 %v859, 8
    %v1032 = vpop.permute.xlu0 %1031
    %1033 = vrot.lane.b32.xlu0 %v860, 8
    %v1034 = vpop.permute.xlu0 %1033
    %1035 = vrot.lane.b32.xlu0 %v861, 8
    %v1036 = vpop.permute.xlu0 %1035
    %1037 = vrot.lane.b32.xlu0 %v862, 8
    %v1038 = vpop.permute.xlu0 %1037
    %1039 = vrot.lane.b32.xlu0 %v863, 8
    %v1040 = vpop.permute.xlu0 %1039
    %1041 = vrot.lane.b32.xlu0 %v864, 8
    %v1042 = vpop.permute.xlu0 %1041
    %1043 = vrot.lane.b32.xlu0 %v865, 8
    %v1044 = vpop.permute.xlu0 %1043
    %1045 = vrot.lane.b32.xlu0 %v866, 8
    %v1046 = vpop.permute.xlu0 %1045
    %1047 = vrot.lane.b32.xlu0 %v867, 8
    %v1048 = vpop.permute.xlu0 %1047
    %1049 = vrot.lane.b32.xlu0 %v868, 8
    %v1050 = vpop.permute.xlu0 %1049
    %1051 = vrot.lane.b32.xlu0 %v869, 8
    %v1052 = vpop.permute.xlu0 %1051
    %1053 = vrot.lane.b32.xlu0 %v870, 8
    %v1054 = vpop.permute.xlu0 %1053
    %1055 = vrot.lane.b32.xlu0 %v871, 8
    %v1056 = vpop.permute.xlu0 %1055
    %1057 = vrot.lane.b32.xlu0 %v872, 8
    %v1058 = vpop.permute.xlu0 %1057
    %1059 = vrot.lane.b32.xlu0 %v873, 8
    %v1060 = vpop.permute.xlu0 %1059
    %1061 = vrot.lane.b32.xlu0 %v874, 8
    %v1062 = vpop.permute.xlu0 %1061
    %1063 = vrot.lane.b32.xlu0 %v875, 8
    %v1064 = vpop.permute.xlu0 %1063
    %1065 = vrot.lane.b32.xlu0 %v876, 8
    %v1066 = vpop.permute.xlu0 %1065
    %1067 = vrot.lane.b32.xlu0 %v877, 8
    %v1068 = vpop.permute.xlu0 %1067
    %1069 = vrot.lane.b32.xlu0 %v878, 8
    %v1070 = vpop.permute.xlu0 %1069
    %vm1135 = vcmask 97344
    %1136 = vst.msk [vmem:[#allocation4] sm:$0xff] %vm1135, %v944
    %1137 = vst.msk [vmem:[#allocation4 + $0x8] sm:$0xff] %vm1135, %v946
    %1138 = vst.msk [vmem:[#allocation4 + $0x10] sm:$0xff] %vm1135, %v948
    %1139 = vst.msk [vmem:[#allocation4 + $0x18] sm:$0xff] %vm1135, %v950
    %1140 = vst.msk [vmem:[#allocation4 + $0x20] sm:$0xff] %vm1135, %v952
    %1141 = vst.msk [vmem:[#allocation4 + $0x28] sm:$0xff] %vm1135, %v954
    %1142 = vst.msk [vmem:[#allocation4 + $0x30] sm:$0xff] %vm1135, %v956
    %1143 = vst.msk [vmem:[#allocation4 + $0x38] sm:$0xff] %vm1135, %v958
    %1144 = vst.msk [vmem:[#allocation4 + $0x40] sm:$0xff] %vm1135, %v960
    %1145 = vst.msk [vmem:[#allocation4 + $0x48] sm:$0xff] %vm1135, %v962
    %1146 = vst.msk [vmem:[#allocation4 + $0x50] sm:$0xff] %vm1135, %v964
    %1147 = vst.msk [vmem:[#allocation4 + $0x58] sm:$0xff] %vm1135, %v966
    %1148 = vst.msk [vmem:[#allocation4 + $0x60] sm:$0xff] %vm1135, %v968
    %1149 = vst.msk [vmem:[#allocation4 + $0x68] sm:$0xff] %vm1135, %v970
    %1150 = vst.msk [vmem:[#allocation4 + $0x70] sm:$0xff] %vm1135, %v972
    %1151 = vst.msk [vmem:[#allocation4 + $0x78] sm:$0xff] %vm1135, %v974
    %1152 = vst.msk [vmem:[#allocation4 + $0x80] sm:$0xff] %vm1135, %v976
    %1153 = vst.msk [vmem:[#allocation4 + $0x88] sm:$0xff] %vm1135, %v978
    %1154 = vst.msk [vmem:[#allocation4 + $0x90] sm:$0xff] %vm1135, %v980
    %1155 = vst.msk [vmem:[#allocation4 + $0x98] sm:$0xff] %vm1135, %v982
    %1156 = vst.msk [vmem:[#allocation4 + $0xa0] sm:$0xff] %vm1135, %v984
    %1157 = vst.msk [vmem:[#allocation4 + $0xa8] sm:$0xff] %vm1135, %v986
    %1158 = vst.msk [vmem:[#allocation4 + $0xb0] sm:$0xff] %vm1135, %v988
    %1159 = vst.msk [vmem:[#allocation4 + $0xb8] sm:$0xff] %vm1135, %v990
    %1160 = vst.msk [vmem:[#allocation4 + $0xc0] sm:$0xff] %vm1135, %v992
    %1161 = vst.msk [vmem:[#allocation4 + $0xc8] sm:$0xff] %vm1135, %v994
    %1162 = vst.msk [vmem:[#allocation4 + $0xd0] sm:$0xff] %vm1135, %v996
    %1163 = vst.msk [vmem:[#allocation4 + $0xd8] sm:$0xff] %vm1135, %v998
    %1164 = vst.msk [vmem:[#allocation4 + $0xe0] sm:$0xff] %vm1135, %v1000
    %1165 = vst.msk [vmem:[#allocation4 + $0xe8] sm:$0xff] %vm1135, %v1002
    %1166 = vst.msk [vmem:[#allocation4 + $0xf0] sm:$0xff] %vm1135, %v1004
    %1167 = vst.msk [vmem:[#allocation4 + $0xf8] sm:$0xff] %vm1135, %v1006
    %1168 = vst.msk [vmem:[#allocation4 + $0x100] sm:$0xff] %vm1135, %v1008
    %1169 = vst.msk [vmem:[#allocation4 + $0x108] sm:$0xff] %vm1135, %v1010
    %1170 = vst.msk [vmem:[#allocation4 + $0x110] sm:$0xff] %vm1135, %v1012
    %1171 = vst.msk [vmem:[#allocation4 + $0x118] sm:$0xff] %vm1135, %v1014
    %1172 = vst.msk [vmem:[#allocation4 + $0x120] sm:$0xff] %vm1135, %v1016
    %1173 = vst.msk [vmem:[#allocation4 + $0x128] sm:$0xff] %vm1135, %v1018
    %1174 = vst.msk [vmem:[#allocation4 + $0x130] sm:$0xff] %vm1135, %v1020
    %1175 = vst.msk [vmem:[#allocation4 + $0x138] sm:$0xff] %vm1135, %v1022
    %1176 = vst.msk [vmem:[#allocation4 + $0x140] sm:$0xff] %vm1135, %v1024
    %1177 = vst.msk [vmem:[#allocation4 + $0x148] sm:$0xff] %vm1135, %v1026
    %1178 = vst.msk [vmem:[#allocation4 + $0x150] sm:$0xff] %vm1135, %v1028
    %1179 = vst.msk [vmem:[#allocation4 + $0x158] sm:$0xff] %vm1135, %v1030
    %1180 = vst.msk [vmem:[#allocation4 + $0x160] sm:$0xff] %vm1135, %v1032
    %1181 = vst.msk [vmem:[#allocation4 + $0x168] sm:$0xff] %vm1135, %v1034
    %1182 = vst.msk [vmem:[#allocation4 + $0x170] sm:$0xff] %vm1135, %v1036
    %1183 = vst.msk [vmem:[#allocation4 + $0x178] sm:$0xff] %vm1135, %v1038
    %1184 = vst.msk [vmem:[#allocation4 + $0x180] sm:$0xff] %vm1135, %v1040
    %1185 = vst.msk [vmem:[#allocation4 + $0x188] sm:$0xff] %vm1135, %v1042
    %1186 = vst.msk [vmem:[#allocation4 + $0x190] sm:$0xff] %vm1135, %v1044
    %1187 = vst.msk [vmem:[#allocation4 + $0x198] sm:$0xff] %vm1135, %v1046
    %1188 = vst.msk [vmem:[#allocation4 + $0x1a0] sm:$0xff] %vm1135, %v1048
    %1189 = vst.msk [vmem:[#allocation4 + $0x1a8] sm:$0xff] %vm1135, %v1050
    %1190 = vst.msk [vmem:[#allocation4 + $0x1b0] sm:$0xff] %vm1135, %v1052
    %1191 = vst.msk [vmem:[#allocation4 + $0x1b8] sm:$0xff] %vm1135, %v1054
    %1192 = vst.msk [vmem:[#allocation4 + $0x1c0] sm:$0xff] %vm1135, %v1056
    %1193 = vst.msk [vmem:[#allocation4 + $0x1c8] sm:$0xff] %vm1135, %v1058
    %1194 = vst.msk [vmem:[#allocation4 + $0x1d0] sm:$0xff] %vm1135, %v1060
    %1195 = vst.msk [vmem:[#allocation4 + $0x1d8] sm:$0xff] %vm1135, %v1062
    %1196 = vst.msk [vmem:[#allocation4 + $0x1e0] sm:$0xff] %vm1135, %v1064
    %1197 = vst.msk [vmem:[#allocation4 + $0x1e8] sm:$0xff] %vm1135, %v1066
    %1198 = vst.msk [vmem:[#allocation4 + $0x1f0] sm:$0xff] %vm1135, %v1068
    %1199 = vst.msk [vmem:[#allocation4 + $0x1f8] sm:$0xff] %vm1135, %v1070
    %v1200 = vld [vmem:[%s237] sm:$0xff]
    %v1201 = vld [vmem:[%s237 + $0x8] sm:$0xff]
    %v1202 = vld [vmem:[%s237 + $0x18] sm:$0xff]
    %v1203 = vld [vmem:[%s237 + $0x20] sm:$0xff]
    %v1204 = vld [vmem:[%s237 + $0x30] sm:$0xff]
    %v1205 = vld [vmem:[%s237 + $0x38] sm:$0xff]
    %v1206 = vld [vmem:[%s237 + $0x48] sm:$0xff]
    %v1207 = vld [vmem:[%s237 + $0x50] sm:$0xff]
    %v1208 = vld [vmem:[%s237 + $0x60] sm:$0xff]
    %v1209 = vld [vmem:[%s237 + $0x68] sm:$0xff]
    %v1210 = vld [vmem:[%s237 + $0x78] sm:$0xff]
    %v1211 = vld [vmem:[%s237 + $0x80] sm:$0xff]
    %v1212 = vld [vmem:[%s237 + $0x90] sm:$0xff]
    %v1213 = vld [vmem:[%s237 + $0x98] sm:$0xff]
    %v1214 = vld [vmem:[%s237 + $0xa8] sm:$0xff]
    %v1215 = vld [vmem:[%s237 + $0xb0] sm:$0xff]
    %v1216 = vld [vmem:[%s237 + $0xc0] sm:$0xff]
    %v1217 = vld [vmem:[%s237 + $0xc8] sm:$0xff]
    %v1218 = vld [vmem:[%s237 + $0xd8] sm:$0xff]
    %v1219 = vld [vmem:[%s237 + $0xe0] sm:$0xff]
    %v1220 = vld [vmem:[%s237 + $0xf0] sm:$0xff]
    %v1221 = vld [vmem:[%s237 + $0xf8] sm:$0xff]
    %v1222 = vld [vmem:[%s237 + $0x108] sm:$0xff]
    %v1223 = vld [vmem:[%s237 + $0x110] sm:$0xff]
    %v1224 = vld [vmem:[%s237 + $0x120] sm:$0xff]
    %v1225 = vld [vmem:[%s237 + $0x128] sm:$0xff]
    %v1226 = vld [vmem:[%s237 + $0x138] sm:$0xff]
    %v1227 = vld [vmem:[%s237 + $0x140] sm:$0xff]
    %v1228 = vld [vmem:[%s237 + $0x150] sm:$0xff]
    %v1229 = vld [vmem:[%s237 + $0x158] sm:$0xff]
    %v1230 = vld [vmem:[%s237 + $0x168] sm:$0xff]
    %v1231 = vld [vmem:[%s237 + $0x170] sm:$0xff]
    %v1232 = vld [vmem:[%s237 + $0x1b0] sm:$0xff]
    %v1233 = vld [vmem:[%s237 + $0x1b8] sm:$0xff]
    %v1234 = vld [vmem:[%s237 + $0x1c8] sm:$0xff]
    %v1235 = vld [vmem:[%s237 + $0x1d0] sm:$0xff]
    %v1236 = vld [vmem:[%s237 + $0x1e0] sm:$0xff]
    %v1237 = vld [vmem:[%s237 + $0x1e8] sm:$0xff]
    %v1238 = vld [vmem:[%s237 + $0x1f8] sm:$0xff]
    %v1239 = vld [vmem:[%s237 + $0x200] sm:$0xff]
    %v1240 = vld [vmem:[%s237 + $0x210] sm:$0xff]
    %v1241 = vld [vmem:[%s237 + $0x218] sm:$0xff]
    %v1242 = vld [vmem:[%s237 + $0x228] sm:$0xff]
    %v1243 = vld [vmem:[%s237 + $0x230] sm:$0xff]
    %v1244 = vld [vmem:[%s237 + $0x240] sm:$0xff]
    %v1245 = vld [vmem:[%s237 + $0x248] sm:$0xff]
    %v1246 = vld [vmem:[%s237 + $0x258] sm:$0xff]
    %v1247 = vld [vmem:[%s237 + $0x260] sm:$0xff]
    %v1248 = vld [vmem:[%s237 + $0x270] sm:$0xff]
    %v1249 = vld [vmem:[%s237 + $0x278] sm:$0xff]
    %v1250 = vld [vmem:[%s237 + $0x288] sm:$0xff]
    %v1251 = vld [vmem:[%s237 + $0x290] sm:$0xff]
    %v1252 = vld [vmem:[%s237 + $0x2a0] sm:$0xff]
    %v1253 = vld [vmem:[%s237 + $0x2a8] sm:$0xff]
    %v1254 = vld [vmem:[%s237 + $0x2b8] sm:$0xff]
    %v1255 = vld [vmem:[%s237 + $0x2c0] sm:$0xff]
    %v1256 = vld [vmem:[%s237 + $0x2d0] sm:$0xff]
    %v1257 = vld [vmem:[%s237 + $0x2d8] sm:$0xff]
    %v1258 = vld [vmem:[%s237 + $0x2e8] sm:$0xff]
    %v1259 = vld [vmem:[%s237 + $0x2f0] sm:$0xff]
    %v1260 = vld [vmem:[%s237 + $0x300] sm:$0xff]
    %v1261 = vld [vmem:[%s237 + $0x308] sm:$0xff]
    %v1262 = vld [vmem:[%s237 + $0x318] sm:$0xff]
    %v1263 = vld [vmem:[%s237 + $0x320] sm:$0xff]
    %1328 = vrot.lane.b32.xlu0 %v1200, 12
    %v1329 = vpop.permute.xlu0 %1328
    %1330 = vrot.lane.b32.xlu0 %v1201, 12
    %v1331 = vpop.permute.xlu0 %1330
    %1332 = vrot.lane.b32.xlu0 %v1202, 12
    %v1333 = vpop.permute.xlu0 %1332
    %1334 = vrot.lane.b32.xlu0 %v1203, 12
    %v1335 = vpop.permute.xlu0 %1334
    %1336 = vrot.lane.b32.xlu0 %v1204, 12
    %v1337 = vpop.permute.xlu0 %1336
    %1338 = vrot.lane.b32.xlu0 %v1205, 12
    %v1339 = vpop.permute.xlu0 %1338
    %1340 = vrot.lane.b32.xlu0 %v1206, 12
    %v1341 = vpop.permute.xlu0 %1340
    %1342 = vrot.lane.b32.xlu0 %v1207, 12
    %v1343 = vpop.permute.xlu0 %1342
    %1344 = vrot.lane.b32.xlu0 %v1208, 12
    %v1345 = vpop.permute.xlu0 %1344
    %1346 = vrot.lane.b32.xlu0 %v1209, 12
    %v1347 = vpop.permute.xlu0 %1346
    %1348 = vrot.lane.b32.xlu0 %v1210, 12
    %v1349 = vpop.permute.xlu0 %1348
    %1350 = vrot.lane.b32.xlu0 %v1211, 12
    %v1351 = vpop.permute.xlu0 %1350
    %1352 = vrot.lane.b32.xlu0 %v1212, 12
    %v1353 = vpop.permute.xlu0 %1352
    %1354 = vrot.lane.b32.xlu0 %v1213, 12
    %v1355 = vpop.permute.xlu0 %1354
    %1356 = vrot.lane.b32.xlu0 %v1214, 12
    %v1357 = vpop.permute.xlu0 %1356
    %1358 = vrot.lane.b32.xlu0 %v1215, 12
    %v1359 = vpop.permute.xlu0 %1358
    %1360 = vrot.lane.b32.xlu0 %v1216, 12
    %v1361 = vpop.permute.xlu0 %1360
    %1362 = vrot.lane.b32.xlu0 %v1217, 12
    %v1363 = vpop.permute.xlu0 %1362
    %1364 = vrot.lane.b32.xlu0 %v1218, 12
    %v1365 = vpop.permute.xlu0 %1364
    %1366 = vrot.lane.b32.xlu0 %v1219, 12
    %v1367 = vpop.permute.xlu0 %1366
    %1368 = vrot.lane.b32.xlu0 %v1220, 12
    %v1369 = vpop.permute.xlu0 %1368
    %1370 = vrot.lane.b32.xlu0 %v1221, 12
    %v1371 = vpop.permute.xlu0 %1370
    %1372 = vrot.lane.b32.xlu0 %v1222, 12
    %v1373 = vpop.permute.xlu0 %1372
    %1374 = vrot.lane.b32.xlu0 %v1223, 12
    %v1375 = vpop.permute.xlu0 %1374
    %1376 = vrot.lane.b32.xlu0 %v1224, 12
    %v1377 = vpop.permute.xlu0 %1376
    %1378 = vrot.lane.b32.xlu0 %v1225, 12
    %v1379 = vpop.permute.xlu0 %1378
    %1380 = vrot.lane.b32.xlu0 %v1226, 12
    %v1381 = vpop.permute.xlu0 %1380
    %1382 = vrot.lane.b32.xlu0 %v1227, 12
    %v1383 = vpop.permute.xlu0 %1382
    %1384 = vrot.lane.b32.xlu0 %v1228, 12
    %v1385 = vpop.permute.xlu0 %1384
    %1386 = vrot.lane.b32.xlu0 %v1229, 12
    %v1387 = vpop.permute.xlu0 %1386
    %1388 = vrot.lane.b32.xlu0 %v1230, 12
    %v1389 = vpop.permute.xlu0 %1388
    %1390 = vrot.lane.b32.xlu0 %v1231, 12
    %v1391 = vpop.permute.xlu0 %1390
    %1392 = vrot.lane.b32.xlu0 %v1232, 12
    %v1393 = vpop.permute.xlu0 %1392
    %1394 = vrot.lane.b32.xlu0 %v1233, 12
    %v1395 = vpop.permute.xlu0 %1394
    %1396 = vrot.lane.b32.xlu0 %v1234, 12
    %v1397 = vpop.permute.xlu0 %1396
    %1398 = vrot.lane.b32.xlu0 %v1235, 12
    %v1399 = vpop.permute.xlu0 %1398
    %1400 = vrot.lane.b32.xlu0 %v1236, 12
    %v1401 = vpop.permute.xlu0 %1400
    %1402 = vrot.lane.b32.xlu0 %v1237, 12
    %v1403 = vpop.permute.xlu0 %1402
    %1404 = vrot.lane.b32.xlu0 %v1238, 12
    %v1405 = vpop.permute.xlu0 %1404
    %1406 = vrot.lane.b32.xlu0 %v1239, 12
    %v1407 = vpop.permute.xlu0 %1406
    %1408 = vrot.lane.b32.xlu0 %v1240, 12
    %v1409 = vpop.permute.xlu0 %1408
    %1410 = vrot.lane.b32.xlu0 %v1241, 12
    %v1411 = vpop.permute.xlu0 %1410
    %1412 = vrot.lane.b32.xlu0 %v1242, 12
    %v1413 = vpop.permute.xlu0 %1412
    %1414 = vrot.lane.b32.xlu0 %v1243, 12
    %v1415 = vpop.permute.xlu0 %1414
    %1416 = vrot.lane.b32.xlu0 %v1244, 12
    %v1417 = vpop.permute.xlu0 %1416
    %1418 = vrot.lane.b32.xlu0 %v1245, 12
    %v1419 = vpop.permute.xlu0 %1418
    %1420 = vrot.lane.b32.xlu0 %v1246, 12
    %v1421 = vpop.permute.xlu0 %1420
    %1422 = vrot.lane.b32.xlu0 %v1247, 12
    %v1423 = vpop.permute.xlu0 %1422
    %1424 = vrot.lane.b32.xlu0 %v1248, 12
    %v1425 = vpop.permute.xlu0 %1424
    %1426 = vrot.lane.b32.xlu0 %v1249, 12
    %v1427 = vpop.permute.xlu0 %1426
    %1428 = vrot.lane.b32.xlu0 %v1250, 12
    %v1429 = vpop.permute.xlu0 %1428
    %1430 = vrot.lane.b32.xlu0 %v1251, 12
    %v1431 = vpop.permute.xlu0 %1430
    %1432 = vrot.lane.b32.xlu0 %v1252, 12
    %v1433 = vpop.permute.xlu0 %1432
    %1434 = vrot.lane.b32.xlu0 %v1253, 12
    %v1435 = vpop.permute.xlu0 %1434
    %1436 = vrot.lane.b32.xlu0 %v1254, 12
    %v1437 = vpop.permute.xlu0 %1436
    %1438 = vrot.lane.b32.xlu0 %v1255, 12
    %v1439 = vpop.permute.xlu0 %1438
    %1440 = vrot.lane.b32.xlu0 %v1256, 12
    %v1441 = vpop.permute.xlu0 %1440
    %1442 = vrot.lane.b32.xlu0 %v1257, 12
    %v1443 = vpop.permute.xlu0 %1442
    %1444 = vrot.lane.b32.xlu0 %v1258, 12
    %v1445 = vpop.permute.xlu0 %1444
    %1446 = vrot.lane.b32.xlu0 %v1259, 12
    %v1447 = vpop.permute.xlu0 %1446
    %1448 = vrot.lane.b32.xlu0 %v1260, 12
    %v1449 = vpop.permute.xlu0 %1448
    %1450 = vrot.lane.b32.xlu0 %v1261, 12
    %v1451 = vpop.permute.xlu0 %1450
    %1452 = vrot.lane.b32.xlu0 %v1262, 12
    %v1453 = vpop.permute.xlu0 %1452
    %1454 = vrot.lane.b32.xlu0 %v1263, 12
    %v1455 = vpop.permute.xlu0 %1454
    %vm1520 = vcmask 130144
    %1521 = vst.msk [vmem:[#allocation4] sm:$0xff] %vm1520, %v1329
    %1522 = vst.msk [vmem:[#allocation4 + $0x8] sm:$0xff] %vm1520, %v1331
    %1523 = vst.msk [vmem:[#allocation4 + $0x10] sm:$0xff] %vm1520, %v1333
    %1524 = vst.msk [vmem:[#allocation4 + $0x18] sm:$0xff] %vm1520, %v1335
    %1525 = vst.msk [vmem:[#allocation4 + $0x20] sm:$0xff] %vm1520, %v1337
    %1526 = vst.msk [vmem:[#allocation4 + $0x28] sm:$0xff] %vm1520, %v1339
    %1527 = vst.msk [vmem:[#allocation4 + $0x30] sm:$0xff] %vm1520, %v1341
    %1528 = vst.msk [vmem:[#allocation4 + $0x38] sm:$0xff] %vm1520, %v1343
    %1529 = vst.msk [vmem:[#allocation4 + $0x40] sm:$0xff] %vm1520, %v1345
    %1530 = vst.msk [vmem:[#allocation4 + $0x48] sm:$0xff] %vm1520, %v1347
    %1531 = vst.msk [vmem:[#allocation4 + $0x50] sm:$0xff] %vm1520, %v1349
    %1532 = vst.msk [vmem:[#allocation4 + $0x58] sm:$0xff] %vm1520, %v1351
    %1533 = vst.msk [vmem:[#allocation4 + $0x60] sm:$0xff] %vm1520, %v1353
    %1534 = vst.msk [vmem:[#allocation4 + $0x68] sm:$0xff] %vm1520, %v1355
    %1535 = vst.msk [vmem:[#allocation4 + $0x70] sm:$0xff] %vm1520, %v1357
    %1536 = vst.msk [vmem:[#allocation4 + $0x78] sm:$0xff] %vm1520, %v1359
    %1537 = vst.msk [vmem:[#allocation4 + $0x80] sm:$0xff] %vm1520, %v1361
    %1538 = vst.msk [vmem:[#allocation4 + $0x88] sm:$0xff] %vm1520, %v1363
    %1539 = vst.msk [vmem:[#allocation4 + $0x90] sm:$0xff] %vm1520, %v1365
    %1540 = vst.msk [vmem:[#allocation4 + $0x98] sm:$0xff] %vm1520, %v1367
    %1541 = vst.msk [vmem:[#allocation4 + $0xa0] sm:$0xff] %vm1520, %v1369
    %1542 = vst.msk [vmem:[#allocation4 + $0xa8] sm:$0xff] %vm1520, %v1371
    %1543 = vst.msk [vmem:[#allocation4 + $0xb0] sm:$0xff] %vm1520, %v1373
    %1544 = vst.msk [vmem:[#allocation4 + $0xb8] sm:$0xff] %vm1520, %v1375
    %1545 = vst.msk [vmem:[#allocation4 + $0xc0] sm:$0xff] %vm1520, %v1377
    %1546 = vst.msk [vmem:[#allocation4 + $0xc8] sm:$0xff] %vm1520, %v1379
    %1547 = vst.msk [vmem:[#allocation4 + $0xd0] sm:$0xff] %vm1520, %v1381
    %1548 = vst.msk [vmem:[#allocation4 + $0xd8] sm:$0xff] %vm1520, %v1383
    %1549 = vst.msk [vmem:[#allocation4 + $0xe0] sm:$0xff] %vm1520, %v1385
    %1550 = vst.msk [vmem:[#allocation4 + $0xe8] sm:$0xff] %vm1520, %v1387
    %1551 = vst.msk [vmem:[#allocation4 + $0xf0] sm:$0xff] %vm1520, %v1389
    %1552 = vst.msk [vmem:[#allocation4 + $0xf8] sm:$0xff] %vm1520, %v1391
    %1553 = vst.msk [vmem:[#allocation4 + $0x100] sm:$0xff] %vm1520, %v1393
    %1554 = vst.msk [vmem:[#allocation4 + $0x108] sm:$0xff] %vm1520, %v1395
    %1555 = vst.msk [vmem:[#allocation4 + $0x110] sm:$0xff] %vm1520, %v1397
    %1556 = vst.msk [vmem:[#allocation4 + $0x118] sm:$0xff] %vm1520, %v1399
    %1557 = vst.msk [vmem:[#allocation4 + $0x120] sm:$0xff] %vm1520, %v1401
    %1558 = vst.msk [vmem:[#allocation4 + $0x128] sm:$0xff] %vm1520, %v1403
    %1559 = vst.msk [vmem:[#allocation4 + $0x130] sm:$0xff] %vm1520, %v1405
    %1560 = vst.msk [vmem:[#allocation4 + $0x138] sm:$0xff] %vm1520, %v1407
    %1561 = vst.msk [vmem:[#allocation4 + $0x140] sm:$0xff] %vm1520, %v1409
    %1562 = vst.msk [vmem:[#allocation4 + $0x148] sm:$0xff] %vm1520, %v1411
    %1563 = vst.msk [vmem:[#allocation4 + $0x150] sm:$0xff] %vm1520, %v1413
    %1564 = vst.msk [vmem:[#allocation4 + $0x158] sm:$0xff] %vm1520, %v1415
    %1565 = vst.msk [vmem:[#allocation4 + $0x160] sm:$0xff] %vm1520, %v1417
    %1566 = vst.msk [vmem:[#allocation4 + $0x168] sm:$0xff] %vm1520, %v1419
    %1567 = vst.msk [vmem:[#allocation4 + $0x170] sm:$0xff] %vm1520, %v1421
    %1568 = vst.msk [vmem:[#allocation4 + $0x178] sm:$0xff] %vm1520, %v1423
    %1569 = vst.msk [vmem:[#allocation4 + $0x180] sm:$0xff] %vm1520, %v1425
    %1570 = vst.msk [vmem:[#allocation4 + $0x188] sm:$0xff] %vm1520, %v1427
    %1571 = vst.msk [vmem:[#allocation4 + $0x190] sm:$0xff] %vm1520, %v1429
    %1572 = vst.msk [vmem:[#allocation4 + $0x198] sm:$0xff] %vm1520, %v1431
    %1573 = vst.msk [vmem:[#allocation4 + $0x1a0] sm:$0xff] %vm1520, %v1433
    %1574 = vst.msk [vmem:[#allocation4 + $0x1a8] sm:$0xff] %vm1520, %v1435
    %1575 = vst.msk [vmem:[#allocation4 + $0x1b0] sm:$0xff] %vm1520, %v1437
    %1576 = vst.msk [vmem:[#allocation4 + $0x1b8] sm:$0xff] %vm1520, %v1439
    %1577 = vst.msk [vmem:[#allocation4 + $0x1c0] sm:$0xff] %vm1520, %v1441
    %1578 = vst.msk [vmem:[#allocation4 + $0x1c8] sm:$0xff] %vm1520, %v1443
    %1579 = vst.msk [vmem:[#allocation4 + $0x1d0] sm:$0xff] %vm1520, %v1445
    %1580 = vst.msk [vmem:[#allocation4 + $0x1d8] sm:$0xff] %vm1520, %v1447
    %1581 = vst.msk [vmem:[#allocation4 + $0x1e0] sm:$0xff] %vm1520, %v1449
    %1582 = vst.msk [vmem:[#allocation4 + $0x1e8] sm:$0xff] %vm1520, %v1451
    %1583 = vst.msk [vmem:[#allocation4 + $0x1f0] sm:$0xff] %vm1520, %v1453
    %1584 = vst.msk [vmem:[#allocation4 + $0x1f8] sm:$0xff] %vm1520, %v1455
    %v1585 = vld [vmem:[%s237 + $0x1] sm:$0xff]
    %v1586 = vld [vmem:[%s237 + $0x9] sm:$0xff]
    %v1587 = vld [vmem:[%s237 + $0x19] sm:$0xff]
    %v1588 = vld [vmem:[%s237 + $0x21] sm:$0xff]
    %v1589 = vld [vmem:[%s237 + $0x31] sm:$0xff]
    %v1590 = vld [vmem:[%s237 + $0x39] sm:$0xff]
    %v1591 = vld [vmem:[%s237 + $0x49] sm:$0xff]
    %v1592 = vld [vmem:[%s237 + $0x51] sm:$0xff]
    %v1593 = vld [vmem:[%s237 + $0x61] sm:$0xff]
    %v1594 = vld [vmem:[%s237 + $0x69] sm:$0xff]
    %v1595 = vld [vmem:[%s237 + $0x79] sm:$0xff]
    %v1596 = vld [vmem:[%s237 + $0x81] sm:$0xff]
    %v1597 = vld [vmem:[%s237 + $0x91] sm:$0xff]
    %v1598 = vld [vmem:[%s237 + $0x99] sm:$0xff]
    %v1599 = vld [vmem:[%s237 + $0xa9] sm:$0xff]
    %v1600 = vld [vmem:[%s237 + $0xb1] sm:$0xff]
    %v1601 = vld [vmem:[%s237 + $0xc1] sm:$0xff]
    %v1602 = vld [vmem:[%s237 + $0xc9] sm:$0xff]
    %v1603 = vld [vmem:[%s237 + $0xd9] sm:$0xff]
    %v1604 = vld [vmem:[%s237 + $0xe1] sm:$0xff]
    %v1605 = vld [vmem:[%s237 + $0xf1] sm:$0xff]
    %v1606 = vld [vmem:[%s237 + $0xf9] sm:$0xff]
    %v1607 = vld [vmem:[%s237 + $0x109] sm:$0xff]
    %v1608 = vld [vmem:[%s237 + $0x111] sm:$0xff]
    %v1609 = vld [vmem:[%s237 + $0x121] sm:$0xff]
    %v1610 = vld [vmem:[%s237 + $0x129] sm:$0xff]
    %v1611 = vld [vmem:[%s237 + $0x139] sm:$0xff]
    %v1612 = vld [vmem:[%s237 + $0x141] sm:$0xff]
    %v1613 = vld [vmem:[%s237 + $0x151] sm:$0xff]
    %v1614 = vld [vmem:[%s237 + $0x159] sm:$0xff]
    %v1615 = vld [vmem:[%s237 + $0x169] sm:$0xff]
    %v1616 = vld [vmem:[%s237 + $0x171] sm:$0xff]
    %v1617 = vld [vmem:[%s237 + $0x1b1] sm:$0xff]
    %v1618 = vld [vmem:[%s237 + $0x1b9] sm:$0xff]
    %v1619 = vld [vmem:[%s237 + $0x1c9] sm:$0xff]
    %v1620 = vld [vmem:[%s237 + $0x1d1] sm:$0xff]
    %v1621 = vld [vmem:[%s237 + $0x1e1] sm:$0xff]
    %v1622 = vld [vmem:[%s237 + $0x1e9] sm:$0xff]
    %v1623 = vld [vmem:[%s237 + $0x1f9] sm:$0xff]
    %v1624 = vld [vmem:[%s237 + $0x201] sm:$0xff]
    %v1625 = vld [vmem:[%s237 + $0x211] sm:$0xff]
    %v1626 = vld [vmem:[%s237 + $0x219] sm:$0xff]
    %v1627 = vld [vmem:[%s237 + $0x229] sm:$0xff]
    %v1628 = vld [vmem:[%s237 + $0x231] sm:$0xff]
    %v1629 = vld [vmem:[%s237 + $0x241] sm:$0xff]
    %v1630 = vld [vmem:[%s237 + $0x249] sm:$0xff]
    %v1631 = vld [vmem:[%s237 + $0x259] sm:$0xff]
    %v1632 = vld [vmem:[%s237 + $0x261] sm:$0xff]
    %v1633 = vld [vmem:[%s237 + $0x271] sm:$0xff]
    %v1634 = vld [vmem:[%s237 + $0x279] sm:$0xff]
    %v1635 = vld [vmem:[%s237 + $0x289] sm:$0xff]
    %v1636 = vld [vmem:[%s237 + $0x291] sm:$0xff]
    %v1637 = vld [vmem:[%s237 + $0x2a1] sm:$0xff]
    %v1638 = vld [vmem:[%s237 + $0x2a9] sm:$0xff]
    %v1639 = vld [vmem:[%s237 + $0x2b9] sm:$0xff]
    %v1640 = vld [vmem:[%s237 + $0x2c1] sm:$0xff]
    %v1641 = vld [vmem:[%s237 + $0x2d1] sm:$0xff]
    %v1642 = vld [vmem:[%s237 + $0x2d9] sm:$0xff]
    %v1643 = vld [vmem:[%s237 + $0x2e9] sm:$0xff]
    %v1644 = vld [vmem:[%s237 + $0x2f1] sm:$0xff]
    %v1645 = vld [vmem:[%s237 + $0x301] sm:$0xff]
    %v1646 = vld [vmem:[%s237 + $0x309] sm:$0xff]
    %v1647 = vld [vmem:[%s237 + $0x319] sm:$0xff]
    %v1648 = vld [vmem:[%s237 + $0x321] sm:$0xff]
    %1713 = vrot.lane.b32.xlu0 %v1585, 16
    %v1714 = vpop.permute.xlu0 %1713
    %1715 = vrot.lane.b32.xlu0 %v1586, 16
    %v1716 = vpop.permute.xlu0 %1715
    %1717 = vrot.lane.b32.xlu0 %v1587, 16
    %v1718 = vpop.permute.xlu0 %1717
    %1719 = vrot.lane.b32.xlu0 %v1588, 16
    %v1720 = vpop.permute.xlu0 %1719
    %1721 = vrot.lane.b32.xlu0 %v1589, 16
    %v1722 = vpop.permute.xlu0 %1721
    %1723 = vrot.lane.b32.xlu0 %v1590, 16
    %v1724 = vpop.permute.xlu0 %1723
    %1725 = vrot.lane.b32.xlu0 %v1591, 16
    %v1726 = vpop.permute.xlu0 %1725
    %1727 = vrot.lane.b32.xlu0 %v1592, 16
    %v1728 = vpop.permute.xlu0 %1727
    %1729 = vrot.lane.b32.xlu0 %v1593, 16
    %v1730 = vpop.permute.xlu0 %1729
    %1731 = vrot.lane.b32.xlu0 %v1594, 16
    %v1732 = vpop.permute.xlu0 %1731
    %1733 = vrot.lane.b32.xlu0 %v1595, 16
    %v1734 = vpop.permute.xlu0 %1733
    %1735 = vrot.lane.b32.xlu0 %v1596, 16
    %v1736 = vpop.permute.xlu0 %1735
    %1737 = vrot.lane.b32.xlu0 %v1597, 16
    %v1738 = vpop.permute.xlu0 %1737
    %1739 = vrot.lane.b32.xlu0 %v1598, 16
    %v1740 = vpop.permute.xlu0 %1739
    %1741 = vrot.lane.b32.xlu0 %v1599, 16
    %v1742 = vpop.permute.xlu0 %1741
    %1743 = vrot.lane.b32.xlu0 %v1600, 16
    %v1744 = vpop.permute.xlu0 %1743
    %1745 = vrot.lane.b32.xlu0 %v1601, 16
    %v1746 = vpop.permute.xlu0 %1745
    %1747 = vrot.lane.b32.xlu0 %v1602, 16
    %v1748 = vpop.permute.xlu0 %1747
    %1749 = vrot.lane.b32.xlu0 %v1603, 16
    %v1750 = vpop.permute.xlu0 %1749
    %1751 = vrot.lane.b32.xlu0 %v1604, 16
    %v1752 = vpop.permute.xlu0 %1751
    %1753 = vrot.lane.b32.xlu0 %v1605, 16
    %v1754 = vpop.permute.xlu0 %1753
    %1755 = vrot.lane.b32.xlu0 %v1606, 16
    %v1756 = vpop.permute.xlu0 %1755
    %1757 = vrot.lane.b32.xlu0 %v1607, 16
    %v1758 = vpop.permute.xlu0 %1757
    %1759 = vrot.lane.b32.xlu0 %v1608, 16
    %v1760 = vpop.permute.xlu0 %1759
    %1761 = vrot.lane.b32.xlu0 %v1609, 16
    %v1762 = vpop.permute.xlu0 %1761
    %1763 = vrot.lane.b32.xlu0 %v1610, 16
    %v1764 = vpop.permute.xlu0 %1763
    %1765 = vrot.lane.b32.xlu0 %v1611, 16
    %v1766 = vpop.permute.xlu0 %1765
    %1767 = vrot.lane.b32.xlu0 %v1612, 16
    %v1768 = vpop.permute.xlu0 %1767
    %1769 = vrot.lane.b32.xlu0 %v1613, 16
    %v1770 = vpop.permute.xlu0 %1769
    %1771 = vrot.lane.b32.xlu0 %v1614, 16
    %v1772 = vpop.permute.xlu0 %1771
    %1773 = vrot.lane.b32.xlu0 %v1615, 16
    %v1774 = vpop.permute.xlu0 %1773
    %1775 = vrot.lane.b32.xlu0 %v1616, 16
    %v1776 = vpop.permute.xlu0 %1775
    %1777 = vrot.lane.b32.xlu0 %v1617, 16
    %v1778 = vpop.permute.xlu0 %1777
    %1779 = vrot.lane.b32.xlu0 %v1618, 16
    %v1780 = vpop.permute.xlu0 %1779
    %1781 = vrot.lane.b32.xlu0 %v1619, 16
    %v1782 = vpop.permute.xlu0 %1781
    %1783 = vrot.lane.b32.xlu0 %v1620, 16
    %v1784 = vpop.permute.xlu0 %1783
    %1785 = vrot.lane.b32.xlu0 %v1621, 16
    %v1786 = vpop.permute.xlu0 %1785
    %1787 = vrot.lane.b32.xlu0 %v1622, 16
    %v1788 = vpop.permute.xlu0 %1787
    %1789 = vrot.lane.b32.xlu0 %v1623, 16
    %v1790 = vpop.permute.xlu0 %1789
    %1791 = vrot.lane.b32.xlu0 %v1624, 16
    %v1792 = vpop.permute.xlu0 %1791
    %1793 = vrot.lane.b32.xlu0 %v1625, 16
    %v1794 = vpop.permute.xlu0 %1793
    %1795 = vrot.lane.b32.xlu0 %v1626, 16
    %v1796 = vpop.permute.xlu0 %1795
    %1797 = vrot.lane.b32.xlu0 %v1627, 16
    %v1798 = vpop.permute.xlu0 %1797
    %1799 = vrot.lane.b32.xlu0 %v1628, 16
    %v1800 = vpop.permute.xlu0 %1799
    %1801 = vrot.lane.b32.xlu0 %v1629, 16
    %v1802 = vpop.permute.xlu0 %1801
    %1803 = vrot.lane.b32.xlu0 %v1630, 16
    %v1804 = vpop.permute.xlu0 %1803
    %1805 = vrot.lane.b32.xlu0 %v1631, 16
    %v1806 = vpop.permute.xlu0 %1805
    %1807 = vrot.lane.b32.xlu0 %v1632, 16
    %v1808 = vpop.permute.xlu0 %1807
    %1809 = vrot.lane.b32.xlu0 %v1633, 16
    %v1810 = vpop.permute.xlu0 %1809
    %1811 = vrot.lane.b32.xlu0 %v1634, 16
    %v1812 = vpop.permute.xlu0 %1811
    %1813 = vrot.lane.b32.xlu0 %v1635, 16
    %v1814 = vpop.permute.xlu0 %1813
    %1815 = vrot.lane.b32.xlu0 %v1636, 16
    %v1816 = vpop.permute.xlu0 %1815
    %1817 = vrot.lane.b32.xlu0 %v1637, 16
    %v1818 = vpop.permute.xlu0 %1817
    %1819 = vrot.lane.b32.xlu0 %v1638, 16
    %v1820 = vpop.permute.xlu0 %1819
    %1821 = vrot.lane.b32.xlu0 %v1639, 16
    %v1822 = vpop.permute.xlu0 %1821
    %1823 = vrot.lane.b32.xlu0 %v1640, 16
    %v1824 = vpop.permute.xlu0 %1823
    %1825 = vrot.lane.b32.xlu0 %v1641, 16
    %v1826 = vpop.permute.xlu0 %1825
    %1827 = vrot.lane.b32.xlu0 %v1642, 16
    %v1828 = vpop.permute.xlu0 %1827
    %1829 = vrot.lane.b32.xlu0 %v1643, 16
    %v1830 = vpop.permute.xlu0 %1829
    %1831 = vrot.lane.b32.xlu0 %v1644, 16
    %v1832 = vpop.permute.xlu0 %1831
    %1833 = vrot.lane.b32.xlu0 %v1645, 16
    %v1834 = vpop.permute.xlu0 %1833
    %1835 = vrot.lane.b32.xlu0 %v1646, 16
    %v1836 = vpop.permute.xlu0 %1835
    %1837 = vrot.lane.b32.xlu0 %v1647, 16
    %v1838 = vpop.permute.xlu0 %1837
    %1839 = vrot.lane.b32.xlu0 %v1648, 16
    %v1840 = vpop.permute.xlu0 %1839
    %vm1905 = vcmask 162944
    %1906 = vst.msk [vmem:[#allocation4] sm:$0xff] %vm1905, %v1714
    %1907 = vst.msk [vmem:[#allocation4 + $0x8] sm:$0xff] %vm1905, %v1716
    %1908 = vst.msk [vmem:[#allocation4 + $0x10] sm:$0xff] %vm1905, %v1718
    %1909 = vst.msk [vmem:[#allocation4 + $0x18] sm:$0xff] %vm1905, %v1720
    %1910 = vst.msk [vmem:[#allocation4 + $0x20] sm:$0xff] %vm1905, %v1722
    %1911 = vst.msk [vmem:[#allocation4 + $0x28] sm:$0xff] %vm1905, %v1724
    %1912 = vst.msk [vmem:[#allocation4 + $0x30] sm:$0xff] %vm1905, %v1726
    %1913 = vst.msk [vmem:[#allocation4 + $0x38] sm:$0xff] %vm1905, %v1728
    %1914 = vst.msk [vmem:[#allocation4 + $0x40] sm:$0xff] %vm1905, %v1730
    %1915 = vst.msk [vmem:[#allocation4 + $0x48] sm:$0xff] %vm1905, %v1732
    %1916 = vst.msk [vmem:[#allocation4 + $0x50] sm:$0xff] %vm1905, %v1734
    %1917 = vst.msk [vmem:[#allocation4 + $0x58] sm:$0xff] %vm1905, %v1736
    %1918 = vst.msk [vmem:[#allocation4 + $0x60] sm:$0xff] %vm1905, %v1738
    %1919 = vst.msk [vmem:[#allocation4 + $0x68] sm:$0xff] %vm1905, %v1740
    %1920 = vst.msk [vmem:[#allocation4 + $0x70] sm:$0xff] %vm1905, %v1742
    %1921 = vst.msk [vmem:[#allocation4 + $0x78] sm:$0xff] %vm1905, %v1744
    %1922 = vst.msk [vmem:[#allocation4 + $0x80] sm:$0xff] %vm1905, %v1746
    %1923 = vst.msk [vmem:[#allocation4 + $0x88] sm:$0xff] %vm1905, %v1748
    %1924 = vst.msk [vmem:[#allocation4 + $0x90] sm:$0xff] %vm1905, %v1750
    %1925 = vst.msk [vmem:[#allocation4 + $0x98] sm:$0xff] %vm1905, %v1752
    %1926 = vst.msk [vmem:[#allocation4 + $0xa0] sm:$0xff] %vm1905, %v1754
    %1927 = vst.msk [vmem:[#allocation4 + $0xa8] sm:$0xff] %vm1905, %v1756
    %1928 = vst.msk [vmem:[#allocation4 + $0xb0] sm:$0xff] %vm1905, %v1758
    %1929 = vst.msk [vmem:[#allocation4 + $0xb8] sm:$0xff] %vm1905, %v1760
    %1930 = vst.msk [vmem:[#allocation4 + $0xc0] sm:$0xff] %vm1905, %v1762
    %1931 = vst.msk [vmem:[#allocation4 + $0xc8] sm:$0xff] %vm1905, %v1764
    %1932 = vst.msk [vmem:[#allocation4 + $0xd0] sm:$0xff] %vm1905, %v1766
    %1933 = vst.msk [vmem:[#allocation4 + $0xd8] sm:$0xff] %vm1905, %v1768
    %1934 = vst.msk [vmem:[#allocation4 + $0xe0] sm:$0xff] %vm1905, %v1770
    %1935 = vst.msk [vmem:[#allocation4 + $0xe8] sm:$0xff] %vm1905, %v1772
    %1936 = vst.msk [vmem:[#allocation4 + $0xf0] sm:$0xff] %vm1905, %v1774
    %1937 = vst.msk [vmem:[#allocation4 + $0xf8] sm:$0xff] %vm1905, %v1776
    %1938 = vst.msk [vmem:[#allocation4 + $0x100] sm:$0xff] %vm1905, %v1778
    %1939 = vst.msk [vmem:[#allocation4 + $0x108] sm:$0xff] %vm1905, %v1780
    %1940 = vst.msk [vmem:[#allocation4 + $0x110] sm:$0xff] %vm1905, %v1782
    %1941 = vst.msk [vmem:[#allocation4 + $0x118] sm:$0xff] %vm1905, %v1784
    %1942 = vst.msk [vmem:[#allocation4 + $0x120] sm:$0xff] %vm1905, %v1786
    %1943 = vst.msk [vmem:[#allocation4 + $0x128] sm:$0xff] %vm1905, %v1788
    %1944 = vst.msk [vmem:[#allocation4 + $0x130] sm:$0xff] %vm1905, %v1790
    %1945 = vst.msk [vmem:[#allocation4 + $0x138] sm:$0xff] %vm1905, %v1792
    %1946 = vst.msk [vmem:[#allocation4 + $0x140] sm:$0xff] %vm1905, %v1794
    %1947 = vst.msk [vmem:[#allocation4 + $0x148] sm:$0xff] %vm1905, %v1796
    %1948 = vst.msk [vmem:[#allocation4 + $0x150] sm:$0xff] %vm1905, %v1798
    %1949 = vst.msk [vmem:[#allocation4 + $0x158] sm:$0xff] %vm1905, %v1800
    %1950 = vst.msk [vmem:[#allocation4 + $0x160] sm:$0xff] %vm1905, %v1802
    %1951 = vst.msk [vmem:[#allocation4 + $0x168] sm:$0xff] %vm1905, %v1804
    %1952 = vst.msk [vmem:[#allocation4 + $0x170] sm:$0xff] %vm1905, %v1806
    %1953 = vst.msk [vmem:[#allocation4 + $0x178] sm:$0xff] %vm1905, %v1808
    %1954 = vst.msk [vmem:[#allocation4 + $0x180] sm:$0xff] %vm1905, %v1810
    %1955 = vst.msk [vmem:[#allocation4 + $0x188] sm:$0xff] %vm1905, %v1812
    %1956 = vst.msk [vmem:[#allocation4 + $0x190] sm:$0xff] %vm1905, %v1814
    %1957 = vst.msk [vmem:[#allocation4 + $0x198] sm:$0xff] %vm1905, %v1816
    %1958 = vst.msk [vmem:[#allocation4 + $0x1a0] sm:$0xff] %vm1905, %v1818
    %1959 = vst.msk [vmem:[#allocation4 + $0x1a8] sm:$0xff] %vm1905, %v1820
    %1960 = vst.msk [vmem:[#allocation4 + $0x1b0] sm:$0xff] %vm1905, %v1822
    %1961 = vst.msk [vmem:[#allocation4 + $0x1b8] sm:$0xff] %vm1905, %v1824
    %1962 = vst.msk [vmem:[#allocation4 + $0x1c0] sm:$0xff] %vm1905, %v1826
    %1963 = vst.msk [vmem:[#allocation4 + $0x1c8] sm:$0xff] %vm1905, %v1828
    %1964 = vst.msk [vmem:[#allocation4 + $0x1d0] sm:$0xff] %vm1905, %v1830
    %1965 = vst.msk [vmem:[#allocation4 + $0x1d8] sm:$0xff] %vm1905, %v1832
    %1966 = vst.msk [vmem:[#allocation4 + $0x1e0] sm:$0xff] %vm1905, %v1834
    %1967 = vst.msk [vmem:[#allocation4 + $0x1e8] sm:$0xff] %vm1905, %v1836
    %1968 = vst.msk [vmem:[#allocation4 + $0x1f0] sm:$0xff] %vm1905, %v1838
    %1969 = vst.msk [vmem:[#allocation4 + $0x1f8] sm:$0xff] %vm1905, %v1840
    %v1970 = vld [vmem:[%s237 + $0x2] sm:$0xff]
    %v1971 = vld [vmem:[%s237 + $0xa] sm:$0xff]
    %v1972 = vld [vmem:[%s237 + $0x1a] sm:$0xff]
    %v1973 = vld [vmem:[%s237 + $0x22] sm:$0xff]
    %v1974 = vld [vmem:[%s237 + $0x32] sm:$0xff]
    %v1975 = vld [vmem:[%s237 + $0x3a] sm:$0xff]
    %v1976 = vld [vmem:[%s237 + $0x4a] sm:$0xff]
    %v1977 = vld [vmem:[%s237 + $0x52] sm:$0xff]
    %v1978 = vld [vmem:[%s237 + $0x62] sm:$0xff]
    %v1979 = vld [vmem:[%s237 + $0x6a] sm:$0xff]
    %v1980 = vld [vmem:[%s237 + $0x7a] sm:$0xff]
    %v1981 = vld [vmem:[%s237 + $0x82] sm:$0xff]
    %v1982 = vld [vmem:[%s237 + $0x92] sm:$0xff]
    %v1983 = vld [vmem:[%s237 + $0x9a] sm:$0xff]
    %v1984 = vld [vmem:[%s237 + $0xaa] sm:$0xff]
    %v1985 = vld [vmem:[%s237 + $0xb2] sm:$0xff]
    %v1986 = vld [vmem:[%s237 + $0xc2] sm:$0xff]
    %v1987 = vld [vmem:[%s237 + $0xca] sm:$0xff]
    %v1988 = vld [vmem:[%s237 + $0xda] sm:$0xff]
    %v1989 = vld [vmem:[%s237 + $0xe2] sm:$0xff]
    %v1990 = vld [vmem:[%s237 + $0xf2] sm:$0xff]
    %v1991 = vld [vmem:[%s237 + $0xfa] sm:$0xff]
    %v1992 = vld [vmem:[%s237 + $0x10a] sm:$0xff]
    %v1993 = vld [vmem:[%s237 + $0x112] sm:$0xff]
    %v1994 = vld [vmem:[%s237 + $0x122] sm:$0xff]
    %v1995 = vld [vmem:[%s237 + $0x12a] sm:$0xff]
    %v1996 = vld [vmem:[%s237 + $0x13a] sm:$0xff]
    %v1997 = vld [vmem:[%s237 + $0x142] sm:$0xff]
    %v1998 = vld [vmem:[%s237 + $0x152] sm:$0xff]
    %v1999 = vld [vmem:[%s237 + $0x15a] sm:$0xff]
    %v2000 = vld [vmem:[%s237 + $0x16a] sm:$0xff]
    %v2001 = vld [vmem:[%s237 + $0x172] sm:$0xff]
    %v2002 = vld [vmem:[%s237 + $0x1b2] sm:$0xff]
    %v2003 = vld [vmem:[%s237 + $0x1ba] sm:$0xff]
    %v2004 = vld [vmem:[%s237 + $0x1ca] sm:$0xff]
    %v2005 = vld [vmem:[%s237 + $0x1d2] sm:$0xff]
    %v2006 = vld [vmem:[%s237 + $0x1e2] sm:$0xff]
    %v2007 = vld [vmem:[%s237 + $0x1ea] sm:$0xff]
    %v2008 = vld [vmem:[%s237 + $0x1fa] sm:$0xff]
    %v2009 = vld [vmem:[%s237 + $0x202] sm:$0xff]
    %v2010 = vld [vmem:[%s237 + $0x212] sm:$0xff]
    %v2011 = vld [vmem:[%s237 + $0x21a] sm:$0xff]
    %v2012 = vld [vmem:[%s237 + $0x22a] sm:$0xff]
    %v2013 = vld [vmem:[%s237 + $0x232] sm:$0xff]
    %v2014 = vld [vmem:[%s237 + $0x242] sm:$0xff]
    %v2015 = vld [vmem:[%s237 + $0x24a] sm:$0xff]
    %v2016 = vld [vmem:[%s237 + $0x25a] sm:$0xff]
    %v2017 = vld [vmem:[%s237 + $0x262] sm:$0xff]
    %v2018 = vld [vmem:[%s237 + $0x272] sm:$0xff]
    %v2019 = vld [vmem:[%s237 + $0x27a] sm:$0xff]
    %v2020 = vld [vmem:[%s237 + $0x28a] sm:$0xff]
    %v2021 = vld [vmem:[%s237 + $0x292] sm:$0xff]
    %v2022 = vld [vmem:[%s237 + $0x2a2] sm:$0xff]
    %v2023 = vld [vmem:[%s237 + $0x2aa] sm:$0xff]
    %v2024 = vld [vmem:[%s237 + $0x2ba] sm:$0xff]
    %v2025 = vld [vmem:[%s237 + $0x2c2] sm:$0xff]
    %v2026 = vld [vmem:[%s237 + $0x2d2] sm:$0xff]
    %v2027 = vld [vmem:[%s237 + $0x2da] sm:$0xff]
    %v2028 = vld [vmem:[%s237 + $0x2ea] sm:$0xff]
    %v2029 = vld [vmem:[%s237 + $0x2f2] sm:$0xff]
    %v2030 = vld [vmem:[%s237 + $0x302] sm:$0xff]
    %v2031 = vld [vmem:[%s237 + $0x30a] sm:$0xff]
    %v2032 = vld [vmem:[%s237 + $0x31a] sm:$0xff]
    %v2033 = vld [vmem:[%s237 + $0x322] sm:$0xff]
    %2098 = vrot.lane.b32.xlu0 %v1970, 20
    %v2099 = vpop.permute.xlu0 %2098
    %2100 = vrot.lane.b32.xlu0 %v1971, 20
    %v2101 = vpop.permute.xlu0 %2100
    %2102 = vrot.lane.b32.xlu0 %v1972, 20
    %v2103 = vpop.permute.xlu0 %2102
    %2104 = vrot.lane.b32.xlu0 %v1973, 20
    %v2105 = vpop.permute.xlu0 %2104
    %2106 = vrot.lane.b32.xlu0 %v1974, 20
    %v2107 = vpop.permute.xlu0 %2106
    %2108 = vrot.lane.b32.xlu0 %v1975, 20
    %v2109 = vpop.permute.xlu0 %2108
    %2110 = vrot.lane.b32.xlu0 %v1976, 20
    %v2111 = vpop.permute.xlu0 %2110
    %2112 = vrot.lane.b32.xlu0 %v1977, 20
    %v2113 = vpop.permute.xlu0 %2112
    %2114 = vrot.lane.b32.xlu0 %v1978, 20
    %v2115 = vpop.permute.xlu0 %2114
    %2116 = vrot.lane.b32.xlu0 %v1979, 20
    %v2117 = vpop.permute.xlu0 %2116
    %2118 = vrot.lane.b32.xlu0 %v1980, 20
    %v2119 = vpop.permute.xlu0 %2118
    %2120 = vrot.lane.b32.xlu0 %v1981, 20
    %v2121 = vpop.permute.xlu0 %2120
    %2122 = vrot.lane.b32.xlu0 %v1982, 20
    %v2123 = vpop.permute.xlu0 %2122
    %2124 = vrot.lane.b32.xlu0 %v1983, 20
    %v2125 = vpop.permute.xlu0 %2124
    %2126 = vrot.lane.b32.xlu0 %v1984, 20
    %v2127 = vpop.permute.xlu0 %2126
    %2128 = vrot.lane.b32.xlu0 %v1985, 20
    %v2129 = vpop.permute.xlu0 %2128
    %2130 = vrot.lane.b32.xlu0 %v1986, 20
    %v2131 = vpop.permute.xlu0 %2130
    %2132 = vrot.lane.b32.xlu0 %v1987, 20
    %v2133 = vpop.permute.xlu0 %2132
    %2134 = vrot.lane.b32.xlu0 %v1988, 20
    %v2135 = vpop.permute.xlu0 %2134
    %2136 = vrot.lane.b32.xlu0 %v1989, 20
    %v2137 = vpop.permute.xlu0 %2136
    %2138 = vrot.lane.b32.xlu0 %v1990, 20
    %v2139 = vpop.permute.xlu0 %2138
    %2140 = vrot.lane.b32.xlu0 %v1991, 20
    %v2141 = vpop.permute.xlu0 %2140
    %2142 = vrot.lane.b32.xlu0 %v1992, 20
    %v2143 = vpop.permute.xlu0 %2142
    %2144 = vrot.lane.b32.xlu0 %v1993, 20
    %v2145 = vpop.permute.xlu0 %2144
    %2146 = vrot.lane.b32.xlu0 %v1994, 20
    %v2147 = vpop.permute.xlu0 %2146
    %2148 = vrot.lane.b32.xlu0 %v1995, 20
    %v2149 = vpop.permute.xlu0 %2148
    %2150 = vrot.lane.b32.xlu0 %v1996, 20
    %v2151 = vpop.permute.xlu0 %2150
    %2152 = vrot.lane.b32.xlu0 %v1997, 20
    %v2153 = vpop.permute.xlu0 %2152
    %2154 = vrot.lane.b32.xlu0 %v1998, 20
    %v2155 = vpop.permute.xlu0 %2154
    %2156 = vrot.lane.b32.xlu0 %v1999, 20
    %v2157 = vpop.permute.xlu0 %2156
    %2158 = vrot.lane.b32.xlu0 %v2000, 20
    %v2159 = vpop.permute.xlu0 %2158
    %2160 = vrot.lane.b32.xlu0 %v2001, 20
    %v2161 = vpop.permute.xlu0 %2160
    %2162 = vrot.lane.b32.xlu0 %v2002, 20
    %v2163 = vpop.permute.xlu0 %2162
    %2164 = vrot.lane.b32.xlu0 %v2003, 20
    %v2165 = vpop.permute.xlu0 %2164
    %2166 = vrot.lane.b32.xlu0 %v2004, 20
    %v2167 = vpop.permute.xlu0 %2166
    %2168 = vrot.lane.b32.xlu0 %v2005, 20
    %v2169 = vpop.permute.xlu0 %2168
    %2170 = vrot.lane.b32.xlu0 %v2006, 20
    %v2171 = vpop.permute.xlu0 %2170
    %2172 = vrot.lane.b32.xlu0 %v2007, 20
    %v2173 = vpop.permute.xlu0 %2172
    %2174 = vrot.lane.b32.xlu0 %v2008, 20
    %v2175 = vpop.permute.xlu0 %2174
    %2176 = vrot.lane.b32.xlu0 %v2009, 20
    %v2177 = vpop.permute.xlu0 %2176
    %2178 = vrot.lane.b32.xlu0 %v2010, 20
    %v2179 = vpop.permute.xlu0 %2178
    %2180 = vrot.lane.b32.xlu0 %v2011, 20
    %v2181 = vpop.permute.xlu0 %2180
    %2182 = vrot.lane.b32.xlu0 %v2012, 20
    %v2183 = vpop.permute.xlu0 %2182
    %2184 = vrot.lane.b32.xlu0 %v2013, 20
    %v2185 = vpop.permute.xlu0 %2184
    %2186 = vrot.lane.b32.xlu0 %v2014, 20
    %v2187 = vpop.permute.xlu0 %2186
    %2188 = vrot.lane.b32.xlu0 %v2015, 20
    %v2189 = vpop.permute.xlu0 %2188
    %2190 = vrot.lane.b32.xlu0 %v2016, 20
    %v2191 = vpop.permute.xlu0 %2190
    %2192 = vrot.lane.b32.xlu0 %v2017, 20
    %v2193 = vpop.permute.xlu0 %2192
    %2194 = vrot.lane.b32.xlu0 %v2018, 20
    %v2195 = vpop.permute.xlu0 %2194
    %2196 = vrot.lane.b32.xlu0 %v2019, 20
    %v2197 = vpop.permute.xlu0 %2196
    %2198 = vrot.lane.b32.xlu0 %v2020, 20
    %v2199 = vpop.permute.xlu0 %2198
    %2200 = vrot.lane.b32.xlu0 %v2021, 20
    %v2201 = vpop.permute.xlu0 %2200
    %2202 = vrot.lane.b32.xlu0 %v2022, 20
    %v2203 = vpop.permute.xlu0 %2202
    %2204 = vrot.lane.b32.xlu0 %v2023, 20
    %v2205 = vpop.permute.xlu0 %2204
    %2206 = vrot.lane.b32.xlu0 %v2024, 20
    %v2207 = vpop.permute.xlu0 %2206
    %2208 = vrot.lane.b32.xlu0 %v2025, 20
    %v2209 = vpop.permute.xlu0 %2208
    %2210 = vrot.lane.b32.xlu0 %v2026, 20
    %v2211 = vpop.permute.xlu0 %2210
    %2212 = vrot.lane.b32.xlu0 %v2027, 20
    %v2213 = vpop.permute.xlu0 %2212
    %2214 = vrot.lane.b32.xlu0 %v2028, 20
    %v2215 = vpop.permute.xlu0 %2214
    %2216 = vrot.lane.b32.xlu0 %v2029, 20
    %v2217 = vpop.permute.xlu0 %2216
    %2218 = vrot.lane.b32.xlu0 %v2030, 20
    %v2219 = vpop.permute.xlu0 %2218
    %2220 = vrot.lane.b32.xlu0 %v2031, 20
    %v2221 = vpop.permute.xlu0 %2220
    %2222 = vrot.lane.b32.xlu0 %v2032, 20
    %v2223 = vpop.permute.xlu0 %2222
    %2224 = vrot.lane.b32.xlu0 %v2033, 20
    %v2225 = vpop.permute.xlu0 %2224
    %vm2290 = vcmask 195744
    %2291 = vst.msk [vmem:[#allocation4] sm:$0xff] %vm2290, %v2099
    %2292 = vst.msk [vmem:[#allocation4 + $0x8] sm:$0xff] %vm2290, %v2101
    %2293 = vst.msk [vmem:[#allocation4 + $0x10] sm:$0xff] %vm2290, %v2103
    %2294 = vst.msk [vmem:[#allocation4 + $0x18] sm:$0xff] %vm2290, %v2105
    %2295 = vst.msk [vmem:[#allocation4 + $0x20] sm:$0xff] %vm2290, %v2107
    %2296 = vst.msk [vmem:[#allocation4 + $0x28] sm:$0xff] %vm2290, %v2109
    %2297 = vst.msk [vmem:[#allocation4 + $0x30] sm:$0xff] %vm2290, %v2111
    %2298 = vst.msk [vmem:[#allocation4 + $0x38] sm:$0xff] %vm2290, %v2113
    %2299 = vst.msk [vmem:[#allocation4 + $0x40] sm:$0xff] %vm2290, %v2115
    %2300 = vst.msk [vmem:[#allocation4 + $0x48] sm:$0xff] %vm2290, %v2117
    %2301 = vst.msk [vmem:[#allocation4 + $0x50] sm:$0xff] %vm2290, %v2119
    %2302 = vst.msk [vmem:[#allocation4 + $0x58] sm:$0xff] %vm2290, %v2121
    %2303 = vst.msk [vmem:[#allocation4 + $0x60] sm:$0xff] %vm2290, %v2123
    %2304 = vst.msk [vmem:[#allocation4 + $0x68] sm:$0xff] %vm2290, %v2125
    %2305 = vst.msk [vmem:[#allocation4 + $0x70] sm:$0xff] %vm2290, %v2127
    %2306 = vst.msk [vmem:[#allocation4 + $0x78] sm:$0xff] %vm2290, %v2129
    %2307 = vst.msk [vmem:[#allocation4 + $0x80] sm:$0xff] %vm2290, %v2131
    %2308 = vst.msk [vmem:[#allocation4 + $0x88] sm:$0xff] %vm2290, %v2133
    %2309 = vst.msk [vmem:[#allocation4 + $0x90] sm:$0xff] %vm2290, %v2135
    %2310 = vst.msk [vmem:[#allocation4 + $0x98] sm:$0xff] %vm2290, %v2137
    %2311 = vst.msk [vmem:[#allocation4 + $0xa0] sm:$0xff] %vm2290, %v2139
    %2312 = vst.msk [vmem:[#allocation4 + $0xa8] sm:$0xff] %vm2290, %v2141
    %2313 = vst.msk [vmem:[#allocation4 + $0xb0] sm:$0xff] %vm2290, %v2143
    %2314 = vst.msk [vmem:[#allocation4 + $0xb8] sm:$0xff] %vm2290, %v2145
    %2315 = vst.msk [vmem:[#allocation4 + $0xc0] sm:$0xff] %vm2290, %v2147
    %2316 = vst.msk [vmem:[#allocation4 + $0xc8] sm:$0xff] %vm2290, %v2149
    %2317 = vst.msk [vmem:[#allocation4 + $0xd0] sm:$0xff] %vm2290, %v2151
    %2318 = vst.msk [vmem:[#allocation4 + $0xd8] sm:$0xff] %vm2290, %v2153
    %2319 = vst.msk [vmem:[#allocation4 + $0xe0] sm:$0xff] %vm2290, %v2155
    %2320 = vst.msk [vmem:[#allocation4 + $0xe8] sm:$0xff] %vm2290, %v2157
    %2321 = vst.msk [vmem:[#allocation4 + $0xf0] sm:$0xff] %vm2290, %v2159
    %2322 = vst.msk [vmem:[#allocation4 + $0xf8] sm:$0xff] %vm2290, %v2161
    %2323 = vst.msk [vmem:[#allocation4 + $0x100] sm:$0xff] %vm2290, %v2163
    %2324 = vst.msk [vmem:[#allocation4 + $0x108] sm:$0xff] %vm2290, %v2165
    %2325 = vst.msk [vmem:[#allocation4 + $0x110] sm:$0xff] %vm2290, %v2167
    %2326 = vst.msk [vmem:[#allocation4 + $0x118] sm:$0xff] %vm2290, %v2169
    %2327 = vst.msk [vmem:[#allocation4 + $0x120] sm:$0xff] %vm2290, %v2171
    %2328 = vst.msk [vmem:[#allocation4 + $0x128] sm:$0xff] %vm2290, %v2173
    %2329 = vst.msk [vmem:[#allocation4 + $0x130] sm:$0xff] %vm2290, %v2175
    %2330 = vst.msk [vmem:[#allocation4 + $0x138] sm:$0xff] %vm2290, %v2177
    %2331 = vst.msk [vmem:[#allocation4 + $0x140] sm:$0xff] %vm2290, %v2179
    %2332 = vst.msk [vmem:[#allocation4 + $0x148] sm:$0xff] %vm2290, %v2181
    %2333 = vst.msk [vmem:[#allocation4 + $0x150] sm:$0xff] %vm2290, %v2183
    %2334 = vst.msk [vmem:[#allocation4 + $0x158] sm:$0xff] %vm2290, %v2185
    %2335 = vst.msk [vmem:[#allocation4 + $0x160] sm:$0xff] %vm2290, %v2187
    %2336 = vst.msk [vmem:[#allocation4 + $0x168] sm:$0xff] %vm2290, %v2189
    %2337 = vst.msk [vmem:[#allocation4 + $0x170] sm:$0xff] %vm2290, %v2191
    %2338 = vst.msk [vmem:[#allocation4 + $0x178] sm:$0xff] %vm2290, %v2193
    %2339 = vst.msk [vmem:[#allocation4 + $0x180] sm:$0xff] %vm2290, %v2195
    %2340 = vst.msk [vmem:[#allocation4 + $0x188] sm:$0xff] %vm2290, %v2197
    %2341 = vst.msk [vmem:[#allocation4 + $0x190] sm:$0xff] %vm2290, %v2199
    %2342 = vst.msk [vmem:[#allocation4 + $0x198] sm:$0xff] %vm2290, %v2201
    %2343 = vst.msk [vmem:[#allocation4 + $0x1a0] sm:$0xff] %vm2290, %v2203
    %2344 = vst.msk [vmem:[#allocation4 + $0x1a8] sm:$0xff] %vm2290, %v2205
    %2345 = vst.msk [vmem:[#allocation4 + $0x1b0] sm:$0xff] %vm2290, %v2207
    %2346 = vst.msk [vmem:[#allocation4 + $0x1b8] sm:$0xff] %vm2290, %v2209
    %2347 = vst.msk [vmem:[#allocation4 + $0x1c0] sm:$0xff] %vm2290, %v2211
    %2348 = vst.msk [vmem:[#allocation4 + $0x1c8] sm:$0xff] %vm2290, %v2213
    %2349 = vst.msk [vmem:[#allocation4 + $0x1d0] sm:$0xff] %vm2290, %v2215
    %2350 = vst.msk [vmem:[#allocation4 + $0x1d8] sm:$0xff] %vm2290, %v2217
    %2351 = vst.msk [vmem:[#allocation4 + $0x1e0] sm:$0xff] %vm2290, %v2219
    %2352 = vst.msk [vmem:[#allocation4 + $0x1e8] sm:$0xff] %vm2290, %v2221
    %2353 = vst.msk [vmem:[#allocation4 + $0x1f0] sm:$0xff] %vm2290, %v2223
    %2354 = vst.msk [vmem:[#allocation4 + $0x1f8] sm:$0xff] %vm2290, %v2225
    %s2355 = scalar_lea.vmem [#allocation2], 48
    %v2356 = vld [vmem:[%s2355] sm:$0xff]
    %v2357 = vld [vmem:[%s2355 + $0x8] sm:$0xff]
    %v2358 = vld [vmem:[%s2355 + $0x18] sm:$0xff]
    %v2359 = vld [vmem:[%s2355 + $0x20] sm:$0xff]
    %v2360 = vld [vmem:[%s2355 + $0x30] sm:$0xff]
    %v2361 = vld [vmem:[%s2355 + $0x38] sm:$0xff]
    %v2362 = vld [vmem:[%s2355 + $0x48] sm:$0xff]
    %v2363 = vld [vmem:[%s2355 + $0x50] sm:$0xff]
    %v2364 = vld [vmem:[%s2355 + $0x60] sm:$0xff]
    %v2365 = vld [vmem:[%s2355 + $0x68] sm:$0xff]
    %v2366 = vld [vmem:[%s2355 + $0x78] sm:$0xff]
    %v2367 = vld [vmem:[%s2355 + $0x80] sm:$0xff]
    %v2368 = vld [vmem:[%s2355 + $0x90] sm:$0xff]
    %v2369 = vld [vmem:[%s2355 + $0x98] sm:$0xff]
    %v2370 = vld [vmem:[%s2355 + $0xa8] sm:$0xff]
    %v2371 = vld [vmem:[%s2355 + $0xb0] sm:$0xff]
    %v2372 = vld [vmem:[%s2355 + $0xc0] sm:$0xff]
    %v2373 = vld [vmem:[%s2355 + $0xc8] sm:$0xff]
    %v2374 = vld [vmem:[%s2355 + $0xd8] sm:$0xff]
    %v2375 = vld [vmem:[%s2355 + $0xe0] sm:$0xff]
    %v2376 = vld [vmem:[%s2355 + $0xf0] sm:$0xff]
    %v2377 = vld [vmem:[%s2355 + $0xf8] sm:$0xff]
    %v2378 = vld [vmem:[%s2355 + $0x108] sm:$0xff]
    %v2379 = vld [vmem:[%s2355 + $0x110] sm:$0xff]
    %v2380 = vld [vmem:[%s2355 + $0x120] sm:$0xff]
    %v2381 = vld [vmem:[%s2355 + $0x128] sm:$0xff]
    %v2382 = vld [vmem:[%s2355 + $0x138] sm:$0xff]
    %v2383 = vld [vmem:[%s2355 + $0x140] sm:$0xff]
    %v2384 = vld [vmem:[%s2355 + $0x150] sm:$0xff]
    %v2385 = vld [vmem:[%s2355 + $0x158] sm:$0xff]
    %v2386 = vld [vmem:[%s2355 + $0x168] sm:$0xff]
    %v2387 = vld [vmem:[%s2355 + $0x170] sm:$0xff]
    %v2388 = vld [vmem:[%s2355 + $0x1b0] sm:$0xff]
    %v2389 = vld [vmem:[%s2355 + $0x1b8] sm:$0xff]
    %v2390 = vld [vmem:[%s2355 + $0x1c8] sm:$0xff]
    %v2391 = vld [vmem:[%s2355 + $0x1d0] sm:$0xff]
    %v2392 = vld [vmem:[%s2355 + $0x1e0] sm:$0xff]
    %v2393 = vld [vmem:[%s2355 + $0x1e8] sm:$0xff]
    %v2394 = vld [vmem:[%s2355 + $0x1f8] sm:$0xff]
    %v2395 = vld [vmem:[%s2355 + $0x200] sm:$0xff]
    %v2396 = vld [vmem:[%s2355 + $0x210] sm:$0xff]
    %v2397 = vld [vmem:[%s2355 + $0x218] sm:$0xff]
    %v2398 = vld [vmem:[%s2355 + $0x228] sm:$0xff]
    %v2399 = vld [vmem:[%s2355 + $0x230] sm:$0xff]
    %v2400 = vld [vmem:[%s2355 + $0x240] sm:$0xff]
    %v2401 = vld [vmem:[%s2355 + $0x248] sm:$0xff]
    %v2402 = vld [vmem:[%s2355 + $0x258] sm:$0xff]
    %v2403 = vld [vmem:[%s2355 + $0x260] sm:$0xff]
    %v2404 = vld [vmem:[%s2355 + $0x270] sm:$0xff]
    %v2405 = vld [vmem:[%s2355 + $0x278] sm:$0xff]
    %v2406 = vld [vmem:[%s2355 + $0x288] sm:$0xff]
    %v2407 = vld [vmem:[%s2355 + $0x290] sm:$0xff]
    %v2408 = vld [vmem:[%s2355 + $0x2a0] sm:$0xff]
    %v2409 = vld [vmem:[%s2355 + $0x2a8] sm:$0xff]
    %v2410 = vld [vmem:[%s2355 + $0x2b8] sm:$0xff]
    %v2411 = vld [vmem:[%s2355 + $0x2c0] sm:$0xff]
    %v2412 = vld [vmem:[%s2355 + $0x2d0] sm:$0xff]
    %v2413 = vld [vmem:[%s2355 + $0x2d8] sm:$0xff]
    %v2414 = vld [vmem:[%s2355 + $0x2e8] sm:$0xff]
    %v2415 = vld [vmem:[%s2355 + $0x2f0] sm:$0xff]
    %v2416 = vld [vmem:[%s2355 + $0x300] sm:$0xff]
    %v2417 = vld [vmem:[%s2355 + $0x308] sm:$0xff]
    %v2418 = vld [vmem:[%s2355 + $0x318] sm:$0xff]
    %v2419 = vld [vmem:[%s2355 + $0x320] sm:$0xff]
    %2484 = vrot.lane.b32.xlu0 %v2356, 24
    %v2485 = vpop.permute.xlu0 %2484
    %2486 = vrot.lane.b32.xlu0 %v2357, 24
    %v2487 = vpop.permute.xlu0 %2486
    %2488 = vrot.lane.b32.xlu0 %v2358, 24
    %v2489 = vpop.permute.xlu0 %2488
    %2490 = vrot.lane.b32.xlu0 %v2359, 24
    %v2491 = vpop.permute.xlu0 %2490
    %2492 = vrot.lane.b32.xlu0 %v2360, 24
    %v2493 = vpop.permute.xlu0 %2492
    %2494 = vrot.lane.b32.xlu0 %v2361, 24
    %v2495 = vpop.permute.xlu0 %2494
    %2496 = vrot.lane.b32.xlu0 %v2362, 24
    %v2497 = vpop.permute.xlu0 %2496
    %2498 = vrot.lane.b32.xlu0 %v2363, 24
    %v2499 = vpop.permute.xlu0 %2498
    %2500 = vrot.lane.b32.xlu0 %v2364, 24
    %v2501 = vpop.permute.xlu0 %2500
    %2502 = vrot.lane.b32.xlu0 %v2365, 24
    %v2503 = vpop.permute.xlu0 %2502
    %2504 = vrot.lane.b32.xlu0 %v2366, 24
    %v2505 = vpop.permute.xlu0 %2504
    %2506 = vrot.lane.b32.xlu0 %v2367, 24
    %v2507 = vpop.permute.xlu0 %2506
    %2508 = vrot.lane.b32.xlu0 %v2368, 24
    %v2509 = vpop.permute.xlu0 %2508
    %2510 = vrot.lane.b32.xlu0 %v2369, 24
    %v2511 = vpop.permute.xlu0 %2510
    %2512 = vrot.lane.b32.xlu0 %v2370, 24
    %v2513 = vpop.permute.xlu0 %2512
    %2514 = vrot.lane.b32.xlu0 %v2371, 24
    %v2515 = vpop.permute.xlu0 %2514
    %2516 = vrot.lane.b32.xlu0 %v2372, 24
    %v2517 = vpop.permute.xlu0 %2516
    %2518 = vrot.lane.b32.xlu0 %v2373, 24
    %v2519 = vpop.permute.xlu0 %2518
    %2520 = vrot.lane.b32.xlu0 %v2374, 24
    %v2521 = vpop.permute.xlu0 %2520
    %2522 = vrot.lane.b32.xlu0 %v2375, 24
    %v2523 = vpop.permute.xlu0 %2522
    %2524 = vrot.lane.b32.xlu0 %v2376, 24
    %v2525 = vpop.permute.xlu0 %2524
    %2526 = vrot.lane.b32.xlu0 %v2377, 24
    %v2527 = vpop.permute.xlu0 %2526
    %2528 = vrot.lane.b32.xlu0 %v2378, 24
    %v2529 = vpop.permute.xlu0 %2528
    %2530 = vrot.lane.b32.xlu0 %v2379, 24
    %v2531 = vpop.permute.xlu0 %2530
    %2532 = vrot.lane.b32.xlu0 %v2380, 24
    %v2533 = vpop.permute.xlu0 %2532
    %2534 = vrot.lane.b32.xlu0 %v2381, 24
    %v2535 = vpop.permute.xlu0 %2534
    %2536 = vrot.lane.b32.xlu0 %v2382, 24
    %v2537 = vpop.permute.xlu0 %2536
    %2538 = vrot.lane.b32.xlu0 %v2383, 24
    %v2539 = vpop.permute.xlu0 %2538
    %2540 = vrot.lane.b32.xlu0 %v2384, 24
    %v2541 = vpop.permute.xlu0 %2540
    %2542 = vrot.lane.b32.xlu0 %v2385, 24
    %v2543 = vpop.permute.xlu0 %2542
    %2544 = vrot.lane.b32.xlu0 %v2386, 24
    %v2545 = vpop.permute.xlu0 %2544
    %2546 = vrot.lane.b32.xlu0 %v2387, 24
    %v2547 = vpop.permute.xlu0 %2546
    %2548 = vrot.lane.b32.xlu0 %v2388, 24
    %v2549 = vpop.permute.xlu0 %2548
    %2550 = vrot.lane.b32.xlu0 %v2389, 24
    %v2551 = vpop.permute.xlu0 %2550
    %2552 = vrot.lane.b32.xlu0 %v2390, 24
    %v2553 = vpop.permute.xlu0 %2552
    %2554 = vrot.lane.b32.xlu0 %v2391, 24
    %v2555 = vpop.permute.xlu0 %2554
    %2556 = vrot.lane.b32.xlu0 %v2392, 24
    %v2557 = vpop.permute.xlu0 %2556
    %2558 = vrot.lane.b32.xlu0 %v2393, 24
    %v2559 = vpop.permute.xlu0 %2558
    %2560 = vrot.lane.b32.xlu0 %v2394, 24
    %v2561 = vpop.permute.xlu0 %2560
    %2562 = vrot.lane.b32.xlu0 %v2395, 24
    %v2563 = vpop.permute.xlu0 %2562
    %2564 = vrot.lane.b32.xlu0 %v2396, 24
    %v2565 = vpop.permute.xlu0 %2564
    %2566 = vrot.lane.b32.xlu0 %v2397, 24
    %v2567 = vpop.permute.xlu0 %2566
    %2568 = vrot.lane.b32.xlu0 %v2398, 24
    %v2569 = vpop.permute.xlu0 %2568
    %2570 = vrot.lane.b32.xlu0 %v2399, 24
    %v2571 = vpop.permute.xlu0 %2570
    %2572 = vrot.lane.b32.xlu0 %v2400, 24
    %v2573 = vpop.permute.xlu0 %2572
    %2574 = vrot.lane.b32.xlu0 %v2401, 24
    %v2575 = vpop.permute.xlu0 %2574
    %2576 = vrot.lane.b32.xlu0 %v2402, 24
    %v2577 = vpop.permute.xlu0 %2576
    %2578 = vrot.lane.b32.xlu0 %v2403, 24
    %v2579 = vpop.permute.xlu0 %2578
    %2580 = vrot.lane.b32.xlu0 %v2404, 24
    %v2581 = vpop.permute.xlu0 %2580
    %2582 = vrot.lane.b32.xlu0 %v2405, 24
    %v2583 = vpop.permute.xlu0 %2582
    %2584 = vrot.lane.b32.xlu0 %v2406, 24
    %v2585 = vpop.permute.xlu0 %2584
    %2586 = vrot.lane.b32.xlu0 %v2407, 24
    %v2587 = vpop.permute.xlu0 %2586
    %2588 = vrot.lane.b32.xlu0 %v2408, 24
    %v2589 = vpop.permute.xlu0 %2588
    %2590 = vrot.lane.b32.xlu0 %v2409, 24
    %v2591 = vpop.permute.xlu0 %2590
    %2592 = vrot.lane.b32.xlu0 %v2410, 24
    %v2593 = vpop.permute.xlu0 %2592
    %2594 = vrot.lane.b32.xlu0 %v2411, 24
    %v2595 = vpop.permute.xlu0 %2594
    %2596 = vrot.lane.b32.xlu0 %v2412, 24
    %v2597 = vpop.permute.xlu0 %2596
    %2598 = vrot.lane.b32.xlu0 %v2413, 24
    %v2599 = vpop.permute.xlu0 %2598
    %2600 = vrot.lane.b32.xlu0 %v2414, 24
    %v2601 = vpop.permute.xlu0 %2600
    %2602 = vrot.lane.b32.xlu0 %v2415, 24
    %v2603 = vpop.permute.xlu0 %2602
    %2604 = vrot.lane.b32.xlu0 %v2416, 24
    %v2605 = vpop.permute.xlu0 %2604
    %2606 = vrot.lane.b32.xlu0 %v2417, 24
    %v2607 = vpop.permute.xlu0 %2606
    %2608 = vrot.lane.b32.xlu0 %v2418, 24
    %v2609 = vpop.permute.xlu0 %2608
    %2610 = vrot.lane.b32.xlu0 %v2419, 24
    %v2611 = vpop.permute.xlu0 %2610
    %vm2676 = vcmask 228544
    %2677 = vst.msk [vmem:[#allocation4] sm:$0xff] %vm2676, %v2485
    %2678 = vst.msk [vmem:[#allocation4 + $0x8] sm:$0xff] %vm2676, %v2487
    %2679 = vst.msk [vmem:[#allocation4 + $0x10] sm:$0xff] %vm2676, %v2489
    %2680 = vst.msk [vmem:[#allocation4 + $0x18] sm:$0xff] %vm2676, %v2491
    %2681 = vst.msk [vmem:[#allocation4 + $0x20] sm:$0xff] %vm2676, %v2493
    %2682 = vst.msk [vmem:[#allocation4 + $0x28] sm:$0xff] %vm2676, %v2495
    %2683 = vst.msk [vmem:[#allocation4 + $0x30] sm:$0xff] %vm2676, %v2497
    %2684 = vst.msk [vmem:[#allocation4 + $0x38] sm:$0xff] %vm2676, %v2499
    %2685 = vst.msk [vmem:[#allocation4 + $0x40] sm:$0xff] %vm2676, %v2501
    %2686 = vst.msk [vmem:[#allocation4 + $0x48] sm:$0xff] %vm2676, %v2503
    %2687 = vst.msk [vmem:[#allocation4 + $0x50] sm:$0xff] %vm2676, %v2505
    %2688 = vst.msk [vmem:[#allocation4 + $0x58] sm:$0xff] %vm2676, %v2507
    %2689 = vst.msk [vmem:[#allocation4 + $0x60] sm:$0xff] %vm2676, %v2509
    %2690 = vst.msk [vmem:[#allocation4 + $0x68] sm:$0xff] %vm2676, %v2511
    %2691 = vst.msk [vmem:[#allocation4 + $0x70] sm:$0xff] %vm2676, %v2513
    %2692 = vst.msk [vmem:[#allocation4 + $0x78] sm:$0xff] %vm2676, %v2515
    %2693 = vst.msk [vmem:[#allocation4 + $0x80] sm:$0xff] %vm2676, %v2517
    %2694 = vst.msk [vmem:[#allocation4 + $0x88] sm:$0xff] %vm2676, %v2519
    %2695 = vst.msk [vmem:[#allocation4 + $0x90] sm:$0xff] %vm2676, %v2521
    %2696 = vst.msk [vmem:[#allocation4 + $0x98] sm:$0xff] %vm2676, %v2523
    %2697 = vst.msk [vmem:[#allocation4 + $0xa0] sm:$0xff] %vm2676, %v2525
    %2698 = vst.msk [vmem:[#allocation4 + $0xa8] sm:$0xff] %vm2676, %v2527
    %2699 = vst.msk [vmem:[#allocation4 + $0xb0] sm:$0xff] %vm2676, %v2529
    %2700 = vst.msk [vmem:[#allocation4 + $0xb8] sm:$0xff] %vm2676, %v2531
    %2701 = vst.msk [vmem:[#allocation4 + $0xc0] sm:$0xff] %vm2676, %v2533
    %2702 = vst.msk [vmem:[#allocation4 + $0xc8] sm:$0xff] %vm2676, %v2535
    %2703 = vst.msk [vmem:[#allocation4 + $0xd0] sm:$0xff] %vm2676, %v2537
    %2704 = vst.msk [vmem:[#allocation4 + $0xd8] sm:$0xff] %vm2676, %v2539
    %2705 = vst.msk [vmem:[#allocation4 + $0xe0] sm:$0xff] %vm2676, %v2541
    %2706 = vst.msk [vmem:[#allocation4 + $0xe8] sm:$0xff] %vm2676, %v2543
    %2707 = vst.msk [vmem:[#allocation4 + $0xf0] sm:$0xff] %vm2676, %v2545
    %2708 = vst.msk [vmem:[#allocation4 + $0xf8] sm:$0xff] %vm2676, %v2547
    %2709 = vst.msk [vmem:[#allocation4 + $0x100] sm:$0xff] %vm2676, %v2549
    %2710 = vst.msk [vmem:[#allocation4 + $0x108] sm:$0xff] %vm2676, %v2551
    %2711 = vst.msk [vmem:[#allocation4 + $0x110] sm:$0xff] %vm2676, %v2553
    %2712 = vst.msk [vmem:[#allocation4 + $0x118] sm:$0xff] %vm2676, %v2555
    %2713 = vst.msk [vmem:[#allocation4 + $0x120] sm:$0xff] %vm2676, %v2557
    %2714 = vst.msk [vmem:[#allocation4 + $0x128] sm:$0xff] %vm2676, %v2559
    %2715 = vst.msk [vmem:[#allocation4 + $0x130] sm:$0xff] %vm2676, %v2561
    %2716 = vst.msk [vmem:[#allocation4 + $0x138] sm:$0xff] %vm2676, %v2563
    %2717 = vst.msk [vmem:[#allocation4 + $0x140] sm:$0xff] %vm2676, %v2565
    %2718 = vst.msk [vmem:[#allocation4 + $0x148] sm:$0xff] %vm2676, %v2567
    %2719 = vst.msk [vmem:[#allocation4 + $0x150] sm:$0xff] %vm2676, %v2569
    %2720 = vst.msk [vmem:[#allocation4 + $0x158] sm:$0xff] %vm2676, %v2571
    %2721 = vst.msk [vmem:[#allocation4 + $0x160] sm:$0xff] %vm2676, %v2573
    %2722 = vst.msk [vmem:[#allocation4 + $0x168] sm:$0xff] %vm2676, %v2575
    %2723 = vst.msk [vmem:[#allocation4 + $0x170] sm:$0xff] %vm2676, %v2577
    %2724 = vst.msk [vmem:[#allocation4 + $0x178] sm:$0xff] %vm2676, %v2579
    %2725 = vst.msk [vmem:[#allocation4 + $0x180] sm:$0xff] %vm2676, %v2581
    %2726 = vst.msk [vmem:[#allocation4 + $0x188] sm:$0xff] %vm2676, %v2583
    %2727 = vst.msk [vmem:[#allocation4 + $0x190] sm:$0xff] %vm2676, %v2585
    %2728 = vst.msk [vmem:[#allocation4 + $0x198] sm:$0xff] %vm2676, %v2587
    %2729 = vst.msk [vmem:[#allocation4 + $0x1a0] sm:$0xff] %vm2676, %v2589
    %2730 = vst.msk [vmem:[#allocation4 + $0x1a8] sm:$0xff] %vm2676, %v2591
    %2731 = vst.msk [vmem:[#allocation4 + $0x1b0] sm:$0xff] %vm2676, %v2593
    %2732 = vst.msk [vmem:[#allocation4 + $0x1b8] sm:$0xff] %vm2676, %v2595
    %2733 = vst.msk [vmem:[#allocation4 + $0x1c0] sm:$0xff] %vm2676, %v2597
    %2734 = vst.msk [vmem:[#allocation4 + $0x1c8] sm:$0xff] %vm2676, %v2599
    %2735 = vst.msk [vmem:[#allocation4 + $0x1d0] sm:$0xff] %vm2676, %v2601
    %2736 = vst.msk [vmem:[#allocation4 + $0x1d8] sm:$0xff] %vm2676, %v2603
    %2737 = vst.msk [vmem:[#allocation4 + $0x1e0] sm:$0xff] %vm2676, %v2605
    %2738 = vst.msk [vmem:[#allocation4 + $0x1e8] sm:$0xff] %vm2676, %v2607
    %2739 = vst.msk [vmem:[#allocation4 + $0x1f0] sm:$0xff] %vm2676, %v2609
    %2740 = vst.msk [vmem:[#allocation4 + $0x1f8] sm:$0xff] %vm2676, %v2611
    %v2741 = vld [vmem:[%s2355 + $0x1] sm:$0xff]
    %v2742 = vld [vmem:[%s2355 + $0x9] sm:$0xff]
    %v2743 = vld [vmem:[%s2355 + $0x19] sm:$0xff]
    %v2744 = vld [vmem:[%s2355 + $0x21] sm:$0xff]
    %v2745 = vld [vmem:[%s2355 + $0x31] sm:$0xff]
    %v2746 = vld [vmem:[%s2355 + $0x39] sm:$0xff]
    %v2747 = vld [vmem:[%s2355 + $0x49] sm:$0xff]
    %v2748 = vld [vmem:[%s2355 + $0x51] sm:$0xff]
    %v2749 = vld [vmem:[%s2355 + $0x61] sm:$0xff]
    %v2750 = vld [vmem:[%s2355 + $0x69] sm:$0xff]
    %v2751 = vld [vmem:[%s2355 + $0x79] sm:$0xff]
    %v2752 = vld [vmem:[%s2355 + $0x81] sm:$0xff]
    %v2753 = vld [vmem:[%s2355 + $0x91] sm:$0xff]
    %v2754 = vld [vmem:[%s2355 + $0x99] sm:$0xff]
    %v2755 = vld [vmem:[%s2355 + $0xa9] sm:$0xff]
    %v2756 = vld [vmem:[%s2355 + $0xb1] sm:$0xff]
    %v2757 = vld [vmem:[%s2355 + $0xc1] sm:$0xff]
    %v2758 = vld [vmem:[%s2355 + $0xc9] sm:$0xff]
    %v2759 = vld [vmem:[%s2355 + $0xd9] sm:$0xff]
    %v2760 = vld [vmem:[%s2355 + $0xe1] sm:$0xff]
    %v2761 = vld [vmem:[%s2355 + $0xf1] sm:$0xff]
    %v2762 = vld [vmem:[%s2355 + $0xf9] sm:$0xff]
    %v2763 = vld [vmem:[%s2355 + $0x109] sm:$0xff]
    %v2764 = vld [vmem:[%s2355 + $0x111] sm:$0xff]
    %v2765 = vld [vmem:[%s2355 + $0x121] sm:$0xff]
    %v2766 = vld [vmem:[%s2355 + $0x129] sm:$0xff]
    %v2767 = vld [vmem:[%s2355 + $0x139] sm:$0xff]
    %v2768 = vld [vmem:[%s2355 + $0x141] sm:$0xff]
    %v2769 = vld [vmem:[%s2355 + $0x151] sm:$0xff]
    %v2770 = vld [vmem:[%s2355 + $0x159] sm:$0xff]
    %v2771 = vld [vmem:[%s2355 + $0x169] sm:$0xff]
    %v2772 = vld [vmem:[%s2355 + $0x171] sm:$0xff]
    %v2773 = vld [vmem:[%s2355 + $0x1b1] sm:$0xff]
    %v2774 = vld [vmem:[%s2355 + $0x1b9] sm:$0xff]
    %v2775 = vld [vmem:[%s2355 + $0x1c9] sm:$0xff]
    %v2776 = vld [vmem:[%s2355 + $0x1d1] sm:$0xff]
    %v2777 = vld [vmem:[%s2355 + $0x1e1] sm:$0xff]
    %v2778 = vld [vmem:[%s2355 + $0x1e9] sm:$0xff]
    %v2779 = vld [vmem:[%s2355 + $0x1f9] sm:$0xff]
    %v2780 = vld [vmem:[%s2355 + $0x201] sm:$0xff]
    %v2781 = vld [vmem:[%s2355 + $0x211] sm:$0xff]
    %v2782 = vld [vmem:[%s2355 + $0x219] sm:$0xff]
    %v2783 = vld [vmem:[%s2355 + $0x229] sm:$0xff]
    %v2784 = vld [vmem:[%s2355 + $0x231] sm:$0xff]
    %v2785 = vld [vmem:[%s2355 + $0x241] sm:$0xff]
    %v2786 = vld [vmem:[%s2355 + $0x249] sm:$0xff]
    %v2787 = vld [vmem:[%s2355 + $0x259] sm:$0xff]
    %v2788 = vld [vmem:[%s2355 + $0x261] sm:$0xff]
    %v2789 = vld [vmem:[%s2355 + $0x271] sm:$0xff]
    %v2790 = vld [vmem:[%s2355 + $0x279] sm:$0xff]
    %v2791 = vld [vmem:[%s2355 + $0x289] sm:$0xff]
    %v2792 = vld [vmem:[%s2355 + $0x291] sm:$0xff]
    %v2793 = vld [vmem:[%s2355 + $0x2a1] sm:$0xff]
    %v2794 = vld [vmem:[%s2355 + $0x2a9] sm:$0xff]
    %v2795 = vld [vmem:[%s2355 + $0x2b9] sm:$0xff]
    %v2796 = vld [vmem:[%s2355 + $0x2c1] sm:$0xff]
    %v2797 = vld [vmem:[%s2355 + $0x2d1] sm:$0xff]
    %v2798 = vld [vmem:[%s2355 + $0x2d9] sm:$0xff]
    %v2799 = vld [vmem:[%s2355 + $0x2e9] sm:$0xff]
    %v2800 = vld [vmem:[%s2355 + $0x2f1] sm:$0xff]
    %v2801 = vld [vmem:[%s2355 + $0x301] sm:$0xff]
    %v2802 = vld [vmem:[%s2355 + $0x309] sm:$0xff]
    %v2803 = vld [vmem:[%s2355 + $0x319] sm:$0xff]
    %v2804 = vld [vmem:[%s2355 + $0x321] sm:$0xff]
    %2869 = vrot.lane.b32.xlu0 %v2741, 28
    %v2870 = vpop.permute.xlu0 %2869
    %2871 = vrot.lane.b32.xlu0 %v2742, 28
    %v2872 = vpop.permute.xlu0 %2871
    %2873 = vrot.lane.b32.xlu0 %v2743, 28
    %v2874 = vpop.permute.xlu0 %2873
    %2875 = vrot.lane.b32.xlu0 %v2744, 28
    %v2876 = vpop.permute.xlu0 %2875
    %2877 = vrot.lane.b32.xlu0 %v2745, 28
    %v2878 = vpop.permute.xlu0 %2877
    %2879 = vrot.lane.b32.xlu0 %v2746, 28
    %v2880 = vpop.permute.xlu0 %2879
    %2881 = vrot.lane.b32.xlu0 %v2747, 28
    %v2882 = vpop.permute.xlu0 %2881
    %2883 = vrot.lane.b32.xlu0 %v2748, 28
    %v2884 = vpop.permute.xlu0 %2883
    %2885 = vrot.lane.b32.xlu0 %v2749, 28
    %v2886 = vpop.permute.xlu0 %2885
    %2887 = vrot.lane.b32.xlu0 %v2750, 28
    %v2888 = vpop.permute.xlu0 %2887
    %2889 = vrot.lane.b32.xlu0 %v2751, 28
    %v2890 = vpop.permute.xlu0 %2889
    %2891 = vrot.lane.b32.xlu0 %v2752, 28
    %v2892 = vpop.permute.xlu0 %2891
    %2893 = vrot.lane.b32.xlu0 %v2753, 28
    %v2894 = vpop.permute.xlu0 %2893
    %2895 = vrot.lane.b32.xlu0 %v2754, 28
    %v2896 = vpop.permute.xlu0 %2895
    %2897 = vrot.lane.b32.xlu0 %v2755, 28
    %v2898 = vpop.permute.xlu0 %2897
    %2899 = vrot.lane.b32.xlu0 %v2756, 28
    %v2900 = vpop.permute.xlu0 %2899
    %2901 = vrot.lane.b32.xlu0 %v2757, 28
    %v2902 = vpop.permute.xlu0 %2901
    %2903 = vrot.lane.b32.xlu0 %v2758, 28
    %v2904 = vpop.permute.xlu0 %2903
    %2905 = vrot.lane.b32.xlu0 %v2759, 28
    %v2906 = vpop.permute.xlu0 %2905
    %2907 = vrot.lane.b32.xlu0 %v2760, 28
    %v2908 = vpop.permute.xlu0 %2907
    %2909 = vrot.lane.b32.xlu0 %v2761, 28
    %v2910 = vpop.permute.xlu0 %2909
    %2911 = vrot.lane.b32.xlu0 %v2762, 28
    %v2912 = vpop.permute.xlu0 %2911
    %2913 = vrot.lane.b32.xlu0 %v2763, 28
    %v2914 = vpop.permute.xlu0 %2913
    %2915 = vrot.lane.b32.xlu0 %v2764, 28
    %v2916 = vpop.permute.xlu0 %2915
    %2917 = vrot.lane.b32.xlu0 %v2765, 28
    %v2918 = vpop.permute.xlu0 %2917
    %2919 = vrot.lane.b32.xlu0 %v2766, 28
    %v2920 = vpop.permute.xlu0 %2919
    %2921 = vrot.lane.b32.xlu0 %v2767, 28
    %v2922 = vpop.permute.xlu0 %2921
    %2923 = vrot.lane.b32.xlu0 %v2768, 28
    %v2924 = vpop.permute.xlu0 %2923
    %2925 = vrot.lane.b32.xlu0 %v2769, 28
    %v2926 = vpop.permute.xlu0 %2925
    %2927 = vrot.lane.b32.xlu0 %v2770, 28
    %v2928 = vpop.permute.xlu0 %2927
    %2929 = vrot.lane.b32.xlu0 %v2771, 28
    %v2930 = vpop.permute.xlu0 %2929
    %2931 = vrot.lane.b32.xlu0 %v2772, 28
    %v2932 = vpop.permute.xlu0 %2931
    %2933 = vrot.lane.b32.xlu0 %v2773, 28
    %v2934 = vpop.permute.xlu0 %2933
    %2935 = vrot.lane.b32.xlu0 %v2774, 28
    %v2936 = vpop.permute.xlu0 %2935
    %2937 = vrot.lane.b32.xlu0 %v2775, 28
    %v2938 = vpop.permute.xlu0 %2937
    %2939 = vrot.lane.b32.xlu0 %v2776, 28
    %v2940 = vpop.permute.xlu0 %2939
    %2941 = vrot.lane.b32.xlu0 %v2777, 28
    %v2942 = vpop.permute.xlu0 %2941
    %2943 = vrot.lane.b32.xlu0 %v2778, 28
    %v2944 = vpop.permute.xlu0 %2943
    %2945 = vrot.lane.b32.xlu0 %v2779, 28
    %v2946 = vpop.permute.xlu0 %2945
    %2947 = vrot.lane.b32.xlu0 %v2780, 28
    %v2948 = vpop.permute.xlu0 %2947
    %2949 = vrot.lane.b32.xlu0 %v2781, 28
    %v2950 = vpop.permute.xlu0 %2949
    %2951 = vrot.lane.b32.xlu0 %v2782, 28
    %v2952 = vpop.permute.xlu0 %2951
    %2953 = vrot.lane.b32.xlu0 %v2783, 28
    %v2954 = vpop.permute.xlu0 %2953
    %2955 = vrot.lane.b32.xlu0 %v2784, 28
    %v2956 = vpop.permute.xlu0 %2955
    %2957 = vrot.lane.b32.xlu0 %v2785, 28
    %v2958 = vpop.permute.xlu0 %2957
    %2959 = vrot.lane.b32.xlu0 %v2786, 28
    %v2960 = vpop.permute.xlu0 %2959
    %2961 = vrot.lane.b32.xlu0 %v2787, 28
    %v2962 = vpop.permute.xlu0 %2961
    %2963 = vrot.lane.b32.xlu0 %v2788, 28
    %v2964 = vpop.permute.xlu0 %2963
    %2965 = vrot.lane.b32.xlu0 %v2789, 28
    %v2966 = vpop.permute.xlu0 %2965
    %2967 = vrot.lane.b32.xlu0 %v2790, 28
    %v2968 = vpop.permute.xlu0 %2967
    %2969 = vrot.lane.b32.xlu0 %v2791, 28
    %v2970 = vpop.permute.xlu0 %2969
    %2971 = vrot.lane.b32.xlu0 %v2792, 28
    %v2972 = vpop.permute.xlu0 %2971
    %2973 = vrot.lane.b32.xlu0 %v2793, 28
    %v2974 = vpop.permute.xlu0 %2973
    %2975 = vrot.lane.b32.xlu0 %v2794, 28
    %v2976 = vpop.permute.xlu0 %2975
    %2977 = vrot.lane.b32.xlu0 %v2795, 28
    %v2978 = vpop.permute.xlu0 %2977
    %2979 = vrot.lane.b32.xlu0 %v2796, 28
    %v2980 = vpop.permute.xlu0 %2979
    %2981 = vrot.lane.b32.xlu0 %v2797, 28
    %v2982 = vpop.permute.xlu0 %2981
    %2983 = vrot.lane.b32.xlu0 %v2798, 28
    %v2984 = vpop.permute.xlu0 %2983
    %2985 = vrot.lane.b32.xlu0 %v2799, 28
    %v2986 = vpop.permute.xlu0 %2985
    %2987 = vrot.lane.b32.xlu0 %v2800, 28
    %v2988 = vpop.permute.xlu0 %2987
    %2989 = vrot.lane.b32.xlu0 %v2801, 28
    %v2990 = vpop.permute.xlu0 %2989
    %2991 = vrot.lane.b32.xlu0 %v2802, 28
    %v2992 = vpop.permute.xlu0 %2991
    %2993 = vrot.lane.b32.xlu0 %v2803, 28
    %v2994 = vpop.permute.xlu0 %2993
    %2995 = vrot.lane.b32.xlu0 %v2804, 28
    %v2996 = vpop.permute.xlu0 %2995
    %vm3061 = vcmask 261344
    %3062 = vst.msk [vmem:[#allocation4] sm:$0xff] %vm3061, %v2870
    %3063 = vst.msk [vmem:[#allocation4 + $0x8] sm:$0xff] %vm3061, %v2872
    %3064 = vst.msk [vmem:[#allocation4 + $0x10] sm:$0xff] %vm3061, %v2874
    %3065 = vst.msk [vmem:[#allocation4 + $0x18] sm:$0xff] %vm3061, %v2876
    %3066 = vst.msk [vmem:[#allocation4 + $0x20] sm:$0xff] %vm3061, %v2878
    %3067 = vst.msk [vmem:[#allocation4 + $0x28] sm:$0xff] %vm3061, %v2880
    %3068 = vst.msk [vmem:[#allocation4 + $0x30] sm:$0xff] %vm3061, %v2882
    %3069 = vst.msk [vmem:[#allocation4 + $0x38] sm:$0xff] %vm3061, %v2884
    %3070 = vst.msk [vmem:[#allocation4 + $0x40] sm:$0xff] %vm3061, %v2886
    %3071 = vst.msk [vmem:[#allocation4 + $0x48] sm:$0xff] %vm3061, %v2888
    %3072 = vst.msk [vmem:[#allocation4 + $0x50] sm:$0xff] %vm3061, %v2890
    %3073 = vst.msk [vmem:[#allocation4 + $0x58] sm:$0xff] %vm3061, %v2892
    %3074 = vst.msk [vmem:[#allocation4 + $0x60] sm:$0xff] %vm3061, %v2894
    %3075 = vst.msk [vmem:[#allocation4 + $0x68] sm:$0xff] %vm3061, %v2896
    %3076 = vst.msk [vmem:[#allocation4 + $0x70] sm:$0xff] %vm3061, %v2898
    %3077 = vst.msk [vmem:[#allocation4 + $0x78] sm:$0xff] %vm3061, %v2900
    %3078 = vst.msk [vmem:[#allocation4 + $0x80] sm:$0xff] %vm3061, %v2902
    %3079 = vst.msk [vmem:[#allocation4 + $0x88] sm:$0xff] %vm3061, %v2904
    %3080 = vst.msk [vmem:[#allocation4 + $0x90] sm:$0xff] %vm3061, %v2906
    %3081 = vst.msk [vmem:[#allocation4 + $0x98] sm:$0xff] %vm3061, %v2908
    %3082 = vst.msk [vmem:[#allocation4 + $0xa0] sm:$0xff] %vm3061, %v2910
    %3083 = vst.msk [vmem:[#allocation4 + $0xa8] sm:$0xff] %vm3061, %v2912
    %3084 = vst.msk [vmem:[#allocation4 + $0xb0] sm:$0xff] %vm3061, %v2914
    %3085 = vst.msk [vmem:[#allocation4 + $0xb8] sm:$0xff] %vm3061, %v2916
    %3086 = vst.msk [vmem:[#allocation4 + $0xc0] sm:$0xff] %vm3061, %v2918
    %3087 = vst.msk [vmem:[#allocation4 + $0xc8] sm:$0xff] %vm3061, %v2920
    %3088 = vst.msk [vmem:[#allocation4 + $0xd0] sm:$0xff] %vm3061, %v2922
    %3089 = vst.msk [vmem:[#allocation4 + $0xd8] sm:$0xff] %vm3061, %v2924
    %3090 = vst.msk [vmem:[#allocation4 + $0xe0] sm:$0xff] %vm3061, %v2926
    %3091 = vst.msk [vmem:[#allocation4 + $0xe8] sm:$0xff] %vm3061, %v2928
    %3092 = vst.msk [vmem:[#allocation4 + $0xf0] sm:$0xff] %vm3061, %v2930
    %3093 = vst.msk [vmem:[#allocation4 + $0xf8] sm:$0xff] %vm3061, %v2932
    %3094 = vst.msk [vmem:[#allocation4 + $0x100] sm:$0xff] %vm3061, %v2934
    %3095 = vst.msk [vmem:[#allocation4 + $0x108] sm:$0xff] %vm3061, %v2936
    %3096 = vst.msk [vmem:[#allocation4 + $0x110] sm:$0xff] %vm3061, %v2938
    %3097 = vst.msk [vmem:[#allocation4 + $0x118] sm:$0xff] %vm3061, %v2940
    %3098 = vst.msk [vmem:[#allocation4 + $0x120] sm:$0xff] %vm3061, %v2942
    %3099 = vst.msk [vmem:[#allocation4 + $0x128] sm:$0xff] %vm3061, %v2944
    %3100 = vst.msk [vmem:[#allocation4 + $0x130] sm:$0xff] %vm3061, %v2946
    %3101 = vst.msk [vmem:[#allocation4 + $0x138] sm:$0xff] %vm3061, %v2948
    %3102 = vst.msk [vmem:[#allocation4 + $0x140] sm:$0xff] %vm3061, %v2950
    %3103 = vst.msk [vmem:[#allocation4 + $0x148] sm:$0xff] %vm3061, %v2952
    %3104 = vst.msk [vmem:[#allocation4 + $0x150] sm:$0xff] %vm3061, %v2954
    %3105 = vst.msk [vmem:[#allocation4 + $0x158] sm:$0xff] %vm3061, %v2956
    %3106 = vst.msk [vmem:[#allocation4 + $0x160] sm:$0xff] %vm3061, %v2958
    %3107 = vst.msk [vmem:[#allocation4 + $0x168] sm:$0xff] %vm3061, %v2960
    %3108 = vst.msk [vmem:[#allocation4 + $0x170] sm:$0xff] %vm3061, %v2962
    %3109 = vst.msk [vmem:[#allocation4 + $0x178] sm:$0xff] %vm3061, %v2964
    %3110 = vst.msk [vmem:[#allocation4 + $0x180] sm:$0xff] %vm3061, %v2966
    %3111 = vst.msk [vmem:[#allocation4 + $0x188] sm:$0xff] %vm3061, %v2968
    %3112 = vst.msk [vmem:[#allocation4 + $0x190] sm:$0xff] %vm3061, %v2970
    %3113 = vst.msk [vmem:[#allocation4 + $0x198] sm:$0xff] %vm3061, %v2972
    %3114 = vst.msk [vmem:[#allocation4 + $0x1a0] sm:$0xff] %vm3061, %v2974
    %3115 = vst.msk [vmem:[#allocation4 + $0x1a8] sm:$0xff] %vm3061, %v2976
    %3116 = vst.msk [vmem:[#allocation4 + $0x1b0] sm:$0xff] %vm3061, %v2978
    %3117 = vst.msk [vmem:[#allocation4 + $0x1b8] sm:$0xff] %vm3061, %v2980
    %3118 = vst.msk [vmem:[#allocation4 + $0x1c0] sm:$0xff] %vm3061, %v2982
    %3119 = vst.msk [vmem:[#allocation4 + $0x1c8] sm:$0xff] %vm3061, %v2984
    %3120 = vst.msk [vmem:[#allocation4 + $0x1d0] sm:$0xff] %vm3061, %v2986
    %3121 = vst.msk [vmem:[#allocation4 + $0x1d8] sm:$0xff] %vm3061, %v2988
    %3122 = vst.msk [vmem:[#allocation4 + $0x1e0] sm:$0xff] %vm3061, %v2990
    %3123 = vst.msk [vmem:[#allocation4 + $0x1e8] sm:$0xff] %vm3061, %v2992
    %3124 = vst.msk [vmem:[#allocation4 + $0x1f0] sm:$0xff] %vm3061, %v2994
    %3125 = vst.msk [vmem:[#allocation4 + $0x1f8] sm:$0xff] %vm3061, %v2996
    %v3126 = vld [vmem:[%s2355 + $0x2] sm:$0xff]
    %v3127 = vld [vmem:[%s2355 + $0xa] sm:$0xff]
    %v3128 = vld [vmem:[%s2355 + $0x1a] sm:$0xff]
    %v3129 = vld [vmem:[%s2355 + $0x22] sm:$0xff]
    %v3130 = vld [vmem:[%s2355 + $0x32] sm:$0xff]
    %v3131 = vld [vmem:[%s2355 + $0x3a] sm:$0xff]
    %v3132 = vld [vmem:[%s2355 + $0x4a] sm:$0xff]
    %v3133 = vld [vmem:[%s2355 + $0x52] sm:$0xff]
    %v3134 = vld [vmem:[%s2355 + $0x62] sm:$0xff]
    %v3135 = vld [vmem:[%s2355 + $0x6a] sm:$0xff]
    %v3136 = vld [vmem:[%s2355 + $0x7a] sm:$0xff]
    %v3137 = vld [vmem:[%s2355 + $0x82] sm:$0xff]
    %v3138 = vld [vmem:[%s2355 + $0x92] sm:$0xff]
    %v3139 = vld [vmem:[%s2355 + $0x9a] sm:$0xff]
    %v3140 = vld [vmem:[%s2355 + $0xaa] sm:$0xff]
    %v3141 = vld [vmem:[%s2355 + $0xb2] sm:$0xff]
    %v3142 = vld [vmem:[%s2355 + $0xc2] sm:$0xff]
    %v3143 = vld [vmem:[%s2355 + $0xca] sm:$0xff]
    %v3144 = vld [vmem:[%s2355 + $0xda] sm:$0xff]
    %v3145 = vld [vmem:[%s2355 + $0xe2] sm:$0xff]
    %v3146 = vld [vmem:[%s2355 + $0xf2] sm:$0xff]
    %v3147 = vld [vmem:[%s2355 + $0xfa] sm:$0xff]
    %v3148 = vld [vmem:[%s2355 + $0x10a] sm:$0xff]
    %v3149 = vld [vmem:[%s2355 + $0x112] sm:$0xff]
    %v3150 = vld [vmem:[%s2355 + $0x122] sm:$0xff]
    %v3151 = vld [vmem:[%s2355 + $0x12a] sm:$0xff]
    %v3152 = vld [vmem:[%s2355 + $0x13a] sm:$0xff]
    %v3153 = vld [vmem:[%s2355 + $0x142] sm:$0xff]
    %v3154 = vld [vmem:[%s2355 + $0x152] sm:$0xff]
    %v3155 = vld [vmem:[%s2355 + $0x15a] sm:$0xff]
    %v3156 = vld [vmem:[%s2355 + $0x16a] sm:$0xff]
    %v3157 = vld [vmem:[%s2355 + $0x172] sm:$0xff]
    %v3158 = vld [vmem:[%s2355 + $0x1b2] sm:$0xff]
    %v3159 = vld [vmem:[%s2355 + $0x1ba] sm:$0xff]
    %v3160 = vld [vmem:[%s2355 + $0x1ca] sm:$0xff]
    %v3161 = vld [vmem:[%s2355 + $0x1d2] sm:$0xff]
    %v3162 = vld [vmem:[%s2355 + $0x1e2] sm:$0xff]
    %v3163 = vld [vmem:[%s2355 + $0x1ea] sm:$0xff]
    %v3164 = vld [vmem:[%s2355 + $0x1fa] sm:$0xff]
    %v3165 = vld [vmem:[%s2355 + $0x202] sm:$0xff]
    %v3166 = vld [vmem:[%s2355 + $0x212] sm:$0xff]
    %v3167 = vld [vmem:[%s2355 + $0x21a] sm:$0xff]
    %v3168 = vld [vmem:[%s2355 + $0x22a] sm:$0xff]
    %v3169 = vld [vmem:[%s2355 + $0x232] sm:$0xff]
    %v3170 = vld [vmem:[%s2355 + $0x242] sm:$0xff]
    %v3171 = vld [vmem:[%s2355 + $0x24a] sm:$0xff]
    %v3172 = vld [vmem:[%s2355 + $0x25a] sm:$0xff]
    %v3173 = vld [vmem:[%s2355 + $0x262] sm:$0xff]
    %v3174 = vld [vmem:[%s2355 + $0x272] sm:$0xff]
    %v3175 = vld [vmem:[%s2355 + $0x27a] sm:$0xff]
    %v3176 = vld [vmem:[%s2355 + $0x28a] sm:$0xff]
    %v3177 = vld [vmem:[%s2355 + $0x292] sm:$0xff]
    %v3178 = vld [vmem:[%s2355 + $0x2a2] sm:$0xff]
    %v3179 = vld [vmem:[%s2355 + $0x2aa] sm:$0xff]
    %v3180 = vld [vmem:[%s2355 + $0x2ba] sm:$0xff]
    %v3181 = vld [vmem:[%s2355 + $0x2c2] sm:$0xff]
    %v3182 = vld [vmem:[%s2355 + $0x2d2] sm:$0xff]
    %v3183 = vld [vmem:[%s2355 + $0x2da] sm:$0xff]
    %v3184 = vld [vmem:[%s2355 + $0x2ea] sm:$0xff]
    %v3185 = vld [vmem:[%s2355 + $0x2f2] sm:$0xff]
    %v3186 = vld [vmem:[%s2355 + $0x302] sm:$0xff]
    %v3187 = vld [vmem:[%s2355 + $0x30a] sm:$0xff]
    %v3188 = vld [vmem:[%s2355 + $0x31a] sm:$0xff]
    %v3189 = vld [vmem:[%s2355 + $0x322] sm:$0xff]
    %3254 = vrot.lane.b32.xlu0 %v3126, 32
    %v3255 = vpop.permute.xlu0 %3254
    %3256 = vrot.lane.b32.xlu0 %v3127, 32
    %v3257 = vpop.permute.xlu0 %3256
    %3258 = vrot.lane.b32.xlu0 %v3128, 32
    %v3259 = vpop.permute.xlu0 %3258
    %3260 = vrot.lane.b32.xlu0 %v3129, 32
    %v3261 = vpop.permute.xlu0 %3260
    %3262 = vrot.lane.b32.xlu0 %v3130, 32
    %v3263 = vpop.permute.xlu0 %3262
    %3264 = vrot.lane.b32.xlu0 %v3131, 32
    %v3265 = vpop.permute.xlu0 %3264
    %3266 = vrot.lane.b32.xlu0 %v3132, 32
    %v3267 = vpop.permute.xlu0 %3266
    %3268 = vrot.lane.b32.xlu0 %v3133, 32
    %v3269 = vpop.permute.xlu0 %3268
    %3270 = vrot.lane.b32.xlu0 %v3134, 32
    %v3271 = vpop.permute.xlu0 %3270
    %3272 = vrot.lane.b32.xlu0 %v3135, 32
    %v3273 = vpop.permute.xlu0 %3272
    %3274 = vrot.lane.b32.xlu0 %v3136, 32
    %v3275 = vpop.permute.xlu0 %3274
    %3276 = vrot.lane.b32.xlu0 %v3137, 32
    %v3277 = vpop.permute.xlu0 %3276
    %3278 = vrot.lane.b32.xlu0 %v3138, 32
    %v3279 = vpop.permute.xlu0 %3278
    %3280 = vrot.lane.b32.xlu0 %v3139, 32
    %v3281 = vpop.permute.xlu0 %3280
    %3282 = vrot.lane.b32.xlu0 %v3140, 32
    %v3283 = vpop.permute.xlu0 %3282
    %3284 = vrot.lane.b32.xlu0 %v3141, 32
    %v3285 = vpop.permute.xlu0 %3284
    %3286 = vrot.lane.b32.xlu0 %v3142, 32
    %v3287 = vpop.permute.xlu0 %3286
    %3288 = vrot.lane.b32.xlu0 %v3143, 32
    %v3289 = vpop.permute.xlu0 %3288
    %3290 = vrot.lane.b32.xlu0 %v3144, 32
    %v3291 = vpop.permute.xlu0 %3290
    %3292 = vrot.lane.b32.xlu0 %v3145, 32
    %v3293 = vpop.permute.xlu0 %3292
    %3294 = vrot.lane.b32.xlu0 %v3146, 32
    %v3295 = vpop.permute.xlu0 %3294
    %3296 = vrot.lane.b32.xlu0 %v3147, 32
    %v3297 = vpop.permute.xlu0 %3296
    %3298 = vrot.lane.b32.xlu0 %v3148, 32
    %v3299 = vpop.permute.xlu0 %3298
    %3300 = vrot.lane.b32.xlu0 %v3149, 32
    %v3301 = vpop.permute.xlu0 %3300
    %3302 = vrot.lane.b32.xlu0 %v3150, 32
    %v3303 = vpop.permute.xlu0 %3302
    %3304 = vrot.lane.b32.xlu0 %v3151, 32
    %v3305 = vpop.permute.xlu0 %3304
    %3306 = vrot.lane.b32.xlu0 %v3152, 32
    %v3307 = vpop.permute.xlu0 %3306
    %3308 = vrot.lane.b32.xlu0 %v3153, 32
    %v3309 = vpop.permute.xlu0 %3308
    %3310 = vrot.lane.b32.xlu0 %v3154, 32
    %v3311 = vpop.permute.xlu0 %3310
    %3312 = vrot.lane.b32.xlu0 %v3155, 32
    %v3313 = vpop.permute.xlu0 %3312
    %3314 = vrot.lane.b32.xlu0 %v3156, 32
    %v3315 = vpop.permute.xlu0 %3314
    %3316 = vrot.lane.b32.xlu0 %v3157, 32
    %v3317 = vpop.permute.xlu0 %3316
    %3318 = vrot.lane.b32.xlu0 %v3158, 32
    %v3319 = vpop.permute.xlu0 %3318
    %3320 = vrot.lane.b32.xlu0 %v3159, 32
    %v3321 = vpop.permute.xlu0 %3320
    %3322 = vrot.lane.b32.xlu0 %v3160, 32
    %v3323 = vpop.permute.xlu0 %3322
    %3324 = vrot.lane.b32.xlu0 %v3161, 32
    %v3325 = vpop.permute.xlu0 %3324
    %3326 = vrot.lane.b32.xlu0 %v3162, 32
    %v3327 = vpop.permute.xlu0 %3326
    %3328 = vrot.lane.b32.xlu0 %v3163, 32
    %v3329 = vpop.permute.xlu0 %3328
    %3330 = vrot.lane.b32.xlu0 %v3164, 32
    %v3331 = vpop.permute.xlu0 %3330
    %3332 = vrot.lane.b32.xlu0 %v3165, 32
    %v3333 = vpop.permute.xlu0 %3332
    %3334 = vrot.lane.b32.xlu0 %v3166, 32
    %v3335 = vpop.permute.xlu0 %3334
    %3336 = vrot.lane.b32.xlu0 %v3167, 32
    %v3337 = vpop.permute.xlu0 %3336
    %3338 = vrot.lane.b32.xlu0 %v3168, 32
    %v3339 = vpop.permute.xlu0 %3338
    %3340 = vrot.lane.b32.xlu0 %v3169, 32
    %v3341 = vpop.permute.xlu0 %3340
    %3342 = vrot.lane.b32.xlu0 %v3170, 32
    %v3343 = vpop.permute.xlu0 %3342
    %3344 = vrot.lane.b32.xlu0 %v3171, 32
    %v3345 = vpop.permute.xlu0 %3344
    %3346 = vrot.lane.b32.xlu0 %v3172, 32
    %v3347 = vpop.permute.xlu0 %3346
    %3348 = vrot.lane.b32.xlu0 %v3173, 32
    %v3349 = vpop.permute.xlu0 %3348
    %3350 = vrot.lane.b32.xlu0 %v3174, 32
    %v3351 = vpop.permute.xlu0 %3350
    %3352 = vrot.lane.b32.xlu0 %v3175, 32
    %v3353 = vpop.permute.xlu0 %3352
    %3354 = vrot.lane.b32.xlu0 %v3176, 32
    %v3355 = vpop.permute.xlu0 %3354
    %3356 = vrot.lane.b32.xlu0 %v3177, 32
    %v3357 = vpop.permute.xlu0 %3356
    %3358 = vrot.lane.b32.xlu0 %v3178, 32
    %v3359 = vpop.permute.xlu0 %3358
    %3360 = vrot.lane.b32.xlu0 %v3179, 32
    %v3361 = vpop.permute.xlu0 %3360
    %3362 = vrot.lane.b32.xlu0 %v3180, 32
    %v3363 = vpop.permute.xlu0 %3362
    %3364 = vrot.lane.b32.xlu0 %v3181, 32
    %v3365 = vpop.permute.xlu0 %3364
    %3366 = vrot.lane.b32.xlu0 %v3182, 32
    %v3367 = vpop.permute.xlu0 %3366
    %3368 = vrot.lane.b32.xlu0 %v3183, 32
    %v3369 = vpop.permute.xlu0 %3368
    %3370 = vrot.lane.b32.xlu0 %v3184, 32
    %v3371 = vpop.permute.xlu0 %3370
    %3372 = vrot.lane.b32.xlu0 %v3185, 32
    %v3373 = vpop.permute.xlu0 %3372
    %3374 = vrot.lane.b32.xlu0 %v3186, 32
    %v3375 = vpop.permute.xlu0 %3374
    %3376 = vrot.lane.b32.xlu0 %v3187, 32
    %v3377 = vpop.permute.xlu0 %3376
    %3378 = vrot.lane.b32.xlu0 %v3188, 32
    %v3379 = vpop.permute.xlu0 %3378
    %3380 = vrot.lane.b32.xlu0 %v3189, 32
    %v3381 = vpop.permute.xlu0 %3380
    %vm3446 = vcmask 294144
    %3447 = vst.msk [vmem:[#allocation4] sm:$0xff] %vm3446, %v3255
    %3448 = vst.msk [vmem:[#allocation4 + $0x8] sm:$0xff] %vm3446, %v3257
    %3449 = vst.msk [vmem:[#allocation4 + $0x10] sm:$0xff] %vm3446, %v3259
    %3450 = vst.msk [vmem:[#allocation4 + $0x18] sm:$0xff] %vm3446, %v3261
    %3451 = vst.msk [vmem:[#allocation4 + $0x20] sm:$0xff] %vm3446, %v3263
    %3452 = vst.msk [vmem:[#allocation4 + $0x28] sm:$0xff] %vm3446, %v3265
    %3453 = vst.msk [vmem:[#allocation4 + $0x30] sm:$0xff] %vm3446, %v3267
    %3454 = vst.msk [vmem:[#allocation4 + $0x38] sm:$0xff] %vm3446, %v3269
    %3455 = vst.msk [vmem:[#allocation4 + $0x40] sm:$0xff] %vm3446, %v3271
    %3456 = vst.msk [vmem:[#allocation4 + $0x48] sm:$0xff] %vm3446, %v3273
    %3457 = vst.msk [vmem:[#allocation4 + $0x50] sm:$0xff] %vm3446, %v3275
    %3458 = vst.msk [vmem:[#allocation4 + $0x58] sm:$0xff] %vm3446, %v3277
    %3459 = vst.msk [vmem:[#allocation4 + $0x60] sm:$0xff] %vm3446, %v3279
    %3460 = vst.msk [vmem:[#allocation4 + $0x68] sm:$0xff] %vm3446, %v3281
    %3461 = vst.msk [vmem:[#allocation4 + $0x70] sm:$0xff] %vm3446, %v3283
    %3462 = vst.msk [vmem:[#allocation4 + $0x78] sm:$0xff] %vm3446, %v3285
    %3463 = vst.msk [vmem:[#allocation4 + $0x80] sm:$0xff] %vm3446, %v3287
    %3464 = vst.msk [vmem:[#allocation4 + $0x88] sm:$0xff] %vm3446, %v3289
    %3465 = vst.msk [vmem:[#allocation4 + $0x90] sm:$0xff] %vm3446, %v3291
    %3466 = vst.msk [vmem:[#allocation4 + $0x98] sm:$0xff] %vm3446, %v3293
    %3467 = vst.msk [vmem:[#allocation4 + $0xa0] sm:$0xff] %vm3446, %v3295
    %3468 = vst.msk [vmem:[#allocation4 + $0xa8] sm:$0xff] %vm3446, %v3297
    %3469 = vst.msk [vmem:[#allocation4 + $0xb0] sm:$0xff] %vm3446, %v3299
    %3470 = vst.msk [vmem:[#allocation4 + $0xb8] sm:$0xff] %vm3446, %v3301
    %3471 = vst.msk [vmem:[#allocation4 + $0xc0] sm:$0xff] %vm3446, %v3303
    %3472 = vst.msk [vmem:[#allocation4 + $0xc8] sm:$0xff] %vm3446, %v3305
    %3473 = vst.msk [vmem:[#allocation4 + $0xd0] sm:$0xff] %vm3446, %v3307
    %3474 = vst.msk [vmem:[#allocation4 + $0xd8] sm:$0xff] %vm3446, %v3309
    %3475 = vst.msk [vmem:[#allocation4 + $0xe0] sm:$0xff] %vm3446, %v3311
    %3476 = vst.msk [vmem:[#allocation4 + $0xe8] sm:$0xff] %vm3446, %v3313
    %3477 = vst.msk [vmem:[#allocation4 + $0xf0] sm:$0xff] %vm3446, %v3315
    %3478 = vst.msk [vmem:[#allocation4 + $0xf8] sm:$0xff] %vm3446, %v3317
    %3479 = vst.msk [vmem:[#allocation4 + $0x100] sm:$0xff] %vm3446, %v3319
    %3480 = vst.msk [vmem:[#allocation4 + $0x108] sm:$0xff] %vm3446, %v3321
    %3481 = vst.msk [vmem:[#allocation4 + $0x110] sm:$0xff] %vm3446, %v3323
    %3482 = vst.msk [vmem:[#allocation4 + $0x118] sm:$0xff] %vm3446, %v3325
    %3483 = vst.msk [vmem:[#allocation4 + $0x120] sm:$0xff] %vm3446, %v3327
    %3484 = vst.msk [vmem:[#allocation4 + $0x128] sm:$0xff] %vm3446, %v3329
    %3485 = vst.msk [vmem:[#allocation4 + $0x130] sm:$0xff] %vm3446, %v3331
    %3486 = vst.msk [vmem:[#allocation4 + $0x138] sm:$0xff] %vm3446, %v3333
    %3487 = vst.msk [vmem:[#allocation4 + $0x140] sm:$0xff] %vm3446, %v3335
    %3488 = vst.msk [vmem:[#allocation4 + $0x148] sm:$0xff] %vm3446, %v3337
    %3489 = vst.msk [vmem:[#allocation4 + $0x150] sm:$0xff] %vm3446, %v3339
    %3490 = vst.msk [vmem:[#allocation4 + $0x158] sm:$0xff] %vm3446, %v3341
    %3491 = vst.msk [vmem:[#allocation4 + $0x160] sm:$0xff] %vm3446, %v3343
    %3492 = vst.msk [vmem:[#allocation4 + $0x168] sm:$0xff] %vm3446, %v3345
    %3493 = vst.msk [vmem:[#allocation4 + $0x170] sm:$0xff] %vm3446, %v3347
    %3494 = vst.msk [vmem:[#allocation4 + $0x178] sm:$0xff] %vm3446, %v3349
    %3495 = vst.msk [vmem:[#allocation4 + $0x180] sm:$0xff] %vm3446, %v3351
    %3496 = vst.msk [vmem:[#allocation4 + $0x188] sm:$0xff] %vm3446, %v3353
    %3497 = vst.msk [vmem:[#allocation4 + $0x190] sm:$0xff] %vm3446, %v3355
    %3498 = vst.msk [vmem:[#allocation4 + $0x198] sm:$0xff] %vm3446, %v3357
    %3499 = vst.msk [vmem:[#allocation4 + $0x1a0] sm:$0xff] %vm3446, %v3359
    %3500 = vst.msk [vmem:[#allocation4 + $0x1a8] sm:$0xff] %vm3446, %v3361
    %3501 = vst.msk [vmem:[#allocation4 + $0x1b0] sm:$0xff] %vm3446, %v3363
    %3502 = vst.msk [vmem:[#allocation4 + $0x1b8] sm:$0xff] %vm3446, %v3365
    %3503 = vst.msk [vmem:[#allocation4 + $0x1c0] sm:$0xff] %vm3446, %v3367
    %3504 = vst.msk [vmem:[#allocation4 + $0x1c8] sm:$0xff] %vm3446, %v3369
    %3505 = vst.msk [vmem:[#allocation4 + $0x1d0] sm:$0xff] %vm3446, %v3371
    %3506 = vst.msk [vmem:[#allocation4 + $0x1d8] sm:$0xff] %vm3446, %v3373
    %3507 = vst.msk [vmem:[#allocation4 + $0x1e0] sm:$0xff] %vm3446, %v3375
    %3508 = vst.msk [vmem:[#allocation4 + $0x1e8] sm:$0xff] %vm3446, %v3377
    %3509 = vst.msk [vmem:[#allocation4 + $0x1f0] sm:$0xff] %vm3446, %v3379
    %3510 = vst.msk [vmem:[#allocation4 + $0x1f8] sm:$0xff] %vm3446, %v3381
    %v3511 = vld [vmem:[#allocation4] sm:$0xff]
    %v3512 = vld [vmem:[#allocation4 + $0x8] sm:$0xff]
    %v3513 = vld [vmem:[#allocation4 + $0x10] sm:$0xff]
    %v3514 = vld [vmem:[#allocation4 + $0x18] sm:$0xff]
    %v3515 = vld [vmem:[#allocation4 + $0x20] sm:$0xff]
    %v3516 = vld [vmem:[#allocation4 + $0x28] sm:$0xff]
    %v3517 = vld [vmem:[#allocation4 + $0x30] sm:$0xff]
    %v3518 = vld [vmem:[#allocation4 + $0x38] sm:$0xff]
    %v3519 = vld [vmem:[#allocation4 + $0x40] sm:$0xff]
    %v3520 = vld [vmem:[#allocation4 + $0x48] sm:$0xff]
    %v3521 = vld [vmem:[#allocation4 + $0x50] sm:$0xff]
    %v3522 = vld [vmem:[#allocation4 + $0x58] sm:$0xff]
    %v3523 = vld [vmem:[#allocation4 + $0x60] sm:$0xff]
    %v3524 = vld [vmem:[#allocation4 + $0x68] sm:$0xff]
    %v3525 = vld [vmem:[#allocation4 + $0x70] sm:$0xff]
    %v3526 = vld [vmem:[#allocation4 + $0x78] sm:$0xff]
    %v3527 = vld [vmem:[#allocation4 + $0x80] sm:$0xff]
    %v3528 = vld [vmem:[#allocation4 + $0x88] sm:$0xff]
    %v3529 = vld [vmem:[#allocation4 + $0x90] sm:$0xff]
    %v3530 = vld [vmem:[#allocation4 + $0x98] sm:$0xff]
    %v3531 = vld [vmem:[#allocation4 + $0xa0] sm:$0xff]
    %v3532 = vld [vmem:[#allocation4 + $0xa8] sm:$0xff]
    %v3533 = vld [vmem:[#allocation4 + $0xb0] sm:$0xff]
    %v3534 = vld [vmem:[#allocation4 + $0xb8] sm:$0xff]
    %v3535 = vld [vmem:[#allocation4 + $0xc0] sm:$0xff]
    %v3536 = vld [vmem:[#allocation4 + $0xc8] sm:$0xff]
    %v3537 = vld [vmem:[#allocation4 + $0xd0] sm:$0xff]
    %v3538 = vld [vmem:[#allocation4 + $0xd8] sm:$0xff]
    %v3539 = vld [vmem:[#allocation4 + $0xe0] sm:$0xff]
    %v3540 = vld [vmem:[#allocation4 + $0xe8] sm:$0xff]
    %v3541 = vld [vmem:[#allocation4 + $0xf0] sm:$0xff]
    %v3542 = vld [vmem:[#allocation4 + $0xf8] sm:$0xff]
    %v3543 = vld [vmem:[#allocation4 + $0x100] sm:$0xff]
    %v3544 = vld [vmem:[#allocation4 + $0x108] sm:$0xff]
    %v3545 = vld [vmem:[#allocation4 + $0x110] sm:$0xff]
    %v3546 = vld [vmem:[#allocation4 + $0x118] sm:$0xff]
    %v3547 = vld [vmem:[#allocation4 + $0x120] sm:$0xff]
    %v3548 = vld [vmem:[#allocation4 + $0x128] sm:$0xff]
    %v3549 = vld [vmem:[#allocation4 + $0x130] sm:$0xff]
    %v3550 = vld [vmem:[#allocation4 + $0x138] sm:$0xff]
    %v3551 = vld [vmem:[#allocation4 + $0x140] sm:$0xff]
    %v3552 = vld [vmem:[#allocation4 + $0x148] sm:$0xff]
    %v3553 = vld [vmem:[#allocation4 + $0x150] sm:$0xff]
    %v3554 = vld [vmem:[#allocation4 + $0x158] sm:$0xff]
    %v3555 = vld [vmem:[#allocation4 + $0x160] sm:$0xff]
    %v3556 = vld [vmem:[#allocation4 + $0x168] sm:$0xff]
    %v3557 = vld [vmem:[#allocation4 + $0x170] sm:$0xff]
    %v3558 = vld [vmem:[#allocation4 + $0x178] sm:$0xff]
    %v3559 = vld [vmem:[#allocation4 + $0x180] sm:$0xff]
    %v3560 = vld [vmem:[#allocation4 + $0x188] sm:$0xff]
    %v3561 = vld [vmem:[#allocation4 + $0x190] sm:$0xff]
    %v3562 = vld [vmem:[#allocation4 + $0x198] sm:$0xff]
    %v3563 = vld [vmem:[#allocation4 + $0x1a0] sm:$0xff]
    %v3564 = vld [vmem:[#allocation4 + $0x1a8] sm:$0xff]
    %v3565 = vld [vmem:[#allocation4 + $0x1b0] sm:$0xff]
    %v3566 = vld [vmem:[#allocation4 + $0x1b8] sm:$0xff]
    %v3567 = vld [vmem:[#allocation4 + $0x1c0] sm:$0xff]
    %v3568 = vld [vmem:[#allocation4 + $0x1c8] sm:$0xff]
    %v3569 = vld [vmem:[#allocation4 + $0x1d0] sm:$0xff]
    %v3570 = vld [vmem:[#allocation4 + $0x1d8] sm:$0xff]
    %v3571 = vld [vmem:[#allocation4 + $0x1e0] sm:$0xff]
    %v3572 = vld [vmem:[#allocation4 + $0x1e8] sm:$0xff]
    %v3573 = vld [vmem:[#allocation4 + $0x1f0] sm:$0xff]
    %v3574 = vld [vmem:[#allocation4 + $0x1f8] sm:$0xff]
    %v3575 = vpack.c.bf16 %v3512, %v3511
    %v3576 = vpack.c.bf16 %v3514, %v3513
    %v3577 = vpack.c.bf16 %v3516, %v3515
    %v3578 = vpack.c.bf16 %v3518, %v3517
    %v3579 = vpack.c.bf16 %v3520, %v3519
    %v3580 = vpack.c.bf16 %v3522, %v3521
    %v3581 = vpack.c.bf16 %v3524, %v3523
    %v3582 = vpack.c.bf16 %v3526, %v3525
    %v3583 = vpack.c.bf16 %v3528, %v3527
    %v3584 = vpack.c.bf16 %v3530, %v3529
    %v3585 = vpack.c.bf16 %v3532, %v3531
    %v3586 = vpack.c.bf16 %v3534, %v3533
    %v3587 = vpack.c.bf16 %v3536, %v3535
    %v3588 = vpack.c.bf16 %v3538, %v3537
    %v3589 = vpack.c.bf16 %v3540, %v3539
    %v3590 = vpack.c.bf16 %v3542, %v3541
    %v3591 = vpack.c.bf16 %v3544, %v3543
    %v3592 = vpack.c.bf16 %v3546, %v3545
    %v3593 = vpack.c.bf16 %v3548, %v3547
    %v3594 = vpack.c.bf16 %v3550, %v3549
    %v3595 = vpack.c.bf16 %v3552, %v3551
    %v3596 = vpack.c.bf16 %v3554, %v3553
    %v3597 = vpack.c.bf16 %v3556, %v3555
    %v3598 = vpack.c.bf16 %v3558, %v3557
    %v3599 = vpack.c.bf16 %v3560, %v3559
    %v3600 = vpack.c.bf16 %v3562, %v3561
    %v3601 = vpack.c.bf16 %v3564, %v3563
    %v3602 = vpack.c.bf16 %v3566, %v3565
    %v3603 = vpack.c.bf16 %v3568, %v3567
    %v3604 = vpack.c.bf16 %v3570, %v3569
    %v3605 = vpack.c.bf16 %v3572, %v3571
    %v3606 = vpack.c.bf16 %v3574, %v3573
    %v3607 = vld [vmem:[%s2] sm:$0xf]
    %v3608 = vld [vmem:[%s2 + $0x4] sm:$0xf]
    %v3609 = vld [vmem:[%s2 + $0x8] sm:$0xf]
    %v3610 = vld [vmem:[%s2 + $0xc] sm:$0xf]
    %v3611 = vld [vmem:[%s2 + $0x10] sm:$0x3]
    %v3612 = vld [vmem:[%s3] sm:$0x1]
    %v3614 = vlaneseq
    %v3615 = vshrl.u32 %v3614, 7
    %v3616 = vsub.s32 0, %v3615
    %v3617 = vrot.slane %v3612, %v3616
    %v3624 = vunpack.c.l.b16 %v3607
    %v3625 = vunpack.c.l.b16 %v3608
    %v3626 = vunpack.c.l.b16 %v3609
    %v3627 = vunpack.c.l.b16 %v3610
    %v3628 = vunpack.c.l.b16 %v3611
    %v3629 = vpack.c.b16 %v3625, %v3624
    %v3630 = vpack.c.b16 %v3627, %v3626
    %v3631 = vpack.c.b16 %v3628, %v3628
    %vm3634 = vcmask 293888
    %v3636 = vsel %vm3634, %v3575, 0
    %v3639 = vsel %vm3634, %v3576, 0
    %v3642 = vsel %vm3634, %v3577, 0
    %v3645 = vsel %vm3634, %v3578, 0
    %v3648 = vsel %vm3634, %v3579, 0
    %v3651 = vsel %vm3634, %v3580, 0
    %v3654 = vsel %vm3634, %v3581, 0
    %v3657 = vsel %vm3634, %v3582, 0
    %v3660 = vsel %vm3634, %v3583, 0
    %v3663 = vsel %vm3634, %v3584, 0
    %v3666 = vsel %vm3634, %v3585, 0
    %v3669 = vsel %vm3634, %v3586, 0
    %v3672 = vsel %vm3634, %v3587, 0
    %v3675 = vsel %vm3634, %v3588, 0
    %v3678 = vsel %vm3634, %v3589, 0
    %v3681 = vsel %vm3634, %v3590, 0
    %v3684 = vsel %vm3634, %v3591, 0
    %v3687 = vsel %vm3634, %v3592, 0
    %v3690 = vsel %vm3634, %v3593, 0
    %v3693 = vsel %vm3634, %v3594, 0
    %v3696 = vsel %vm3634, %v3595, 0
    %v3699 = vsel %vm3634, %v3596, 0
    %v3702 = vsel %vm3634, %v3597, 0
    %v3705 = vsel %vm3634, %v3598, 0
    %v3708 = vsel %vm3634, %v3599, 0
    %v3711 = vsel %vm3634, %v3600, 0
    %v3714 = vsel %vm3634, %v3601, 0
    %v3717 = vsel %vm3634, %v3602, 0
    %v3720 = vsel %vm3634, %v3603, 0
    %v3723 = vsel %vm3634, %v3604, 0
    %v3726 = vsel %vm3634, %v3605, 0
    %v3729 = vsel %vm3634, %v3606, 0
    %vm3731 = vcmask 1041408
    %v3733 = vsel %vm3731, %v3631, 0
    %3735 = vmatprep.subr.bf16.mxu0 0
    %3736 = vmatpush1.bf16.msra.mxu0 0
    %3737 = vmatprep.subr.bf16.mxu0 0
    %3738 = vmatpush1.bf16.msra.mxu0 0
    %3739 = vmatprep.subr.bf16.mxu0 0
    %3740 = vmatpush1.bf16.msra.mxu0 0
    %3741 = vmatprep.subr.bf16.mxu0 0
    %3742 = vmatpush1.bf16.msra.mxu0 0
    %3743 = vmatprep.subr.bf16.mxu0 0
    %3744 = vmatpush1.bf16.msra.mxu0 0
    %3745 = vmatprep.subr.bf16.mxu0 0
    %3746 = vmatpush1.bf16.msra.mxu0 %v3733
    %3747 = vmatprep.subr.bf16.mxu0 0
    %3748 = vmatpush1.bf16.msra.mxu0 %v3630
    %3749 = vmatprep.subr.bf16.mxu0 0
    %3750 = vmatpush1.bf16.msra.mxu0 %v3629
    %3751 = vmatprep.subr.bf16.mxu0 0
    %3752 = vmatpush2.bf16.msra.mxu0 0
    %3753 = vmatprep.subr.bf16.mxu0 0
    %3754 = vmatpush2.bf16.msra.mxu0 0
    %3755 = vmatprep.subr.bf16.mxu0 0
    %3756 = vmatpush2.bf16.msra.mxu0 0
    %3757 = vmatprep.subr.bf16.mxu0 0
    %3758 = vmatpush2.bf16.msra.mxu0 0
    %3759 = vmatprep.subr.bf16.mxu0 0
    %3760 = vmatpush2.bf16.msra.mxu0 0
    %3761 = vmatprep.subr.bf16.mxu0 0
    %3762 = vmatpush2.bf16.msra.mxu0 0
    %3763 = vmatprep.subr.bf16.mxu0 0
    %3764 = vmatpush2.bf16.msra.mxu0 0
    %3765 = vmatprep.subr.bf16.mxu0 0
    %3766 = vmatpush2.bf16.msra.mxu0 0
    %3767 = vmatprep.mubr.bf16.mxu0 0
    %3768 = vmatmul.mubr.bf16.gmra.mxu0 %v3636
    %v3769 = vpop.f32.mrf.mxu0
    %v3770 = vadd.f32 %v3617, %v3769
    %v3771 = vpop.f32.mrf.mxu0
    %v3772 = vpop.f32.mrf.mxu0
    %v3773 = vadd.f32 %v3617, %v3772
    %v3774 = vpop.f32.mrf.mxu0
    %3775 = vmatprep.mubr.bf16.mxu0 0
    %3776 = vmatmul.mubr.bf16.gmra.mxu0 %v3639
    %v3777 = vpop.f32.mrf.mxu0
    %v3778 = vadd.f32 %v3617, %v3777
    %v3779 = vpop.f32.mrf.mxu0
    %v3780 = vpop.f32.mrf.mxu0
    %v3781 = vadd.f32 %v3617, %v3780
    %v3782 = vpop.f32.mrf.mxu0
    %3783 = vmatprep.mubr.bf16.mxu0 0
    %3784 = vmatmul.mubr.bf16.gmra.mxu0 %v3642
    %v3785 = vpop.f32.mrf.mxu0
    %v3786 = vadd.f32 %v3617, %v3785
    %v3787 = vpop.f32.mrf.mxu0
    %v3788 = vpop.f32.mrf.mxu0
    %v3789 = vadd.f32 %v3617, %v3788
    %v3790 = vpop.f32.mrf.mxu0
    %3791 = vmatprep.mubr.bf16.mxu0 0
    %3792 = vmatmul.mubr.bf16.gmra.mxu0 %v3645
    %v3793 = vpop.f32.mrf.mxu0
    %v3794 = vadd.f32 %v3617, %v3793
    %v3795 = vpop.f32.mrf.mxu0
    %v3796 = vpop.f32.mrf.mxu0
    %v3797 = vadd.f32 %v3617, %v3796
    %v3798 = vpop.f32.mrf.mxu0
    %3799 = vmatprep.mubr.bf16.mxu0 0
    %3800 = vmatmul.mubr.bf16.gmra.mxu0 %v3648
    %v3801 = vpop.f32.mrf.mxu0
    %v3802 = vadd.f32 %v3617, %v3801
    %v3803 = vpop.f32.mrf.mxu0
    %v3804 = vpop.f32.mrf.mxu0
    %v3805 = vadd.f32 %v3617, %v3804
    %v3806 = vpop.f32.mrf.mxu0
    %3807 = vmatprep.mubr.bf16.mxu0 0
    %3808 = vmatmul.mubr.bf16.gmra.mxu0 %v3651
    %v3809 = vpop.f32.mrf.mxu0
    %v3810 = vadd.f32 %v3617, %v3809
    %v3811 = vpop.f32.mrf.mxu0
    %v3812 = vpop.f32.mrf.mxu0
    %v3813 = vadd.f32 %v3617, %v3812
    %v3814 = vpop.f32.mrf.mxu0
    %3815 = vmatprep.mubr.bf16.mxu0 0
    %3816 = vmatmul.mubr.bf16.gmra.mxu0 %v3654
    %v3817 = vpop.f32.mrf.mxu0
    %v3818 = vadd.f32 %v3617, %v3817
    %v3819 = vpop.f32.mrf.mxu0
    %v3820 = vpop.f32.mrf.mxu0
    %v3821 = vadd.f32 %v3617, %v3820
    %v3822 = vpop.f32.mrf.mxu0
    %3823 = vmatprep.mubr.bf16.mxu0 0
    %3824 = vmatmul.mubr.bf16.gmra.mxu0 %v3657
    %v3825 = vpop.f32.mrf.mxu0
    %v3826 = vadd.f32 %v3617, %v3825
    %v3827 = vpop.f32.mrf.mxu0
    %v3828 = vpop.f32.mrf.mxu0
    %v3829 = vadd.f32 %v3617, %v3828
    %v3830 = vpop.f32.mrf.mxu0
    %3831 = vmatprep.mubr.bf16.mxu0 0
    %3832 = vmatmul.mubr.bf16.gmra.mxu0 %v3660
    %v3833 = vpop.f32.mrf.mxu0
    %v3834 = vadd.f32 %v3617, %v3833
    %v3835 = vpop.f32.mrf.mxu0
    %v3836 = vpop.f32.mrf.mxu0
    %v3837 = vadd.f32 %v3617, %v3836
    %v3838 = vpop.f32.mrf.mxu0
    %3839 = vmatprep.mubr.bf16.mxu0 0
    %3840 = vmatmul.mubr.bf16.gmra.mxu0 %v3663
    %v3841 = vpop.f32.mrf.mxu0
    %v3842 = vadd.f32 %v3617, %v3841
    %v3843 = vpop.f32.mrf.mxu0
    %v3844 = vpop.f32.mrf.mxu0
    %v3845 = vadd.f32 %v3617, %v3844
    %v3846 = vpop.f32.mrf.mxu0
    %3847 = vmatprep.mubr.bf16.mxu0 0
    %3848 = vmatmul.mubr.bf16.gmra.mxu0 %v3666
    %v3849 = vpop.f32.mrf.mxu0
    %v3850 = vadd.f32 %v3617, %v3849
    %v3851 = vpop.f32.mrf.mxu0
    %v3852 = vpop.f32.mrf.mxu0
    %v3853 = vadd.f32 %v3617, %v3852
    %v3854 = vpop.f32.mrf.mxu0
    %3855 = vmatprep.mubr.bf16.mxu0 0
    %3856 = vmatmul.mubr.bf16.gmra.mxu0 %v3669
    %v3857 = vpop.f32.mrf.mxu0
    %v3858 = vadd.f32 %v3617, %v3857
    %v3859 = vpop.f32.mrf.mxu0
    %v3860 = vpop.f32.mrf.mxu0
    %v3861 = vadd.f32 %v3617, %v3860
    %v3862 = vpop.f32.mrf.mxu0
    %3863 = vmatprep.mubr.bf16.mxu0 0
    %3864 = vmatmul.mubr.bf16.gmra.mxu0 %v3672
    %v3865 = vpop.f32.mrf.mxu0
    %v3866 = vadd.f32 %v3617, %v3865
    %v3867 = vpop.f32.mrf.mxu0
    %v3868 = vpop.f32.mrf.mxu0
    %v3869 = vadd.f32 %v3617, %v3868
    %v3870 = vpop.f32.mrf.mxu0
    %3871 = vmatprep.mubr.bf16.mxu0 0
    %3872 = vmatmul.mubr.bf16.gmra.mxu0 %v3675
    %v3873 = vpop.f32.mrf.mxu0
    %v3874 = vadd.f32 %v3617, %v3873
    %v3875 = vpop.f32.mrf.mxu0
    %v3876 = vpop.f32.mrf.mxu0
    %v3877 = vadd.f32 %v3617, %v3876
    %v3878 = vpop.f32.mrf.mxu0
    %3879 = vmatprep.mubr.bf16.mxu0 0
    %3880 = vmatmul.mubr.bf16.gmra.mxu0 %v3678
    %v3881 = vpop.f32.mrf.mxu0
    %v3882 = vadd.f32 %v3617, %v3881
    %v3883 = vpop.f32.mrf.mxu0
    %v3884 = vpop.f32.mrf.mxu0
    %v3885 = vadd.f32 %v3617, %v3884
    %v3886 = vpop.f32.mrf.mxu0
    %3887 = vmatprep.mubr.bf16.mxu0 0
    %3888 = vmatmul.mubr.bf16.gmra.mxu0 %v3681
    %v3889 = vpop.f32.mrf.mxu0
    %v3890 = vadd.f32 %v3617, %v3889
    %v3891 = vpop.f32.mrf.mxu0
    %v3892 = vpop.f32.mrf.mxu0
    %v3893 = vadd.f32 %v3617, %v3892
    %v3894 = vpop.f32.mrf.mxu0
    %3895 = vmatprep.mubr.bf16.mxu0 0
    %3896 = vmatmul.mubr.bf16.gmra.mxu0 %v3684
    %v3897 = vpop.f32.mrf.mxu0
    %v3898 = vadd.f32 %v3617, %v3897
    %v3899 = vpop.f32.mrf.mxu0
    %v3900 = vpop.f32.mrf.mxu0
    %v3901 = vadd.f32 %v3617, %v3900
    %v3902 = vpop.f32.mrf.mxu0
    %3903 = vmatprep.mubr.bf16.mxu0 0
    %3904 = vmatmul.mubr.bf16.gmra.mxu0 %v3687
    %v3905 = vpop.f32.mrf.mxu0
    %v3906 = vadd.f32 %v3617, %v3905
    %v3907 = vpop.f32.mrf.mxu0
    %v3908 = vpop.f32.mrf.mxu0
    %v3909 = vadd.f32 %v3617, %v3908
    %v3910 = vpop.f32.mrf.mxu0
    %3911 = vmatprep.mubr.bf16.mxu0 0
    %3912 = vmatmul.mubr.bf16.gmra.mxu0 %v3690
    %v3913 = vpop.f32.mrf.mxu0
    %v3914 = vadd.f32 %v3617, %v3913
    %v3915 = vpop.f32.mrf.mxu0
    %v3916 = vpop.f32.mrf.mxu0
    %v3917 = vadd.f32 %v3617, %v3916
    %v3918 = vpop.f32.mrf.mxu0
    %3919 = vmatprep.mubr.bf16.mxu0 0
    %3920 = vmatmul.mubr.bf16.gmra.mxu0 %v3693
    %v3921 = vpop.f32.mrf.mxu0
    %v3922 = vadd.f32 %v3617, %v3921
    %v3923 = vpop.f32.mrf.mxu0
    %v3924 = vpop.f32.mrf.mxu0
    %v3925 = vadd.f32 %v3617, %v3924
    %v3926 = vpop.f32.mrf.mxu0
    %3927 = vmatprep.mubr.bf16.mxu0 0
    %3928 = vmatmul.mubr.bf16.gmra.mxu0 %v3696
    %v3929 = vpop.f32.mrf.mxu0
    %v3930 = vadd.f32 %v3617, %v3929
    %v3931 = vpop.f32.mrf.mxu0
    %v3932 = vpop.f32.mrf.mxu0
    %v3933 = vadd.f32 %v3617, %v3932
    %v3934 = vpop.f32.mrf.mxu0
    %3935 = vmatprep.mubr.bf16.mxu0 0
    %3936 = vmatmul.mubr.bf16.gmra.mxu0 %v3699
    %v3937 = vpop.f32.mrf.mxu0
    %v3938 = vadd.f32 %v3617, %v3937
    %v3939 = vpop.f32.mrf.mxu0
    %v3940 = vpop.f32.mrf.mxu0
    %v3941 = vadd.f32 %v3617, %v3940
    %v3942 = vpop.f32.mrf.mxu0
    %3943 = vmatprep.mubr.bf16.mxu0 0
    %3944 = vmatmul.mubr.bf16.gmra.mxu0 %v3702
    %v3945 = vpop.f32.mrf.mxu0
    %v3946 = vadd.f32 %v3617, %v3945
    %v3947 = vpop.f32.mrf.mxu0
    %v3948 = vpop.f32.mrf.mxu0
    %v3949 = vadd.f32 %v3617, %v3948
    %v3950 = vpop.f32.mrf.mxu0
    %3951 = vmatprep.mubr.bf16.mxu0 0
    %3952 = vmatmul.mubr.bf16.gmra.mxu0 %v3705
    %v3953 = vpop.f32.mrf.mxu0
    %v3954 = vadd.f32 %v3617, %v3953
    %v3955 = vpop.f32.mrf.mxu0
    %v3956 = vpop.f32.mrf.mxu0
    %v3957 = vadd.f32 %v3617, %v3956
    %v3958 = vpop.f32.mrf.mxu0
    %3959 = vmatprep.mubr.bf16.mxu0 0
    %3960 = vmatmul.mubr.bf16.gmra.mxu0 %v3708
    %v3961 = vpop.f32.mrf.mxu0
    %v3962 = vadd.f32 %v3617, %v3961
    %v3963 = vpop.f32.mrf.mxu0
    %v3964 = vpop.f32.mrf.mxu0
    %v3965 = vadd.f32 %v3617, %v3964
    %v3966 = vpop.f32.mrf.mxu0
    %3967 = vmatprep.mubr.bf16.mxu0 0
    %3968 = vmatmul.mubr.bf16.gmra.mxu0 %v3711
    %v3969 = vpop.f32.mrf.mxu0
    %v3970 = vadd.f32 %v3617, %v3969
    %v3971 = vpop.f32.mrf.mxu0
    %v3972 = vpop.f32.mrf.mxu0
    %v3973 = vadd.f32 %v3617, %v3972
    %v3974 = vpop.f32.mrf.mxu0
    %3975 = vmatprep.mubr.bf16.mxu0 0
    %3976 = vmatmul.mubr.bf16.gmra.mxu0 %v3714
    %v3977 = vpop.f32.mrf.mxu0
    %v3978 = vadd.f32 %v3617, %v3977
    %v3979 = vpop.f32.mrf.mxu0
    %v3980 = vpop.f32.mrf.mxu0
    %v3981 = vadd.f32 %v3617, %v3980
    %v3982 = vpop.f32.mrf.mxu0
    %3983 = vmatprep.mubr.bf16.mxu0 0
    %3984 = vmatmul.mubr.bf16.gmra.mxu0 %v3717
    %v3985 = vpop.f32.mrf.mxu0
    %v3986 = vadd.f32 %v3617, %v3985
    %v3987 = vpop.f32.mrf.mxu0
    %v3988 = vpop.f32.mrf.mxu0
    %v3989 = vadd.f32 %v3617, %v3988
    %v3990 = vpop.f32.mrf.mxu0
    %3991 = vmatprep.mubr.bf16.mxu0 0
    %3992 = vmatmul.mubr.bf16.gmra.mxu0 %v3720
    %v3993 = vpop.f32.mrf.mxu0
    %v3994 = vadd.f32 %v3617, %v3993
    %v3995 = vpop.f32.mrf.mxu0
    %v3996 = vpop.f32.mrf.mxu0
    %v3997 = vadd.f32 %v3617, %v3996
    %v3998 = vpop.f32.mrf.mxu0
    %3999 = vmatprep.mubr.bf16.mxu0 0
    %4000 = vmatmul.mubr.bf16.gmra.mxu0 %v3723
    %v4001 = vpop.f32.mrf.mxu0
    %v4002 = vadd.f32 %v3617, %v4001
    %v4003 = vpop.f32.mrf.mxu0
    %v4004 = vpop.f32.mrf.mxu0
    %v4005 = vadd.f32 %v3617, %v4004
    %v4006 = vpop.f32.mrf.mxu0
    %4007 = vmatprep.mubr.bf16.mxu0 0
    %4008 = vmatmul.mubr.bf16.gmra.mxu0 %v3726
    %v4009 = vpop.f32.mrf.mxu0
    %v4010 = vadd.f32 %v3617, %v4009
    %v4011 = vpop.f32.mrf.mxu0
    %v4012 = vpop.f32.mrf.mxu0
    %v4013 = vadd.f32 %v3617, %v4012
    %v4014 = vpop.f32.mrf.mxu0
    %4015 = vmatprep.mubr.bf16.mxu0 0
    %4016 = vmatmul.mubr.bf16.gmra.mxu0 %v3729
    %v4017 = vpop.f32.mrf.mxu0
    %v4018 = vadd.f32 %v3617, %v4017
    %v4019 = vpop.f32.mrf.mxu0
    %v4020 = vpop.f32.mrf.mxu0
    %v4021 = vadd.f32 %v3617, %v4020
    %v4022 = vpop.f32.mrf.mxu0
    %4023 = vdwg.mxu0
    %v4024 = vmax.f32 %v3770, 0.0
    %v4025 = vmax.f32 %v3773, 0.0
    %v4026 = vmax.f32 %v3778, 0.0
    %v4027 = vmax.f32 %v3781, 0.0
    %v4028 = vmax.f32 %v3786, 0.0
    %v4029 = vmax.f32 %v3789, 0.0
    %v4030 = vmax.f32 %v3794, 0.0
    %v4031 = vmax.f32 %v3797, 0.0
    %v4032 = vmax.f32 %v3802, 0.0
    %v4033 = vmax.f32 %v3805, 0.0
    %v4034 = vmax.f32 %v3810, 0.0
    %v4035 = vmax.f32 %v3813, 0.0
    %v4036 = vmax.f32 %v3818, 0.0
    %v4037 = vmax.f32 %v3821, 0.0
    %v4038 = vmax.f32 %v3826, 0.0
    %v4039 = vmax.f32 %v3829, 0.0
    %v4040 = vmax.f32 %v3834, 0.0
    %v4041 = vmax.f32 %v3837, 0.0
    %v4042 = vmax.f32 %v3842, 0.0
    %v4043 = vmax.f32 %v3845, 0.0
    %v4044 = vmax.f32 %v3850, 0.0
    %v4045 = vmax.f32 %v3853, 0.0
    %v4046 = vmax.f32 %v3858, 0.0
    %v4047 = vmax.f32 %v3861, 0.0
    %v4048 = vmax.f32 %v3866, 0.0
    %v4049 = vmax.f32 %v3869, 0.0
    %v4050 = vmax.f32 %v3874, 0.0
    %v4051 = vmax.f32 %v3877, 0.0
    %v4052 = vmax.f32 %v3882, 0.0
    %v4053 = vmax.f32 %v3885, 0.0
    %v4054 = vmax.f32 %v3890, 0.0
    %v4055 = vmax.f32 %v3893, 0.0
    %v4056 = vmax.f32 %v3898, 0.0
    %v4057 = vmax.f32 %v3901, 0.0
    %v4058 = vmax.f32 %v3906, 0.0
    %v4059 = vmax.f32 %v3909, 0.0
    %v4060 = vmax.f32 %v3914, 0.0
    %v4061 = vmax.f32 %v3917, 0.0
    %v4062 = vmax.f32 %v3922, 0.0
    %v4063 = vmax.f32 %v3925, 0.0
    %v4064 = vmax.f32 %v3930, 0.0
    %v4065 = vmax.f32 %v3933, 0.0
    %v4066 = vmax.f32 %v3938, 0.0
    %v4067 = vmax.f32 %v3941, 0.0
    %v4068 = vmax.f32 %v3946, 0.0
    %v4069 = vmax.f32 %v3949, 0.0
    %v4070 = vmax.f32 %v3954, 0.0
    %v4071 = vmax.f32 %v3957, 0.0
    %v4072 = vmax.f32 %v3962, 0.0
    %v4073 = vmax.f32 %v3965, 0.0
    %v4074 = vmax.f32 %v3970, 0.0
    %v4075 = vmax.f32 %v3973, 0.0
    %v4076 = vmax.f32 %v3978, 0.0
    %v4077 = vmax.f32 %v3981, 0.0
    %v4078 = vmax.f32 %v3986, 0.0
    %v4079 = vmax.f32 %v3989, 0.0
    %v4080 = vmax.f32 %v3994, 0.0
    %v4081 = vmax.f32 %v3997, 0.0
    %v4082 = vmax.f32 %v4002, 0.0
    %v4083 = vmax.f32 %v4005, 0.0
    %v4084 = vmax.f32 %v4010, 0.0
    %v4085 = vmax.f32 %v4013, 0.0
    %v4086 = vmax.f32 %v4018, 0.0
    %v4087 = vmax.f32 %v4021, 0.0
    %vm4088 = vcmask 130048
    %4089 = vst.msk [vmem:[#allocation3] sm:$0xff] %vm4088, 0.0
    %4090 = vst.msk [vmem:[#allocation3 + $0x8] sm:$0xff] %vm4088, 0.0
    %vm4091 = vcmask 123904
    %4092 = vst.msk [vmem:[#allocation3 + $0x10] sm:$0x3] %vm4091, 0.0
    %4093 = vst.msk [vmem:[#allocation3 + $0x18] sm:$0xff] %vm4088, 0.0
    %4094 = vst.msk [vmem:[#allocation3 + $0x20] sm:$0xff] %vm4088, 0.0
    %4095 = vst.msk [vmem:[#allocation3 + $0x28] sm:$0x3] %vm4091, 0.0
    %4096 = vst.msk [vmem:[#allocation3 + $0x30] sm:$0xff] %vm4088, 0.0
    %4097 = vst.msk [vmem:[#allocation3 + $0x38] sm:$0xff] %vm4088, 0.0
    %4098 = vst.msk [vmem:[#allocation3 + $0x40] sm:$0x3] %vm4091, 0.0
    %4099 = vst.msk [vmem:[#allocation3 + $0x48] sm:$0xff] %vm4088, 0.0
    %4100 = vst.msk [vmem:[#allocation3 + $0x50] sm:$0xff] %vm4088, 0.0
    %4101 = vst.msk [vmem:[#allocation3 + $0x58] sm:$0x3] %vm4091, 0.0
    %4102 = vst.msk [vmem:[#allocation3 + $0x60] sm:$0xff] %vm4088, 0.0
    %4103 = vst.msk [vmem:[#allocation3 + $0x68] sm:$0xff] %vm4088, 0.0
    %4104 = vst.msk [vmem:[#allocation3 + $0x70] sm:$0x3] %vm4091, 0.0
    %4105 = vst.msk [vmem:[#allocation3 + $0x78] sm:$0xff] %vm4088, 0.0
    %4106 = vst.msk [vmem:[#allocation3 + $0x80] sm:$0xff] %vm4088, 0.0
    %4107 = vst.msk [vmem:[#allocation3 + $0x88] sm:$0x3] %vm4091, 0.0
    %4108 = vst.msk [vmem:[#allocation3 + $0x90] sm:$0xff] %vm4088, 0.0
    %4109 = vst.msk [vmem:[#allocation3 + $0x98] sm:$0xff] %vm4088, 0.0
    %4110 = vst.msk [vmem:[#allocation3 + $0xa0] sm:$0x3] %vm4091, 0.0
    %4111 = vst.msk [vmem:[#allocation3 + $0xa8] sm:$0xff] %vm4088, 0.0
    %4112 = vst.msk [vmem:[#allocation3 + $0xb0] sm:$0xff] %vm4088, 0.0
    %4113 = vst.msk [vmem:[#allocation3 + $0xb8] sm:$0x3] %vm4091, 0.0
    %4114 = vst.msk [vmem:[#allocation3 + $0xc0] sm:$0xff] %vm4088, 0.0
    %4115 = vst.msk [vmem:[#allocation3 + $0xc8] sm:$0xff] %vm4088, 0.0
    %4116 = vst.msk [vmem:[#allocation3 + $0xd0] sm:$0x3] %vm4091, 0.0
    %4117 = vst.msk [vmem:[#allocation3 + $0xd8] sm:$0xff] %vm4088, 0.0
    %4118 = vst.msk [vmem:[#allocation3 + $0xe0] sm:$0xff] %vm4088, 0.0
    %4119 = vst.msk [vmem:[#allocation3 + $0xe8] sm:$0x3] %vm4091, 0.0
    %4120 = vst.msk [vmem:[#allocation3 + $0xf0] sm:$0xff] %vm4088, 0.0
    %4121 = vst.msk [vmem:[#allocation3 + $0xf8] sm:$0xff] %vm4088, 0.0
    %4122 = vst.msk [vmem:[#allocation3 + $0x100] sm:$0x3] %vm4091, 0.0
    %4123 = vst.msk [vmem:[#allocation3 + $0x108] sm:$0xff] %vm4088, 0.0
    %4124 = vst.msk [vmem:[#allocation3 + $0x110] sm:$0xff] %vm4088, 0.0
    %4125 = vst.msk [vmem:[#allocation3 + $0x118] sm:$0x3] %vm4091, 0.0
    %4126 = vst.msk [vmem:[#allocation3 + $0x120] sm:$0xff] %vm4088, 0.0
    %4127 = vst.msk [vmem:[#allocation3 + $0x128] sm:$0xff] %vm4088, 0.0
    %4128 = vst.msk [vmem:[#allocation3 + $0x130] sm:$0x3] %vm4091, 0.0
    %4129 = vst.msk [vmem:[#allocation3 + $0x138] sm:$0xff] %vm4088, 0.0
    %4130 = vst.msk [vmem:[#allocation3 + $0x140] sm:$0xff] %vm4088, 0.0
    %4131 = vst.msk [vmem:[#allocation3 + $0x148] sm:$0x3] %vm4091, 0.0
    %4132 = vst.msk [vmem:[#allocation3 + $0x150] sm:$0xff] %vm4088, 0.0
    %4133 = vst.msk [vmem:[#allocation3 + $0x158] sm:$0xff] %vm4088, 0.0
    %4134 = vst.msk [vmem:[#allocation3 + $0x160] sm:$0x3] %vm4091, 0.0
    %4135 = vst.msk [vmem:[#allocation3 + $0x168] sm:$0xff] %vm4088, 0.0
    %4136 = vst.msk [vmem:[#allocation3 + $0x170] sm:$0xff] %vm4088, 0.0
    %4137 = vst.msk [vmem:[#allocation3 + $0x178] sm:$0x3] %vm4091, 0.0
    %4138 = vst.msk [vmem:[#allocation3 + $0x180] sm:$0xff] %vm4088, 0.0
    %4139 = vst.msk [vmem:[#allocation3 + $0x188] sm:$0xff] %vm4088, 0.0
    %4140 = vst.msk [vmem:[#allocation3 + $0x190] sm:$0x3] %vm4091, 0.0
    %4141 = vst.msk [vmem:[#allocation3 + $0x198] sm:$0xff] %vm4088, 0.0
    %4142 = vst.msk [vmem:[#allocation3 + $0x1a0] sm:$0xff] %vm4088, 0.0
    %4143 = vst.msk [vmem:[#allocation3 + $0x1a8] sm:$0x3] %vm4091, 0.0
    %4144 = vst.msk [vmem:[#allocation3 + $0x1b0] sm:$0xff] %vm4088, 0.0
    %4145 = vst.msk [vmem:[#allocation3 + $0x1b8] sm:$0xff] %vm4088, 0.0
    %4146 = vst.msk [vmem:[#allocation3 + $0x1c0] sm:$0x3] %vm4091, 0.0
    %4147 = vst.msk [vmem:[#allocation3 + $0x1c8] sm:$0xff] %vm4088, 0.0
    %4148 = vst.msk [vmem:[#allocation3 + $0x1d0] sm:$0xff] %vm4088, 0.0
    %4149 = vst.msk [vmem:[#allocation3 + $0x1d8] sm:$0x3] %vm4091, 0.0
    %4150 = vst.msk [vmem:[#allocation3 + $0x1e0] sm:$0xff] %vm4088, 0.0
    %4151 = vst.msk [vmem:[#allocation3 + $0x1e8] sm:$0xff] %vm4088, 0.0
    %4152 = vst.msk [vmem:[#allocation3 + $0x1f0] sm:$0x3] %vm4091, 0.0
    %4153 = vst.msk [vmem:[#allocation3 + $0x1f8] sm:$0xff] %vm4088, 0.0
    %4154 = vst.msk [vmem:[#allocation3 + $0x200] sm:$0xff] %vm4088, 0.0
    %4155 = vst.msk [vmem:[#allocation3 + $0x208] sm:$0x3] %vm4091, 0.0
    %4156 = vst.msk [vmem:[#allocation3 + $0x210] sm:$0xff] %vm4088, 0.0
    %4157 = vst.msk [vmem:[#allocation3 + $0x218] sm:$0xff] %vm4088, 0.0
    %4158 = vst.msk [vmem:[#allocation3 + $0x220] sm:$0x3] %vm4091, 0.0
    %4159 = vst.msk [vmem:[#allocation3 + $0x228] sm:$0xff] %vm4088, 0.0
    %4160 = vst.msk [vmem:[#allocation3 + $0x230] sm:$0xff] %vm4088, 0.0
    %4161 = vst.msk [vmem:[#allocation3 + $0x238] sm:$0x3] %vm4091, 0.0
    %4162 = vst.msk [vmem:[#allocation3 + $0x240] sm:$0xff] %vm4088, 0.0
    %4163 = vst.msk [vmem:[#allocation3 + $0x248] sm:$0xff] %vm4088, 0.0
    %4164 = vst.msk [vmem:[#allocation3 + $0x250] sm:$0x3] %vm4091, 0.0
    %4165 = vst.msk [vmem:[#allocation3 + $0x258] sm:$0xff] %vm4088, 0.0
    %4166 = vst.msk [vmem:[#allocation3 + $0x260] sm:$0xff] %vm4088, 0.0
    %4167 = vst.msk [vmem:[#allocation3 + $0x268] sm:$0x3] %vm4091, 0.0
    %4168 = vst.msk [vmem:[#allocation3 + $0x270] sm:$0xff] %vm4088, 0.0
    %4169 = vst.msk [vmem:[#allocation3 + $0x278] sm:$0xff] %vm4088, 0.0
    %4170 = vst.msk [vmem:[#allocation3 + $0x280] sm:$0x3] %vm4091, 0.0
    %4171 = vst.msk [vmem:[#allocation3 + $0x288] sm:$0xff] %vm4088, 0.0
    %4172 = vst.msk [vmem:[#allocation3 + $0x290] sm:$0xff] %vm4088, 0.0
    %4173 = vst.msk [vmem:[#allocation3 + $0x298] sm:$0x3] %vm4091, 0.0
    %4174 = vst.msk [vmem:[#allocation3 + $0x2a0] sm:$0xff] %vm4088, 0.0
    %4175 = vst.msk [vmem:[#allocation3 + $0x2a8] sm:$0xff] %vm4088, 0.0
    %4176 = vst.msk [vmem:[#allocation3 + $0x2b0] sm:$0x3] %vm4091, 0.0
    %4177 = vst.msk [vmem:[#allocation3 + $0x2b8] sm:$0xff] %vm4088, 0.0
    %4178 = vst.msk [vmem:[#allocation3 + $0x2c0] sm:$0xff] %vm4088, 0.0
    %4179 = vst.msk [vmem:[#allocation3 + $0x2c8] sm:$0x3] %vm4091, 0.0
    %4180 = vst.msk [vmem:[#allocation3 + $0x2d0] sm:$0xff] %vm4088, 0.0
    %4181 = vst.msk [vmem:[#allocation3 + $0x2d8] sm:$0xff] %vm4088, 0.0
    %4182 = vst.msk [vmem:[#allocation3 + $0x2e0] sm:$0x3] %vm4091, 0.0
    %4183 = vst.msk [vmem:[#allocation3 + $0x2e8] sm:$0xff] %vm4088, 0.0
    %4184 = vst.msk [vmem:[#allocation3 + $0x2f0] sm:$0xff] %vm4088, 0.0
    %4185 = vst.msk [vmem:[#allocation3 + $0x2f8] sm:$0x3] %vm4091, 0.0
    %4186 = vst.msk [vmem:[#allocation3 + $0x300] sm:$0xff] %vm4088, 0.0
    %4187 = vst.msk [vmem:[#allocation3 + $0x308] sm:$0xff] %vm4088, 0.0
    %4188 = vst.msk [vmem:[#allocation3 + $0x310] sm:$0x3] %vm4091, 0.0
    %4189 = vst.msk [vmem:[#allocation3 + $0x318] sm:$0xff] %vm4088, 0.0
    %4190 = vst.msk [vmem:[#allocation3 + $0x320] sm:$0xff] %vm4088, 0.0
    %4191 = vst.msk [vmem:[#allocation3 + $0x328] sm:$0x3] %vm4091, 0.0
    %4192 = vst.msk [vmem:[#allocation3 + $0x330] sm:$0xff] %vm4088, 0.0
    %4193 = vst.msk [vmem:[#allocation3 + $0x338] sm:$0xff] %vm4088, 0.0
    %4194 = vst.msk [vmem:[#allocation3 + $0x340] sm:$0x3] %vm4091, 0.0
    %4195 = vst.msk [vmem:[#allocation3 + $0x348] sm:$0xff] %vm4088, 0.0
    %4196 = vst.msk [vmem:[#allocation3 + $0x350] sm:$0xff] %vm4088, 0.0
    %4197 = vst.msk [vmem:[#allocation3 + $0x358] sm:$0x3] %vm4091, 0.0
    %s4198 = scalar_lea.vmem [#allocation3], 24
    %4199 = vst.msk [vmem:[%s4198 + $0x1] sm:$0xff] %vm4088, %v4024
    %4200 = vst.msk [vmem:[%s4198 + $0x9] sm:$0xff] %vm4088, %v4025
    %4201 = vst.msk [vmem:[%s4198 + $0x19] sm:$0xff] %vm4088, %v4026
    %4202 = vst.msk [vmem:[%s4198 + $0x21] sm:$0xff] %vm4088, %v4027
    %4203 = vst.msk [vmem:[%s4198 + $0x31] sm:$0xff] %vm4088, %v4028
    %4204 = vst.msk [vmem:[%s4198 + $0x39] sm:$0xff] %vm4088, %v4029
    %4205 = vst.msk [vmem:[%s4198 + $0x49] sm:$0xff] %vm4088, %v4030
    %4206 = vst.msk [vmem:[%s4198 + $0x51] sm:$0xff] %vm4088, %v4031
    %4207 = vst.msk [vmem:[%s4198 + $0x61] sm:$0xff] %vm4088, %v4032
    %4208 = vst.msk [vmem:[%s4198 + $0x69] sm:$0xff] %vm4088, %v4033
    %4209 = vst.msk [vmem:[%s4198 + $0x79] sm:$0xff] %vm4088, %v4034
    %4210 = vst.msk [vmem:[%s4198 + $0x81] sm:$0xff] %vm4088, %v4035
    %4211 = vst.msk [vmem:[%s4198 + $0x91] sm:$0xff] %vm4088, %v4036
    %4212 = vst.msk [vmem:[%s4198 + $0x99] sm:$0xff] %vm4088, %v4037
    %4213 = vst.msk [vmem:[%s4198 + $0xa9] sm:$0xff] %vm4088, %v4038
    %4214 = vst.msk [vmem:[%s4198 + $0xb1] sm:$0xff] %vm4088, %v4039
    %4215 = vst.msk [vmem:[%s4198 + $0xc1] sm:$0xff] %vm4088, %v4040
    %4216 = vst.msk [vmem:[%s4198 + $0xc9] sm:$0xff] %vm4088, %v4041
    %4217 = vst.msk [vmem:[%s4198 + $0xd9] sm:$0xff] %vm4088, %v4042
    %4218 = vst.msk [vmem:[%s4198 + $0xe1] sm:$0xff] %vm4088, %v4043
    %4219 = vst.msk [vmem:[%s4198 + $0xf1] sm:$0xff] %vm4088, %v4044
    %4220 = vst.msk [vmem:[%s4198 + $0xf9] sm:$0xff] %vm4088, %v4045
    %4221 = vst.msk [vmem:[%s4198 + $0x109] sm:$0xff] %vm4088, %v4046
    %4222 = vst.msk [vmem:[%s4198 + $0x111] sm:$0xff] %vm4088, %v4047
    %4223 = vst.msk [vmem:[%s4198 + $0x121] sm:$0xff] %vm4088, %v4048
    %4224 = vst.msk [vmem:[%s4198 + $0x129] sm:$0xff] %vm4088, %v4049
    %4225 = vst.msk [vmem:[%s4198 + $0x139] sm:$0xff] %vm4088, %v4050
    %4226 = vst.msk [vmem:[%s4198 + $0x141] sm:$0xff] %vm4088, %v4051
    %4227 = vst.msk [vmem:[%s4198 + $0x151] sm:$0xff] %vm4088, %v4052
    %4228 = vst.msk [vmem:[%s4198 + $0x159] sm:$0xff] %vm4088, %v4053
    %4229 = vst.msk [vmem:[%s4198 + $0x169] sm:$0xff] %vm4088, %v4054
    %4230 = vst.msk [vmem:[%s4198 + $0x171] sm:$0xff] %vm4088, %v4055
    %4231 = vst.msk [vmem:[%s4198 + $0x1b1] sm:$0xff] %vm4088, %v4056
    %4232 = vst.msk [vmem:[%s4198 + $0x1b9] sm:$0xff] %vm4088, %v4057
    %4233 = vst.msk [vmem:[%s4198 + $0x1c9] sm:$0xff] %vm4088, %v4058
    %4234 = vst.msk [vmem:[%s4198 + $0x1d1] sm:$0xff] %vm4088, %v4059
    %4235 = vst.msk [vmem:[%s4198 + $0x1e1] sm:$0xff] %vm4088, %v4060
    %4236 = vst.msk [vmem:[%s4198 + $0x1e9] sm:$0xff] %vm4088, %v4061
    %4237 = vst.msk [vmem:[%s4198 + $0x1f9] sm:$0xff] %vm4088, %v4062
    %4238 = vst.msk [vmem:[%s4198 + $0x201] sm:$0xff] %vm4088, %v4063
    %4239 = vst.msk [vmem:[%s4198 + $0x211] sm:$0xff] %vm4088, %v4064
    %4240 = vst.msk [vmem:[%s4198 + $0x219] sm:$0xff] %vm4088, %v4065
    %4241 = vst.msk [vmem:[%s4198 + $0x229] sm:$0xff] %vm4088, %v4066
    %4242 = vst.msk [vmem:[%s4198 + $0x231] sm:$0xff] %vm4088, %v4067
    %4243 = vst.msk [vmem:[%s4198 + $0x241] sm:$0xff] %vm4088, %v4068
    %4244 = vst.msk [vmem:[%s4198 + $0x249] sm:$0xff] %vm4088, %v4069
    %4245 = vst.msk [vmem:[%s4198 + $0x259] sm:$0xff] %vm4088, %v4070
    %4246 = vst.msk [vmem:[%s4198 + $0x261] sm:$0xff] %vm4088, %v4071
    %4247 = vst.msk [vmem:[%s4198 + $0x271] sm:$0xff] %vm4088, %v4072
    %4248 = vst.msk [vmem:[%s4198 + $0x279] sm:$0xff] %vm4088, %v4073
    %4249 = vst.msk [vmem:[%s4198 + $0x289] sm:$0xff] %vm4088, %v4074
    %4250 = vst.msk [vmem:[%s4198 + $0x291] sm:$0xff] %vm4088, %v4075
    %4251 = vst.msk [vmem:[%s4198 + $0x2a1] sm:$0xff] %vm4088, %v4076
    %4252 = vst.msk [vmem:[%s4198 + $0x2a9] sm:$0xff] %vm4088, %v4077
    %4253 = vst.msk [vmem:[%s4198 + $0x2b9] sm:$0xff] %vm4088, %v4078
    %4254 = vst.msk [vmem:[%s4198 + $0x2c1] sm:$0xff] %vm4088, %v4079
    %4255 = vst.msk [vmem:[%s4198 + $0x2d1] sm:$0xff] %vm4088, %v4080
    %4256 = vst.msk [vmem:[%s4198 + $0x2d9] sm:$0xff] %vm4088, %v4081
    %4257 = vst.msk [vmem:[%s4198 + $0x2e9] sm:$0xff] %vm4088, %v4082
    %4258 = vst.msk [vmem:[%s4198 + $0x2f1] sm:$0xff] %vm4088, %v4083
    %4259 = vst.msk [vmem:[%s4198 + $0x301] sm:$0xff] %vm4088, %v4084
    %4260 = vst.msk [vmem:[%s4198 + $0x309] sm:$0xff] %vm4088, %v4085
    %4261 = vst.msk [vmem:[%s4198 + $0x319] sm:$0xff] %vm4088, %v4086
    %4262 = vst.msk [vmem:[%s4198 + $0x321] sm:$0xff] %vm4088, %v4087
    %v4263 = vld [vmem:[#allocation3] sm:$0xff]
    %v4264 = vld [vmem:[#allocation3 + $0x8] sm:$0xff]
    %v4265 = vld [vmem:[#allocation3 + $0x18] sm:$0xff]
    %v4266 = vld [vmem:[#allocation3 + $0x20] sm:$0xff]
    %v4267 = vld [vmem:[#allocation3 + $0x30] sm:$0xff]
    %v4268 = vld [vmem:[#allocation3 + $0x38] sm:$0xff]
    %v4269 = vld [vmem:[#allocation3 + $0x48] sm:$0xff]
    %v4270 = vld [vmem:[#allocation3 + $0x50] sm:$0xff]
    %v4271 = vld [vmem:[#allocation3 + $0x60] sm:$0xff]
    %v4272 = vld [vmem:[#allocation3 + $0x68] sm:$0xff]
    %v4273 = vld [vmem:[#allocation3 + $0x78] sm:$0xff]
    %v4274 = vld [vmem:[#allocation3 + $0x80] sm:$0xff]
    %v4275 = vld [vmem:[#allocation3 + $0x90] sm:$0xff]
    %v4276 = vld [vmem:[#allocation3 + $0x98] sm:$0xff]
    %v4277 = vld [vmem:[#allocation3 + $0xa8] sm:$0xff]
    %v4278 = vld [vmem:[#allocation3 + $0xb0] sm:$0xff]
    %v4279 = vld [vmem:[#allocation3 + $0xc0] sm:$0xff]
    %v4280 = vld [vmem:[#allocation3 + $0xc8] sm:$0xff]
    %v4281 = vld [vmem:[#allocation3 + $0xd8] sm:$0xff]
    %v4282 = vld [vmem:[#allocation3 + $0xe0] sm:$0xff]
    %v4283 = vld [vmem:[#allocation3 + $0xf0] sm:$0xff]
    %v4284 = vld [vmem:[#allocation3 + $0xf8] sm:$0xff]
    %v4285 = vld [vmem:[#allocation3 + $0x108] sm:$0xff]
    %v4286 = vld [vmem:[#allocation3 + $0x110] sm:$0xff]
    %v4287 = vld [vmem:[#allocation3 + $0x120] sm:$0xff]
    %v4288 = vld [vmem:[#allocation3 + $0x128] sm:$0xff]
    %v4289 = vld [vmem:[#allocation3 + $0x138] sm:$0xff]
    %v4290 = vld [vmem:[#allocation3 + $0x140] sm:$0xff]
    %v4291 = vld [vmem:[#allocation3 + $0x150] sm:$0xff]
    %v4292 = vld [vmem:[#allocation3 + $0x158] sm:$0xff]
    %v4293 = vld [vmem:[#allocation3 + $0x168] sm:$0xff]
    %v4294 = vld [vmem:[#allocation3 + $0x170] sm:$0xff]
    %v4295 = vld [vmem:[#allocation3 + $0x1b0] sm:$0xff]
    %v4296 = vld [vmem:[#allocation3 + $0x1b8] sm:$0xff]
    %v4297 = vld [vmem:[#allocation3 + $0x1c8] sm:$0xff]
    %v4298 = vld [vmem:[#allocation3 + $0x1d0] sm:$0xff]
    %v4299 = vld [vmem:[#allocation3 + $0x1e0] sm:$0xff]
    %v4300 = vld [vmem:[#allocation3 + $0x1e8] sm:$0xff]
    %v4301 = vld [vmem:[#allocation3 + $0x1f8] sm:$0xff]
    %v4302 = vld [vmem:[#allocation3 + $0x200] sm:$0xff]
    %v4303 = vld [vmem:[#allocation3 + $0x210] sm:$0xff]
    %v4304 = vld [vmem:[#allocation3 + $0x218] sm:$0xff]
    %v4305 = vld [vmem:[#allocation3 + $0x228] sm:$0xff]
    %v4306 = vld [vmem:[#allocation3 + $0x230] sm:$0xff]
    %v4307 = vld [vmem:[#allocation3 + $0x240] sm:$0xff]
    %v4308 = vld [vmem:[#allocation3 + $0x248] sm:$0xff]
    %v4309 = vld [vmem:[#allocation3 + $0x258] sm:$0xff]
    %v4310 = vld [vmem:[#allocation3 + $0x260] sm:$0xff]
    %v4311 = vld [vmem:[#allocation3 + $0x270] sm:$0xff]
    %v4312 = vld [vmem:[#allocation3 + $0x278] sm:$0xff]
    %v4313 = vld [vmem:[#allocation3 + $0x288] sm:$0xff]
    %v4314 = vld [vmem:[#allocation3 + $0x290] sm:$0xff]
    %v4315 = vld [vmem:[#allocation3 + $0x2a0] sm:$0xff]
    %v4316 = vld [vmem:[#allocation3 + $0x2a8] sm:$0xff]
    %v4317 = vld [vmem:[#allocation3 + $0x2b8] sm:$0xff]
    %v4318 = vld [vmem:[#allocation3 + $0x2c0] sm:$0xff]
    %v4319 = vld [vmem:[#allocation3 + $0x2d0] sm:$0xff]
    %v4320 = vld [vmem:[#allocation3 + $0x2d8] sm:$0xff]
    %v4321 = vld [vmem:[#allocation3 + $0x2e8] sm:$0xff]
    %v4322 = vld [vmem:[#allocation3 + $0x2f0] sm:$0xff]
    %v4323 = vld [vmem:[#allocation3 + $0x300] sm:$0xff]
    %v4324 = vld [vmem:[#allocation3 + $0x308] sm:$0xff]
    %v4325 = vld [vmem:[#allocation3 + $0x318] sm:$0xff]
    %v4326 = vld [vmem:[#allocation3 + $0x320] sm:$0xff]
    %4327 = vst.msk [vmem:[#allocation5] sm:$0xff] %vm4088, %v4263
    %4328 = vst.msk [vmem:[#allocation5 + $0x10] sm:$0xff] %vm4088, %v4264
    %4329 = vst.msk [vmem:[#allocation5 + $0x20] sm:$0xff] %vm4088, %v4265
    %4330 = vst.msk [vmem:[#allocation5 + $0x30] sm:$0xff] %vm4088, %v4266
    %4331 = vst.msk [vmem:[#allocation5 + $0x40] sm:$0xff] %vm4088, %v4267
    %4332 = vst.msk [vmem:[#allocation5 + $0x50] sm:$0xff] %vm4088, %v4268
    %4333 = vst.msk [vmem:[#allocation5 + $0x60] sm:$0xff] %vm4088, %v4269
    %4334 = vst.msk [vmem:[#allocation5 + $0x70] sm:$0xff] %vm4088, %v4270
    %4335 = vst.msk [vmem:[#allocation5 + $0x80] sm:$0xff] %vm4088, %v4271
    %4336 = vst.msk [vmem:[#allocation5 + $0x90] sm:$0xff] %vm4088, %v4272
    %4337 = vst.msk [vmem:[#allocation5 + $0xa0] sm:$0xff] %vm4088, %v4273
    %4338 = vst.msk [vmem:[#allocation5 + $0xb0] sm:$0xff] %vm4088, %v4274
    %4339 = vst.msk [vmem:[#allocation5 + $0xc0] sm:$0xff] %vm4088, %v4275
    %4340 = vst.msk [vmem:[#allocation5 + $0xd0] sm:$0xff] %vm4088, %v4276
    %4341 = vst.msk [vmem:[#allocation5 + $0xe0] sm:$0xff] %vm4088, %v4277
    %4342 = vst.msk [vmem:[#allocation5 + $0xf0] sm:$0xff] %vm4088, %v4278
    %4343 = vst.msk [vmem:[#allocation5 + $0x100] sm:$0xff] %vm4088, %v4279
    %4344 = vst.msk [vmem:[#allocation5 + $0x110] sm:$0xff] %vm4088, %v4280
    %4345 = vst.msk [vmem:[#allocation5 + $0x120] sm:$0xff] %vm4088, %v4281
    %4346 = vst.msk [vmem:[#allocation5 + $0x130] sm:$0xff] %vm4088, %v4282
    %4347 = vst.msk [vmem:[#allocation5 + $0x140] sm:$0xff] %vm4088, %v4283
    %4348 = vst.msk [vmem:[#allocation5 + $0x150] sm:$0xff] %vm4088, %v4284
    %4349 = vst.msk [vmem:[#allocation5 + $0x160] sm:$0xff] %vm4088, %v4285
    %4350 = vst.msk [vmem:[#allocation5 + $0x170] sm:$0xff] %vm4088, %v4286
    %4351 = vst.msk [vmem:[#allocation5 + $0x180] sm:$0xff] %vm4088, %v4287
    %4352 = vst.msk [vmem:[#allocation5 + $0x190] sm:$0xff] %vm4088, %v4288
    %4353 = vst.msk [vmem:[#allocation5 + $0x1a0] sm:$0xff] %vm4088, %v4289
    %4354 = vst.msk [vmem:[#allocation5 + $0x1b0] sm:$0xff] %vm4088, %v4290
    %4355 = vst.msk [vmem:[#allocation5 + $0x1c0] sm:$0xff] %vm4088, %v4291
    %4356 = vst.msk [vmem:[#allocation5 + $0x1d0] sm:$0xff] %vm4088, %v4292
    %4357 = vst.msk [vmem:[#allocation5 + $0x1e0] sm:$0xff] %vm4088, %v4293
    %4358 = vst.msk [vmem:[#allocation5 + $0x1f0] sm:$0xff] %vm4088, %v4294
    %4359 = vst.msk [vmem:[#allocation5 + $0x200] sm:$0xff] %vm4088, %v4295
    %4360 = vst.msk [vmem:[#allocation5 + $0x210] sm:$0xff] %vm4088, %v4296
    %4361 = vst.msk [vmem:[#allocation5 + $0x220] sm:$0xff] %vm4088, %v4297
    %4362 = vst.msk [vmem:[#allocation5 + $0x230] sm:$0xff] %vm4088, %v4298
    %4363 = vst.msk [vmem:[#allocation5 + $0x240] sm:$0xff] %vm4088, %v4299
    %4364 = vst.msk [vmem:[#allocation5 + $0x250] sm:$0xff] %vm4088, %v4300
    %4365 = vst.msk [vmem:[#allocation5 + $0x260] sm:$0xff] %vm4088, %v4301
    %4366 = vst.msk [vmem:[#allocation5 + $0x270] sm:$0xff] %vm4088, %v4302
    %4367 = vst.msk [vmem:[#allocation5 + $0x280] sm:$0xff] %vm4088, %v4303
    %4368 = vst.msk [vmem:[#allocation5 + $0x290] sm:$0xff] %vm4088, %v4304
    %4369 = vst.msk [vmem:[#allocation5 + $0x2a0] sm:$0xff] %vm4088, %v4305
    %4370 = vst.msk [vmem:[#allocation5 + $0x2b0] sm:$0xff] %vm4088, %v4306
    %4371 = vst.msk [vmem:[#allocation5 + $0x2c0] sm:$0xff] %vm4088, %v4307
    %4372 = vst.msk [vmem:[#allocation5 + $0x2d0] sm:$0xff] %vm4088, %v4308
    %4373 = vst.msk [vmem:[#allocation5 + $0x2e0] sm:$0xff] %vm4088, %v4309
    %4374 = vst.msk [vmem:[#allocation5 + $0x2f0] sm:$0xff] %vm4088, %v4310
    %4375 = vst.msk [vmem:[#allocation5 + $0x300] sm:$0xff] %vm4088, %v4311
    %4376 = vst.msk [vmem:[#allocation5 + $0x310] sm:$0xff] %vm4088, %v4312
    %4377 = vst.msk [vmem:[#allocation5 + $0x320] sm:$0xff] %vm4088, %v4313
    %4378 = vst.msk [vmem:[#allocation5 + $0x330] sm:$0xff] %vm4088, %v4314
    %4379 = vst.msk [vmem:[#allocation5 + $0x340] sm:$0xff] %vm4088, %v4315
    %4380 = vst.msk [vmem:[#allocation5 + $0x350] sm:$0xff] %vm4088, %v4316
    %4381 = vst.msk [vmem:[#allocation5 + $0x360] sm:$0xff] %vm4088, %v4317
    %4382 = vst.msk [vmem:[#allocation5 + $0x370] sm:$0xff] %vm4088, %v4318
    %4383 = vst.msk [vmem:[#allocation5 + $0x380] sm:$0xff] %vm4088, %v4319
    %4384 = vst.msk [vmem:[#allocation5 + $0x390] sm:$0xff] %vm4088, %v4320
    %4385 = vst.msk [vmem:[#allocation5 + $0x3a0] sm:$0xff] %vm4088, %v4321
    %4386 = vst.msk [vmem:[#allocation5 + $0x3b0] sm:$0xff] %vm4088, %v4322
    %4387 = vst.msk [vmem:[#allocation5 + $0x3c0] sm:$0xff] %vm4088, %v4323
    %4388 = vst.msk [vmem:[#allocation5 + $0x3d0] sm:$0xff] %vm4088, %v4324
    %4389 = vst.msk [vmem:[#allocation5 + $0x3e0] sm:$0xff] %vm4088, %v4325
    %4390 = vst.msk [vmem:[#allocation5 + $0x3f0] sm:$0xff] %vm4088, %v4326
    %v4391 = vld [vmem:[#allocation3 + $0x1] sm:$0xff]
    %v4392 = vld [vmem:[#allocation3 + $0x9] sm:$0xff]
    %v4393 = vld [vmem:[#allocation3 + $0x19] sm:$0xff]
    %v4394 = vld [vmem:[#allocation3 + $0x21] sm:$0xff]
    %v4395 = vld [vmem:[#allocation3 + $0x31] sm:$0xff]
    %v4396 = vld [vmem:[#allocation3 + $0x39] sm:$0xff]
    %v4397 = vld [vmem:[#allocation3 + $0x49] sm:$0xff]
    %v4398 = vld [vmem:[#allocation3 + $0x51] sm:$0xff]
    %v4399 = vld [vmem:[#allocation3 + $0x61] sm:$0xff]
    %v4400 = vld [vmem:[#allocation3 + $0x69] sm:$0xff]
    %v4401 = vld [vmem:[#allocation3 + $0x79] sm:$0xff]
    %v4402 = vld [vmem:[#allocation3 + $0x81] sm:$0xff]
    %v4403 = vld [vmem:[#allocation3 + $0x91] sm:$0xff]
    %v4404 = vld [vmem:[#allocation3 + $0x99] sm:$0xff]
    %v4405 = vld [vmem:[#allocation3 + $0xa9] sm:$0xff]
    %v4406 = vld [vmem:[#allocation3 + $0xb1] sm:$0xff]
    %v4407 = vld [vmem:[#allocation3 + $0xc1] sm:$0xff]
    %v4408 = vld [vmem:[#allocation3 + $0xc9] sm:$0xff]
    %v4409 = vld [vmem:[#allocation3 + $0xd9] sm:$0xff]
    %v4410 = vld [vmem:[#allocation3 + $0xe1] sm:$0xff]
    %v4411 = vld [vmem:[#allocation3 + $0xf1] sm:$0xff]
    %v4412 = vld [vmem:[#allocation3 + $0xf9] sm:$0xff]
    %v4413 = vld [vmem:[#allocation3 + $0x109] sm:$0xff]
    %v4414 = vld [vmem:[#allocation3 + $0x111] sm:$0xff]
    %v4415 = vld [vmem:[#allocation3 + $0x121] sm:$0xff]
    %v4416 = vld [vmem:[#allocation3 + $0x129] sm:$0xff]
    %v4417 = vld [vmem:[#allocation3 + $0x139] sm:$0xff]
    %v4418 = vld [vmem:[#allocation3 + $0x141] sm:$0xff]
    %v4419 = vld [vmem:[#allocation3 + $0x151] sm:$0xff]
    %v4420 = vld [vmem:[#allocation3 + $0x159] sm:$0xff]
    %v4421 = vld [vmem:[#allocation3 + $0x169] sm:$0xff]
    %v4422 = vld [vmem:[#allocation3 + $0x171] sm:$0xff]
    %v4423 = vld [vmem:[#allocation3 + $0x1b1] sm:$0xff]
    %v4424 = vld [vmem:[#allocation3 + $0x1b9] sm:$0xff]
    %v4425 = vld [vmem:[#allocation3 + $0x1c9] sm:$0xff]
    %v4426 = vld [vmem:[#allocation3 + $0x1d1] sm:$0xff]
    %v4427 = vld [vmem:[#allocation3 + $0x1e1] sm:$0xff]
    %v4428 = vld [vmem:[#allocation3 + $0x1e9] sm:$0xff]
    %v4429 = vld [vmem:[#allocation3 + $0x1f9] sm:$0xff]
    %v4430 = vld [vmem:[#allocation3 + $0x201] sm:$0xff]
    %v4431 = vld [vmem:[#allocation3 + $0x211] sm:$0xff]
    %v4432 = vld [vmem:[#allocation3 + $0x219] sm:$0xff]
    %v4433 = vld [vmem:[#allocation3 + $0x229] sm:$0xff]
    %v4434 = vld [vmem:[#allocation3 + $0x231] sm:$0xff]
    %v4435 = vld [vmem:[#allocation3 + $0x241] sm:$0xff]
    %v4436 = vld [vmem:[#allocation3 + $0x249] sm:$0xff]
    %v4437 = vld [vmem:[#allocation3 + $0x259] sm:$0xff]
    %v4438 = vld [vmem:[#allocation3 + $0x261] sm:$0xff]
    %v4439 = vld [vmem:[#allocation3 + $0x271] sm:$0xff]
    %v4440 = vld [vmem:[#allocation3 + $0x279] sm:$0xff]
    %v4441 = vld [vmem:[#allocation3 + $0x289] sm:$0xff]
    %v4442 = vld [vmem:[#allocation3 + $0x291] sm:$0xff]
    %v4443 = vld [vmem:[#allocation3 + $0x2a1] sm:$0xff]
    %v4444 = vld [vmem:[#allocation3 + $0x2a9] sm:$0xff]
    %v4445 = vld [vmem:[#allocation3 + $0x2b9] sm:$0xff]
    %v4446 = vld [vmem:[#allocation3 + $0x2c1] sm:$0xff]
    %v4447 = vld [vmem:[#allocation3 + $0x2d1] sm:$0xff]
    %v4448 = vld [vmem:[#allocation3 + $0x2d9] sm:$0xff]
    %v4449 = vld [vmem:[#allocation3 + $0x2e9] sm:$0xff]
    %v4450 = vld [vmem:[#allocation3 + $0x2f1] sm:$0xff]
    %v4451 = vld [vmem:[#allocation3 + $0x301] sm:$0xff]
    %v4452 = vld [vmem:[#allocation3 + $0x309] sm:$0xff]
    %v4453 = vld [vmem:[#allocation3 + $0x319] sm:$0xff]
    %v4454 = vld [vmem:[#allocation3 + $0x321] sm:$0xff]
    %4519 = vrot.lane.b32.xlu0 %v4391, 16
    %v4520 = vpop.permute.xlu0 %4519
    %4521 = vrot.lane.b32.xlu0 %v4392, 16
    %v4522 = vpop.permute.xlu0 %4521
    %4523 = vrot.lane.b32.xlu0 %v4393, 16
    %v4524 = vpop.permute.xlu0 %4523
    %4525 = vrot.lane.b32.xlu0 %v4394, 16
    %v4526 = vpop.permute.xlu0 %4525
    %4527 = vrot.lane.b32.xlu0 %v4395, 16
    %v4528 = vpop.permute.xlu0 %4527
    %4529 = vrot.lane.b32.xlu0 %v4396, 16
    %v4530 = vpop.permute.xlu0 %4529
    %4531 = vrot.lane.b32.xlu0 %v4397, 16
    %v4532 = vpop.permute.xlu0 %4531
    %4533 = vrot.lane.b32.xlu0 %v4398, 16
    %v4534 = vpop.permute.xlu0 %4533
    %4535 = vrot.lane.b32.xlu0 %v4399, 16
    %v4536 = vpop.permute.xlu0 %4535
    %4537 = vrot.lane.b32.xlu0 %v4400, 16
    %v4538 = vpop.permute.xlu0 %4537
    %4539 = vrot.lane.b32.xlu0 %v4401, 16
    %v4540 = vpop.permute.xlu0 %4539
    %4541 = vrot.lane.b32.xlu0 %v4402, 16
    %v4542 = vpop.permute.xlu0 %4541
    %4543 = vrot.lane.b32.xlu0 %v4403, 16
    %v4544 = vpop.permute.xlu0 %4543
    %4545 = vrot.lane.b32.xlu0 %v4404, 16
    %v4546 = vpop.permute.xlu0 %4545
    %4547 = vrot.lane.b32.xlu0 %v4405, 16
    %v4548 = vpop.permute.xlu0 %4547
    %4549 = vrot.lane.b32.xlu0 %v4406, 16
    %v4550 = vpop.permute.xlu0 %4549
    %4551 = vrot.lane.b32.xlu0 %v4407, 16
    %v4552 = vpop.permute.xlu0 %4551
    %4553 = vrot.lane.b32.xlu0 %v4408, 16
    %v4554 = vpop.permute.xlu0 %4553
    %4555 = vrot.lane.b32.xlu0 %v4409, 16
    %v4556 = vpop.permute.xlu0 %4555
    %4557 = vrot.lane.b32.xlu0 %v4410, 16
    %v4558 = vpop.permute.xlu0 %4557
    %4559 = vrot.lane.b32.xlu0 %v4411, 16
    %v4560 = vpop.permute.xlu0 %4559
    %4561 = vrot.lane.b32.xlu0 %v4412, 16
    %v4562 = vpop.permute.xlu0 %4561
    %4563 = vrot.lane.b32.xlu0 %v4413, 16
    %v4564 = vpop.permute.xlu0 %4563
    %4565 = vrot.lane.b32.xlu0 %v4414, 16
    %v4566 = vpop.permute.xlu0 %4565
    %4567 = vrot.lane.b32.xlu0 %v4415, 16
    %v4568 = vpop.permute.xlu0 %4567
    %4569 = vrot.lane.b32.xlu0 %v4416, 16
    %v4570 = vpop.permute.xlu0 %4569
    %4571 = vrot.lane.b32.xlu0 %v4417, 16
    %v4572 = vpop.permute.xlu0 %4571
    %4573 = vrot.lane.b32.xlu0 %v4418, 16
    %v4574 = vpop.permute.xlu0 %4573
    %4575 = vrot.lane.b32.xlu0 %v4419, 16
    %v4576 = vpop.permute.xlu0 %4575
    %4577 = vrot.lane.b32.xlu0 %v4420, 16
    %v4578 = vpop.permute.xlu0 %4577
    %4579 = vrot.lane.b32.xlu0 %v4421, 16
    %v4580 = vpop.permute.xlu0 %4579
    %4581 = vrot.lane.b32.xlu0 %v4422, 16
    %v4582 = vpop.permute.xlu0 %4581
    %4583 = vrot.lane.b32.xlu0 %v4423, 16
    %v4584 = vpop.permute.xlu0 %4583
    %4585 = vrot.lane.b32.xlu0 %v4424, 16
    %v4586 = vpop.permute.xlu0 %4585
    %4587 = vrot.lane.b32.xlu0 %v4425, 16
    %v4588 = vpop.permute.xlu0 %4587
    %4589 = vrot.lane.b32.xlu0 %v4426, 16
    %v4590 = vpop.permute.xlu0 %4589
    %4591 = vrot.lane.b32.xlu0 %v4427, 16
    %v4592 = vpop.permute.xlu0 %4591
    %4593 = vrot.lane.b32.xlu0 %v4428, 16
    %v4594 = vpop.permute.xlu0 %4593
    %4595 = vrot.lane.b32.xlu0 %v4429, 16
    %v4596 = vpop.permute.xlu0 %4595
    %4597 = vrot.lane.b32.xlu0 %v4430, 16
    %v4598 = vpop.permute.xlu0 %4597
    %4599 = vrot.lane.b32.xlu0 %v4431, 16
    %v4600 = vpop.permute.xlu0 %4599
    %4601 = vrot.lane.b32.xlu0 %v4432, 16
    %v4602 = vpop.permute.xlu0 %4601
    %4603 = vrot.lane.b32.xlu0 %v4433, 16
    %v4604 = vpop.permute.xlu0 %4603
    %4605 = vrot.lane.b32.xlu0 %v4434, 16
    %v4606 = vpop.permute.xlu0 %4605
    %4607 = vrot.lane.b32.xlu0 %v4435, 16
    %v4608 = vpop.permute.xlu0 %4607
    %4609 = vrot.lane.b32.xlu0 %v4436, 16
    %v4610 = vpop.permute.xlu0 %4609
    %4611 = vrot.lane.b32.xlu0 %v4437, 16
    %v4612 = vpop.permute.xlu0 %4611
    %4613 = vrot.lane.b32.xlu0 %v4438, 16
    %v4614 = vpop.permute.xlu0 %4613
    %4615 = vrot.lane.b32.xlu0 %v4439, 16
    %v4616 = vpop.permute.xlu0 %4615
    %4617 = vrot.lane.b32.xlu0 %v4440, 16
    %v4618 = vpop.permute.xlu0 %4617
    %4619 = vrot.lane.b32.xlu0 %v4441, 16
    %v4620 = vpop.permute.xlu0 %4619
    %4621 = vrot.lane.b32.xlu0 %v4442, 16
    %v4622 = vpop.permute.xlu0 %4621
    %4623 = vrot.lane.b32.xlu0 %v4443, 16
    %v4624 = vpop.permute.xlu0 %4623
    %4625 = vrot.lane.b32.xlu0 %v4444, 16
    %v4626 = vpop.permute.xlu0 %4625
    %4627 = vrot.lane.b32.xlu0 %v4445, 16
    %v4628 = vpop.permute.xlu0 %4627
    %4629 = vrot.lane.b32.xlu0 %v4446, 16
    %v4630 = vpop.permute.xlu0 %4629
    %4631 = vrot.lane.b32.xlu0 %v4447, 16
    %v4632 = vpop.permute.xlu0 %4631
    %4633 = vrot.lane.b32.xlu0 %v4448, 16
    %v4634 = vpop.permute.xlu0 %4633
    %4635 = vrot.lane.b32.xlu0 %v4449, 16
    %v4636 = vpop.permute.xlu0 %4635
    %4637 = vrot.lane.b32.xlu0 %v4450, 16
    %v4638 = vpop.permute.xlu0 %4637
    %4639 = vrot.lane.b32.xlu0 %v4451, 16
    %v4640 = vpop.permute.xlu0 %4639
    %4641 = vrot.lane.b32.xlu0 %v4452, 16
    %v4642 = vpop.permute.xlu0 %4641
    %4643 = vrot.lane.b32.xlu0 %v4453, 16
    %v4644 = vpop.permute.xlu0 %4643
    %4645 = vrot.lane.b32.xlu0 %v4454, 16
    %v4646 = vpop.permute.xlu0 %4645
    %vm4711 = vcmask 261248
    %4712 = vst.msk [vmem:[#allocation5] sm:$0xff] %vm4711, %v4520
    %4713 = vst.msk [vmem:[#allocation5 + $0x10] sm:$0xff] %vm4711, %v4522
    %4714 = vst.msk [vmem:[#allocation5 + $0x20] sm:$0xff] %vm4711, %v4524
    %4715 = vst.msk [vmem:[#allocation5 + $0x30] sm:$0xff] %vm4711, %v4526
    %4716 = vst.msk [vmem:[#allocation5 + $0x40] sm:$0xff] %vm4711, %v4528
    %4717 = vst.msk [vmem:[#allocation5 + $0x50] sm:$0xff] %vm4711, %v4530
    %4718 = vst.msk [vmem:[#allocation5 + $0x60] sm:$0xff] %vm4711, %v4532
    %4719 = vst.msk [vmem:[#allocation5 + $0x70] sm:$0xff] %vm4711, %v4534
    %4720 = vst.msk [vmem:[#allocation5 + $0x80] sm:$0xff] %vm4711, %v4536
    %4721 = vst.msk [vmem:[#allocation5 + $0x90] sm:$0xff] %vm4711, %v4538
    %4722 = vst.msk [vmem:[#allocation5 + $0xa0] sm:$0xff] %vm4711, %v4540
    %4723 = vst.msk [vmem:[#allocation5 + $0xb0] sm:$0xff] %vm4711, %v4542
    %4724 = vst.msk [vmem:[#allocation5 + $0xc0] sm:$0xff] %vm4711, %v4544
    %4725 = vst.msk [vmem:[#allocation5 + $0xd0] sm:$0xff] %vm4711, %v4546
    %4726 = vst.msk [vmem:[#allocation5 + $0xe0] sm:$0xff] %vm4711, %v4548
    %4727 = vst.msk [vmem:[#allocation5 + $0xf0] sm:$0xff] %vm4711, %v4550
    %4728 = vst.msk [vmem:[#allocation5 + $0x100] sm:$0xff] %vm4711, %v4552
    %4729 = vst.msk [vmem:[#allocation5 + $0x110] sm:$0xff] %vm4711, %v4554
    %4730 = vst.msk [vmem:[#allocation5 + $0x120] sm:$0xff] %vm4711, %v4556
    %4731 = vst.msk [vmem:[#allocation5 + $0x130] sm:$0xff] %vm4711, %v4558
    %4732 = vst.msk [vmem:[#allocation5 + $0x140] sm:$0xff] %vm4711, %v4560
    %4733 = vst.msk [vmem:[#allocation5 + $0x150] sm:$0xff] %vm4711, %v4562
    %4734 = vst.msk [vmem:[#allocation5 + $0x160] sm:$0xff] %vm4711, %v4564
    %4735 = vst.msk [vmem:[#allocation5 + $0x170] sm:$0xff] %vm4711, %v4566
    %4736 = vst.msk [vmem:[#allocation5 + $0x180] sm:$0xff] %vm4711, %v4568
    %4737 = vst.msk [vmem:[#allocation5 + $0x190] sm:$0xff] %vm4711, %v4570
    %4738 = vst.msk [vmem:[#allocation5 + $0x1a0] sm:$0xff] %vm4711, %v4572
    %4739 = vst.msk [vmem:[#allocation5 + $0x1b0] sm:$0xff] %vm4711, %v4574
    %4740 = vst.msk [vmem:[#allocation5 + $0x1c0] sm:$0xff] %vm4711, %v4576
    %4741 = vst.msk [vmem:[#allocation5 + $0x1d0] sm:$0xff] %vm4711, %v4578
    %4742 = vst.msk [vmem:[#allocation5 + $0x1e0] sm:$0xff] %vm4711, %v4580
    %4743 = vst.msk [vmem:[#allocation5 + $0x1f0] sm:$0xff] %vm4711, %v4582
    %4744 = vst.msk [vmem:[#allocation5 + $0x200] sm:$0xff] %vm4711, %v4584
    %4745 = vst.msk [vmem:[#allocation5 + $0x210] sm:$0xff] %vm4711, %v4586
    %4746 = vst.msk [vmem:[#allocation5 + $0x220] sm:$0xff] %vm4711, %v4588
    %4747 = vst.msk [vmem:[#allocation5 + $0x230] sm:$0xff] %vm4711, %v4590
    %4748 = vst.msk [vmem:[#allocation5 + $0x240] sm:$0xff] %vm4711, %v4592
    %4749 = vst.msk [vmem:[#allocation5 + $0x250] sm:$0xff] %vm4711, %v4594
    %4750 = vst.msk [vmem:[#allocation5 + $0x260] sm:$0xff] %vm4711, %v4596
    %4751 = vst.msk [vmem:[#allocation5 + $0x270] sm:$0xff] %vm4711, %v4598
    %4752 = vst.msk [vmem:[#allocation5 + $0x280] sm:$0xff] %vm4711, %v4600
    %4753 = vst.msk [vmem:[#allocation5 + $0x290] sm:$0xff] %vm4711, %v4602
    %4754 = vst.msk [vmem:[#allocation5 + $0x2a0] sm:$0xff] %vm4711, %v4604
    %4755 = vst.msk [vmem:[#allocation5 + $0x2b0] sm:$0xff] %vm4711, %v4606
    %4756 = vst.msk [vmem:[#allocation5 + $0x2c0] sm:$0xff] %vm4711, %v4608
    %4757 = vst.msk [vmem:[#allocation5 + $0x2d0] sm:$0xff] %vm4711, %v4610
    %4758 = vst.msk [vmem:[#allocation5 + $0x2e0] sm:$0xff] %vm4711, %v4612
    %4759 = vst.msk [vmem:[#allocation5 + $0x2f0] sm:$0xff] %vm4711, %v4614
    %4760 = vst.msk [vmem:[#allocation5 + $0x300] sm:$0xff] %vm4711, %v4616
    %4761 = vst.msk [vmem:[#allocation5 + $0x310] sm:$0xff] %vm4711, %v4618
    %4762 = vst.msk [vmem:[#allocation5 + $0x320] sm:$0xff] %vm4711, %v4620
    %4763 = vst.msk [vmem:[#allocation5 + $0x330] sm:$0xff] %vm4711, %v4622
    %4764 = vst.msk [vmem:[#allocation5 + $0x340] sm:$0xff] %vm4711, %v4624
    %4765 = vst.msk [vmem:[#allocation5 + $0x350] sm:$0xff] %vm4711, %v4626
    %4766 = vst.msk [vmem:[#allocation5 + $0x360] sm:$0xff] %vm4711, %v4628
    %4767 = vst.msk [vmem:[#allocation5 + $0x370] sm:$0xff] %vm4711, %v4630
    %4768 = vst.msk [vmem:[#allocation5 + $0x380] sm:$0xff] %vm4711, %v4632
    %4769 = vst.msk [vmem:[#allocation5 + $0x390] sm:$0xff] %vm4711, %v4634
    %4770 = vst.msk [vmem:[#allocation5 + $0x3a0] sm:$0xff] %vm4711, %v4636
    %4771 = vst.msk [vmem:[#allocation5 + $0x3b0] sm:$0xff] %vm4711, %v4638
    %4772 = vst.msk [vmem:[#allocation5 + $0x3c0] sm:$0xff] %vm4711, %v4640
    %4773 = vst.msk [vmem:[#allocation5 + $0x3d0] sm:$0xff] %vm4711, %v4642
    %4774 = vst.msk [vmem:[#allocation5 + $0x3e0] sm:$0xff] %vm4711, %v4644
    %4775 = vst.msk [vmem:[#allocation5 + $0x3f0] sm:$0xff] %vm4711, %v4646
    %v4776 = vld [vmem:[#allocation3 + $0x2] sm:$0xff]
    %v4777 = vld [vmem:[#allocation3 + $0xa] sm:$0xff]
    %v4778 = vld [vmem:[#allocation3 + $0x1a] sm:$0xff]
    %v4779 = vld [vmem:[#allocation3 + $0x22] sm:$0xff]
    %v4780 = vld [vmem:[#allocation3 + $0x32] sm:$0xff]
    %v4781 = vld [vmem:[#allocation3 + $0x3a] sm:$0xff]
    %v4782 = vld [vmem:[#allocation3 + $0x4a] sm:$0xff]
    %v4783 = vld [vmem:[#allocation3 + $0x52] sm:$0xff]
    %v4784 = vld [vmem:[#allocation3 + $0x62] sm:$0xff]
    %v4785 = vld [vmem:[#allocation3 + $0x6a] sm:$0xff]
    %v4786 = vld [vmem:[#allocation3 + $0x7a] sm:$0xff]
    %v4787 = vld [vmem:[#allocation3 + $0x82] sm:$0xff]
    %v4788 = vld [vmem:[#allocation3 + $0x92] sm:$0xff]
    %v4789 = vld [vmem:[#allocation3 + $0x9a] sm:$0xff]
    %v4790 = vld [vmem:[#allocation3 + $0xaa] sm:$0xff]
    %v4791 = vld [vmem:[#allocation3 + $0xb2] sm:$0xff]
    %v4792 = vld [vmem:[#allocation3 + $0xc2] sm:$0xff]
    %v4793 = vld [vmem:[#allocation3 + $0xca] sm:$0xff]
    %v4794 = vld [vmem:[#allocation3 + $0xda] sm:$0xff]
    %v4795 = vld [vmem:[#allocation3 + $0xe2] sm:$0xff]
    %v4796 = vld [vmem:[#allocation3 + $0xf2] sm:$0xff]
    %v4797 = vld [vmem:[#allocation3 + $0xfa] sm:$0xff]
    %v4798 = vld [vmem:[#allocation3 + $0x10a] sm:$0xff]
    %v4799 = vld [vmem:[#allocation3 + $0x112] sm:$0xff]
    %v4800 = vld [vmem:[#allocation3 + $0x122] sm:$0xff]
    %v4801 = vld [vmem:[#allocation3 + $0x12a] sm:$0xff]
    %v4802 = vld [vmem:[#allocation3 + $0x13a] sm:$0xff]
    %v4803 = vld [vmem:[#allocation3 + $0x142] sm:$0xff]
    %v4804 = vld [vmem:[#allocation3 + $0x152] sm:$0xff]
    %v4805 = vld [vmem:[#allocation3 + $0x15a] sm:$0xff]
    %v4806 = vld [vmem:[#allocation3 + $0x16a] sm:$0xff]
    %v4807 = vld [vmem:[#allocation3 + $0x172] sm:$0xff]
    %v4808 = vld [vmem:[#allocation3 + $0x1b2] sm:$0xff]
    %v4809 = vld [vmem:[#allocation3 + $0x1ba] sm:$0xff]
    %v4810 = vld [vmem:[#allocation3 + $0x1ca] sm:$0xff]
    %v4811 = vld [vmem:[#allocation3 + $0x1d2] sm:$0xff]
    %v4812 = vld [vmem:[#allocation3 + $0x1e2] sm:$0xff]
    %v4813 = vld [vmem:[#allocation3 + $0x1ea] sm:$0xff]
    %v4814 = vld [vmem:[#allocation3 + $0x1fa] sm:$0xff]
    %v4815 = vld [vmem:[#allocation3 + $0x202] sm:$0xff]
    %v4816 = vld [vmem:[#allocation3 + $0x212] sm:$0xff]
    %v4817 = vld [vmem:[#allocation3 + $0x21a] sm:$0xff]
    %v4818 = vld [vmem:[#allocation3 + $0x22a] sm:$0xff]
    %v4819 = vld [vmem:[#allocation3 + $0x232] sm:$0xff]
    %v4820 = vld [vmem:[#allocation3 + $0x242] sm:$0xff]
    %v4821 = vld [vmem:[#allocation3 + $0x24a] sm:$0xff]
    %v4822 = vld [vmem:[#allocation3 + $0x25a] sm:$0xff]
    %v4823 = vld [vmem:[#allocation3 + $0x262] sm:$0xff]
    %v4824 = vld [vmem:[#allocation3 + $0x272] sm:$0xff]
    %v4825 = vld [vmem:[#allocation3 + $0x27a] sm:$0xff]
    %v4826 = vld [vmem:[#allocation3 + $0x28a] sm:$0xff]
    %v4827 = vld [vmem:[#allocation3 + $0x292] sm:$0xff]
    %v4828 = vld [vmem:[#allocation3 + $0x2a2] sm:$0xff]
    %v4829 = vld [vmem:[#allocation3 + $0x2aa] sm:$0xff]
    %v4830 = vld [vmem:[#allocation3 + $0x2ba] sm:$0xff]
    %v4831 = vld [vmem:[#allocation3 + $0x2c2] sm:$0xff]
    %v4832 = vld [vmem:[#allocation3 + $0x2d2] sm:$0xff]
    %v4833 = vld [vmem:[#allocation3 + $0x2da] sm:$0xff]
    %v4834 = vld [vmem:[#allocation3 + $0x2ea] sm:$0xff]
    %v4835 = vld [vmem:[#allocation3 + $0x2f2] sm:$0xff]
    %v4836 = vld [vmem:[#allocation3 + $0x302] sm:$0xff]
    %v4837 = vld [vmem:[#allocation3 + $0x30a] sm:$0xff]
    %v4838 = vld [vmem:[#allocation3 + $0x31a] sm:$0xff]
    %v4839 = vld [vmem:[#allocation3 + $0x322] sm:$0xff]
    %4904 = vrot.lane.b32.xlu0 %v4776, 32
    %v4905 = vpop.permute.xlu0 %4904
    %4906 = vrot.lane.b32.xlu0 %v4777, 32
    %v4907 = vpop.permute.xlu0 %4906
    %4908 = vrot.lane.b32.xlu0 %v4778, 32
    %v4909 = vpop.permute.xlu0 %4908
    %4910 = vrot.lane.b32.xlu0 %v4779, 32
    %v4911 = vpop.permute.xlu0 %4910
    %4912 = vrot.lane.b32.xlu0 %v4780, 32
    %v4913 = vpop.permute.xlu0 %4912
    %4914 = vrot.lane.b32.xlu0 %v4781, 32
    %v4915 = vpop.permute.xlu0 %4914
    %4916 = vrot.lane.b32.xlu0 %v4782, 32
    %v4917 = vpop.permute.xlu0 %4916
    %4918 = vrot.lane.b32.xlu0 %v4783, 32
    %v4919 = vpop.permute.xlu0 %4918
    %4920 = vrot.lane.b32.xlu0 %v4784, 32
    %v4921 = vpop.permute.xlu0 %4920
    %4922 = vrot.lane.b32.xlu0 %v4785, 32
    %v4923 = vpop.permute.xlu0 %4922
    %4924 = vrot.lane.b32.xlu0 %v4786, 32
    %v4925 = vpop.permute.xlu0 %4924
    %4926 = vrot.lane.b32.xlu0 %v4787, 32
    %v4927 = vpop.permute.xlu0 %4926
    %4928 = vrot.lane.b32.xlu0 %v4788, 32
    %v4929 = vpop.permute.xlu0 %4928
    %4930 = vrot.lane.b32.xlu0 %v4789, 32
    %v4931 = vpop.permute.xlu0 %4930
    %4932 = vrot.lane.b32.xlu0 %v4790, 32
    %v4933 = vpop.permute.xlu0 %4932
    %4934 = vrot.lane.b32.xlu0 %v4791, 32
    %v4935 = vpop.permute.xlu0 %4934
    %4936 = vrot.lane.b32.xlu0 %v4792, 32
    %v4937 = vpop.permute.xlu0 %4936
    %4938 = vrot.lane.b32.xlu0 %v4793, 32
    %v4939 = vpop.permute.xlu0 %4938
    %4940 = vrot.lane.b32.xlu0 %v4794, 32
    %v4941 = vpop.permute.xlu0 %4940
    %4942 = vrot.lane.b32.xlu0 %v4795, 32
    %v4943 = vpop.permute.xlu0 %4942
    %4944 = vrot.lane.b32.xlu0 %v4796, 32
    %v4945 = vpop.permute.xlu0 %4944
    %4946 = vrot.lane.b32.xlu0 %v4797, 32
    %v4947 = vpop.permute.xlu0 %4946
    %4948 = vrot.lane.b32.xlu0 %v4798, 32
    %v4949 = vpop.permute.xlu0 %4948
    %4950 = vrot.lane.b32.xlu0 %v4799, 32
    %v4951 = vpop.permute.xlu0 %4950
    %4952 = vrot.lane.b32.xlu0 %v4800, 32
    %v4953 = vpop.permute.xlu0 %4952
    %4954 = vrot.lane.b32.xlu0 %v4801, 32
    %v4955 = vpop.permute.xlu0 %4954
    %4956 = vrot.lane.b32.xlu0 %v4802, 32
    %v4957 = vpop.permute.xlu0 %4956
    %4958 = vrot.lane.b32.xlu0 %v4803, 32
    %v4959 = vpop.permute.xlu0 %4958
    %4960 = vrot.lane.b32.xlu0 %v4804, 32
    %v4961 = vpop.permute.xlu0 %4960
    %4962 = vrot.lane.b32.xlu0 %v4805, 32
    %v4963 = vpop.permute.xlu0 %4962
    %4964 = vrot.lane.b32.xlu0 %v4806, 32
    %v4965 = vpop.permute.xlu0 %4964
    %4966 = vrot.lane.b32.xlu0 %v4807, 32
    %v4967 = vpop.permute.xlu0 %4966
    %4968 = vrot.lane.b32.xlu0 %v4808, 32
    %v4969 = vpop.permute.xlu0 %4968
    %4970 = vrot.lane.b32.xlu0 %v4809, 32
    %v4971 = vpop.permute.xlu0 %4970
    %4972 = vrot.lane.b32.xlu0 %v4810, 32
    %v4973 = vpop.permute.xlu0 %4972
    %4974 = vrot.lane.b32.xlu0 %v4811, 32
    %v4975 = vpop.permute.xlu0 %4974
    %4976 = vrot.lane.b32.xlu0 %v4812, 32
    %v4977 = vpop.permute.xlu0 %4976
    %4978 = vrot.lane.b32.xlu0 %v4813, 32
    %v4979 = vpop.permute.xlu0 %4978
    %4980 = vrot.lane.b32.xlu0 %v4814, 32
    %v4981 = vpop.permute.xlu0 %4980
    %4982 = vrot.lane.b32.xlu0 %v4815, 32
    %v4983 = vpop.permute.xlu0 %4982
    %4984 = vrot.lane.b32.xlu0 %v4816, 32
    %v4985 = vpop.permute.xlu0 %4984
    %4986 = vrot.lane.b32.xlu0 %v4817, 32
    %v4987 = vpop.permute.xlu0 %4986
    %4988 = vrot.lane.b32.xlu0 %v4818, 32
    %v4989 = vpop.permute.xlu0 %4988
    %4990 = vrot.lane.b32.xlu0 %v4819, 32
    %v4991 = vpop.permute.xlu0 %4990
    %4992 = vrot.lane.b32.xlu0 %v4820, 32
    %v4993 = vpop.permute.xlu0 %4992
    %4994 = vrot.lane.b32.xlu0 %v4821, 32
    %v4995 = vpop.permute.xlu0 %4994
    %4996 = vrot.lane.b32.xlu0 %v4822, 32
    %v4997 = vpop.permute.xlu0 %4996
    %4998 = vrot.lane.b32.xlu0 %v4823, 32
    %v4999 = vpop.permute.xlu0 %4998
    %5000 = vrot.lane.b32.xlu0 %v4824, 32
    %v5001 = vpop.permute.xlu0 %5000
    %5002 = vrot.lane.b32.xlu0 %v4825, 32
    %v5003 = vpop.permute.xlu0 %5002
    %5004 = vrot.lane.b32.xlu0 %v4826, 32
    %v5005 = vpop.permute.xlu0 %5004
    %5006 = vrot.lane.b32.xlu0 %v4827, 32
    %v5007 = vpop.permute.xlu0 %5006
    %5008 = vrot.lane.b32.xlu0 %v4828, 32
    %v5009 = vpop.permute.xlu0 %5008
    %5010 = vrot.lane.b32.xlu0 %v4829, 32
    %v5011 = vpop.permute.xlu0 %5010
    %5012 = vrot.lane.b32.xlu0 %v4830, 32
    %v5013 = vpop.permute.xlu0 %5012
    %5014 = vrot.lane.b32.xlu0 %v4831, 32
    %v5015 = vpop.permute.xlu0 %5014
    %5016 = vrot.lane.b32.xlu0 %v4832, 32
    %v5017 = vpop.permute.xlu0 %5016
    %5018 = vrot.lane.b32.xlu0 %v4833, 32
    %v5019 = vpop.permute.xlu0 %5018
    %5020 = vrot.lane.b32.xlu0 %v4834, 32
    %v5021 = vpop.permute.xlu0 %5020
    %5022 = vrot.lane.b32.xlu0 %v4835, 32
    %v5023 = vpop.permute.xlu0 %5022
    %5024 = vrot.lane.b32.xlu0 %v4836, 32
    %v5025 = vpop.permute.xlu0 %5024
    %5026 = vrot.lane.b32.xlu0 %v4837, 32
    %v5027 = vpop.permute.xlu0 %5026
    %5028 = vrot.lane.b32.xlu0 %v4838, 32
    %v5029 = vpop.permute.xlu0 %5028
    %5030 = vrot.lane.b32.xlu0 %v4839, 32
    %v5031 = vpop.permute.xlu0 %5030
    %vm5096 = vcmask 392448
    %5097 = vst.msk [vmem:[#allocation5] sm:$0xff] %vm5096, %v4905
    %5098 = vst.msk [vmem:[#allocation5 + $0x10] sm:$0xff] %vm5096, %v4907
    %5099 = vst.msk [vmem:[#allocation5 + $0x20] sm:$0xff] %vm5096, %v4909
    %5100 = vst.msk [vmem:[#allocation5 + $0x30] sm:$0xff] %vm5096, %v4911
    %5101 = vst.msk [vmem:[#allocation5 + $0x40] sm:$0xff] %vm5096, %v4913
    %5102 = vst.msk [vmem:[#allocation5 + $0x50] sm:$0xff] %vm5096, %v4915
    %5103 = vst.msk [vmem:[#allocation5 + $0x60] sm:$0xff] %vm5096, %v4917
    %5104 = vst.msk [vmem:[#allocation5 + $0x70] sm:$0xff] %vm5096, %v4919
    %5105 = vst.msk [vmem:[#allocation5 + $0x80] sm:$0xff] %vm5096, %v4921
    %5106 = vst.msk [vmem:[#allocation5 + $0x90] sm:$0xff] %vm5096, %v4923
    %5107 = vst.msk [vmem:[#allocation5 + $0xa0] sm:$0xff] %vm5096, %v4925
    %5108 = vst.msk [vmem:[#allocation5 + $0xb0] sm:$0xff] %vm5096, %v4927
    %5109 = vst.msk [vmem:[#allocation5 + $0xc0] sm:$0xff] %vm5096, %v4929
    %5110 = vst.msk [vmem:[#allocation5 + $0xd0] sm:$0xff] %vm5096, %v4931
    %5111 = vst.msk [vmem:[#allocation5 + $0xe0] sm:$0xff] %vm5096, %v4933
    %5112 = vst.msk [vmem:[#allocation5 + $0xf0] sm:$0xff] %vm5096, %v4935
    %5113 = vst.msk [vmem:[#allocation5 + $0x100] sm:$0xff] %vm5096, %v4937
    %5114 = vst.msk [vmem:[#allocation5 + $0x110] sm:$0xff] %vm5096, %v4939
    %5115 = vst.msk [vmem:[#allocation5 + $0x120] sm:$0xff] %vm5096, %v4941
    %5116 = vst.msk [vmem:[#allocation5 + $0x130] sm:$0xff] %vm5096, %v4943
    %5117 = vst.msk [vmem:[#allocation5 + $0x140] sm:$0xff] %vm5096, %v4945
    %5118 = vst.msk [vmem:[#allocation5 + $0x150] sm:$0xff] %vm5096, %v4947
    %5119 = vst.msk [vmem:[#allocation5 + $0x160] sm:$0xff] %vm5096, %v4949
    %5120 = vst.msk [vmem:[#allocation5 + $0x170] sm:$0xff] %vm5096, %v4951
    %5121 = vst.msk [vmem:[#allocation5 + $0x180] sm:$0xff] %vm5096, %v4953
    %5122 = vst.msk [vmem:[#allocation5 + $0x190] sm:$0xff] %vm5096, %v4955
    %5123 = vst.msk [vmem:[#allocation5 + $0x1a0] sm:$0xff] %vm5096, %v4957
    %5124 = vst.msk [vmem:[#allocation5 + $0x1b0] sm:$0xff] %vm5096, %v4959
    %5125 = vst.msk [vmem:[#allocation5 + $0x1c0] sm:$0xff] %vm5096, %v4961
    %5126 = vst.msk [vmem:[#allocation5 + $0x1d0] sm:$0xff] %vm5096, %v4963
    %5127 = vst.msk [vmem:[#allocation5 + $0x1e0] sm:$0xff] %vm5096, %v4965
    %5128 = vst.msk [vmem:[#allocation5 + $0x1f0] sm:$0xff] %vm5096, %v4967
    %5129 = vst.msk [vmem:[#allocation5 + $0x200] sm:$0xff] %vm5096, %v4969
    %5130 = vst.msk [vmem:[#allocation5 + $0x210] sm:$0xff] %vm5096, %v4971
    %5131 = vst.msk [vmem:[#allocation5 + $0x220] sm:$0xff] %vm5096, %v4973
    %5132 = vst.msk [vmem:[#allocation5 + $0x230] sm:$0xff] %vm5096, %v4975
    %5133 = vst.msk [vmem:[#allocation5 + $0x240] sm:$0xff] %vm5096, %v4977
    %5134 = vst.msk [vmem:[#allocation5 + $0x250] sm:$0xff] %vm5096, %v4979
    %5135 = vst.msk [vmem:[#allocation5 + $0x260] sm:$0xff] %vm5096, %v4981
    %5136 = vst.msk [vmem:[#allocation5 + $0x270] sm:$0xff] %vm5096, %v4983
    %5137 = vst.msk [vmem:[#allocation5 + $0x280] sm:$0xff] %vm5096, %v4985
    %5138 = vst.msk [vmem:[#allocation5 + $0x290] sm:$0xff] %vm5096, %v4987
    %5139 = vst.msk [vmem:[#allocation5 + $0x2a0] sm:$0xff] %vm5096, %v4989
    %5140 = vst.msk [vmem:[#allocation5 + $0x2b0] sm:$0xff] %vm5096, %v4991
    %5141 = vst.msk [vmem:[#allocation5 + $0x2c0] sm:$0xff] %vm5096, %v4993
    %5142 = vst.msk [vmem:[#allocation5 + $0x2d0] sm:$0xff] %vm5096, %v4995
    %5143 = vst.msk [vmem:[#allocation5 + $0x2e0] sm:$0xff] %vm5096, %v4997
    %5144 = vst.msk [vmem:[#allocation5 + $0x2f0] sm:$0xff] %vm5096, %v4999
    %5145 = vst.msk [vmem:[#allocation5 + $0x300] sm:$0xff] %vm5096, %v5001
    %5146 = vst.msk [vmem:[#allocation5 + $0x310] sm:$0xff] %vm5096, %v5003
    %5147 = vst.msk [vmem:[#allocation5 + $0x320] sm:$0xff] %vm5096, %v5005
    %5148 = vst.msk [vmem:[#allocation5 + $0x330] sm:$0xff] %vm5096, %v5007
    %5149 = vst.msk [vmem:[#allocation5 + $0x340] sm:$0xff] %vm5096, %v5009
    %5150 = vst.msk [vmem:[#allocation5 + $0x350] sm:$0xff] %vm5096, %v5011
    %5151 = vst.msk [vmem:[#allocation5 + $0x360] sm:$0xff] %vm5096, %v5013
    %5152 = vst.msk [vmem:[#allocation5 + $0x370] sm:$0xff] %vm5096, %v5015
    %5153 = vst.msk [vmem:[#allocation5 + $0x380] sm:$0xff] %vm5096, %v5017
    %5154 = vst.msk [vmem:[#allocation5 + $0x390] sm:$0xff] %vm5096, %v5019
    %5155 = vst.msk [vmem:[#allocation5 + $0x3a0] sm:$0xff] %vm5096, %v5021
    %5156 = vst.msk [vmem:[#allocation5 + $0x3b0] sm:$0xff] %vm5096, %v5023
    %5157 = vst.msk [vmem:[#allocation5 + $0x3c0] sm:$0xff] %vm5096, %v5025
    %5158 = vst.msk [vmem:[#allocation5 + $0x3d0] sm:$0xff] %vm5096, %v5027
    %5159 = vst.msk [vmem:[#allocation5 + $0x3e0] sm:$0xff] %vm5096, %v5029
    %5160 = vst.msk [vmem:[#allocation5 + $0x3f0] sm:$0xff] %vm5096, %v5031
    %v5161 = vld [vmem:[%s4198] sm:$0xff]
    %v5162 = vld [vmem:[%s4198 + $0x8] sm:$0xff]
    %v5163 = vld [vmem:[%s4198 + $0x18] sm:$0xff]
    %v5164 = vld [vmem:[%s4198 + $0x20] sm:$0xff]
    %v5165 = vld [vmem:[%s4198 + $0x30] sm:$0xff]
    %v5166 = vld [vmem:[%s4198 + $0x38] sm:$0xff]
    %v5167 = vld [vmem:[%s4198 + $0x48] sm:$0xff]
    %v5168 = vld [vmem:[%s4198 + $0x50] sm:$0xff]
    %v5169 = vld [vmem:[%s4198 + $0x60] sm:$0xff]
    %v5170 = vld [vmem:[%s4198 + $0x68] sm:$0xff]
    %v5171 = vld [vmem:[%s4198 + $0x78] sm:$0xff]
    %v5172 = vld [vmem:[%s4198 + $0x80] sm:$0xff]
    %v5173 = vld [vmem:[%s4198 + $0x90] sm:$0xff]
    %v5174 = vld [vmem:[%s4198 + $0x98] sm:$0xff]
    %v5175 = vld [vmem:[%s4198 + $0xa8] sm:$0xff]
    %v5176 = vld [vmem:[%s4198 + $0xb0] sm:$0xff]
    %v5177 = vld [vmem:[%s4198 + $0xc0] sm:$0xff]
    %v5178 = vld [vmem:[%s4198 + $0xc8] sm:$0xff]
    %v5179 = vld [vmem:[%s4198 + $0xd8] sm:$0xff]
    %v5180 = vld [vmem:[%s4198 + $0xe0] sm:$0xff]
    %v5181 = vld [vmem:[%s4198 + $0xf0] sm:$0xff]
    %v5182 = vld [vmem:[%s4198 + $0xf8] sm:$0xff]
    %v5183 = vld [vmem:[%s4198 + $0x108] sm:$0xff]
    %v5184 = vld [vmem:[%s4198 + $0x110] sm:$0xff]
    %v5185 = vld [vmem:[%s4198 + $0x120] sm:$0xff]
    %v5186 = vld [vmem:[%s4198 + $0x128] sm:$0xff]
    %v5187 = vld [vmem:[%s4198 + $0x138] sm:$0xff]
    %v5188 = vld [vmem:[%s4198 + $0x140] sm:$0xff]
    %v5189 = vld [vmem:[%s4198 + $0x150] sm:$0xff]
    %v5190 = vld [vmem:[%s4198 + $0x158] sm:$0xff]
    %v5191 = vld [vmem:[%s4198 + $0x168] sm:$0xff]
    %v5192 = vld [vmem:[%s4198 + $0x170] sm:$0xff]
    %v5193 = vld [vmem:[%s4198 + $0x1b0] sm:$0xff]
    %v5194 = vld [vmem:[%s4198 + $0x1b8] sm:$0xff]
    %v5195 = vld [vmem:[%s4198 + $0x1c8] sm:$0xff]
    %v5196 = vld [vmem:[%s4198 + $0x1d0] sm:$0xff]
    %v5197 = vld [vmem:[%s4198 + $0x1e0] sm:$0xff]
    %v5198 = vld [vmem:[%s4198 + $0x1e8] sm:$0xff]
    %v5199 = vld [vmem:[%s4198 + $0x1f8] sm:$0xff]
    %v5200 = vld [vmem:[%s4198 + $0x200] sm:$0xff]
    %v5201 = vld [vmem:[%s4198 + $0x210] sm:$0xff]
    %v5202 = vld [vmem:[%s4198 + $0x218] sm:$0xff]
    %v5203 = vld [vmem:[%s4198 + $0x228] sm:$0xff]
    %v5204 = vld [vmem:[%s4198 + $0x230] sm:$0xff]
    %v5205 = vld [vmem:[%s4198 + $0x240] sm:$0xff]
    %v5206 = vld [vmem:[%s4198 + $0x248] sm:$0xff]
    %v5207 = vld [vmem:[%s4198 + $0x258] sm:$0xff]
    %v5208 = vld [vmem:[%s4198 + $0x260] sm:$0xff]
    %v5209 = vld [vmem:[%s4198 + $0x270] sm:$0xff]
    %v5210 = vld [vmem:[%s4198 + $0x278] sm:$0xff]
    %v5211 = vld [vmem:[%s4198 + $0x288] sm:$0xff]
    %v5212 = vld [vmem:[%s4198 + $0x290] sm:$0xff]
    %v5213 = vld [vmem:[%s4198 + $0x2a0] sm:$0xff]
    %v5214 = vld [vmem:[%s4198 + $0x2a8] sm:$0xff]
    %v5215 = vld [vmem:[%s4198 + $0x2b8] sm:$0xff]
    %v5216 = vld [vmem:[%s4198 + $0x2c0] sm:$0xff]
    %v5217 = vld [vmem:[%s4198 + $0x2d0] sm:$0xff]
    %v5218 = vld [vmem:[%s4198 + $0x2d8] sm:$0xff]
    %v5219 = vld [vmem:[%s4198 + $0x2e8] sm:$0xff]
    %v5220 = vld [vmem:[%s4198 + $0x2f0] sm:$0xff]
    %v5221 = vld [vmem:[%s4198 + $0x300] sm:$0xff]
    %v5222 = vld [vmem:[%s4198 + $0x308] sm:$0xff]
    %v5223 = vld [vmem:[%s4198 + $0x318] sm:$0xff]
    %v5224 = vld [vmem:[%s4198 + $0x320] sm:$0xff]
    %5289 = vrot.lane.b32.xlu0 %v5161, 48
    %v5290 = vpop.permute.xlu0 %5289
    %5291 = vrot.lane.b32.xlu0 %v5162, 48
    %v5292 = vpop.permute.xlu0 %5291
    %5293 = vrot.lane.b32.xlu0 %v5163, 48
    %v5294 = vpop.permute.xlu0 %5293
    %5295 = vrot.lane.b32.xlu0 %v5164, 48
    %v5296 = vpop.permute.xlu0 %5295
    %5297 = vrot.lane.b32.xlu0 %v5165, 48
    %v5298 = vpop.permute.xlu0 %5297
    %5299 = vrot.lane.b32.xlu0 %v5166, 48
    %v5300 = vpop.permute.xlu0 %5299
    %5301 = vrot.lane.b32.xlu0 %v5167, 48
    %v5302 = vpop.permute.xlu0 %5301
    %5303 = vrot.lane.b32.xlu0 %v5168, 48
    %v5304 = vpop.permute.xlu0 %5303
    %5305 = vrot.lane.b32.xlu0 %v5169, 48
    %v5306 = vpop.permute.xlu0 %5305
    %5307 = vrot.lane.b32.xlu0 %v5170, 48
    %v5308 = vpop.permute.xlu0 %5307
    %5309 = vrot.lane.b32.xlu0 %v5171, 48
    %v5310 = vpop.permute.xlu0 %5309
    %5311 = vrot.lane.b32.xlu0 %v5172, 48
    %v5312 = vpop.permute.xlu0 %5311
    %5313 = vrot.lane.b32.xlu0 %v5173, 48
    %v5314 = vpop.permute.xlu0 %5313
    %5315 = vrot.lane.b32.xlu0 %v5174, 48
    %v5316 = vpop.permute.xlu0 %5315
    %5317 = vrot.lane.b32.xlu0 %v5175, 48
    %v5318 = vpop.permute.xlu0 %5317
    %5319 = vrot.lane.b32.xlu0 %v5176, 48
    %v5320 = vpop.permute.xlu0 %5319
    %5321 = vrot.lane.b32.xlu0 %v5177, 48
    %v5322 = vpop.permute.xlu0 %5321
    %5323 = vrot.lane.b32.xlu0 %v5178, 48
    %v5324 = vpop.permute.xlu0 %5323
    %5325 = vrot.lane.b32.xlu0 %v5179, 48
    %v5326 = vpop.permute.xlu0 %5325
    %5327 = vrot.lane.b32.xlu0 %v5180, 48
    %v5328 = vpop.permute.xlu0 %5327
    %5329 = vrot.lane.b32.xlu0 %v5181, 48
    %v5330 = vpop.permute.xlu0 %5329
    %5331 = vrot.lane.b32.xlu0 %v5182, 48
    %v5332 = vpop.permute.xlu0 %5331
    %5333 = vrot.lane.b32.xlu0 %v5183, 48
    %v5334 = vpop.permute.xlu0 %5333
    %5335 = vrot.lane.b32.xlu0 %v5184, 48
    %v5336 = vpop.permute.xlu0 %5335
    %5337 = vrot.lane.b32.xlu0 %v5185, 48
    %v5338 = vpop.permute.xlu0 %5337
    %5339 = vrot.lane.b32.xlu0 %v5186, 48
    %v5340 = vpop.permute.xlu0 %5339
    %5341 = vrot.lane.b32.xlu0 %v5187, 48
    %v5342 = vpop.permute.xlu0 %5341
    %5343 = vrot.lane.b32.xlu0 %v5188, 48
    %v5344 = vpop.permute.xlu0 %5343
    %5345 = vrot.lane.b32.xlu0 %v5189, 48
    %v5346 = vpop.permute.xlu0 %5345
    %5347 = vrot.lane.b32.xlu0 %v5190, 48
    %v5348 = vpop.permute.xlu0 %5347
    %5349 = vrot.lane.b32.xlu0 %v5191, 48
    %v5350 = vpop.permute.xlu0 %5349
    %5351 = vrot.lane.b32.xlu0 %v5192, 48
    %v5352 = vpop.permute.xlu0 %5351
    %5353 = vrot.lane.b32.xlu0 %v5193, 48
    %v5354 = vpop.permute.xlu0 %5353
    %5355 = vrot.lane.b32.xlu0 %v5194, 48
    %v5356 = vpop.permute.xlu0 %5355
    %5357 = vrot.lane.b32.xlu0 %v5195, 48
    %v5358 = vpop.permute.xlu0 %5357
    %5359 = vrot.lane.b32.xlu0 %v5196, 48
    %v5360 = vpop.permute.xlu0 %5359
    %5361 = vrot.lane.b32.xlu0 %v5197, 48
    %v5362 = vpop.permute.xlu0 %5361
    %5363 = vrot.lane.b32.xlu0 %v5198, 48
    %v5364 = vpop.permute.xlu0 %5363
    %5365 = vrot.lane.b32.xlu0 %v5199, 48
    %v5366 = vpop.permute.xlu0 %5365
    %5367 = vrot.lane.b32.xlu0 %v5200, 48
    %v5368 = vpop.permute.xlu0 %5367
    %5369 = vrot.lane.b32.xlu0 %v5201, 48
    %v5370 = vpop.permute.xlu0 %5369
    %5371 = vrot.lane.b32.xlu0 %v5202, 48
    %v5372 = vpop.permute.xlu0 %5371
    %5373 = vrot.lane.b32.xlu0 %v5203, 48
    %v5374 = vpop.permute.xlu0 %5373
    %5375 = vrot.lane.b32.xlu0 %v5204, 48
    %v5376 = vpop.permute.xlu0 %5375
    %5377 = vrot.lane.b32.xlu0 %v5205, 48
    %v5378 = vpop.permute.xlu0 %5377
    %5379 = vrot.lane.b32.xlu0 %v5206, 48
    %v5380 = vpop.permute.xlu0 %5379
    %5381 = vrot.lane.b32.xlu0 %v5207, 48
    %v5382 = vpop.permute.xlu0 %5381
    %5383 = vrot.lane.b32.xlu0 %v5208, 48
    %v5384 = vpop.permute.xlu0 %5383
    %5385 = vrot.lane.b32.xlu0 %v5209, 48
    %v5386 = vpop.permute.xlu0 %5385
    %5387 = vrot.lane.b32.xlu0 %v5210, 48
    %v5388 = vpop.permute.xlu0 %5387
    %5389 = vrot.lane.b32.xlu0 %v5211, 48
    %v5390 = vpop.permute.xlu0 %5389
    %5391 = vrot.lane.b32.xlu0 %v5212, 48
    %v5392 = vpop.permute.xlu0 %5391
    %5393 = vrot.lane.b32.xlu0 %v5213, 48
    %v5394 = vpop.permute.xlu0 %5393
    %5395 = vrot.lane.b32.xlu0 %v5214, 48
    %v5396 = vpop.permute.xlu0 %5395
    %5397 = vrot.lane.b32.xlu0 %v5215, 48
    %v5398 = vpop.permute.xlu0 %5397
    %5399 = vrot.lane.b32.xlu0 %v5216, 48
    %v5400 = vpop.permute.xlu0 %5399
    %5401 = vrot.lane.b32.xlu0 %v5217, 48
    %v5402 = vpop.permute.xlu0 %5401
    %5403 = vrot.lane.b32.xlu0 %v5218, 48
    %v5404 = vpop.permute.xlu0 %5403
    %5405 = vrot.lane.b32.xlu0 %v5219, 48
    %v5406 = vpop.permute.xlu0 %5405
    %5407 = vrot.lane.b32.xlu0 %v5220, 48
    %v5408 = vpop.permute.xlu0 %5407
    %5409 = vrot.lane.b32.xlu0 %v5221, 48
    %v5410 = vpop.permute.xlu0 %5409
    %5411 = vrot.lane.b32.xlu0 %v5222, 48
    %v5412 = vpop.permute.xlu0 %5411
    %5413 = vrot.lane.b32.xlu0 %v5223, 48
    %v5414 = vpop.permute.xlu0 %5413
    %5415 = vrot.lane.b32.xlu0 %v5224, 48
    %v5416 = vpop.permute.xlu0 %5415
    %vm5481 = vcmask 523648
    %5482 = vst.msk [vmem:[#allocation5] sm:$0xff] %vm5481, %v5290
    %5483 = vst.msk [vmem:[#allocation5 + $0x10] sm:$0xff] %vm5481, %v5292
    %5484 = vst.msk [vmem:[#allocation5 + $0x20] sm:$0xff] %vm5481, %v5294
    %5485 = vst.msk [vmem:[#allocation5 + $0x30] sm:$0xff] %vm5481, %v5296
    %5486 = vst.msk [vmem:[#allocation5 + $0x40] sm:$0xff] %vm5481, %v5298
    %5487 = vst.msk [vmem:[#allocation5 + $0x50] sm:$0xff] %vm5481, %v5300
    %5488 = vst.msk [vmem:[#allocation5 + $0x60] sm:$0xff] %vm5481, %v5302
    %5489 = vst.msk [vmem:[#allocation5 + $0x70] sm:$0xff] %vm5481, %v5304
    %5490 = vst.msk [vmem:[#allocation5 + $0x80] sm:$0xff] %vm5481, %v5306
    %5491 = vst.msk [vmem:[#allocation5 + $0x90] sm:$0xff] %vm5481, %v5308
    %5492 = vst.msk [vmem:[#allocation5 + $0xa0] sm:$0xff] %vm5481, %v5310
    %5493 = vst.msk [vmem:[#allocation5 + $0xb0] sm:$0xff] %vm5481, %v5312
    %5494 = vst.msk [vmem:[#allocation5 + $0xc0] sm:$0xff] %vm5481, %v5314
    %5495 = vst.msk [vmem:[#allocation5 + $0xd0] sm:$0xff] %vm5481, %v5316
    %5496 = vst.msk [vmem:[#allocation5 + $0xe0] sm:$0xff] %vm5481, %v5318
    %5497 = vst.msk [vmem:[#allocation5 + $0xf0] sm:$0xff] %vm5481, %v5320
    %5498 = vst.msk [vmem:[#allocation5 + $0x100] sm:$0xff] %vm5481, %v5322
    %5499 = vst.msk [vmem:[#allocation5 + $0x110] sm:$0xff] %vm5481, %v5324
    %5500 = vst.msk [vmem:[#allocation5 + $0x120] sm:$0xff] %vm5481, %v5326
    %5501 = vst.msk [vmem:[#allocation5 + $0x130] sm:$0xff] %vm5481, %v5328
    %5502 = vst.msk [vmem:[#allocation5 + $0x140] sm:$0xff] %vm5481, %v5330
    %5503 = vst.msk [vmem:[#allocation5 + $0x150] sm:$0xff] %vm5481, %v5332
    %5504 = vst.msk [vmem:[#allocation5 + $0x160] sm:$0xff] %vm5481, %v5334
    %5505 = vst.msk [vmem:[#allocation5 + $0x170] sm:$0xff] %vm5481, %v5336
    %5506 = vst.msk [vmem:[#allocation5 + $0x180] sm:$0xff] %vm5481, %v5338
    %5507 = vst.msk [vmem:[#allocation5 + $0x190] sm:$0xff] %vm5481, %v5340
    %5508 = vst.msk [vmem:[#allocation5 + $0x1a0] sm:$0xff] %vm5481, %v5342
    %5509 = vst.msk [vmem:[#allocation5 + $0x1b0] sm:$0xff] %vm5481, %v5344
    %5510 = vst.msk [vmem:[#allocation5 + $0x1c0] sm:$0xff] %vm5481, %v5346
    %5511 = vst.msk [vmem:[#allocation5 + $0x1d0] sm:$0xff] %vm5481, %v5348
    %5512 = vst.msk [vmem:[#allocation5 + $0x1e0] sm:$0xff] %vm5481, %v5350
    %5513 = vst.msk [vmem:[#allocation5 + $0x1f0] sm:$0xff] %vm5481, %v5352
    %5514 = vst.msk [vmem:[#allocation5 + $0x200] sm:$0xff] %vm5481, %v5354
    %5515 = vst.msk [vmem:[#allocation5 + $0x210] sm:$0xff] %vm5481, %v5356
    %5516 = vst.msk [vmem:[#allocation5 + $0x220] sm:$0xff] %vm5481, %v5358
    %5517 = vst.msk [vmem:[#allocation5 + $0x230] sm:$0xff] %vm5481, %v5360
    %5518 = vst.msk [vmem:[#allocation5 + $0x240] sm:$0xff] %vm5481, %v5362
    %5519 = vst.msk [vmem:[#allocation5 + $0x250] sm:$0xff] %vm5481, %v5364
    %5520 = vst.msk [vmem:[#allocation5 + $0x260] sm:$0xff] %vm5481, %v5366
    %5521 = vst.msk [vmem:[#allocation5 + $0x270] sm:$0xff] %vm5481, %v5368
    %5522 = vst.msk [vmem:[#allocation5 + $0x280] sm:$0xff] %vm5481, %v5370
    %5523 = vst.msk [vmem:[#allocation5 + $0x290] sm:$0xff] %vm5481, %v5372
    %5524 = vst.msk [vmem:[#allocation5 + $0x2a0] sm:$0xff] %vm5481, %v5374
    %5525 = vst.msk [vmem:[#allocation5 + $0x2b0] sm:$0xff] %vm5481, %v5376
    %5526 = vst.msk [vmem:[#allocation5 + $0x2c0] sm:$0xff] %vm5481, %v5378
    %5527 = vst.msk [vmem:[#allocation5 + $0x2d0] sm:$0xff] %vm5481, %v5380
    %5528 = vst.msk [vmem:[#allocation5 + $0x2e0] sm:$0xff] %vm5481, %v5382
    %5529 = vst.msk [vmem:[#allocation5 + $0x2f0] sm:$0xff] %vm5481, %v5384
    %5530 = vst.msk [vmem:[#allocation5 + $0x300] sm:$0xff] %vm5481, %v5386
    %5531 = vst.msk [vmem:[#allocation5 + $0x310] sm:$0xff] %vm5481, %v5388
    %5532 = vst.msk [vmem:[#allocation5 + $0x320] sm:$0xff] %vm5481, %v5390
    %5533 = vst.msk [vmem:[#allocation5 + $0x330] sm:$0xff] %vm5481, %v5392
    %5534 = vst.msk [vmem:[#allocation5 + $0x340] sm:$0xff] %vm5481, %v5394
    %5535 = vst.msk [vmem:[#allocation5 + $0x350] sm:$0xff] %vm5481, %v5396
    %5536 = vst.msk [vmem:[#allocation5 + $0x360] sm:$0xff] %vm5481, %v5398
    %5537 = vst.msk [vmem:[#allocation5 + $0x370] sm:$0xff] %vm5481, %v5400
    %5538 = vst.msk [vmem:[#allocation5 + $0x380] sm:$0xff] %vm5481, %v5402
    %5539 = vst.msk [vmem:[#allocation5 + $0x390] sm:$0xff] %vm5481, %v5404
    %5540 = vst.msk [vmem:[#allocation5 + $0x3a0] sm:$0xff] %vm5481, %v5406
    %5541 = vst.msk [vmem:[#allocation5 + $0x3b0] sm:$0xff] %vm5481, %v5408
    %5542 = vst.msk [vmem:[#allocation5 + $0x3c0] sm:$0xff] %vm5481, %v5410
    %5543 = vst.msk [vmem:[#allocation5 + $0x3d0] sm:$0xff] %vm5481, %v5412
    %5544 = vst.msk [vmem:[#allocation5 + $0x3e0] sm:$0xff] %vm5481, %v5414
    %5545 = vst.msk [vmem:[#allocation5 + $0x3f0] sm:$0xff] %vm5481, %v5416
    %v5546 = vld [vmem:[%s4198 + $0x1] sm:$0xff]
    %v5547 = vld [vmem:[%s4198 + $0x9] sm:$0xff]
    %v5548 = vld [vmem:[%s4198 + $0x19] sm:$0xff]
    %v5549 = vld [vmem:[%s4198 + $0x21] sm:$0xff]
    %v5550 = vld [vmem:[%s4198 + $0x31] sm:$0xff]
    %v5551 = vld [vmem:[%s4198 + $0x39] sm:$0xff]
    %v5552 = vld [vmem:[%s4198 + $0x49] sm:$0xff]
    %v5553 = vld [vmem:[%s4198 + $0x51] sm:$0xff]
    %v5554 = vld [vmem:[%s4198 + $0x61] sm:$0xff]
    %v5555 = vld [vmem:[%s4198 + $0x69] sm:$0xff]
    %v5556 = vld [vmem:[%s4198 + $0x79] sm:$0xff]
    %v5557 = vld [vmem:[%s4198 + $0x81] sm:$0xff]
    %v5558 = vld [vmem:[%s4198 + $0x91] sm:$0xff]
    %v5559 = vld [vmem:[%s4198 + $0x99] sm:$0xff]
    %v5560 = vld [vmem:[%s4198 + $0xa9] sm:$0xff]
    %v5561 = vld [vmem:[%s4198 + $0xb1] sm:$0xff]
    %v5562 = vld [vmem:[%s4198 + $0xc1] sm:$0xff]
    %v5563 = vld [vmem:[%s4198 + $0xc9] sm:$0xff]
    %v5564 = vld [vmem:[%s4198 + $0xd9] sm:$0xff]
    %v5565 = vld [vmem:[%s4198 + $0xe1] sm:$0xff]
    %v5566 = vld [vmem:[%s4198 + $0xf1] sm:$0xff]
    %v5567 = vld [vmem:[%s4198 + $0xf9] sm:$0xff]
    %v5568 = vld [vmem:[%s4198 + $0x109] sm:$0xff]
    %v5569 = vld [vmem:[%s4198 + $0x111] sm:$0xff]
    %v5570 = vld [vmem:[%s4198 + $0x121] sm:$0xff]
    %v5571 = vld [vmem:[%s4198 + $0x129] sm:$0xff]
    %v5572 = vld [vmem:[%s4198 + $0x139] sm:$0xff]
    %v5573 = vld [vmem:[%s4198 + $0x141] sm:$0xff]
    %v5574 = vld [vmem:[%s4198 + $0x151] sm:$0xff]
    %v5575 = vld [vmem:[%s4198 + $0x159] sm:$0xff]
    %v5576 = vld [vmem:[%s4198 + $0x169] sm:$0xff]
    %v5577 = vld [vmem:[%s4198 + $0x171] sm:$0xff]
    %v5578 = vld [vmem:[%s4198 + $0x1b1] sm:$0xff]
    %v5579 = vld [vmem:[%s4198 + $0x1b9] sm:$0xff]
    %v5580 = vld [vmem:[%s4198 + $0x1c9] sm:$0xff]
    %v5581 = vld [vmem:[%s4198 + $0x1d1] sm:$0xff]
    %v5582 = vld [vmem:[%s4198 + $0x1e1] sm:$0xff]
    %v5583 = vld [vmem:[%s4198 + $0x1e9] sm:$0xff]
    %v5584 = vld [vmem:[%s4198 + $0x1f9] sm:$0xff]
    %v5585 = vld [vmem:[%s4198 + $0x201] sm:$0xff]
    %v5586 = vld [vmem:[%s4198 + $0x211] sm:$0xff]
    %v5587 = vld [vmem:[%s4198 + $0x219] sm:$0xff]
    %v5588 = vld [vmem:[%s4198 + $0x229] sm:$0xff]
    %v5589 = vld [vmem:[%s4198 + $0x231] sm:$0xff]
    %v5590 = vld [vmem:[%s4198 + $0x241] sm:$0xff]
    %v5591 = vld [vmem:[%s4198 + $0x249] sm:$0xff]
    %v5592 = vld [vmem:[%s4198 + $0x259] sm:$0xff]
    %v5593 = vld [vmem:[%s4198 + $0x261] sm:$0xff]
    %v5594 = vld [vmem:[%s4198 + $0x271] sm:$0xff]
    %v5595 = vld [vmem:[%s4198 + $0x279] sm:$0xff]
    %v5596 = vld [vmem:[%s4198 + $0x289] sm:$0xff]
    %v5597 = vld [vmem:[%s4198 + $0x291] sm:$0xff]
    %v5598 = vld [vmem:[%s4198 + $0x2a1] sm:$0xff]
    %v5599 = vld [vmem:[%s4198 + $0x2a9] sm:$0xff]
    %v5600 = vld [vmem:[%s4198 + $0x2b9] sm:$0xff]
    %v5601 = vld [vmem:[%s4198 + $0x2c1] sm:$0xff]
    %v5602 = vld [vmem:[%s4198 + $0x2d1] sm:$0xff]
    %v5603 = vld [vmem:[%s4198 + $0x2d9] sm:$0xff]
    %v5604 = vld [vmem:[%s4198 + $0x2e9] sm:$0xff]
    %v5605 = vld [vmem:[%s4198 + $0x2f1] sm:$0xff]
    %v5606 = vld [vmem:[%s4198 + $0x301] sm:$0xff]
    %v5607 = vld [vmem:[%s4198 + $0x309] sm:$0xff]
    %v5608 = vld [vmem:[%s4198 + $0x319] sm:$0xff]
    %v5609 = vld [vmem:[%s4198 + $0x321] sm:$0xff]
    %5674 = vrot.lane.b32.xlu0 %v5546, 64
    %v5675 = vpop.permute.xlu0 %5674
    %5676 = vrot.lane.b32.xlu0 %v5547, 64
    %v5677 = vpop.permute.xlu0 %5676
    %5678 = vrot.lane.b32.xlu0 %v5548, 64
    %v5679 = vpop.permute.xlu0 %5678
    %5680 = vrot.lane.b32.xlu0 %v5549, 64
    %v5681 = vpop.permute.xlu0 %5680
    %5682 = vrot.lane.b32.xlu0 %v5550, 64
    %v5683 = vpop.permute.xlu0 %5682
    %5684 = vrot.lane.b32.xlu0 %v5551, 64
    %v5685 = vpop.permute.xlu0 %5684
    %5686 = vrot.lane.b32.xlu0 %v5552, 64
    %v5687 = vpop.permute.xlu0 %5686
    %5688 = vrot.lane.b32.xlu0 %v5553, 64
    %v5689 = vpop.permute.xlu0 %5688
    %5690 = vrot.lane.b32.xlu0 %v5554, 64
    %v5691 = vpop.permute.xlu0 %5690
    %5692 = vrot.lane.b32.xlu0 %v5555, 64
    %v5693 = vpop.permute.xlu0 %5692
    %5694 = vrot.lane.b32.xlu0 %v5556, 64
    %v5695 = vpop.permute.xlu0 %5694
    %5696 = vrot.lane.b32.xlu0 %v5557, 64
    %v5697 = vpop.permute.xlu0 %5696
    %5698 = vrot.lane.b32.xlu0 %v5558, 64
    %v5699 = vpop.permute.xlu0 %5698
    %5700 = vrot.lane.b32.xlu0 %v5559, 64
    %v5701 = vpop.permute.xlu0 %5700
    %5702 = vrot.lane.b32.xlu0 %v5560, 64
    %v5703 = vpop.permute.xlu0 %5702
    %5704 = vrot.lane.b32.xlu0 %v5561, 64
    %v5705 = vpop.permute.xlu0 %5704
    %5706 = vrot.lane.b32.xlu0 %v5562, 64
    %v5707 = vpop.permute.xlu0 %5706
    %5708 = vrot.lane.b32.xlu0 %v5563, 64
    %v5709 = vpop.permute.xlu0 %5708
    %5710 = vrot.lane.b32.xlu0 %v5564, 64
    %v5711 = vpop.permute.xlu0 %5710
    %5712 = vrot.lane.b32.xlu0 %v5565, 64
    %v5713 = vpop.permute.xlu0 %5712
    %5714 = vrot.lane.b32.xlu0 %v5566, 64
    %v5715 = vpop.permute.xlu0 %5714
    %5716 = vrot.lane.b32.xlu0 %v5567, 64
    %v5717 = vpop.permute.xlu0 %5716
    %5718 = vrot.lane.b32.xlu0 %v5568, 64
    %v5719 = vpop.permute.xlu0 %5718
    %5720 = vrot.lane.b32.xlu0 %v5569, 64
    %v5721 = vpop.permute.xlu0 %5720
    %5722 = vrot.lane.b32.xlu0 %v5570, 64
    %v5723 = vpop.permute.xlu0 %5722
    %5724 = vrot.lane.b32.xlu0 %v5571, 64
    %v5725 = vpop.permute.xlu0 %5724
    %5726 = vrot.lane.b32.xlu0 %v5572, 64
    %v5727 = vpop.permute.xlu0 %5726
    %5728 = vrot.lane.b32.xlu0 %v5573, 64
    %v5729 = vpop.permute.xlu0 %5728
    %5730 = vrot.lane.b32.xlu0 %v5574, 64
    %v5731 = vpop.permute.xlu0 %5730
    %5732 = vrot.lane.b32.xlu0 %v5575, 64
    %v5733 = vpop.permute.xlu0 %5732
    %5734 = vrot.lane.b32.xlu0 %v5576, 64
    %v5735 = vpop.permute.xlu0 %5734
    %5736 = vrot.lane.b32.xlu0 %v5577, 64
    %v5737 = vpop.permute.xlu0 %5736
    %5738 = vrot.lane.b32.xlu0 %v5578, 64
    %v5739 = vpop.permute.xlu0 %5738
    %5740 = vrot.lane.b32.xlu0 %v5579, 64
    %v5741 = vpop.permute.xlu0 %5740
    %5742 = vrot.lane.b32.xlu0 %v5580, 64
    %v5743 = vpop.permute.xlu0 %5742
    %5744 = vrot.lane.b32.xlu0 %v5581, 64
    %v5745 = vpop.permute.xlu0 %5744
    %5746 = vrot.lane.b32.xlu0 %v5582, 64
    %v5747 = vpop.permute.xlu0 %5746
    %5748 = vrot.lane.b32.xlu0 %v5583, 64
    %v5749 = vpop.permute.xlu0 %5748
    %5750 = vrot.lane.b32.xlu0 %v5584, 64
    %v5751 = vpop.permute.xlu0 %5750
    %5752 = vrot.lane.b32.xlu0 %v5585, 64
    %v5753 = vpop.permute.xlu0 %5752
    %5754 = vrot.lane.b32.xlu0 %v5586, 64
    %v5755 = vpop.permute.xlu0 %5754
    %5756 = vrot.lane.b32.xlu0 %v5587, 64
    %v5757 = vpop.permute.xlu0 %5756
    %5758 = vrot.lane.b32.xlu0 %v5588, 64
    %v5759 = vpop.permute.xlu0 %5758
    %5760 = vrot.lane.b32.xlu0 %v5589, 64
    %v5761 = vpop.permute.xlu0 %5760
    %5762 = vrot.lane.b32.xlu0 %v5590, 64
    %v5763 = vpop.permute.xlu0 %5762
    %5764 = vrot.lane.b32.xlu0 %v5591, 64
    %v5765 = vpop.permute.xlu0 %5764
    %5766 = vrot.lane.b32.xlu0 %v5592, 64
    %v5767 = vpop.permute.xlu0 %5766
    %5768 = vrot.lane.b32.xlu0 %v5593, 64
    %v5769 = vpop.permute.xlu0 %5768
    %5770 = vrot.lane.b32.xlu0 %v5594, 64
    %v5771 = vpop.permute.xlu0 %5770
    %5772 = vrot.lane.b32.xlu0 %v5595, 64
    %v5773 = vpop.permute.xlu0 %5772
    %5774 = vrot.lane.b32.xlu0 %v5596, 64
    %v5775 = vpop.permute.xlu0 %5774
    %5776 = vrot.lane.b32.xlu0 %v5597, 64
    %v5777 = vpop.permute.xlu0 %5776
    %5778 = vrot.lane.b32.xlu0 %v5598, 64
    %v5779 = vpop.permute.xlu0 %5778
    %5780 = vrot.lane.b32.xlu0 %v5599, 64
    %v5781 = vpop.permute.xlu0 %5780
    %5782 = vrot.lane.b32.xlu0 %v5600, 64
    %v5783 = vpop.permute.xlu0 %5782
    %5784 = vrot.lane.b32.xlu0 %v5601, 64
    %v5785 = vpop.permute.xlu0 %5784
    %5786 = vrot.lane.b32.xlu0 %v5602, 64
    %v5787 = vpop.permute.xlu0 %5786
    %5788 = vrot.lane.b32.xlu0 %v5603, 64
    %v5789 = vpop.permute.xlu0 %5788
    %5790 = vrot.lane.b32.xlu0 %v5604, 64
    %v5791 = vpop.permute.xlu0 %5790
    %5792 = vrot.lane.b32.xlu0 %v5605, 64
    %v5793 = vpop.permute.xlu0 %5792
    %5794 = vrot.lane.b32.xlu0 %v5606, 64
    %v5795 = vpop.permute.xlu0 %5794
    %5796 = vrot.lane.b32.xlu0 %v5607, 64
    %v5797 = vpop.permute.xlu0 %5796
    %5798 = vrot.lane.b32.xlu0 %v5608, 64
    %v5799 = vpop.permute.xlu0 %5798
    %5800 = vrot.lane.b32.xlu0 %v5609, 64
    %v5801 = vpop.permute.xlu0 %5800
    %vm5866 = vcmask 654848
    %5867 = vst.msk [vmem:[#allocation5] sm:$0xff] %vm5866, %v5675
    %5868 = vst.msk [vmem:[#allocation5 + $0x10] sm:$0xff] %vm5866, %v5677
    %5869 = vst.msk [vmem:[#allocation5 + $0x20] sm:$0xff] %vm5866, %v5679
    %5870 = vst.msk [vmem:[#allocation5 + $0x30] sm:$0xff] %vm5866, %v5681
    %5871 = vst.msk [vmem:[#allocation5 + $0x40] sm:$0xff] %vm5866, %v5683
    %5872 = vst.msk [vmem:[#allocation5 + $0x50] sm:$0xff] %vm5866, %v5685
    %5873 = vst.msk [vmem:[#allocation5 + $0x60] sm:$0xff] %vm5866, %v5687
    %5874 = vst.msk [vmem:[#allocation5 + $0x70] sm:$0xff] %vm5866, %v5689
    %5875 = vst.msk [vmem:[#allocation5 + $0x80] sm:$0xff] %vm5866, %v5691
    %5876 = vst.msk [vmem:[#allocation5 + $0x90] sm:$0xff] %vm5866, %v5693
    %5877 = vst.msk [vmem:[#allocation5 + $0xa0] sm:$0xff] %vm5866, %v5695
    %5878 = vst.msk [vmem:[#allocation5 + $0xb0] sm:$0xff] %vm5866, %v5697
    %5879 = vst.msk [vmem:[#allocation5 + $0xc0] sm:$0xff] %vm5866, %v5699
    %5880 = vst.msk [vmem:[#allocation5 + $0xd0] sm:$0xff] %vm5866, %v5701
    %5881 = vst.msk [vmem:[#allocation5 + $0xe0] sm:$0xff] %vm5866, %v5703
    %5882 = vst.msk [vmem:[#allocation5 + $0xf0] sm:$0xff] %vm5866, %v5705
    %5883 = vst.msk [vmem:[#allocation5 + $0x100] sm:$0xff] %vm5866, %v5707
    %5884 = vst.msk [vmem:[#allocation5 + $0x110] sm:$0xff] %vm5866, %v5709
    %5885 = vst.msk [vmem:[#allocation5 + $0x120] sm:$0xff] %vm5866, %v5711
    %5886 = vst.msk [vmem:[#allocation5 + $0x130] sm:$0xff] %vm5866, %v5713
    %5887 = vst.msk [vmem:[#allocation5 + $0x140] sm:$0xff] %vm5866, %v5715
    %5888 = vst.msk [vmem:[#allocation5 + $0x150] sm:$0xff] %vm5866, %v5717
    %5889 = vst.msk [vmem:[#allocation5 + $0x160] sm:$0xff] %vm5866, %v5719
    %5890 = vst.msk [vmem:[#allocation5 + $0x170] sm:$0xff] %vm5866, %v5721
    %5891 = vst.msk [vmem:[#allocation5 + $0x180] sm:$0xff] %vm5866, %v5723
    %5892 = vst.msk [vmem:[#allocation5 + $0x190] sm:$0xff] %vm5866, %v5725
    %5893 = vst.msk [vmem:[#allocation5 + $0x1a0] sm:$0xff] %vm5866, %v5727
    %5894 = vst.msk [vmem:[#allocation5 + $0x1b0] sm:$0xff] %vm5866, %v5729
    %5895 = vst.msk [vmem:[#allocation5 + $0x1c0] sm:$0xff] %vm5866, %v5731
    %5896 = vst.msk [vmem:[#allocation5 + $0x1d0] sm:$0xff] %vm5866, %v5733
    %5897 = vst.msk [vmem:[#allocation5 + $0x1e0] sm:$0xff] %vm5866, %v5735
    %5898 = vst.msk [vmem:[#allocation5 + $0x1f0] sm:$0xff] %vm5866, %v5737
    %5899 = vst.msk [vmem:[#allocation5 + $0x200] sm:$0xff] %vm5866, %v5739
    %5900 = vst.msk [vmem:[#allocation5 + $0x210] sm:$0xff] %vm5866, %v5741
    %5901 = vst.msk [vmem:[#allocation5 + $0x220] sm:$0xff] %vm5866, %v5743
    %5902 = vst.msk [vmem:[#allocation5 + $0x230] sm:$0xff] %vm5866, %v5745
    %5903 = vst.msk [vmem:[#allocation5 + $0x240] sm:$0xff] %vm5866, %v5747
    %5904 = vst.msk [vmem:[#allocation5 + $0x250] sm:$0xff] %vm5866, %v5749
    %5905 = vst.msk [vmem:[#allocation5 + $0x260] sm:$0xff] %vm5866, %v5751
    %5906 = vst.msk [vmem:[#allocation5 + $0x270] sm:$0xff] %vm5866, %v5753
    %5907 = vst.msk [vmem:[#allocation5 + $0x280] sm:$0xff] %vm5866, %v5755
    %5908 = vst.msk [vmem:[#allocation5 + $0x290] sm:$0xff] %vm5866, %v5757
    %5909 = vst.msk [vmem:[#allocation5 + $0x2a0] sm:$0xff] %vm5866, %v5759
    %5910 = vst.msk [vmem:[#allocation5 + $0x2b0] sm:$0xff] %vm5866, %v5761
    %5911 = vst.msk [vmem:[#allocation5 + $0x2c0] sm:$0xff] %vm5866, %v5763
    %5912 = vst.msk [vmem:[#allocation5 + $0x2d0] sm:$0xff] %vm5866, %v5765
    %5913 = vst.msk [vmem:[#allocation5 + $0x2e0] sm:$0xff] %vm5866, %v5767
    %5914 = vst.msk [vmem:[#allocation5 + $0x2f0] sm:$0xff] %vm5866, %v5769
    %5915 = vst.msk [vmem:[#allocation5 + $0x300] sm:$0xff] %vm5866, %v5771
    %5916 = vst.msk [vmem:[#allocation5 + $0x310] sm:$0xff] %vm5866, %v5773
    %5917 = vst.msk [vmem:[#allocation5 + $0x320] sm:$0xff] %vm5866, %v5775
    %5918 = vst.msk [vmem:[#allocation5 + $0x330] sm:$0xff] %vm5866, %v5777
    %5919 = vst.msk [vmem:[#allocation5 + $0x340] sm:$0xff] %vm5866, %v5779
    %5920 = vst.msk [vmem:[#allocation5 + $0x350] sm:$0xff] %vm5866, %v5781
    %5921 = vst.msk [vmem:[#allocation5 + $0x360] sm:$0xff] %vm5866, %v5783
    %5922 = vst.msk [vmem:[#allocation5 + $0x370] sm:$0xff] %vm5866, %v5785
    %5923 = vst.msk [vmem:[#allocation5 + $0x380] sm:$0xff] %vm5866, %v5787
    %5924 = vst.msk [vmem:[#allocation5 + $0x390] sm:$0xff] %vm5866, %v5789
    %5925 = vst.msk [vmem:[#allocation5 + $0x3a0] sm:$0xff] %vm5866, %v5791
    %5926 = vst.msk [vmem:[#allocation5 + $0x3b0] sm:$0xff] %vm5866, %v5793
    %5927 = vst.msk [vmem:[#allocation5 + $0x3c0] sm:$0xff] %vm5866, %v5795
    %5928 = vst.msk [vmem:[#allocation5 + $0x3d0] sm:$0xff] %vm5866, %v5797
    %5929 = vst.msk [vmem:[#allocation5 + $0x3e0] sm:$0xff] %vm5866, %v5799
    %5930 = vst.msk [vmem:[#allocation5 + $0x3f0] sm:$0xff] %vm5866, %v5801
    %v5931 = vld [vmem:[%s4198 + $0x2] sm:$0xff]
    %v5932 = vld [vmem:[%s4198 + $0xa] sm:$0xff]
    %v5933 = vld [vmem:[%s4198 + $0x1a] sm:$0xff]
    %v5934 = vld [vmem:[%s4198 + $0x22] sm:$0xff]
    %v5935 = vld [vmem:[%s4198 + $0x32] sm:$0xff]
    %v5936 = vld [vmem:[%s4198 + $0x3a] sm:$0xff]
    %v5937 = vld [vmem:[%s4198 + $0x4a] sm:$0xff]
    %v5938 = vld [vmem:[%s4198 + $0x52] sm:$0xff]
    %v5939 = vld [vmem:[%s4198 + $0x62] sm:$0xff]
    %v5940 = vld [vmem:[%s4198 + $0x6a] sm:$0xff]
    %v5941 = vld [vmem:[%s4198 + $0x7a] sm:$0xff]
    %v5942 = vld [vmem:[%s4198 + $0x82] sm:$0xff]
    %v5943 = vld [vmem:[%s4198 + $0x92] sm:$0xff]
    %v5944 = vld [vmem:[%s4198 + $0x9a] sm:$0xff]
    %v5945 = vld [vmem:[%s4198 + $0xaa] sm:$0xff]
    %v5946 = vld [vmem:[%s4198 + $0xb2] sm:$0xff]
    %v5947 = vld [vmem:[%s4198 + $0xc2] sm:$0xff]
    %v5948 = vld [vmem:[%s4198 + $0xca] sm:$0xff]
    %v5949 = vld [vmem:[%s4198 + $0xda] sm:$0xff]
    %v5950 = vld [vmem:[%s4198 + $0xe2] sm:$0xff]
    %v5951 = vld [vmem:[%s4198 + $0xf2] sm:$0xff]
    %v5952 = vld [vmem:[%s4198 + $0xfa] sm:$0xff]
    %v5953 = vld [vmem:[%s4198 + $0x10a] sm:$0xff]
    %v5954 = vld [vmem:[%s4198 + $0x112] sm:$0xff]
    %v5955 = vld [vmem:[%s4198 + $0x122] sm:$0xff]
    %v5956 = vld [vmem:[%s4198 + $0x12a] sm:$0xff]
    %v5957 = vld [vmem:[%s4198 + $0x13a] sm:$0xff]
    %v5958 = vld [vmem:[%s4198 + $0x142] sm:$0xff]
    %v5959 = vld [vmem:[%s4198 + $0x152] sm:$0xff]
    %v5960 = vld [vmem:[%s4198 + $0x15a] sm:$0xff]
    %v5961 = vld [vmem:[%s4198 + $0x16a] sm:$0xff]
    %v5962 = vld [vmem:[%s4198 + $0x172] sm:$0xff]
    %v5963 = vld [vmem:[%s4198 + $0x1b2] sm:$0xff]
    %v5964 = vld [vmem:[%s4198 + $0x1ba] sm:$0xff]
    %v5965 = vld [vmem:[%s4198 + $0x1ca] sm:$0xff]
    %v5966 = vld [vmem:[%s4198 + $0x1d2] sm:$0xff]
    %v5967 = vld [vmem:[%s4198 + $0x1e2] sm:$0xff]
    %v5968 = vld [vmem:[%s4198 + $0x1ea] sm:$0xff]
    %v5969 = vld [vmem:[%s4198 + $0x1fa] sm:$0xff]
    %v5970 = vld [vmem:[%s4198 + $0x202] sm:$0xff]
    %v5971 = vld [vmem:[%s4198 + $0x212] sm:$0xff]
    %v5972 = vld [vmem:[%s4198 + $0x21a] sm:$0xff]
    %v5973 = vld [vmem:[%s4198 + $0x22a] sm:$0xff]
    %v5974 = vld [vmem:[%s4198 + $0x232] sm:$0xff]
    %v5975 = vld [vmem:[%s4198 + $0x242] sm:$0xff]
    %v5976 = vld [vmem:[%s4198 + $0x24a] sm:$0xff]
    %v5977 = vld [vmem:[%s4198 + $0x25a] sm:$0xff]
    %v5978 = vld [vmem:[%s4198 + $0x262] sm:$0xff]
    %v5979 = vld [vmem:[%s4198 + $0x272] sm:$0xff]
    %v5980 = vld [vmem:[%s4198 + $0x27a] sm:$0xff]
    %v5981 = vld [vmem:[%s4198 + $0x28a] sm:$0xff]
    %v5982 = vld [vmem:[%s4198 + $0x292] sm:$0xff]
    %v5983 = vld [vmem:[%s4198 + $0x2a2] sm:$0xff]
    %v5984 = vld [vmem:[%s4198 + $0x2aa] sm:$0xff]
    %v5985 = vld [vmem:[%s4198 + $0x2ba] sm:$0xff]
    %v5986 = vld [vmem:[%s4198 + $0x2c2] sm:$0xff]
    %v5987 = vld [vmem:[%s4198 + $0x2d2] sm:$0xff]
    %v5988 = vld [vmem:[%s4198 + $0x2da] sm:$0xff]
    %v5989 = vld [vmem:[%s4198 + $0x2ea] sm:$0xff]
    %v5990 = vld [vmem:[%s4198 + $0x2f2] sm:$0xff]
    %v5991 = vld [vmem:[%s4198 + $0x302] sm:$0xff]
    %v5992 = vld [vmem:[%s4198 + $0x30a] sm:$0xff]
    %v5993 = vld [vmem:[%s4198 + $0x31a] sm:$0xff]
    %v5994 = vld [vmem:[%s4198 + $0x322] sm:$0xff]
    %6059 = vrot.lane.b32.xlu0 %v5931, 80
    %v6060 = vpop.permute.xlu0 %6059
    %6061 = vrot.lane.b32.xlu0 %v5932, 80
    %v6062 = vpop.permute.xlu0 %6061
    %6063 = vrot.lane.b32.xlu0 %v5933, 80
    %v6064 = vpop.permute.xlu0 %6063
    %6065 = vrot.lane.b32.xlu0 %v5934, 80
    %v6066 = vpop.permute.xlu0 %6065
    %6067 = vrot.lane.b32.xlu0 %v5935, 80
    %v6068 = vpop.permute.xlu0 %6067
    %6069 = vrot.lane.b32.xlu0 %v5936, 80
    %v6070 = vpop.permute.xlu0 %6069
    %6071 = vrot.lane.b32.xlu0 %v5937, 80
    %v6072 = vpop.permute.xlu0 %6071
    %6073 = vrot.lane.b32.xlu0 %v5938, 80
    %v6074 = vpop.permute.xlu0 %6073
    %6075 = vrot.lane.b32.xlu0 %v5939, 80
    %v6076 = vpop.permute.xlu0 %6075
    %6077 = vrot.lane.b32.xlu0 %v5940, 80
    %v6078 = vpop.permute.xlu0 %6077
    %6079 = vrot.lane.b32.xlu0 %v5941, 80
    %v6080 = vpop.permute.xlu0 %6079
    %6081 = vrot.lane.b32.xlu0 %v5942, 80
    %v6082 = vpop.permute.xlu0 %6081
    %6083 = vrot.lane.b32.xlu0 %v5943, 80
    %v6084 = vpop.permute.xlu0 %6083
    %6085 = vrot.lane.b32.xlu0 %v5944, 80
    %v6086 = vpop.permute.xlu0 %6085
    %6087 = vrot.lane.b32.xlu0 %v5945, 80
    %v6088 = vpop.permute.xlu0 %6087
    %6089 = vrot.lane.b32.xlu0 %v5946, 80
    %v6090 = vpop.permute.xlu0 %6089
    %6091 = vrot.lane.b32.xlu0 %v5947, 80
    %v6092 = vpop.permute.xlu0 %6091
    %6093 = vrot.lane.b32.xlu0 %v5948, 80
    %v6094 = vpop.permute.xlu0 %6093
    %6095 = vrot.lane.b32.xlu0 %v5949, 80
    %v6096 = vpop.permute.xlu0 %6095
    %6097 = vrot.lane.b32.xlu0 %v5950, 80
    %v6098 = vpop.permute.xlu0 %6097
    %6099 = vrot.lane.b32.xlu0 %v5951, 80
    %v6100 = vpop.permute.xlu0 %6099
    %6101 = vrot.lane.b32.xlu0 %v5952, 80
    %v6102 = vpop.permute.xlu0 %6101
    %6103 = vrot.lane.b32.xlu0 %v5953, 80
    %v6104 = vpop.permute.xlu0 %6103
    %6105 = vrot.lane.b32.xlu0 %v5954, 80
    %v6106 = vpop.permute.xlu0 %6105
    %6107 = vrot.lane.b32.xlu0 %v5955, 80
    %v6108 = vpop.permute.xlu0 %6107
    %6109 = vrot.lane.b32.xlu0 %v5956, 80
    %v6110 = vpop.permute.xlu0 %6109
    %6111 = vrot.lane.b32.xlu0 %v5957, 80
    %v6112 = vpop.permute.xlu0 %6111
    %6113 = vrot.lane.b32.xlu0 %v5958, 80
    %v6114 = vpop.permute.xlu0 %6113
    %6115 = vrot.lane.b32.xlu0 %v5959, 80
    %v6116 = vpop.permute.xlu0 %6115
    %6117 = vrot.lane.b32.xlu0 %v5960, 80
    %v6118 = vpop.permute.xlu0 %6117
    %6119 = vrot.lane.b32.xlu0 %v5961, 80
    %v6120 = vpop.permute.xlu0 %6119
    %6121 = vrot.lane.b32.xlu0 %v5962, 80
    %v6122 = vpop.permute.xlu0 %6121
    %6123 = vrot.lane.b32.xlu0 %v5963, 80
    %v6124 = vpop.permute.xlu0 %6123
    %6125 = vrot.lane.b32.xlu0 %v5964, 80
    %v6126 = vpop.permute.xlu0 %6125
    %6127 = vrot.lane.b32.xlu0 %v5965, 80
    %v6128 = vpop.permute.xlu0 %6127
    %6129 = vrot.lane.b32.xlu0 %v5966, 80
    %v6130 = vpop.permute.xlu0 %6129
    %6131 = vrot.lane.b32.xlu0 %v5967, 80
    %v6132 = vpop.permute.xlu0 %6131
    %6133 = vrot.lane.b32.xlu0 %v5968, 80
    %v6134 = vpop.permute.xlu0 %6133
    %6135 = vrot.lane.b32.xlu0 %v5969, 80
    %v6136 = vpop.permute.xlu0 %6135
    %6137 = vrot.lane.b32.xlu0 %v5970, 80
    %v6138 = vpop.permute.xlu0 %6137
    %6139 = vrot.lane.b32.xlu0 %v5971, 80
    %v6140 = vpop.permute.xlu0 %6139
    %6141 = vrot.lane.b32.xlu0 %v5972, 80
    %v6142 = vpop.permute.xlu0 %6141
    %6143 = vrot.lane.b32.xlu0 %v5973, 80
    %v6144 = vpop.permute.xlu0 %6143
    %6145 = vrot.lane.b32.xlu0 %v5974, 80
    %v6146 = vpop.permute.xlu0 %6145
    %6147 = vrot.lane.b32.xlu0 %v5975, 80
    %v6148 = vpop.permute.xlu0 %6147
    %6149 = vrot.lane.b32.xlu0 %v5976, 80
    %v6150 = vpop.permute.xlu0 %6149
    %6151 = vrot.lane.b32.xlu0 %v5977, 80
    %v6152 = vpop.permute.xlu0 %6151
    %6153 = vrot.lane.b32.xlu0 %v5978, 80
    %v6154 = vpop.permute.xlu0 %6153
    %6155 = vrot.lane.b32.xlu0 %v5979, 80
    %v6156 = vpop.permute.xlu0 %6155
    %6157 = vrot.lane.b32.xlu0 %v5980, 80
    %v6158 = vpop.permute.xlu0 %6157
    %6159 = vrot.lane.b32.xlu0 %v5981, 80
    %v6160 = vpop.permute.xlu0 %6159
    %6161 = vrot.lane.b32.xlu0 %v5982, 80
    %v6162 = vpop.permute.xlu0 %6161
    %6163 = vrot.lane.b32.xlu0 %v5983, 80
    %v6164 = vpop.permute.xlu0 %6163
    %6165 = vrot.lane.b32.xlu0 %v5984, 80
    %v6166 = vpop.permute.xlu0 %6165
    %6167 = vrot.lane.b32.xlu0 %v5985, 80
    %v6168 = vpop.permute.xlu0 %6167
    %6169 = vrot.lane.b32.xlu0 %v5986, 80
    %v6170 = vpop.permute.xlu0 %6169
    %6171 = vrot.lane.b32.xlu0 %v5987, 80
    %v6172 = vpop.permute.xlu0 %6171
    %6173 = vrot.lane.b32.xlu0 %v5988, 80
    %v6174 = vpop.permute.xlu0 %6173
    %6175 = vrot.lane.b32.xlu0 %v5989, 80
    %v6176 = vpop.permute.xlu0 %6175
    %6177 = vrot.lane.b32.xlu0 %v5990, 80
    %v6178 = vpop.permute.xlu0 %6177
    %6179 = vrot.lane.b32.xlu0 %v5991, 80
    %v6180 = vpop.permute.xlu0 %6179
    %6181 = vrot.lane.b32.xlu0 %v5992, 80
    %v6182 = vpop.permute.xlu0 %6181
    %6183 = vrot.lane.b32.xlu0 %v5993, 80
    %v6184 = vpop.permute.xlu0 %6183
    %6185 = vrot.lane.b32.xlu0 %v5994, 80
    %v6186 = vpop.permute.xlu0 %6185
    %vm6251 = vcmask 786048
    %6252 = vst.msk [vmem:[#allocation5] sm:$0xff] %vm6251, %v6060
    %6253 = vst.msk [vmem:[#allocation5 + $0x10] sm:$0xff] %vm6251, %v6062
    %6254 = vst.msk [vmem:[#allocation5 + $0x20] sm:$0xff] %vm6251, %v6064
    %6255 = vst.msk [vmem:[#allocation5 + $0x30] sm:$0xff] %vm6251, %v6066
    %6256 = vst.msk [vmem:[#allocation5 + $0x40] sm:$0xff] %vm6251, %v6068
    %6257 = vst.msk [vmem:[#allocation5 + $0x50] sm:$0xff] %vm6251, %v6070
    %6258 = vst.msk [vmem:[#allocation5 + $0x60] sm:$0xff] %vm6251, %v6072
    %6259 = vst.msk [vmem:[#allocation5 + $0x70] sm:$0xff] %vm6251, %v6074
    %6260 = vst.msk [vmem:[#allocation5 + $0x80] sm:$0xff] %vm6251, %v6076
    %6261 = vst.msk [vmem:[#allocation5 + $0x90] sm:$0xff] %vm6251, %v6078
    %6262 = vst.msk [vmem:[#allocation5 + $0xa0] sm:$0xff] %vm6251, %v6080
    %6263 = vst.msk [vmem:[#allocation5 + $0xb0] sm:$0xff] %vm6251, %v6082
    %6264 = vst.msk [vmem:[#allocation5 + $0xc0] sm:$0xff] %vm6251, %v6084
    %6265 = vst.msk [vmem:[#allocation5 + $0xd0] sm:$0xff] %vm6251, %v6086
    %6266 = vst.msk [vmem:[#allocation5 + $0xe0] sm:$0xff] %vm6251, %v6088
    %6267 = vst.msk [vmem:[#allocation5 + $0xf0] sm:$0xff] %vm6251, %v6090
    %6268 = vst.msk [vmem:[#allocation5 + $0x100] sm:$0xff] %vm6251, %v6092
    %6269 = vst.msk [vmem:[#allocation5 + $0x110] sm:$0xff] %vm6251, %v6094
    %6270 = vst.msk [vmem:[#allocation5 + $0x120] sm:$0xff] %vm6251, %v6096
    %6271 = vst.msk [vmem:[#allocation5 + $0x130] sm:$0xff] %vm6251, %v6098
    %6272 = vst.msk [vmem:[#allocation5 + $0x140] sm:$0xff] %vm6251, %v6100
    %6273 = vst.msk [vmem:[#allocation5 + $0x150] sm:$0xff] %vm6251, %v6102
    %6274 = vst.msk [vmem:[#allocation5 + $0x160] sm:$0xff] %vm6251, %v6104
    %6275 = vst.msk [vmem:[#allocation5 + $0x170] sm:$0xff] %vm6251, %v6106
    %6276 = vst.msk [vmem:[#allocation5 + $0x180] sm:$0xff] %vm6251, %v6108
    %6277 = vst.msk [vmem:[#allocation5 + $0x190] sm:$0xff] %vm6251, %v6110
    %6278 = vst.msk [vmem:[#allocation5 + $0x1a0] sm:$0xff] %vm6251, %v6112
    %6279 = vst.msk [vmem:[#allocation5 + $0x1b0] sm:$0xff] %vm6251, %v6114
    %6280 = vst.msk [vmem:[#allocation5 + $0x1c0] sm:$0xff] %vm6251, %v6116
    %6281 = vst.msk [vmem:[#allocation5 + $0x1d0] sm:$0xff] %vm6251, %v6118
    %6282 = vst.msk [vmem:[#allocation5 + $0x1e0] sm:$0xff] %vm6251, %v6120
    %6283 = vst.msk [vmem:[#allocation5 + $0x1f0] sm:$0xff] %vm6251, %v6122
    %6284 = vst.msk [vmem:[#allocation5 + $0x200] sm:$0xff] %vm6251, %v6124
    %6285 = vst.msk [vmem:[#allocation5 + $0x210] sm:$0xff] %vm6251, %v6126
    %6286 = vst.msk [vmem:[#allocation5 + $0x220] sm:$0xff] %vm6251, %v6128
    %6287 = vst.msk [vmem:[#allocation5 + $0x230] sm:$0xff] %vm6251, %v6130
    %6288 = vst.msk [vmem:[#allocation5 + $0x240] sm:$0xff] %vm6251, %v6132
    %6289 = vst.msk [vmem:[#allocation5 + $0x250] sm:$0xff] %vm6251, %v6134
    %6290 = vst.msk [vmem:[#allocation5 + $0x260] sm:$0xff] %vm6251, %v6136
    %6291 = vst.msk [vmem:[#allocation5 + $0x270] sm:$0xff] %vm6251, %v6138
    %6292 = vst.msk [vmem:[#allocation5 + $0x280] sm:$0xff] %vm6251, %v6140
    %6293 = vst.msk [vmem:[#allocation5 + $0x290] sm:$0xff] %vm6251, %v6142
    %6294 = vst.msk [vmem:[#allocation5 + $0x2a0] sm:$0xff] %vm6251, %v6144
    %6295 = vst.msk [vmem:[#allocation5 + $0x2b0] sm:$0xff] %vm6251, %v6146
    %6296 = vst.msk [vmem:[#allocation5 + $0x2c0] sm:$0xff] %vm6251, %v6148
    %6297 = vst.msk [vmem:[#allocation5 + $0x2d0] sm:$0xff] %vm6251, %v6150
    %6298 = vst.msk [vmem:[#allocation5 + $0x2e0] sm:$0xff] %vm6251, %v6152
    %6299 = vst.msk [vmem:[#allocation5 + $0x2f0] sm:$0xff] %vm6251, %v6154
    %6300 = vst.msk [vmem:[#allocation5 + $0x300] sm:$0xff] %vm6251, %v6156
    %6301 = vst.msk [vmem:[#allocation5 + $0x310] sm:$0xff] %vm6251, %v6158
    %6302 = vst.msk [vmem:[#allocation5 + $0x320] sm:$0xff] %vm6251, %v6160
    %6303 = vst.msk [vmem:[#allocation5 + $0x330] sm:$0xff] %vm6251, %v6162
    %6304 = vst.msk [vmem:[#allocation5 + $0x340] sm:$0xff] %vm6251, %v6164
    %6305 = vst.msk [vmem:[#allocation5 + $0x350] sm:$0xff] %vm6251, %v6166
    %6306 = vst.msk [vmem:[#allocation5 + $0x360] sm:$0xff] %vm6251, %v6168
    %6307 = vst.msk [vmem:[#allocation5 + $0x370] sm:$0xff] %vm6251, %v6170
    %6308 = vst.msk [vmem:[#allocation5 + $0x380] sm:$0xff] %vm6251, %v6172
    %6309 = vst.msk [vmem:[#allocation5 + $0x390] sm:$0xff] %vm6251, %v6174
    %6310 = vst.msk [vmem:[#allocation5 + $0x3a0] sm:$0xff] %vm6251, %v6176
    %6311 = vst.msk [vmem:[#allocation5 + $0x3b0] sm:$0xff] %vm6251, %v6178
    %6312 = vst.msk [vmem:[#allocation5 + $0x3c0] sm:$0xff] %vm6251, %v6180
    %6313 = vst.msk [vmem:[#allocation5 + $0x3d0] sm:$0xff] %vm6251, %v6182
    %6314 = vst.msk [vmem:[#allocation5 + $0x3e0] sm:$0xff] %vm6251, %v6184
    %6315 = vst.msk [vmem:[#allocation5 + $0x3f0] sm:$0xff] %vm6251, %v6186
    %s6316 = scalar_lea.vmem [#allocation3], 48
    %v6317 = vld [vmem:[%s6316] sm:$0xff]
    %v6318 = vld [vmem:[%s6316 + $0x8] sm:$0xff]
    %v6319 = vld [vmem:[%s6316 + $0x18] sm:$0xff]
    %v6320 = vld [vmem:[%s6316 + $0x20] sm:$0xff]
    %v6321 = vld [vmem:[%s6316 + $0x30] sm:$0xff]
    %v6322 = vld [vmem:[%s6316 + $0x38] sm:$0xff]
    %v6323 = vld [vmem:[%s6316 + $0x48] sm:$0xff]
    %v6324 = vld [vmem:[%s6316 + $0x50] sm:$0xff]
    %v6325 = vld [vmem:[%s6316 + $0x60] sm:$0xff]
    %v6326 = vld [vmem:[%s6316 + $0x68] sm:$0xff]
    %v6327 = vld [vmem:[%s6316 + $0x78] sm:$0xff]
    %v6328 = vld [vmem:[%s6316 + $0x80] sm:$0xff]
    %v6329 = vld [vmem:[%s6316 + $0x90] sm:$0xff]
    %v6330 = vld [vmem:[%s6316 + $0x98] sm:$0xff]
    %v6331 = vld [vmem:[%s6316 + $0xa8] sm:$0xff]
    %v6332 = vld [vmem:[%s6316 + $0xb0] sm:$0xff]
    %v6333 = vld [vmem:[%s6316 + $0xc0] sm:$0xff]
    %v6334 = vld [vmem:[%s6316 + $0xc8] sm:$0xff]
    %v6335 = vld [vmem:[%s6316 + $0xd8] sm:$0xff]
    %v6336 = vld [vmem:[%s6316 + $0xe0] sm:$0xff]
    %v6337 = vld [vmem:[%s6316 + $0xf0] sm:$0xff]
    %v6338 = vld [vmem:[%s6316 + $0xf8] sm:$0xff]
    %v6339 = vld [vmem:[%s6316 + $0x108] sm:$0xff]
    %v6340 = vld [vmem:[%s6316 + $0x110] sm:$0xff]
    %v6341 = vld [vmem:[%s6316 + $0x120] sm:$0xff]
    %v6342 = vld [vmem:[%s6316 + $0x128] sm:$0xff]
    %v6343 = vld [vmem:[%s6316 + $0x138] sm:$0xff]
    %v6344 = vld [vmem:[%s6316 + $0x140] sm:$0xff]
    %v6345 = vld [vmem:[%s6316 + $0x150] sm:$0xff]
    %v6346 = vld [vmem:[%s6316 + $0x158] sm:$0xff]
    %v6347 = vld [vmem:[%s6316 + $0x168] sm:$0xff]
    %v6348 = vld [vmem:[%s6316 + $0x170] sm:$0xff]
    %v6349 = vld [vmem:[%s6316 + $0x1b0] sm:$0xff]
    %v6350 = vld [vmem:[%s6316 + $0x1b8] sm:$0xff]
    %v6351 = vld [vmem:[%s6316 + $0x1c8] sm:$0xff]
    %v6352 = vld [vmem:[%s6316 + $0x1d0] sm:$0xff]
    %v6353 = vld [vmem:[%s6316 + $0x1e0] sm:$0xff]
    %v6354 = vld [vmem:[%s6316 + $0x1e8] sm:$0xff]
    %v6355 = vld [vmem:[%s6316 + $0x1f8] sm:$0xff]
    %v6356 = vld [vmem:[%s6316 + $0x200] sm:$0xff]
    %v6357 = vld [vmem:[%s6316 + $0x210] sm:$0xff]
    %v6358 = vld [vmem:[%s6316 + $0x218] sm:$0xff]
    %v6359 = vld [vmem:[%s6316 + $0x228] sm:$0xff]
    %v6360 = vld [vmem:[%s6316 + $0x230] sm:$0xff]
    %v6361 = vld [vmem:[%s6316 + $0x240] sm:$0xff]
    %v6362 = vld [vmem:[%s6316 + $0x248] sm:$0xff]
    %v6363 = vld [vmem:[%s6316 + $0x258] sm:$0xff]
    %v6364 = vld [vmem:[%s6316 + $0x260] sm:$0xff]
    %v6365 = vld [vmem:[%s6316 + $0x270] sm:$0xff]
    %v6366 = vld [vmem:[%s6316 + $0x278] sm:$0xff]
    %v6367 = vld [vmem:[%s6316 + $0x288] sm:$0xff]
    %v6368 = vld [vmem:[%s6316 + $0x290] sm:$0xff]
    %v6369 = vld [vmem:[%s6316 + $0x2a0] sm:$0xff]
    %v6370 = vld [vmem:[%s6316 + $0x2a8] sm:$0xff]
    %v6371 = vld [vmem:[%s6316 + $0x2b8] sm:$0xff]
    %v6372 = vld [vmem:[%s6316 + $0x2c0] sm:$0xff]
    %v6373 = vld [vmem:[%s6316 + $0x2d0] sm:$0xff]
    %v6374 = vld [vmem:[%s6316 + $0x2d8] sm:$0xff]
    %v6375 = vld [vmem:[%s6316 + $0x2e8] sm:$0xff]
    %v6376 = vld [vmem:[%s6316 + $0x2f0] sm:$0xff]
    %v6377 = vld [vmem:[%s6316 + $0x300] sm:$0xff]
    %v6378 = vld [vmem:[%s6316 + $0x308] sm:$0xff]
    %v6379 = vld [vmem:[%s6316 + $0x318] sm:$0xff]
    %v6380 = vld [vmem:[%s6316 + $0x320] sm:$0xff]
    %6445 = vrot.lane.b32.xlu0 %v6317, 96
    %v6446 = vpop.permute.xlu0 %6445
    %6447 = vrot.lane.b32.xlu0 %v6318, 96
    %v6448 = vpop.permute.xlu0 %6447
    %6449 = vrot.lane.b32.xlu0 %v6319, 96
    %v6450 = vpop.permute.xlu0 %6449
    %6451 = vrot.lane.b32.xlu0 %v6320, 96
    %v6452 = vpop.permute.xlu0 %6451
    %6453 = vrot.lane.b32.xlu0 %v6321, 96
    %v6454 = vpop.permute.xlu0 %6453
    %6455 = vrot.lane.b32.xlu0 %v6322, 96
    %v6456 = vpop.permute.xlu0 %6455
    %6457 = vrot.lane.b32.xlu0 %v6323, 96
    %v6458 = vpop.permute.xlu0 %6457
    %6459 = vrot.lane.b32.xlu0 %v6324, 96
    %v6460 = vpop.permute.xlu0 %6459
    %6461 = vrot.lane.b32.xlu0 %v6325, 96
    %v6462 = vpop.permute.xlu0 %6461
    %6463 = vrot.lane.b32.xlu0 %v6326, 96
    %v6464 = vpop.permute.xlu0 %6463
    %6465 = vrot.lane.b32.xlu0 %v6327, 96
    %v6466 = vpop.permute.xlu0 %6465
    %6467 = vrot.lane.b32.xlu0 %v6328, 96
    %v6468 = vpop.permute.xlu0 %6467
    %6469 = vrot.lane.b32.xlu0 %v6329, 96
    %v6470 = vpop.permute.xlu0 %6469
    %6471 = vrot.lane.b32.xlu0 %v6330, 96
    %v6472 = vpop.permute.xlu0 %6471
    %6473 = vrot.lane.b32.xlu0 %v6331, 96
    %v6474 = vpop.permute.xlu0 %6473
    %6475 = vrot.lane.b32.xlu0 %v6332, 96
    %v6476 = vpop.permute.xlu0 %6475
    %6477 = vrot.lane.b32.xlu0 %v6333, 96
    %v6478 = vpop.permute.xlu0 %6477
    %6479 = vrot.lane.b32.xlu0 %v6334, 96
    %v6480 = vpop.permute.xlu0 %6479
    %6481 = vrot.lane.b32.xlu0 %v6335, 96
    %v6482 = vpop.permute.xlu0 %6481
    %6483 = vrot.lane.b32.xlu0 %v6336, 96
    %v6484 = vpop.permute.xlu0 %6483
    %6485 = vrot.lane.b32.xlu0 %v6337, 96
    %v6486 = vpop.permute.xlu0 %6485
    %6487 = vrot.lane.b32.xlu0 %v6338, 96
    %v6488 = vpop.permute.xlu0 %6487
    %6489 = vrot.lane.b32.xlu0 %v6339, 96
    %v6490 = vpop.permute.xlu0 %6489
    %6491 = vrot.lane.b32.xlu0 %v6340, 96
    %v6492 = vpop.permute.xlu0 %6491
    %6493 = vrot.lane.b32.xlu0 %v6341, 96
    %v6494 = vpop.permute.xlu0 %6493
    %6495 = vrot.lane.b32.xlu0 %v6342, 96
    %v6496 = vpop.permute.xlu0 %6495
    %6497 = vrot.lane.b32.xlu0 %v6343, 96
    %v6498 = vpop.permute.xlu0 %6497
    %6499 = vrot.lane.b32.xlu0 %v6344, 96
    %v6500 = vpop.permute.xlu0 %6499
    %6501 = vrot.lane.b32.xlu0 %v6345, 96
    %v6502 = vpop.permute.xlu0 %6501
    %6503 = vrot.lane.b32.xlu0 %v6346, 96
    %v6504 = vpop.permute.xlu0 %6503
    %6505 = vrot.lane.b32.xlu0 %v6347, 96
    %v6506 = vpop.permute.xlu0 %6505
    %6507 = vrot.lane.b32.xlu0 %v6348, 96
    %v6508 = vpop.permute.xlu0 %6507
    %6509 = vrot.lane.b32.xlu0 %v6349, 96
    %v6510 = vpop.permute.xlu0 %6509
    %6511 = vrot.lane.b32.xlu0 %v6350, 96
    %v6512 = vpop.permute.xlu0 %6511
    %6513 = vrot.lane.b32.xlu0 %v6351, 96
    %v6514 = vpop.permute.xlu0 %6513
    %6515 = vrot.lane.b32.xlu0 %v6352, 96
    %v6516 = vpop.permute.xlu0 %6515
    %6517 = vrot.lane.b32.xlu0 %v6353, 96
    %v6518 = vpop.permute.xlu0 %6517
    %6519 = vrot.lane.b32.xlu0 %v6354, 96
    %v6520 = vpop.permute.xlu0 %6519
    %6521 = vrot.lane.b32.xlu0 %v6355, 96
    %v6522 = vpop.permute.xlu0 %6521
    %6523 = vrot.lane.b32.xlu0 %v6356, 96
    %v6524 = vpop.permute.xlu0 %6523
    %6525 = vrot.lane.b32.xlu0 %v6357, 96
    %v6526 = vpop.permute.xlu0 %6525
    %6527 = vrot.lane.b32.xlu0 %v6358, 96
    %v6528 = vpop.permute.xlu0 %6527
    %6529 = vrot.lane.b32.xlu0 %v6359, 96
    %v6530 = vpop.permute.xlu0 %6529
    %6531 = vrot.lane.b32.xlu0 %v6360, 96
    %v6532 = vpop.permute.xlu0 %6531
    %6533 = vrot.lane.b32.xlu0 %v6361, 96
    %v6534 = vpop.permute.xlu0 %6533
    %6535 = vrot.lane.b32.xlu0 %v6362, 96
    %v6536 = vpop.permute.xlu0 %6535
    %6537 = vrot.lane.b32.xlu0 %v6363, 96
    %v6538 = vpop.permute.xlu0 %6537
    %6539 = vrot.lane.b32.xlu0 %v6364, 96
    %v6540 = vpop.permute.xlu0 %6539
    %6541 = vrot.lane.b32.xlu0 %v6365, 96
    %v6542 = vpop.permute.xlu0 %6541
    %6543 = vrot.lane.b32.xlu0 %v6366, 96
    %v6544 = vpop.permute.xlu0 %6543
    %6545 = vrot.lane.b32.xlu0 %v6367, 96
    %v6546 = vpop.permute.xlu0 %6545
    %6547 = vrot.lane.b32.xlu0 %v6368, 96
    %v6548 = vpop.permute.xlu0 %6547
    %6549 = vrot.lane.b32.xlu0 %v6369, 96
    %v6550 = vpop.permute.xlu0 %6549
    %6551 = vrot.lane.b32.xlu0 %v6370, 96
    %v6552 = vpop.permute.xlu0 %6551
    %6553 = vrot.lane.b32.xlu0 %v6371, 96
    %v6554 = vpop.permute.xlu0 %6553
    %6555 = vrot.lane.b32.xlu0 %v6372, 96
    %v6556 = vpop.permute.xlu0 %6555
    %6557 = vrot.lane.b32.xlu0 %v6373, 96
    %v6558 = vpop.permute.xlu0 %6557
    %6559 = vrot.lane.b32.xlu0 %v6374, 96
    %v6560 = vpop.permute.xlu0 %6559
    %6561 = vrot.lane.b32.xlu0 %v6375, 96
    %v6562 = vpop.permute.xlu0 %6561
    %6563 = vrot.lane.b32.xlu0 %v6376, 96
    %v6564 = vpop.permute.xlu0 %6563
    %6565 = vrot.lane.b32.xlu0 %v6377, 96
    %v6566 = vpop.permute.xlu0 %6565
    %6567 = vrot.lane.b32.xlu0 %v6378, 96
    %v6568 = vpop.permute.xlu0 %6567
    %6569 = vrot.lane.b32.xlu0 %v6379, 96
    %v6570 = vpop.permute.xlu0 %6569
    %6571 = vrot.lane.b32.xlu0 %v6380, 96
    %v6572 = vpop.permute.xlu0 %6571
    %vm6637 = vcmask 917248
    %6638 = vst.msk [vmem:[#allocation5] sm:$0xff] %vm6637, %v6446
    %6639 = vst.msk [vmem:[#allocation5 + $0x10] sm:$0xff] %vm6637, %v6448
    %6640 = vst.msk [vmem:[#allocation5 + $0x20] sm:$0xff] %vm6637, %v6450
    %6641 = vst.msk [vmem:[#allocation5 + $0x30] sm:$0xff] %vm6637, %v6452
    %6642 = vst.msk [vmem:[#allocation5 + $0x40] sm:$0xff] %vm6637, %v6454
    %6643 = vst.msk [vmem:[#allocation5 + $0x50] sm:$0xff] %vm6637, %v6456
    %6644 = vst.msk [vmem:[#allocation5 + $0x60] sm:$0xff] %vm6637, %v6458
    %6645 = vst.msk [vmem:[#allocation5 + $0x70] sm:$0xff] %vm6637, %v6460
    %6646 = vst.msk [vmem:[#allocation5 + $0x80] sm:$0xff] %vm6637, %v6462
    %6647 = vst.msk [vmem:[#allocation5 + $0x90] sm:$0xff] %vm6637, %v6464
    %6648 = vst.msk [vmem:[#allocation5 + $0xa0] sm:$0xff] %vm6637, %v6466
    %6649 = vst.msk [vmem:[#allocation5 + $0xb0] sm:$0xff] %vm6637, %v6468
    %6650 = vst.msk [vmem:[#allocation5 + $0xc0] sm:$0xff] %vm6637, %v6470
    %6651 = vst.msk [vmem:[#allocation5 + $0xd0] sm:$0xff] %vm6637, %v6472
    %6652 = vst.msk [vmem:[#allocation5 + $0xe0] sm:$0xff] %vm6637, %v6474
    %6653 = vst.msk [vmem:[#allocation5 + $0xf0] sm:$0xff] %vm6637, %v6476
    %6654 = vst.msk [vmem:[#allocation5 + $0x100] sm:$0xff] %vm6637, %v6478
    %6655 = vst.msk [vmem:[#allocation5 + $0x110] sm:$0xff] %vm6637, %v6480
    %6656 = vst.msk [vmem:[#allocation5 + $0x120] sm:$0xff] %vm6637, %v6482
    %6657 = vst.msk [vmem:[#allocation5 + $0x130] sm:$0xff] %vm6637, %v6484
    %6658 = vst.msk [vmem:[#allocation5 + $0x140] sm:$0xff] %vm6637, %v6486
    %6659 = vst.msk [vmem:[#allocation5 + $0x150] sm:$0xff] %vm6637, %v6488
    %6660 = vst.msk [vmem:[#allocation5 + $0x160] sm:$0xff] %vm6637, %v6490
    %6661 = vst.msk [vmem:[#allocation5 + $0x170] sm:$0xff] %vm6637, %v6492
    %6662 = vst.msk [vmem:[#allocation5 + $0x180] sm:$0xff] %vm6637, %v6494
    %6663 = vst.msk [vmem:[#allocation5 + $0x190] sm:$0xff] %vm6637, %v6496
    %6664 = vst.msk [vmem:[#allocation5 + $0x1a0] sm:$0xff] %vm6637, %v6498
    %6665 = vst.msk [vmem:[#allocation5 + $0x1b0] sm:$0xff] %vm6637, %v6500
    %6666 = vst.msk [vmem:[#allocation5 + $0x1c0] sm:$0xff] %vm6637, %v6502
    %6667 = vst.msk [vmem:[#allocation5 + $0x1d0] sm:$0xff] %vm6637, %v6504
    %6668 = vst.msk [vmem:[#allocation5 + $0x1e0] sm:$0xff] %vm6637, %v6506
    %6669 = vst.msk [vmem:[#allocation5 + $0x1f0] sm:$0xff] %vm6637, %v6508
    %6670 = vst.msk [vmem:[#allocation5 + $0x200] sm:$0xff] %vm6637, %v6510
    %6671 = vst.msk [vmem:[#allocation5 + $0x210] sm:$0xff] %vm6637, %v6512
    %6672 = vst.msk [vmem:[#allocation5 + $0x220] sm:$0xff] %vm6637, %v6514
    %6673 = vst.msk [vmem:[#allocation5 + $0x230] sm:$0xff] %vm6637, %v6516
    %6674 = vst.msk [vmem:[#allocation5 + $0x240] sm:$0xff] %vm6637, %v6518
    %6675 = vst.msk [vmem:[#allocation5 + $0x250] sm:$0xff] %vm6637, %v6520
    %6676 = vst.msk [vmem:[#allocation5 + $0x260] sm:$0xff] %vm6637, %v6522
    %6677 = vst.msk [vmem:[#allocation5 + $0x270] sm:$0xff] %vm6637, %v6524
    %6678 = vst.msk [vmem:[#allocation5 + $0x280] sm:$0xff] %vm6637, %v6526
    %6679 = vst.msk [vmem:[#allocation5 + $0x290] sm:$0xff] %vm6637, %v6528
    %6680 = vst.msk [vmem:[#allocation5 + $0x2a0] sm:$0xff] %vm6637, %v6530
    %6681 = vst.msk [vmem:[#allocation5 + $0x2b0] sm:$0xff] %vm6637, %v6532
    %6682 = vst.msk [vmem:[#allocation5 + $0x2c0] sm:$0xff] %vm6637, %v6534
    %6683 = vst.msk [vmem:[#allocation5 + $0x2d0] sm:$0xff] %vm6637, %v6536
    %6684 = vst.msk [vmem:[#allocation5 + $0x2e0] sm:$0xff] %vm6637, %v6538
    %6685 = vst.msk [vmem:[#allocation5 + $0x2f0] sm:$0xff] %vm6637, %v6540
    %6686 = vst.msk [vmem:[#allocation5 + $0x300] sm:$0xff] %vm6637, %v6542
    %6687 = vst.msk [vmem:[#allocation5 + $0x310] sm:$0xff] %vm6637, %v6544
    %6688 = vst.msk [vmem:[#allocation5 + $0x320] sm:$0xff] %vm6637, %v6546
    %6689 = vst.msk [vmem:[#allocation5 + $0x330] sm:$0xff] %vm6637, %v6548
    %6690 = vst.msk [vmem:[#allocation5 + $0x340] sm:$0xff] %vm6637, %v6550
    %6691 = vst.msk [vmem:[#allocation5 + $0x350] sm:$0xff] %vm6637, %v6552
    %6692 = vst.msk [vmem:[#allocation5 + $0x360] sm:$0xff] %vm6637, %v6554
    %6693 = vst.msk [vmem:[#allocation5 + $0x370] sm:$0xff] %vm6637, %v6556
    %6694 = vst.msk [vmem:[#allocation5 + $0x380] sm:$0xff] %vm6637, %v6558
    %6695 = vst.msk [vmem:[#allocation5 + $0x390] sm:$0xff] %vm6637, %v6560
    %6696 = vst.msk [vmem:[#allocation5 + $0x3a0] sm:$0xff] %vm6637, %v6562
    %6697 = vst.msk [vmem:[#allocation5 + $0x3b0] sm:$0xff] %vm6637, %v6564
    %6698 = vst.msk [vmem:[#allocation5 + $0x3c0] sm:$0xff] %vm6637, %v6566
    %6699 = vst.msk [vmem:[#allocation5 + $0x3d0] sm:$0xff] %vm6637, %v6568
    %6700 = vst.msk [vmem:[#allocation5 + $0x3e0] sm:$0xff] %vm6637, %v6570
    %6701 = vst.msk [vmem:[#allocation5 + $0x3f0] sm:$0xff] %vm6637, %v6572
    %v6702 = vld [vmem:[%s6316 + $0x1] sm:$0xff]
    %v6703 = vld [vmem:[%s6316 + $0x9] sm:$0xff]
    %v6704 = vld [vmem:[%s6316 + $0x19] sm:$0xff]
    %v6705 = vld [vmem:[%s6316 + $0x21] sm:$0xff]
    %v6706 = vld [vmem:[%s6316 + $0x31] sm:$0xff]
    %v6707 = vld [vmem:[%s6316 + $0x39] sm:$0xff]
    %v6708 = vld [vmem:[%s6316 + $0x49] sm:$0xff]
    %v6709 = vld [vmem:[%s6316 + $0x51] sm:$0xff]
    %v6710 = vld [vmem:[%s6316 + $0x61] sm:$0xff]
    %v6711 = vld [vmem:[%s6316 + $0x69] sm:$0xff]
    %v6712 = vld [vmem:[%s6316 + $0x79] sm:$0xff]
    %v6713 = vld [vmem:[%s6316 + $0x81] sm:$0xff]
    %v6714 = vld [vmem:[%s6316 + $0x91] sm:$0xff]
    %v6715 = vld [vmem:[%s6316 + $0x99] sm:$0xff]
    %v6716 = vld [vmem:[%s6316 + $0xa9] sm:$0xff]
    %v6717 = vld [vmem:[%s6316 + $0xb1] sm:$0xff]
    %v6718 = vld [vmem:[%s6316 + $0xc1] sm:$0xff]
    %v6719 = vld [vmem:[%s6316 + $0xc9] sm:$0xff]
    %v6720 = vld [vmem:[%s6316 + $0xd9] sm:$0xff]
    %v6721 = vld [vmem:[%s6316 + $0xe1] sm:$0xff]
    %v6722 = vld [vmem:[%s6316 + $0xf1] sm:$0xff]
    %v6723 = vld [vmem:[%s6316 + $0xf9] sm:$0xff]
    %v6724 = vld [vmem:[%s6316 + $0x109] sm:$0xff]
    %v6725 = vld [vmem:[%s6316 + $0x111] sm:$0xff]
    %v6726 = vld [vmem:[%s6316 + $0x121] sm:$0xff]
    %v6727 = vld [vmem:[%s6316 + $0x129] sm:$0xff]
    %v6728 = vld [vmem:[%s6316 + $0x139] sm:$0xff]
    %v6729 = vld [vmem:[%s6316 + $0x141] sm:$0xff]
    %v6730 = vld [vmem:[%s6316 + $0x151] sm:$0xff]
    %v6731 = vld [vmem:[%s6316 + $0x159] sm:$0xff]
    %v6732 = vld [vmem:[%s6316 + $0x169] sm:$0xff]
    %v6733 = vld [vmem:[%s6316 + $0x171] sm:$0xff]
    %v6734 = vld [vmem:[%s6316 + $0x1b1] sm:$0xff]
    %v6735 = vld [vmem:[%s6316 + $0x1b9] sm:$0xff]
    %v6736 = vld [vmem:[%s6316 + $0x1c9] sm:$0xff]
    %v6737 = vld [vmem:[%s6316 + $0x1d1] sm:$0xff]
    %v6738 = vld [vmem:[%s6316 + $0x1e1] sm:$0xff]
    %v6739 = vld [vmem:[%s6316 + $0x1e9] sm:$0xff]
    %v6740 = vld [vmem:[%s6316 + $0x1f9] sm:$0xff]
    %v6741 = vld [vmem:[%s6316 + $0x201] sm:$0xff]
    %v6742 = vld [vmem:[%s6316 + $0x211] sm:$0xff]
    %v6743 = vld [vmem:[%s6316 + $0x219] sm:$0xff]
    %v6744 = vld [vmem:[%s6316 + $0x229] sm:$0xff]
    %v6745 = vld [vmem:[%s6316 + $0x231] sm:$0xff]
    %v6746 = vld [vmem:[%s6316 + $0x241] sm:$0xff]
    %v6747 = vld [vmem:[%s6316 + $0x249] sm:$0xff]
    %v6748 = vld [vmem:[%s6316 + $0x259] sm:$0xff]
    %v6749 = vld [vmem:[%s6316 + $0x261] sm:$0xff]
    %v6750 = vld [vmem:[%s6316 + $0x271] sm:$0xff]
    %v6751 = vld [vmem:[%s6316 + $0x279] sm:$0xff]
    %v6752 = vld [vmem:[%s6316 + $0x289] sm:$0xff]
    %v6753 = vld [vmem:[%s6316 + $0x291] sm:$0xff]
    %v6754 = vld [vmem:[%s6316 + $0x2a1] sm:$0xff]
    %v6755 = vld [vmem:[%s6316 + $0x2a9] sm:$0xff]
    %v6756 = vld [vmem:[%s6316 + $0x2b9] sm:$0xff]
    %v6757 = vld [vmem:[%s6316 + $0x2c1] sm:$0xff]
    %v6758 = vld [vmem:[%s6316 + $0x2d1] sm:$0xff]
    %v6759 = vld [vmem:[%s6316 + $0x2d9] sm:$0xff]
    %v6760 = vld [vmem:[%s6316 + $0x2e9] sm:$0xff]
    %v6761 = vld [vmem:[%s6316 + $0x2f1] sm:$0xff]
    %v6762 = vld [vmem:[%s6316 + $0x301] sm:$0xff]
    %v6763 = vld [vmem:[%s6316 + $0x309] sm:$0xff]
    %v6764 = vld [vmem:[%s6316 + $0x319] sm:$0xff]
    %v6765 = vld [vmem:[%s6316 + $0x321] sm:$0xff]
    %6830 = vrot.lane.b32.xlu0 %v6702, 112
    %v6831 = vpop.permute.xlu0 %6830
    %6832 = vrot.lane.b32.xlu0 %v6703, 112
    %v6833 = vpop.permute.xlu0 %6832
    %6834 = vrot.lane.b32.xlu0 %v6704, 112
    %v6835 = vpop.permute.xlu0 %6834
    %6836 = vrot.lane.b32.xlu0 %v6705, 112
    %v6837 = vpop.permute.xlu0 %6836
    %6838 = vrot.lane.b32.xlu0 %v6706, 112
    %v6839 = vpop.permute.xlu0 %6838
    %6840 = vrot.lane.b32.xlu0 %v6707, 112
    %v6841 = vpop.permute.xlu0 %6840
    %6842 = vrot.lane.b32.xlu0 %v6708, 112
    %v6843 = vpop.permute.xlu0 %6842
    %6844 = vrot.lane.b32.xlu0 %v6709, 112
    %v6845 = vpop.permute.xlu0 %6844
    %6846 = vrot.lane.b32.xlu0 %v6710, 112
    %v6847 = vpop.permute.xlu0 %6846
    %6848 = vrot.lane.b32.xlu0 %v6711, 112
    %v6849 = vpop.permute.xlu0 %6848
    %6850 = vrot.lane.b32.xlu0 %v6712, 112
    %v6851 = vpop.permute.xlu0 %6850
    %6852 = vrot.lane.b32.xlu0 %v6713, 112
    %v6853 = vpop.permute.xlu0 %6852
    %6854 = vrot.lane.b32.xlu0 %v6714, 112
    %v6855 = vpop.permute.xlu0 %6854
    %6856 = vrot.lane.b32.xlu0 %v6715, 112
    %v6857 = vpop.permute.xlu0 %6856
    %6858 = vrot.lane.b32.xlu0 %v6716, 112
    %v6859 = vpop.permute.xlu0 %6858
    %6860 = vrot.lane.b32.xlu0 %v6717, 112
    %v6861 = vpop.permute.xlu0 %6860
    %6862 = vrot.lane.b32.xlu0 %v6718, 112
    %v6863 = vpop.permute.xlu0 %6862
    %6864 = vrot.lane.b32.xlu0 %v6719, 112
    %v6865 = vpop.permute.xlu0 %6864
    %6866 = vrot.lane.b32.xlu0 %v6720, 112
    %v6867 = vpop.permute.xlu0 %6866
    %6868 = vrot.lane.b32.xlu0 %v6721, 112
    %v6869 = vpop.permute.xlu0 %6868
    %6870 = vrot.lane.b32.xlu0 %v6722, 112
    %v6871 = vpop.permute.xlu0 %6870
    %6872 = vrot.lane.b32.xlu0 %v6723, 112
    %v6873 = vpop.permute.xlu0 %6872
    %6874 = vrot.lane.b32.xlu0 %v6724, 112
    %v6875 = vpop.permute.xlu0 %6874
    %6876 = vrot.lane.b32.xlu0 %v6725, 112
    %v6877 = vpop.permute.xlu0 %6876
    %6878 = vrot.lane.b32.xlu0 %v6726, 112
    %v6879 = vpop.permute.xlu0 %6878
    %6880 = vrot.lane.b32.xlu0 %v6727, 112
    %v6881 = vpop.permute.xlu0 %6880
    %6882 = vrot.lane.b32.xlu0 %v6728, 112
    %v6883 = vpop.permute.xlu0 %6882
    %6884 = vrot.lane.b32.xlu0 %v6729, 112
    %v6885 = vpop.permute.xlu0 %6884
    %6886 = vrot.lane.b32.xlu0 %v6730, 112
    %v6887 = vpop.permute.xlu0 %6886
    %6888 = vrot.lane.b32.xlu0 %v6731, 112
    %v6889 = vpop.permute.xlu0 %6888
    %6890 = vrot.lane.b32.xlu0 %v6732, 112
    %v6891 = vpop.permute.xlu0 %6890
    %6892 = vrot.lane.b32.xlu0 %v6733, 112
    %v6893 = vpop.permute.xlu0 %6892
    %6894 = vrot.lane.b32.xlu0 %v6734, 112
    %v6895 = vpop.permute.xlu0 %6894
    %6896 = vrot.lane.b32.xlu0 %v6735, 112
    %v6897 = vpop.permute.xlu0 %6896
    %6898 = vrot.lane.b32.xlu0 %v6736, 112
    %v6899 = vpop.permute.xlu0 %6898
    %6900 = vrot.lane.b32.xlu0 %v6737, 112
    %v6901 = vpop.permute.xlu0 %6900
    %6902 = vrot.lane.b32.xlu0 %v6738, 112
    %v6903 = vpop.permute.xlu0 %6902
    %6904 = vrot.lane.b32.xlu0 %v6739, 112
    %v6905 = vpop.permute.xlu0 %6904
    %6906 = vrot.lane.b32.xlu0 %v6740, 112
    %v6907 = vpop.permute.xlu0 %6906
    %6908 = vrot.lane.b32.xlu0 %v6741, 112
    %v6909 = vpop.permute.xlu0 %6908
    %6910 = vrot.lane.b32.xlu0 %v6742, 112
    %v6911 = vpop.permute.xlu0 %6910
    %6912 = vrot.lane.b32.xlu0 %v6743, 112
    %v6913 = vpop.permute.xlu0 %6912
    %6914 = vrot.lane.b32.xlu0 %v6744, 112
    %v6915 = vpop.permute.xlu0 %6914
    %6916 = vrot.lane.b32.xlu0 %v6745, 112
    %v6917 = vpop.permute.xlu0 %6916
    %6918 = vrot.lane.b32.xlu0 %v6746, 112
    %v6919 = vpop.permute.xlu0 %6918
    %6920 = vrot.lane.b32.xlu0 %v6747, 112
    %v6921 = vpop.permute.xlu0 %6920
    %6922 = vrot.lane.b32.xlu0 %v6748, 112
    %v6923 = vpop.permute.xlu0 %6922
    %6924 = vrot.lane.b32.xlu0 %v6749, 112
    %v6925 = vpop.permute.xlu0 %6924
    %6926 = vrot.lane.b32.xlu0 %v6750, 112
    %v6927 = vpop.permute.xlu0 %6926
    %6928 = vrot.lane.b32.xlu0 %v6751, 112
    %v6929 = vpop.permute.xlu0 %6928
    %6930 = vrot.lane.b32.xlu0 %v6752, 112
    %v6931 = vpop.permute.xlu0 %6930
    %6932 = vrot.lane.b32.xlu0 %v6753, 112
    %v6933 = vpop.permute.xlu0 %6932
    %6934 = vrot.lane.b32.xlu0 %v6754, 112
    %v6935 = vpop.permute.xlu0 %6934
    %6936 = vrot.lane.b32.xlu0 %v6755, 112
    %v6937 = vpop.permute.xlu0 %6936
    %6938 = vrot.lane.b32.xlu0 %v6756, 112
    %v6939 = vpop.permute.xlu0 %6938
    %6940 = vrot.lane.b32.xlu0 %v6757, 112
    %v6941 = vpop.permute.xlu0 %6940
    %6942 = vrot.lane.b32.xlu0 %v6758, 112
    %v6943 = vpop.permute.xlu0 %6942
    %6944 = vrot.lane.b32.xlu0 %v6759, 112
    %v6945 = vpop.permute.xlu0 %6944
    %6946 = vrot.lane.b32.xlu0 %v6760, 112
    %v6947 = vpop.permute.xlu0 %6946
    %6948 = vrot.lane.b32.xlu0 %v6761, 112
    %v6949 = vpop.permute.xlu0 %6948
    %6950 = vrot.lane.b32.xlu0 %v6762, 112
    %v6951 = vpop.permute.xlu0 %6950
    %6952 = vrot.lane.b32.xlu0 %v6763, 112
    %v6953 = vpop.permute.xlu0 %6952
    %6954 = vrot.lane.b32.xlu0 %v6764, 112
    %v6955 = vpop.permute.xlu0 %6954
    %6956 = vrot.lane.b32.xlu0 %v6765, 112
    %v6957 = vpop.permute.xlu0 %6956
    %vm7022 = vcmask 1048448
    %7023 = vst.msk [vmem:[#allocation5] sm:$0xff] %vm7022, %v6831
    %7024 = vst.msk [vmem:[#allocation5 + $0x10] sm:$0xff] %vm7022, %v6833
    %7025 = vst.msk [vmem:[#allocation5 + $0x20] sm:$0xff] %vm7022, %v6835
    %7026 = vst.msk [vmem:[#allocation5 + $0x30] sm:$0xff] %vm7022, %v6837
    %7027 = vst.msk [vmem:[#allocation5 + $0x40] sm:$0xff] %vm7022, %v6839
    %7028 = vst.msk [vmem:[#allocation5 + $0x50] sm:$0xff] %vm7022, %v6841
    %7029 = vst.msk [vmem:[#allocation5 + $0x60] sm:$0xff] %vm7022, %v6843
    %7030 = vst.msk [vmem:[#allocation5 + $0x70] sm:$0xff] %vm7022, %v6845
    %7031 = vst.msk [vmem:[#allocation5 + $0x80] sm:$0xff] %vm7022, %v6847
    %7032 = vst.msk [vmem:[#allocation5 + $0x90] sm:$0xff] %vm7022, %v6849
    %7033 = vst.msk [vmem:[#allocation5 + $0xa0] sm:$0xff] %vm7022, %v6851
    %7034 = vst.msk [vmem:[#allocation5 + $0xb0] sm:$0xff] %vm7022, %v6853
    %7035 = vst.msk [vmem:[#allocation5 + $0xc0] sm:$0xff] %vm7022, %v6855
    %7036 = vst.msk [vmem:[#allocation5 + $0xd0] sm:$0xff] %vm7022, %v6857
    %7037 = vst.msk [vmem:[#allocation5 + $0xe0] sm:$0xff] %vm7022, %v6859
    %7038 = vst.msk [vmem:[#allocation5 + $0xf0] sm:$0xff] %vm7022, %v6861
    %7039 = vst.msk [vmem:[#allocation5 + $0x100] sm:$0xff] %vm7022, %v6863
    %7040 = vst.msk [vmem:[#allocation5 + $0x110] sm:$0xff] %vm7022, %v6865
    %7041 = vst.msk [vmem:[#allocation5 + $0x120] sm:$0xff] %vm7022, %v6867
    %7042 = vst.msk [vmem:[#allocation5 + $0x130] sm:$0xff] %vm7022, %v6869
    %7043 = vst.msk [vmem:[#allocation5 + $0x140] sm:$0xff] %vm7022, %v6871
    %7044 = vst.msk [vmem:[#allocation5 + $0x150] sm:$0xff] %vm7022, %v6873
    %7045 = vst.msk [vmem:[#allocation5 + $0x160] sm:$0xff] %vm7022, %v6875
    %7046 = vst.msk [vmem:[#allocation5 + $0x170] sm:$0xff] %vm7022, %v6877
    %7047 = vst.msk [vmem:[#allocation5 + $0x180] sm:$0xff] %vm7022, %v6879
    %7048 = vst.msk [vmem:[#allocation5 + $0x190] sm:$0xff] %vm7022, %v6881
    %7049 = vst.msk [vmem:[#allocation5 + $0x1a0] sm:$0xff] %vm7022, %v6883
    %7050 = vst.msk [vmem:[#allocation5 + $0x1b0] sm:$0xff] %vm7022, %v6885
    %7051 = vst.msk [vmem:[#allocation5 + $0x1c0] sm:$0xff] %vm7022, %v6887
    %7052 = vst.msk [vmem:[#allocation5 + $0x1d0] sm:$0xff] %vm7022, %v6889
    %7053 = vst.msk [vmem:[#allocation5 + $0x1e0] sm:$0xff] %vm7022, %v6891
    %7054 = vst.msk [vmem:[#allocation5 + $0x1f0] sm:$0xff] %vm7022, %v6893
    %7055 = vst.msk [vmem:[#allocation5 + $0x200] sm:$0xff] %vm7022, %v6895
    %7056 = vst.msk [vmem:[#allocation5 + $0x210] sm:$0xff] %vm7022, %v6897
    %7057 = vst.msk [vmem:[#allocation5 + $0x220] sm:$0xff] %vm7022, %v6899
    %7058 = vst.msk [vmem:[#allocation5 + $0x230] sm:$0xff] %vm7022, %v6901
    %7059 = vst.msk [vmem:[#allocation5 + $0x240] sm:$0xff] %vm7022, %v6903
    %7060 = vst.msk [vmem:[#allocation5 + $0x250] sm:$0xff] %vm7022, %v6905
    %7061 = vst.msk [vmem:[#allocation5 + $0x260] sm:$0xff] %vm7022, %v6907
    %7062 = vst.msk [vmem:[#allocation5 + $0x270] sm:$0xff] %vm7022, %v6909
    %7063 = vst.msk [vmem:[#allocation5 + $0x280] sm:$0xff] %vm7022, %v6911
    %7064 = vst.msk [vmem:[#allocation5 + $0x290] sm:$0xff] %vm7022, %v6913
    %7065 = vst.msk [vmem:[#allocation5 + $0x2a0] sm:$0xff] %vm7022, %v6915
    %7066 = vst.msk [vmem:[#allocation5 + $0x2b0] sm:$0xff] %vm7022, %v6917
    %7067 = vst.msk [vmem:[#allocation5 + $0x2c0] sm:$0xff] %vm7022, %v6919
    %7068 = vst.msk [vmem:[#allocation5 + $0x2d0] sm:$0xff] %vm7022, %v6921
    %7069 = vst.msk [vmem:[#allocation5 + $0x2e0] sm:$0xff] %vm7022, %v6923
    %7070 = vst.msk [vmem:[#allocation5 + $0x2f0] sm:$0xff] %vm7022, %v6925
    %7071 = vst.msk [vmem:[#allocation5 + $0x300] sm:$0xff] %vm7022, %v6927
    %7072 = vst.msk [vmem:[#allocation5 + $0x310] sm:$0xff] %vm7022, %v6929
    %7073 = vst.msk [vmem:[#allocation5 + $0x320] sm:$0xff] %vm7022, %v6931
    %7074 = vst.msk [vmem:[#allocation5 + $0x330] sm:$0xff] %vm7022, %v6933
    %7075 = vst.msk [vmem:[#allocation5 + $0x340] sm:$0xff] %vm7022, %v6935
    %7076 = vst.msk [vmem:[#allocation5 + $0x350] sm:$0xff] %vm7022, %v6937
    %7077 = vst.msk [vmem:[#allocation5 + $0x360] sm:$0xff] %vm7022, %v6939
    %7078 = vst.msk [vmem:[#allocation5 + $0x370] sm:$0xff] %vm7022, %v6941
    %7079 = vst.msk [vmem:[#allocation5 + $0x380] sm:$0xff] %vm7022, %v6943
    %7080 = vst.msk [vmem:[#allocation5 + $0x390] sm:$0xff] %vm7022, %v6945
    %7081 = vst.msk [vmem:[#allocation5 + $0x3a0] sm:$0xff] %vm7022, %v6947
    %7082 = vst.msk [vmem:[#allocation5 + $0x3b0] sm:$0xff] %vm7022, %v6949
    %7083 = vst.msk [vmem:[#allocation5 + $0x3c0] sm:$0xff] %vm7022, %v6951
    %7084 = vst.msk [vmem:[#allocation5 + $0x3d0] sm:$0xff] %vm7022, %v6953
    %7085 = vst.msk [vmem:[#allocation5 + $0x3e0] sm:$0xff] %vm7022, %v6955
    %7086 = vst.msk [vmem:[#allocation5 + $0x3f0] sm:$0xff] %vm7022, %v6957
    %v7087 = vld [vmem:[%s6316 + $0x2] sm:$0xff]
    %v7088 = vld [vmem:[%s6316 + $0xa] sm:$0xff]
    %v7089 = vld [vmem:[%s6316 + $0x1a] sm:$0xff]
    %v7090 = vld [vmem:[%s6316 + $0x22] sm:$0xff]
    %v7091 = vld [vmem:[%s6316 + $0x32] sm:$0xff]
    %v7092 = vld [vmem:[%s6316 + $0x3a] sm:$0xff]
    %v7093 = vld [vmem:[%s6316 + $0x4a] sm:$0xff]
    %v7094 = vld [vmem:[%s6316 + $0x52] sm:$0xff]
    %v7095 = vld [vmem:[%s6316 + $0x62] sm:$0xff]
    %v7096 = vld [vmem:[%s6316 + $0x6a] sm:$0xff]
    %v7097 = vld [vmem:[%s6316 + $0x7a] sm:$0xff]
    %v7098 = vld [vmem:[%s6316 + $0x82] sm:$0xff]
    %v7099 = vld [vmem:[%s6316 + $0x92] sm:$0xff]
    %v7100 = vld [vmem:[%s6316 + $0x9a] sm:$0xff]
    %v7101 = vld [vmem:[%s6316 + $0xaa] sm:$0xff]
    %v7102 = vld [vmem:[%s6316 + $0xb2] sm:$0xff]
    %v7103 = vld [vmem:[%s6316 + $0xc2] sm:$0xff]
    %v7104 = vld [vmem:[%s6316 + $0xca] sm:$0xff]
    %v7105 = vld [vmem:[%s6316 + $0xda] sm:$0xff]
    %v7106 = vld [vmem:[%s6316 + $0xe2] sm:$0xff]
    %v7107 = vld [vmem:[%s6316 + $0xf2] sm:$0xff]
    %v7108 = vld [vmem:[%s6316 + $0xfa] sm:$0xff]
    %v7109 = vld [vmem:[%s6316 + $0x10a] sm:$0xff]
    %v7110 = vld [vmem:[%s6316 + $0x112] sm:$0xff]
    %v7111 = vld [vmem:[%s6316 + $0x122] sm:$0xff]
    %v7112 = vld [vmem:[%s6316 + $0x12a] sm:$0xff]
    %v7113 = vld [vmem:[%s6316 + $0x13a] sm:$0xff]
    %v7114 = vld [vmem:[%s6316 + $0x142] sm:$0xff]
    %v7115 = vld [vmem:[%s6316 + $0x152] sm:$0xff]
    %v7116 = vld [vmem:[%s6316 + $0x15a] sm:$0xff]
    %v7117 = vld [vmem:[%s6316 + $0x16a] sm:$0xff]
    %v7118 = vld [vmem:[%s6316 + $0x172] sm:$0xff]
    %v7119 = vld [vmem:[%s6316 + $0x1b2] sm:$0xff]
    %v7120 = vld [vmem:[%s6316 + $0x1ba] sm:$0xff]
    %v7121 = vld [vmem:[%s6316 + $0x1ca] sm:$0xff]
    %v7122 = vld [vmem:[%s6316 + $0x1d2] sm:$0xff]
    %v7123 = vld [vmem:[%s6316 + $0x1e2] sm:$0xff]
    %v7124 = vld [vmem:[%s6316 + $0x1ea] sm:$0xff]
    %v7125 = vld [vmem:[%s6316 + $0x1fa] sm:$0xff]
    %v7126 = vld [vmem:[%s6316 + $0x202] sm:$0xff]
    %v7127 = vld [vmem:[%s6316 + $0x212] sm:$0xff]
    %v7128 = vld [vmem:[%s6316 + $0x21a] sm:$0xff]
    %v7129 = vld [vmem:[%s6316 + $0x22a] sm:$0xff]
    %v7130 = vld [vmem:[%s6316 + $0x232] sm:$0xff]
    %v7131 = vld [vmem:[%s6316 + $0x242] sm:$0xff]
    %v7132 = vld [vmem:[%s6316 + $0x24a] sm:$0xff]
    %v7133 = vld [vmem:[%s6316 + $0x25a] sm:$0xff]
    %v7134 = vld [vmem:[%s6316 + $0x262] sm:$0xff]
    %v7135 = vld [vmem:[%s6316 + $0x272] sm:$0xff]
    %v7136 = vld [vmem:[%s6316 + $0x27a] sm:$0xff]
    %v7137 = vld [vmem:[%s6316 + $0x28a] sm:$0xff]
    %v7138 = vld [vmem:[%s6316 + $0x292] sm:$0xff]
    %v7139 = vld [vmem:[%s6316 + $0x2a2] sm:$0xff]
    %v7140 = vld [vmem:[%s6316 + $0x2aa] sm:$0xff]
    %v7141 = vld [vmem:[%s6316 + $0x2ba] sm:$0xff]
    %v7142 = vld [vmem:[%s6316 + $0x2c2] sm:$0xff]
    %v7143 = vld [vmem:[%s6316 + $0x2d2] sm:$0xff]
    %v7144 = vld [vmem:[%s6316 + $0x2da] sm:$0xff]
    %v7145 = vld [vmem:[%s6316 + $0x2ea] sm:$0xff]
    %v7146 = vld [vmem:[%s6316 + $0x2f2] sm:$0xff]
    %v7147 = vld [vmem:[%s6316 + $0x302] sm:$0xff]
    %v7148 = vld [vmem:[%s6316 + $0x30a] sm:$0xff]
    %v7149 = vld [vmem:[%s6316 + $0x31a] sm:$0xff]
    %v7150 = vld [vmem:[%s6316 + $0x322] sm:$0xff]
    %7151 = vst.msk [vmem:[#allocation5 + $0x8] sm:$0xff] %vm4088, %v7087
    %7152 = vst.msk [vmem:[#allocation5 + $0x18] sm:$0xff] %vm4088, %v7088
    %7153 = vst.msk [vmem:[#allocation5 + $0x28] sm:$0xff] %vm4088, %v7089
    %7154 = vst.msk [vmem:[#allocation5 + $0x38] sm:$0xff] %vm4088, %v7090
    %7155 = vst.msk [vmem:[#allocation5 + $0x48] sm:$0xff] %vm4088, %v7091
    %7156 = vst.msk [vmem:[#allocation5 + $0x58] sm:$0xff] %vm4088, %v7092
    %7157 = vst.msk [vmem:[#allocation5 + $0x68] sm:$0xff] %vm4088, %v7093
    %7158 = vst.msk [vmem:[#allocation5 + $0x78] sm:$0xff] %vm4088, %v7094
    %7159 = vst.msk [vmem:[#allocation5 + $0x88] sm:$0xff] %vm4088, %v7095
    %7160 = vst.msk [vmem:[#allocation5 + $0x98] sm:$0xff] %vm4088, %v7096
    %7161 = vst.msk [vmem:[#allocation5 + $0xa8] sm:$0xff] %vm4088, %v7097
    %7162 = vst.msk [vmem:[#allocation5 + $0xb8] sm:$0xff] %vm4088, %v7098
    %7163 = vst.msk [vmem:[#allocation5 + $0xc8] sm:$0xff] %vm4088, %v7099
    %7164 = vst.msk [vmem:[#allocation5 + $0xd8] sm:$0xff] %vm4088, %v7100
    %7165 = vst.msk [vmem:[#allocation5 + $0xe8] sm:$0xff] %vm4088, %v7101
    %7166 = vst.msk [vmem:[#allocation5 + $0xf8] sm:$0xff] %vm4088, %v7102
    %7167 = vst.msk [vmem:[#allocation5 + $0x108] sm:$0xff] %vm4088, %v7103
    %7168 = vst.msk [vmem:[#allocation5 + $0x118] sm:$0xff] %vm4088, %v7104
    %7169 = vst.msk [vmem:[#allocation5 + $0x128] sm:$0xff] %vm4088, %v7105
    %7170 = vst.msk [vmem:[#allocation5 + $0x138] sm:$0xff] %vm4088, %v7106
    %7171 = vst.msk [vmem:[#allocation5 + $0x148] sm:$0xff] %vm4088, %v7107
    %7172 = vst.msk [vmem:[#allocation5 + $0x158] sm:$0xff] %vm4088, %v7108
    %7173 = vst.msk [vmem:[#allocation5 + $0x168] sm:$0xff] %vm4088, %v7109
    %7174 = vst.msk [vmem:[#allocation5 + $0x178] sm:$0xff] %vm4088, %v7110
    %7175 = vst.msk [vmem:[#allocation5 + $0x188] sm:$0xff] %vm4088, %v7111
    %7176 = vst.msk [vmem:[#allocation5 + $0x198] sm:$0xff] %vm4088, %v7112
    %7177 = vst.msk [vmem:[#allocation5 + $0x1a8] sm:$0xff] %vm4088, %v7113
    %7178 = vst.msk [vmem:[#allocation5 + $0x1b8] sm:$0xff] %vm4088, %v7114
    %7179 = vst.msk [vmem:[#allocation5 + $0x1c8] sm:$0xff] %vm4088, %v7115
    %7180 = vst.msk [vmem:[#allocation5 + $0x1d8] sm:$0xff] %vm4088, %v7116
    %7181 = vst.msk [vmem:[#allocation5 + $0x1e8] sm:$0xff] %vm4088, %v7117
    %7182 = vst.msk [vmem:[#allocation5 + $0x1f8] sm:$0xff] %vm4088, %v7118
    %7183 = vst.msk [vmem:[#allocation5 + $0x208] sm:$0xff] %vm4088, %v7119
    %7184 = vst.msk [vmem:[#allocation5 + $0x218] sm:$0xff] %vm4088, %v7120
    %7185 = vst.msk [vmem:[#allocation5 + $0x228] sm:$0xff] %vm4088, %v7121
    %7186 = vst.msk [vmem:[#allocation5 + $0x238] sm:$0xff] %vm4088, %v7122
    %7187 = vst.msk [vmem:[#allocation5 + $0x248] sm:$0xff] %vm4088, %v7123
    %7188 = vst.msk [vmem:[#allocation5 + $0x258] sm:$0xff] %vm4088, %v7124
    %7189 = vst.msk [vmem:[#allocation5 + $0x268] sm:$0xff] %vm4088, %v7125
    %7190 = vst.msk [vmem:[#allocation5 + $0x278] sm:$0xff] %vm4088, %v7126
    %7191 = vst.msk [vmem:[#allocation5 + $0x288] sm:$0xff] %vm4088, %v7127
    %7192 = vst.msk [vmem:[#allocation5 + $0x298] sm:$0xff] %vm4088, %v7128
    %7193 = vst.msk [vmem:[#allocation5 + $0x2a8] sm:$0xff] %vm4088, %v7129
    %7194 = vst.msk [vmem:[#allocation5 + $0x2b8] sm:$0xff] %vm4088, %v7130
    %7195 = vst.msk [vmem:[#allocation5 + $0x2c8] sm:$0xff] %vm4088, %v7131
    %7196 = vst.msk [vmem:[#allocation5 + $0x2d8] sm:$0xff] %vm4088, %v7132
    %7197 = vst.msk [vmem:[#allocation5 + $0x2e8] sm:$0xff] %vm4088, %v7133
    %7198 = vst.msk [vmem:[#allocation5 + $0x2f8] sm:$0xff] %vm4088, %v7134
    %7199 = vst.msk [vmem:[#allocation5 + $0x308] sm:$0xff] %vm4088, %v7135
    %7200 = vst.msk [vmem:[#allocation5 + $0x318] sm:$0xff] %vm4088, %v7136
    %7201 = vst.msk [vmem:[#allocation5 + $0x328] sm:$0xff] %vm4088, %v7137
    %7202 = vst.msk [vmem:[#allocation5 + $0x338] sm:$0xff] %vm4088, %v7138
    %7203 = vst.msk [vmem:[#allocation5 + $0x348] sm:$0xff] %vm4088, %v7139
    %7204 = vst.msk [vmem:[#allocation5 + $0x358] sm:$0xff] %vm4088, %v7140
    %7205 = vst.msk [vmem:[#allocation5 + $0x368] sm:$0xff] %vm4088, %v7141
    %7206 = vst.msk [vmem:[#allocation5 + $0x378] sm:$0xff] %vm4088, %v7142
    %7207 = vst.msk [vmem:[#allocation5 + $0x388] sm:$0xff] %vm4088, %v7143
    %7208 = vst.msk [vmem:[#allocation5 + $0x398] sm:$0xff] %vm4088, %v7144
    %7209 = vst.msk [vmem:[#allocation5 + $0x3a8] sm:$0xff] %vm4088, %v7145
    %7210 = vst.msk [vmem:[#allocation5 + $0x3b8] sm:$0xff] %vm4088, %v7146
    %7211 = vst.msk [vmem:[#allocation5 + $0x3c8] sm:$0xff] %vm4088, %v7147
    %7212 = vst.msk [vmem:[#allocation5 + $0x3d8] sm:$0xff] %vm4088, %v7148
    %7213 = vst.msk [vmem:[#allocation5 + $0x3e8] sm:$0xff] %vm4088, %v7149
    %7214 = vst.msk [vmem:[#allocation5 + $0x3f8] sm:$0xff] %vm4088, %v7150
    %v7215 = vld [vmem:[#allocation5] sm:$0xff]
    %v7216 = vld [vmem:[#allocation5 + $0x8] sm:$0xff]
    %v7217 = vld [vmem:[#allocation5 + $0x10] sm:$0xff]
    %v7218 = vld [vmem:[#allocation5 + $0x18] sm:$0xff]
    %v7219 = vld [vmem:[#allocation5 + $0x20] sm:$0xff]
    %v7220 = vld [vmem:[#allocation5 + $0x28] sm:$0xff]
    %v7221 = vld [vmem:[#allocation5 + $0x30] sm:$0xff]
    %v7222 = vld [vmem:[#allocation5 + $0x38] sm:$0xff]
    %v7223 = vld [vmem:[#allocation5 + $0x40] sm:$0xff]
    %v7224 = vld [vmem:[#allocation5 + $0x48] sm:$0xff]
    %v7225 = vld [vmem:[#allocation5 + $0x50] sm:$0xff]
    %v7226 = vld [vmem:[#allocation5 + $0x58] sm:$0xff]
    %v7227 = vld [vmem:[#allocation5 + $0x60] sm:$0xff]
    %v7228 = vld [vmem:[#allocation5 + $0x68] sm:$0xff]
    %v7229 = vld [vmem:[#allocation5 + $0x70] sm:$0xff]
    %v7230 = vld [vmem:[#allocation5 + $0x78] sm:$0xff]
    %v7231 = vld [vmem:[#allocation5 + $0x80] sm:$0xff]
    %v7232 = vld [vmem:[#allocation5 + $0x88] sm:$0xff]
    %v7233 = vld [vmem:[#allocation5 + $0x90] sm:$0xff]
    %v7234 = vld [vmem:[#allocation5 + $0x98] sm:$0xff]
    %v7235 = vld [vmem:[#allocation5 + $0xa0] sm:$0xff]
    %v7236 = vld [vmem:[#allocation5 + $0xa8] sm:$0xff]
    %v7237 = vld [vmem:[#allocation5 + $0xb0] sm:$0xff]
    %v7238 = vld [vmem:[#allocation5 + $0xb8] sm:$0xff]
    %v7239 = vld [vmem:[#allocation5 + $0xc0] sm:$0xff]
    %v7240 = vld [vmem:[#allocation5 + $0xc8] sm:$0xff]
    %v7241 = vld [vmem:[#allocation5 + $0xd0] sm:$0xff]
    %v7242 = vld [vmem:[#allocation5 + $0xd8] sm:$0xff]
    %v7243 = vld [vmem:[#allocation5 + $0xe0] sm:$0xff]
    %v7244 = vld [vmem:[#allocation5 + $0xe8] sm:$0xff]
    %v7245 = vld [vmem:[#allocation5 + $0xf0] sm:$0xff]
    %v7246 = vld [vmem:[#allocation5 + $0xf8] sm:$0xff]
    %v7247 = vld [vmem:[#allocation5 + $0x100] sm:$0xff]
    %v7248 = vld [vmem:[#allocation5 + $0x108] sm:$0xff]
    %v7249 = vld [vmem:[#allocation5 + $0x110] sm:$0xff]
    %v7250 = vld [vmem:[#allocation5 + $0x118] sm:$0xff]
    %v7251 = vld [vmem:[#allocation5 + $0x120] sm:$0xff]
    %v7252 = vld [vmem:[#allocation5 + $0x128] sm:$0xff]
    %v7253 = vld [vmem:[#allocation5 + $0x130] sm:$0xff]
    %v7254 = vld [vmem:[#allocation5 + $0x138] sm:$0xff]
    %v7255 = vld [vmem:[#allocation5 + $0x140] sm:$0xff]
    %v7256 = vld [vmem:[#allocation5 + $0x148] sm:$0xff]
    %v7257 = vld [vmem:[#allocation5 + $0x150] sm:$0xff]
    %v7258 = vld [vmem:[#allocation5 + $0x158] sm:$0xff]
    %v7259 = vld [vmem:[#allocation5 + $0x160] sm:$0xff]
    %v7260 = vld [vmem:[#allocation5 + $0x168] sm:$0xff]
    %v7261 = vld [vmem:[#allocation5 + $0x170] sm:$0xff]
    %v7262 = vld [vmem:[#allocation5 + $0x178] sm:$0xff]
    %v7263 = vld [vmem:[#allocation5 + $0x180] sm:$0xff]
    %v7264 = vld [vmem:[#allocation5 + $0x188] sm:$0xff]
    %v7265 = vld [vmem:[#allocation5 + $0x190] sm:$0xff]
    %v7266 = vld [vmem:[#allocation5 + $0x198] sm:$0xff]
    %v7267 = vld [vmem:[#allocation5 + $0x1a0] sm:$0xff]
    %v7268 = vld [vmem:[#allocation5 + $0x1a8] sm:$0xff]
    %v7269 = vld [vmem:[#allocation5 + $0x1b0] sm:$0xff]
    %v7270 = vld [vmem:[#allocation5 + $0x1b8] sm:$0xff]
    %v7271 = vld [vmem:[#allocation5 + $0x1c0] sm:$0xff]
    %v7272 = vld [vmem:[#allocation5 + $0x1c8] sm:$0xff]
    %v7273 = vld [vmem:[#allocation5 + $0x1d0] sm:$0xff]
    %v7274 = vld [vmem:[#allocation5 + $0x1d8] sm:$0xff]
    %v7275 = vld [vmem:[#allocation5 + $0x1e0] sm:$0xff]
    %v7276 = vld [vmem:[#allocation5 + $0x1e8] sm:$0xff]
    %v7277 = vld [vmem:[#allocation5 + $0x1f0] sm:$0xff]
    %v7278 = vld [vmem:[#allocation5 + $0x1f8] sm:$0xff]
    %v7279 = vld [vmem:[#allocation5 + $0x200] sm:$0xff]
    %v7280 = vld [vmem:[#allocation5 + $0x208] sm:$0xff]
    %v7281 = vld [vmem:[#allocation5 + $0x210] sm:$0xff]
    %v7282 = vld [vmem:[#allocation5 + $0x218] sm:$0xff]
    %v7283 = vld [vmem:[#allocation5 + $0x220] sm:$0xff]
    %v7284 = vld [vmem:[#allocation5 + $0x228] sm:$0xff]
    %v7285 = vld [vmem:[#allocation5 + $0x230] sm:$0xff]
    %v7286 = vld [vmem:[#allocation5 + $0x238] sm:$0xff]
    %v7287 = vld [vmem:[#allocation5 + $0x240] sm:$0xff]
    %v7288 = vld [vmem:[#allocation5 + $0x248] sm:$0xff]
    %v7289 = vld [vmem:[#allocation5 + $0x250] sm:$0xff]
    %v7290 = vld [vmem:[#allocation5 + $0x258] sm:$0xff]
    %v7291 = vld [vmem:[#allocation5 + $0x260] sm:$0xff]
    %v7292 = vld [vmem:[#allocation5 + $0x268] sm:$0xff]
    %v7293 = vld [vmem:[#allocation5 + $0x270] sm:$0xff]
    %v7294 = vld [vmem:[#allocation5 + $0x278] sm:$0xff]
    %v7295 = vld [vmem:[#allocation5 + $0x280] sm:$0xff]
    %v7296 = vld [vmem:[#allocation5 + $0x288] sm:$0xff]
    %v7297 = vld [vmem:[#allocation5 + $0x290] sm:$0xff]
    %v7298 = vld [vmem:[#allocation5 + $0x298] sm:$0xff]
    %v7299 = vld [vmem:[#allocation5 + $0x2a0] sm:$0xff]
    %v7300 = vld [vmem:[#allocation5 + $0x2a8] sm:$0xff]
    %v7301 = vld [vmem:[#allocation5 + $0x2b0] sm:$0xff]
    %v7302 = vld [vmem:[#allocation5 + $0x2b8] sm:$0xff]
    %v7303 = vld [vmem:[#allocation5 + $0x2c0] sm:$0xff]
    %v7304 = vld [vmem:[#allocation5 + $0x2c8] sm:$0xff]
    %v7305 = vld [vmem:[#allocation5 + $0x2d0] sm:$0xff]
    %v7306 = vld [vmem:[#allocation5 + $0x2d8] sm:$0xff]
    %v7307 = vld [vmem:[#allocation5 + $0x2e0] sm:$0xff]
    %v7308 = vld [vmem:[#allocation5 + $0x2e8] sm:$0xff]
    %v7309 = vld [vmem:[#allocation5 + $0x2f0] sm:$0xff]
    %v7310 = vld [vmem:[#allocation5 + $0x2f8] sm:$0xff]
    %v7311 = vld [vmem:[#allocation5 + $0x300] sm:$0xff]
    %v7312 = vld [vmem:[#allocation5 + $0x308] sm:$0xff]
    %v7313 = vld [vmem:[#allocation5 + $0x310] sm:$0xff]
    %v7314 = vld [vmem:[#allocation5 + $0x318] sm:$0xff]
    %v7315 = vld [vmem:[#allocation5 + $0x320] sm:$0xff]
    %v7316 = vld [vmem:[#allocation5 + $0x328] sm:$0xff]
    %v7317 = vld [vmem:[#allocation5 + $0x330] sm:$0xff]
    %v7318 = vld [vmem:[#allocation5 + $0x338] sm:$0xff]
    %v7319 = vld [vmem:[#allocation5 + $0x340] sm:$0xff]
    %v7320 = vld [vmem:[#allocation5 + $0x348] sm:$0xff]
    %v7321 = vld [vmem:[#allocation5 + $0x350] sm:$0xff]
    %v7322 = vld [vmem:[#allocation5 + $0x358] sm:$0xff]
    %v7323 = vld [vmem:[#allocation5 + $0x360] sm:$0xff]
    %v7324 = vld [vmem:[#allocation5 + $0x368] sm:$0xff]
    %v7325 = vld [vmem:[#allocation5 + $0x370] sm:$0xff]
    %v7326 = vld [vmem:[#allocation5 + $0x378] sm:$0xff]
    %v7327 = vld [vmem:[#allocation5 + $0x380] sm:$0xff]
    %v7328 = vld [vmem:[#allocation5 + $0x388] sm:$0xff]
    %v7329 = vld [vmem:[#allocation5 + $0x390] sm:$0xff]
    %v7330 = vld [vmem:[#allocation5 + $0x398] sm:$0xff]
    %v7331 = vld [vmem:[#allocation5 + $0x3a0] sm:$0xff]
    %v7332 = vld [vmem:[#allocation5 + $0x3a8] sm:$0xff]
    %v7333 = vld [vmem:[#allocation5 + $0x3b0] sm:$0xff]
    %v7334 = vld [vmem:[#allocation5 + $0x3b8] sm:$0xff]
    %v7335 = vld [vmem:[#allocation5 + $0x3c0] sm:$0xff]
    %v7336 = vld [vmem:[#allocation5 + $0x3c8] sm:$0xff]
    %v7337 = vld [vmem:[#allocation5 + $0x3d0] sm:$0xff]
    %v7338 = vld [vmem:[#allocation5 + $0x3d8] sm:$0xff]
    %v7339 = vld [vmem:[#allocation5 + $0x3e0] sm:$0xff]
    %v7340 = vld [vmem:[#allocation5 + $0x3e8] sm:$0xff]
    %v7341 = vld [vmem:[#allocation5 + $0x3f0] sm:$0xff]
    %v7342 = vld [vmem:[#allocation5 + $0x3f8] sm:$0xff]
    %v7343 = vpack.c.bf16 %v7217, %v7215
    %v7344 = vpack.c.bf16 %v7218, %v7216
    %v7345 = vpack.c.bf16 %v7221, %v7219
    %v7346 = vpack.c.bf16 %v7222, %v7220
    %v7347 = vpack.c.bf16 %v7225, %v7223
    %v7348 = vpack.c.bf16 %v7226, %v7224
    %v7349 = vpack.c.bf16 %v7229, %v7227
    %v7350 = vpack.c.bf16 %v7230, %v7228
    %v7351 = vpack.c.bf16 %v7233, %v7231
    %v7352 = vpack.c.bf16 %v7234, %v7232
    %v7353 = vpack.c.bf16 %v7237, %v7235
    %v7354 = vpack.c.bf16 %v7238, %v7236
    %v7355 = vpack.c.bf16 %v7241, %v7239
    %v7356 = vpack.c.bf16 %v7242, %v7240
    %v7357 = vpack.c.bf16 %v7245, %v7243
    %v7358 = vpack.c.bf16 %v7246, %v7244
    %v7359 = vpack.c.bf16 %v7249, %v7247
    %v7360 = vpack.c.bf16 %v7250, %v7248
    %v7361 = vpack.c.bf16 %v7253, %v7251
    %v7362 = vpack.c.bf16 %v7254, %v7252
    %v7363 = vpack.c.bf16 %v7257, %v7255
    %v7364 = vpack.c.bf16 %v7258, %v7256
    %v7365 = vpack.c.bf16 %v7261, %v7259
    %v7366 = vpack.c.bf16 %v7262, %v7260
    %v7367 = vpack.c.bf16 %v7265, %v7263
    %v7368 = vpack.c.bf16 %v7266, %v7264
    %v7369 = vpack.c.bf16 %v7269, %v7267
    %v7370 = vpack.c.bf16 %v7270, %v7268
    %v7371 = vpack.c.bf16 %v7273, %v7271
    %v7372 = vpack.c.bf16 %v7274, %v7272
    %v7373 = vpack.c.bf16 %v7277, %v7275
    %v7374 = vpack.c.bf16 %v7278, %v7276
    %v7375 = vpack.c.bf16 %v7281, %v7279
    %v7376 = vpack.c.bf16 %v7282, %v7280
    %v7377 = vpack.c.bf16 %v7285, %v7283
    %v7378 = vpack.c.bf16 %v7286, %v7284
    %v7379 = vpack.c.bf16 %v7289, %v7287
    %v7380 = vpack.c.bf16 %v7290, %v7288
    %v7381 = vpack.c.bf16 %v7293, %v7291
    %v7382 = vpack.c.bf16 %v7294, %v7292
    %v7383 = vpack.c.bf16 %v7297, %v7295
    %v7384 = vpack.c.bf16 %v7298, %v7296
    %v7385 = vpack.c.bf16 %v7301, %v7299
    %v7386 = vpack.c.bf16 %v7302, %v7300
    %v7387 = vpack.c.bf16 %v7305, %v7303
    %v7388 = vpack.c.bf16 %v7306, %v7304
    %v7389 = vpack.c.bf16 %v7309, %v7307
    %v7390 = vpack.c.bf16 %v7310, %v7308
    %v7391 = vpack.c.bf16 %v7313, %v7311
    %v7392 = vpack.c.bf16 %v7314, %v7312
    %v7393 = vpack.c.bf16 %v7317, %v7315
    %v7394 = vpack.c.bf16 %v7318, %v7316
    %v7395 = vpack.c.bf16 %v7321, %v7319
    %v7396 = vpack.c.bf16 %v7322, %v7320
    %v7397 = vpack.c.bf16 %v7325, %v7323
    %v7398 = vpack.c.bf16 %v7326, %v7324
    %v7399 = vpack.c.bf16 %v7329, %v7327
    %v7400 = vpack.c.bf16 %v7330, %v7328
    %v7401 = vpack.c.bf16 %v7333, %v7331
    %v7402 = vpack.c.bf16 %v7334, %v7332
    %v7403 = vpack.c.bf16 %v7337, %v7335
    %v7404 = vpack.c.bf16 %v7338, %v7336
    %v7405 = vpack.c.bf16 %v7341, %v7339
    %v7406 = vpack.c.bf16 %v7342, %v7340
    %v7407 = vld [vmem:[%s4] sm:$0xf]
    %v7408 = vld [vmem:[%s4 + $0x4] sm:$0xf]
    %v7409 = vld [vmem:[%s4 + $0x8] sm:$0xf]
    %v7410 = vld [vmem:[%s4 + $0xc] sm:$0xf]
    %v7411 = vld [vmem:[%s4 + $0x10] sm:$0xf]
    %v7412 = vld [vmem:[%s4 + $0x14] sm:$0xf]
    %v7413 = vld [vmem:[%s4 + $0x18] sm:$0xf]
    %v7414 = vld [vmem:[%s4 + $0x1c] sm:$0xf]
    %v7415 = vld [vmem:[%s4 + $0x20] sm:$0xf]
    %v7416 = vld [vmem:[%s4 + $0x24] sm:$0xf]
    %v7417 = vld [vmem:[%s4 + $0x28] sm:$0xf]
    %v7418 = vld [vmem:[%s4 + $0x2c] sm:$0xf]
    %v7419 = vld [vmem:[%s4 + $0x30] sm:$0xf]
    %v7420 = vld [vmem:[%s4 + $0x34] sm:$0xf]
    %v7421 = vld [vmem:[%s4 + $0x38] sm:$0xf]
    %v7422 = vld [vmem:[%s4 + $0x3c] sm:$0xf]
    %v7423 = vld [vmem:[%s4 + $0x40] sm:$0xf]
    %v7424 = vld [vmem:[%s4 + $0x44] sm:$0xf]
    %v7425 = vld [vmem:[%s5] sm:$0x1]
    %v7427 = vlaneseq
    %v7428 = vshrl.u32 %v7427, 7
    %v7429 = vsub.s32 0, %v7428
    %v7430 = vrot.slane %v7425, %v7429
    %v7450 = vunpack.c.l.b16 %v7407
    %v7451 = vunpack.c.l.b16 %v7408
    %v7452 = vunpack.c.l.b16 %v7409
    %v7453 = vunpack.c.l.b16 %v7410
    %v7454 = vunpack.c.l.b16 %v7411
    %v7455 = vunpack.c.l.b16 %v7412
    %v7456 = vunpack.c.l.b16 %v7413
    %v7457 = vunpack.c.l.b16 %v7414
    %v7458 = vunpack.c.l.b16 %v7415
    %v7459 = vunpack.c.l.b16 %v7416
    %v7460 = vunpack.c.l.b16 %v7417
    %v7461 = vunpack.c.l.b16 %v7418
    %v7462 = vunpack.c.l.b16 %v7419
    %v7463 = vunpack.c.l.b16 %v7420
    %v7464 = vunpack.c.l.b16 %v7421
    %v7465 = vunpack.c.l.b16 %v7422
    %v7466 = vunpack.c.l.b16 %v7423
    %v7467 = vunpack.c.l.b16 %v7424
    %v7468 = vpack.c.b16 %v7451, %v7450
    %v7469 = vpack.c.b16 %v7453, %v7452
    %v7470 = vpack.c.b16 %v7455, %v7454
    %v7471 = vpack.c.b16 %v7457, %v7456
    %v7472 = vpack.c.b16 %v7459, %v7458
    %v7473 = vpack.c.b16 %v7461, %v7460
    %v7474 = vpack.c.b16 %v7463, %v7462
    %v7475 = vpack.c.b16 %v7465, %v7464
    %v7476 = vpack.c.b16 %v7467, %v7466
    %v7487 = vsel %vm4088, %v7344, 0
    %v7490 = vsel %vm4088, %v7346, 0
    %v7493 = vsel %vm4088, %v7348, 0
    %v7496 = vsel %vm4088, %v7350, 0
    %v7499 = vsel %vm4088, %v7352, 0
    %v7502 = vsel %vm4088, %v7354, 0
    %v7505 = vsel %vm4088, %v7356, 0
    %v7508 = vsel %vm4088, %v7358, 0
    %v7511 = vsel %vm4088, %v7360, 0
    %v7514 = vsel %vm4088, %v7362, 0
    %v7517 = vsel %vm4088, %v7364, 0
    %v7520 = vsel %vm4088, %v7366, 0
    %v7523 = vsel %vm4088, %v7368, 0
    %v7526 = vsel %vm4088, %v7370, 0
    %v7529 = vsel %vm4088, %v7372, 0
    %v7532 = vsel %vm4088, %v7374, 0
    %v7535 = vsel %vm4088, %v7376, 0
    %v7538 = vsel %vm4088, %v7378, 0
    %v7541 = vsel %vm4088, %v7380, 0
    %v7544 = vsel %vm4088, %v7382, 0
    %v7547 = vsel %vm4088, %v7384, 0
    %v7550 = vsel %vm4088, %v7386, 0
    %v7553 = vsel %vm4088, %v7388, 0
    %v7556 = vsel %vm4088, %v7390, 0
    %v7559 = vsel %vm4088, %v7392, 0
    %v7562 = vsel %vm4088, %v7394, 0
    %v7565 = vsel %vm4088, %v7396, 0
    %v7568 = vsel %vm4088, %v7398, 0
    %v7571 = vsel %vm4088, %v7400, 0
    %v7574 = vsel %vm4088, %v7402, 0
    %v7577 = vsel %vm4088, %v7404, 0
    %v7580 = vsel %vm4088, %v7406, 0
    %7582 = vmatprep.subr.bf16.mxu0 0
    %7583 = vmatpush1.bf16.msra.mxu0 %v7475
    %7584 = vmatprep.subr.bf16.mxu0 0
    %7585 = vmatpush1.bf16.msra.mxu0 %v7474
    %7586 = vmatprep.subr.bf16.mxu0 0
    %7587 = vmatpush1.bf16.msra.mxu0 %v7473
    %7588 = vmatprep.subr.bf16.mxu0 0
    %7589 = vmatpush1.bf16.msra.mxu0 %v7472
    %7590 = vmatprep.subr.bf16.mxu0 0
    %7591 = vmatpush1.bf16.msra.mxu0 %v7471
    %7592 = vmatprep.subr.bf16.mxu0 0
    %7593 = vmatpush1.bf16.msra.mxu0 %v7470
    %7594 = vmatprep.subr.bf16.mxu0 0
    %7595 = vmatpush1.bf16.msra.mxu0 %v7469
    %7596 = vmatprep.subr.bf16.mxu0 0
    %7597 = vmatpush1.bf16.msra.mxu0 %v7468
    %7598 = vmatprep.subr.bf16.mxu0 0
    %7599 = vmatpush2.bf16.msra.mxu0 0
    %7600 = vmatprep.subr.bf16.mxu0 0
    %7601 = vmatpush2.bf16.msra.mxu0 0
    %7602 = vmatprep.subr.bf16.mxu0 0
    %7603 = vmatpush2.bf16.msra.mxu0 0
    %7604 = vmatprep.subr.bf16.mxu0 0
    %7605 = vmatpush2.bf16.msra.mxu0 0
    %7606 = vmatprep.subr.bf16.mxu0 0
    %7607 = vmatpush2.bf16.msra.mxu0 0
    %7608 = vmatprep.subr.bf16.mxu0 0
    %7609 = vmatpush2.bf16.msra.mxu0 0
    %7610 = vmatprep.subr.bf16.mxu0 0
    %7611 = vmatpush2.bf16.msra.mxu0 0
    %7612 = vmatprep.subr.bf16.mxu0 0
    %7613 = vmatpush2.bf16.msra.mxu0 %v7476
    %7614 = vmatprep.mubr.bf16.mxu0 %v7487
    %7615 = vmatmul.mubr.bf16.gmra.mxu0 %v7343
    %v7616 = vpop.f32.mrf.mxu0
    %v7617 = vadd.f32 %v7430, %v7616
    %v7618 = vpop.f32.mrf.mxu0
    %v7619 = vpop.f32.mrf.mxu0
    %v7620 = vadd.f32 %v7430, %v7619
    %v7621 = vpop.f32.mrf.mxu0
    %7622 = vmatprep.mubr.bf16.mxu0 %v7490
    %7623 = vmatmul.mubr.bf16.gmra.mxu0 %v7345
    %v7624 = vpop.f32.mrf.mxu0
    %v7625 = vadd.f32 %v7430, %v7624
    %v7626 = vpop.f32.mrf.mxu0
    %v7627 = vpop.f32.mrf.mxu0
    %v7628 = vadd.f32 %v7430, %v7627
    %v7629 = vpop.f32.mrf.mxu0
    %7630 = vmatprep.mubr.bf16.mxu0 %v7493
    %7631 = vmatmul.mubr.bf16.gmra.mxu0 %v7347
    %v7632 = vpop.f32.mrf.mxu0
    %v7633 = vadd.f32 %v7430, %v7632
    %v7634 = vpop.f32.mrf.mxu0
    %v7635 = vpop.f32.mrf.mxu0
    %v7636 = vadd.f32 %v7430, %v7635
    %v7637 = vpop.f32.mrf.mxu0
    %7638 = vmatprep.mubr.bf16.mxu0 %v7496
    %7639 = vmatmul.mubr.bf16.gmra.mxu0 %v7349
    %v7640 = vpop.f32.mrf.mxu0
    %v7641 = vadd.f32 %v7430, %v7640
    %v7642 = vpop.f32.mrf.mxu0
    %v7643 = vpop.f32.mrf.mxu0
    %v7644 = vadd.f32 %v7430, %v7643
    %v7645 = vpop.f32.mrf.mxu0
    %7646 = vmatprep.mubr.bf16.mxu0 %v7499
    %7647 = vmatmul.mubr.bf16.gmra.mxu0 %v7351
    %v7648 = vpop.f32.mrf.mxu0
    %v7649 = vadd.f32 %v7430, %v7648
    %v7650 = vpop.f32.mrf.mxu0
    %v7651 = vpop.f32.mrf.mxu0
    %v7652 = vadd.f32 %v7430, %v7651
    %v7653 = vpop.f32.mrf.mxu0
    %7654 = vmatprep.mubr.bf16.mxu0 %v7502
    %7655 = vmatmul.mubr.bf16.gmra.mxu0 %v7353
    %v7656 = vpop.f32.mrf.mxu0
    %v7657 = vadd.f32 %v7430, %v7656
    %v7658 = vpop.f32.mrf.mxu0
    %v7659 = vpop.f32.mrf.mxu0
    %v7660 = vadd.f32 %v7430, %v7659
    %v7661 = vpop.f32.mrf.mxu0
    %7662 = vmatprep.mubr.bf16.mxu0 %v7505
    %7663 = vmatmul.mubr.bf16.gmra.mxu0 %v7355
    %v7664 = vpop.f32.mrf.mxu0
    %v7665 = vadd.f32 %v7430, %v7664
    %v7666 = vpop.f32.mrf.mxu0
    %v7667 = vpop.f32.mrf.mxu0
    %v7668 = vadd.f32 %v7430, %v7667
    %v7669 = vpop.f32.mrf.mxu0
    %7670 = vmatprep.mubr.bf16.mxu0 %v7508
    %7671 = vmatmul.mubr.bf16.gmra.mxu0 %v7357
    %v7672 = vpop.f32.mrf.mxu0
    %v7673 = vadd.f32 %v7430, %v7672
    %v7674 = vpop.f32.mrf.mxu0
    %v7675 = vpop.f32.mrf.mxu0
    %v7676 = vadd.f32 %v7430, %v7675
    %v7677 = vpop.f32.mrf.mxu0
    %7678 = vmatprep.mubr.bf16.mxu0 %v7511
    %7679 = vmatmul.mubr.bf16.gmra.mxu0 %v7359
    %v7680 = vpop.f32.mrf.mxu0
    %v7681 = vadd.f32 %v7430, %v7680
    %v7682 = vpop.f32.mrf.mxu0
    %v7683 = vpop.f32.mrf.mxu0
    %v7684 = vadd.f32 %v7430, %v7683
    %v7685 = vpop.f32.mrf.mxu0
    %7686 = vmatprep.mubr.bf16.mxu0 %v7514
    %7687 = vmatmul.mubr.bf16.gmra.mxu0 %v7361
    %v7688 = vpop.f32.mrf.mxu0
    %v7689 = vadd.f32 %v7430, %v7688
    %v7690 = vpop.f32.mrf.mxu0
    %v7691 = vpop.f32.mrf.mxu0
    %v7692 = vadd.f32 %v7430, %v7691
    %v7693 = vpop.f32.mrf.mxu0
    %7694 = vmatprep.mubr.bf16.mxu0 %v7517
    %7695 = vmatmul.mubr.bf16.gmra.mxu0 %v7363
    %v7696 = vpop.f32.mrf.mxu0
    %v7697 = vadd.f32 %v7430, %v7696
    %v7698 = vpop.f32.mrf.mxu0
    %v7699 = vpop.f32.mrf.mxu0
    %v7700 = vadd.f32 %v7430, %v7699
    %v7701 = vpop.f32.mrf.mxu0
    %7702 = vmatprep.mubr.bf16.mxu0 %v7520
    %7703 = vmatmul.mubr.bf16.gmra.mxu0 %v7365
    %v7704 = vpop.f32.mrf.mxu0
    %v7705 = vadd.f32 %v7430, %v7704
    %v7706 = vpop.f32.mrf.mxu0
    %v7707 = vpop.f32.mrf.mxu0
    %v7708 = vadd.f32 %v7430, %v7707
    %v7709 = vpop.f32.mrf.mxu0
    %7710 = vmatprep.mubr.bf16.mxu0 %v7523
    %7711 = vmatmul.mubr.bf16.gmra.mxu0 %v7367
    %v7712 = vpop.f32.mrf.mxu0
    %v7713 = vadd.f32 %v7430, %v7712
    %v7714 = vpop.f32.mrf.mxu0
    %v7715 = vpop.f32.mrf.mxu0
    %v7716 = vadd.f32 %v7430, %v7715
    %v7717 = vpop.f32.mrf.mxu0
    %7718 = vmatprep.mubr.bf16.mxu0 %v7526
    %7719 = vmatmul.mubr.bf16.gmra.mxu0 %v7369
    %v7720 = vpop.f32.mrf.mxu0
    %v7721 = vadd.f32 %v7430, %v7720
    %v7722 = vpop.f32.mrf.mxu0
    %v7723 = vpop.f32.mrf.mxu0
    %v7724 = vadd.f32 %v7430, %v7723
    %v7725 = vpop.f32.mrf.mxu0
    %7726 = vmatprep.mubr.bf16.mxu0 %v7529
    %7727 = vmatmul.mubr.bf16.gmra.mxu0 %v7371
    %v7728 = vpop.f32.mrf.mxu0
    %v7729 = vadd.f32 %v7430, %v7728
    %v7730 = vpop.f32.mrf.mxu0
    %v7731 = vpop.f32.mrf.mxu0
    %v7732 = vadd.f32 %v7430, %v7731
    %v7733 = vpop.f32.mrf.mxu0
    %7734 = vmatprep.mubr.bf16.mxu0 %v7532
    %7735 = vmatmul.mubr.bf16.gmra.mxu0 %v7373
    %v7736 = vpop.f32.mrf.mxu0
    %v7737 = vadd.f32 %v7430, %v7736
    %v7738 = vpop.f32.mrf.mxu0
    %v7739 = vpop.f32.mrf.mxu0
    %v7740 = vadd.f32 %v7430, %v7739
    %v7741 = vpop.f32.mrf.mxu0
    %7742 = vmatprep.mubr.bf16.mxu0 %v7535
    %7743 = vmatmul.mubr.bf16.gmra.mxu0 %v7375
    %v7744 = vpop.f32.mrf.mxu0
    %v7745 = vadd.f32 %v7430, %v7744
    %v7746 = vpop.f32.mrf.mxu0
    %v7747 = vpop.f32.mrf.mxu0
    %v7748 = vadd.f32 %v7430, %v7747
    %v7749 = vpop.f32.mrf.mxu0
    %7750 = vmatprep.mubr.bf16.mxu0 %v7538
    %7751 = vmatmul.mubr.bf16.gmra.mxu0 %v7377
    %v7752 = vpop.f32.mrf.mxu0
    %v7753 = vadd.f32 %v7430, %v7752
    %v7754 = vpop.f32.mrf.mxu0
    %v7755 = vpop.f32.mrf.mxu0
    %v7756 = vadd.f32 %v7430, %v7755
    %v7757 = vpop.f32.mrf.mxu0
    %7758 = vmatprep.mubr.bf16.mxu0 %v7541
    %7759 = vmatmul.mubr.bf16.gmra.mxu0 %v7379
    %v7760 = vpop.f32.mrf.mxu0
    %v7761 = vadd.f32 %v7430, %v7760
    %v7762 = vpop.f32.mrf.mxu0
    %v7763 = vpop.f32.mrf.mxu0
    %v7764 = vadd.f32 %v7430, %v7763
    %v7765 = vpop.f32.mrf.mxu0
    %7766 = vmatprep.mubr.bf16.mxu0 %v7544
    %7767 = vmatmul.mubr.bf16.gmra.mxu0 %v7381
    %v7768 = vpop.f32.mrf.mxu0
    %v7769 = vadd.f32 %v7430, %v7768
    %v7770 = vpop.f32.mrf.mxu0
    %v7771 = vpop.f32.mrf.mxu0
    %v7772 = vadd.f32 %v7430, %v7771
    %v7773 = vpop.f32.mrf.mxu0
    %7774 = vmatprep.mubr.bf16.mxu0 %v7547
    %7775 = vmatmul.mubr.bf16.gmra.mxu0 %v7383
    %v7776 = vpop.f32.mrf.mxu0
    %v7777 = vadd.f32 %v7430, %v7776
    %v7778 = vpop.f32.mrf.mxu0
    %v7779 = vpop.f32.mrf.mxu0
    %v7780 = vadd.f32 %v7430, %v7779
    %v7781 = vpop.f32.mrf.mxu0
    %7782 = vmatprep.mubr.bf16.mxu0 %v7550
    %7783 = vmatmul.mubr.bf16.gmra.mxu0 %v7385
    %v7784 = vpop.f32.mrf.mxu0
    %v7785 = vadd.f32 %v7430, %v7784
    %v7786 = vpop.f32.mrf.mxu0
    %v7787 = vpop.f32.mrf.mxu0
    %v7788 = vadd.f32 %v7430, %v7787
    %v7789 = vpop.f32.mrf.mxu0
    %7790 = vmatprep.mubr.bf16.mxu0 %v7553
    %7791 = vmatmul.mubr.bf16.gmra.mxu0 %v7387
    %v7792 = vpop.f32.mrf.mxu0
    %v7793 = vadd.f32 %v7430, %v7792
    %v7794 = vpop.f32.mrf.mxu0
    %v7795 = vpop.f32.mrf.mxu0
    %v7796 = vadd.f32 %v7430, %v7795
    %v7797 = vpop.f32.mrf.mxu0
    %7798 = vmatprep.mubr.bf16.mxu0 %v7556
    %7799 = vmatmul.mubr.bf16.gmra.mxu0 %v7389
    %v7800 = vpop.f32.mrf.mxu0
    %v7801 = vadd.f32 %v7430, %v7800
    %v7802 = vpop.f32.mrf.mxu0
    %v7803 = vpop.f32.mrf.mxu0
    %v7804 = vadd.f32 %v7430, %v7803
    %v7805 = vpop.f32.mrf.mxu0
    %7806 = vmatprep.mubr.bf16.mxu0 %v7559
    %7807 = vmatmul.mubr.bf16.gmra.mxu0 %v7391
    %v7808 = vpop.f32.mrf.mxu0
    %v7809 = vadd.f32 %v7430, %v7808
    %v7810 = vpop.f32.mrf.mxu0
    %v7811 = vpop.f32.mrf.mxu0
    %v7812 = vadd.f32 %v7430, %v7811
    %v7813 = vpop.f32.mrf.mxu0
    %7814 = vmatprep.mubr.bf16.mxu0 %v7562
    %7815 = vmatmul.mubr.bf16.gmra.mxu0 %v7393
    %v7816 = vpop.f32.mrf.mxu0
    %v7817 = vadd.f32 %v7430, %v7816
    %v7818 = vpop.f32.mrf.mxu0
    %v7819 = vpop.f32.mrf.mxu0
    %v7820 = vadd.f32 %v7430, %v7819
    %v7821 = vpop.f32.mrf.mxu0
    %7822 = vmatprep.mubr.bf16.mxu0 %v7565
    %7823 = vmatmul.mubr.bf16.gmra.mxu0 %v7395
    %v7824 = vpop.f32.mrf.mxu0
    %v7825 = vadd.f32 %v7430, %v7824
    %v7826 = vpop.f32.mrf.mxu0
    %v7827 = vpop.f32.mrf.mxu0
    %v7828 = vadd.f32 %v7430, %v7827
    %v7829 = vpop.f32.mrf.mxu0
    %7830 = vmatprep.mubr.bf16.mxu0 %v7568
    %7831 = vmatmul.mubr.bf16.gmra.mxu0 %v7397
    %v7832 = vpop.f32.mrf.mxu0
    %v7833 = vadd.f32 %v7430, %v7832
    %v7834 = vpop.f32.mrf.mxu0
    %v7835 = vpop.f32.mrf.mxu0
    %v7836 = vadd.f32 %v7430, %v7835
    %v7837 = vpop.f32.mrf.mxu0
    %7838 = vmatprep.mubr.bf16.mxu0 %v7571
    %7839 = vmatmul.mubr.bf16.gmra.mxu0 %v7399
    %v7840 = vpop.f32.mrf.mxu0
    %v7841 = vadd.f32 %v7430, %v7840
    %v7842 = vpop.f32.mrf.mxu0
    %v7843 = vpop.f32.mrf.mxu0
    %v7844 = vadd.f32 %v7430, %v7843
    %v7845 = vpop.f32.mrf.mxu0
    %7846 = vmatprep.mubr.bf16.mxu0 %v7574
    %7847 = vmatmul.mubr.bf16.gmra.mxu0 %v7401
    %v7848 = vpop.f32.mrf.mxu0
    %v7849 = vadd.f32 %v7430, %v7848
    %v7850 = vpop.f32.mrf.mxu0
    %v7851 = vpop.f32.mrf.mxu0
    %v7852 = vadd.f32 %v7430, %v7851
    %v7853 = vpop.f32.mrf.mxu0
    %7854 = vmatprep.mubr.bf16.mxu0 %v7577
    %7855 = vmatmul.mubr.bf16.gmra.mxu0 %v7403
    %v7856 = vpop.f32.mrf.mxu0
    %v7857 = vadd.f32 %v7430, %v7856
    %v7858 = vpop.f32.mrf.mxu0
    %v7859 = vpop.f32.mrf.mxu0
    %v7860 = vadd.f32 %v7430, %v7859
    %v7861 = vpop.f32.mrf.mxu0
    %7862 = vmatprep.mubr.bf16.mxu0 %v7580
    %7863 = vmatmul.mubr.bf16.gmra.mxu0 %v7405
    %v7864 = vpop.f32.mrf.mxu0
    %v7865 = vadd.f32 %v7430, %v7864
    %v7866 = vpop.f32.mrf.mxu0
    %v7867 = vpop.f32.mrf.mxu0
    %v7868 = vadd.f32 %v7430, %v7867
    %v7869 = vpop.f32.mrf.mxu0
    %7870 = vdwg.mxu0
    %v7871 = vmax.f32 %v7617, 0.0
    %v7872 = vmax.f32 %v7620, 0.0
    %v7873 = vmax.f32 %v7625, 0.0
    %v7874 = vmax.f32 %v7628, 0.0
    %v7875 = vmax.f32 %v7633, 0.0
    %v7876 = vmax.f32 %v7636, 0.0
    %v7877 = vmax.f32 %v7641, 0.0
    %v7878 = vmax.f32 %v7644, 0.0
    %v7879 = vmax.f32 %v7649, 0.0
    %v7880 = vmax.f32 %v7652, 0.0
    %v7881 = vmax.f32 %v7657, 0.0
    %v7882 = vmax.f32 %v7660, 0.0
    %v7883 = vmax.f32 %v7665, 0.0
    %v7884 = vmax.f32 %v7668, 0.0
    %v7885 = vmax.f32 %v7673, 0.0
    %v7886 = vmax.f32 %v7676, 0.0
    %v7887 = vmax.f32 %v7681, 0.0
    %v7888 = vmax.f32 %v7684, 0.0
    %v7889 = vmax.f32 %v7689, 0.0
    %v7890 = vmax.f32 %v7692, 0.0
    %v7891 = vmax.f32 %v7697, 0.0
    %v7892 = vmax.f32 %v7700, 0.0
    %v7893 = vmax.f32 %v7705, 0.0
    %v7894 = vmax.f32 %v7708, 0.0
    %v7895 = vmax.f32 %v7713, 0.0
    %v7896 = vmax.f32 %v7716, 0.0
    %v7897 = vmax.f32 %v7721, 0.0
    %v7898 = vmax.f32 %v7724, 0.0
    %v7899 = vmax.f32 %v7729, 0.0
    %v7900 = vmax.f32 %v7732, 0.0
    %v7901 = vmax.f32 %v7737, 0.0
    %v7902 = vmax.f32 %v7740, 0.0
    %v7903 = vmax.f32 %v7745, 0.0
    %v7904 = vmax.f32 %v7748, 0.0
    %v7905 = vmax.f32 %v7753, 0.0
    %v7906 = vmax.f32 %v7756, 0.0
    %v7907 = vmax.f32 %v7761, 0.0
    %v7908 = vmax.f32 %v7764, 0.0
    %v7909 = vmax.f32 %v7769, 0.0
    %v7910 = vmax.f32 %v7772, 0.0
    %v7911 = vmax.f32 %v7777, 0.0
    %v7912 = vmax.f32 %v7780, 0.0
    %v7913 = vmax.f32 %v7785, 0.0
    %v7914 = vmax.f32 %v7788, 0.0
    %v7915 = vmax.f32 %v7793, 0.0
    %v7916 = vmax.f32 %v7796, 0.0
    %v7917 = vmax.f32 %v7801, 0.0
    %v7918 = vmax.f32 %v7804, 0.0
    %v7919 = vmax.f32 %v7809, 0.0
    %v7920 = vmax.f32 %v7812, 0.0
    %v7921 = vmax.f32 %v7817, 0.0
    %v7922 = vmax.f32 %v7820, 0.0
    %v7923 = vmax.f32 %v7825, 0.0
    %v7924 = vmax.f32 %v7828, 0.0
    %v7925 = vmax.f32 %v7833, 0.0
    %v7926 = vmax.f32 %v7836, 0.0
    %v7927 = vmax.f32 %v7841, 0.0
    %v7928 = vmax.f32 %v7844, 0.0
    %v7929 = vmax.f32 %v7849, 0.0
    %v7930 = vmax.f32 %v7852, 0.0
    %v7931 = vmax.f32 %v7857, 0.0
    %v7932 = vmax.f32 %v7860, 0.0
    %v7933 = vmax.f32 %v7865, 0.0
    %v7934 = vmax.f32 %v7868, 0.0
    %vm7935 = vcmask 261120
    %v7936 = vsel %vm7935, %v7871, 0.0
    %v7937 = vsel %vm7935, %v7872, 0.0
    %v7938 = vadd.f32 %v7936, %v7937
    %v7939 = vsel %vm7935, %v7873, 0.0
    %v7940 = vadd.f32 %v7938, %v7939
    %v7941 = vsel %vm7935, %v7874, 0.0
    %v7942 = vadd.f32 %v7940, %v7941
    %v7943 = vsel %vm7935, %v7875, 0.0
    %v7944 = vadd.f32 %v7942, %v7943
    %v7945 = vsel %vm7935, %v7876, 0.0
    %v7946 = vadd.f32 %v7944, %v7945
    %v7947 = vsel %vm7935, %v7877, 0.0
    %v7948 = vadd.f32 %v7946, %v7947
    %v7949 = vsel %vm7935, %v7878, 0.0
    %v7950 = vadd.f32 %v7948, %v7949
    %v7951 = vsel %vm7935, %v7879, 0.0
    %v7952 = vadd.f32 %v7950, %v7951
    %v7953 = vsel %vm7935, %v7880, 0.0
    %v7954 = vadd.f32 %v7952, %v7953
    %v7955 = vsel %vm7935, %v7881, 0.0
    %v7956 = vadd.f32 %v7954, %v7955
    %v7957 = vsel %vm7935, %v7882, 0.0
    %v7958 = vadd.f32 %v7956, %v7957
    %v7959 = vsel %vm7935, %v7883, 0.0
    %v7960 = vadd.f32 %v7958, %v7959
    %v7961 = vsel %vm7935, %v7884, 0.0
    %v7962 = vadd.f32 %v7960, %v7961
    %v7963 = vsel %vm7935, %v7885, 0.0
    %v7964 = vadd.f32 %v7962, %v7963
    %v7965 = vsel %vm7935, %v7886, 0.0
    %v7966 = vadd.f32 %v7964, %v7965
    %v7967 = vsel %vm7935, %v7887, 0.0
    %v7968 = vadd.f32 %v7966, %v7967
    %v7969 = vsel %vm7935, %v7888, 0.0
    %v7970 = vadd.f32 %v7968, %v7969
    %v7971 = vsel %vm7935, %v7889, 0.0
    %v7972 = vadd.f32 %v7970, %v7971
    %v7973 = vsel %vm7935, %v7890, 0.0
    %v7974 = vadd.f32 %v7972, %v7973
    %v7975 = vsel %vm7935, %v7891, 0.0
    %v7976 = vadd.f32 %v7974, %v7975
    %v7977 = vsel %vm7935, %v7892, 0.0
    %v7978 = vadd.f32 %v7976, %v7977
    %v7979 = vsel %vm7935, %v7893, 0.0
    %v7980 = vadd.f32 %v7978, %v7979
    %v7981 = vsel %vm7935, %v7894, 0.0
    %v7982 = vadd.f32 %v7980, %v7981
    %v7983 = vsel %vm7935, %v7895, 0.0
    %v7984 = vadd.f32 %v7982, %v7983
    %v7985 = vsel %vm7935, %v7896, 0.0
    %v7986 = vadd.f32 %v7984, %v7985
    %v7987 = vsel %vm7935, %v7897, 0.0
    %v7988 = vadd.f32 %v7986, %v7987
    %v7989 = vsel %vm7935, %v7898, 0.0
    %v7990 = vadd.f32 %v7988, %v7989
    %v7991 = vsel %vm7935, %v7899, 0.0
    %v7992 = vadd.f32 %v7990, %v7991
    %v7993 = vsel %vm7935, %v7900, 0.0
    %v7994 = vadd.f32 %v7992, %v7993
    %v7995 = vsel %vm7935, %v7901, 0.0
    %v7996 = vadd.f32 %v7994, %v7995
    %v7997 = vsel %vm7935, %v7902, 0.0
    %v7998 = vadd.f32 %v7996, %v7997
    %v7999 = vrot.slane %v7998, 4
    %v8000 = vadd.f32 %v7998, %v7999
    %v8001 = vrot.slane %v8000, 2
    %v8002 = vadd.f32 %v8000, %v8001
    %v8003 = vrot.slane %v8002, 1
    %v8004 = vadd.f32 %v8002, %v8003
    %v8005 = vsel %vm7935, %v7903, 0.0
    %v8006 = vsel %vm7935, %v7904, 0.0
    %v8007 = vadd.f32 %v8005, %v8006
    %v8008 = vsel %vm7935, %v7905, 0.0
    %v8009 = vadd.f32 %v8007, %v8008
    %v8010 = vsel %vm7935, %v7906, 0.0
    %v8011 = vadd.f32 %v8009, %v8010
    %v8012 = vsel %vm7935, %v7907, 0.0
    %v8013 = vadd.f32 %v8011, %v8012
    %v8014 = vsel %vm7935, %v7908, 0.0
    %v8015 = vadd.f32 %v8013, %v8014
    %v8016 = vsel %vm7935, %v7909, 0.0
    %v8017 = vadd.f32 %v8015, %v8016
    %v8018 = vsel %vm7935, %v7910, 0.0
    %v8019 = vadd.f32 %v8017, %v8018
    %v8020 = vsel %vm7935, %v7911, 0.0
    %v8021 = vadd.f32 %v8019, %v8020
    %v8022 = vsel %vm7935, %v7912, 0.0
    %v8023 = vadd.f32 %v8021, %v8022
    %v8024 = vsel %vm7935, %v7913, 0.0
    %v8025 = vadd.f32 %v8023, %v8024
    %v8026 = vsel %vm7935, %v7914, 0.0
    %v8027 = vadd.f32 %v8025, %v8026
    %v8028 = vsel %vm7935, %v7915, 0.0
    %v8029 = vadd.f32 %v8027, %v8028
    %v8030 = vsel %vm7935, %v7916, 0.0
    %v8031 = vadd.f32 %v8029, %v8030
    %v8032 = vsel %vm7935, %v7917, 0.0
    %v8033 = vadd.f32 %v8031, %v8032
    %v8034 = vsel %vm7935, %v7918, 0.0
    %v8035 = vadd.f32 %v8033, %v8034
    %v8036 = vsel %vm7935, %v7919, 0.0
    %v8037 = vadd.f32 %v8035, %v8036
    %v8038 = vsel %vm7935, %v7920, 0.0
    %v8039 = vadd.f32 %v8037, %v8038
    %v8040 = vsel %vm7935, %v7921, 0.0
    %v8041 = vadd.f32 %v8039, %v8040
    %v8042 = vsel %vm7935, %v7922, 0.0
    %v8043 = vadd.f32 %v8041, %v8042
    %v8044 = vsel %vm7935, %v7923, 0.0
    %v8045 = vadd.f32 %v8043, %v8044
    %v8046 = vsel %vm7935, %v7924, 0.0
    %v8047 = vadd.f32 %v8045, %v8046
    %v8048 = vsel %vm7935, %v7925, 0.0
    %v8049 = vadd.f32 %v8047, %v8048
    %v8050 = vsel %vm7935, %v7926, 0.0
    %v8051 = vadd.f32 %v8049, %v8050
    %v8052 = vsel %vm7935, %v7927, 0.0
    %v8053 = vadd.f32 %v8051, %v8052
    %v8054 = vsel %vm7935, %v7928, 0.0
    %v8055 = vadd.f32 %v8053, %v8054
    %v8056 = vsel %vm7935, %v7929, 0.0
    %v8057 = vadd.f32 %v8055, %v8056
    %v8058 = vsel %vm7935, %v7930, 0.0
    %v8059 = vadd.f32 %v8057, %v8058
    %v8060 = vsel %vm7935, %v7931, 0.0
    %v8061 = vadd.f32 %v8059, %v8060
    %v8062 = vsel %vm7935, %v7932, 0.0
    %v8063 = vadd.f32 %v8061, %v8062
    %v8064 = vsel %vm7935, %v7933, 0.0
    %v8065 = vadd.f32 %v8063, %v8064
    %v8066 = vsel %vm7935, %v7934, 0.0
    %v8067 = vadd.f32 %v8065, %v8066
    %v8068 = vrot.slane %v8067, 4
    %v8069 = vadd.f32 %v8067, %v8068
    %v8070 = vrot.slane %v8069, 2
    %v8071 = vadd.f32 %v8069, %v8070
    %v8072 = vrot.slane %v8071, 1
    %v8073 = vadd.f32 %v8071, %v8072
    %v8074 = vrcp.pop 256.0
    %v8075 = vmul.f32 %v8004, %v8074
    %v8076 = vmul.f32 %v8073, %v8074
    %v8077 = vsel %vm7935, %v7871, -inf
    %v8078 = vsel %vm7935, %v7872, -inf
    %v8079 = vsel %vm7935, %v7873, -inf
    %v8080 = vmax.f32 %v8077, %v8079
    %v8081 = vsel %vm7935, %v7874, -inf
    %v8082 = vmax.f32 %v8078, %v8081
    %v8083 = vsel %vm7935, %v7875, -inf
    %v8084 = vmax.f32 %v8080, %v8083
    %v8085 = vsel %vm7935, %v7876, -inf
    %v8086 = vmax.f32 %v8082, %v8085
    %v8087 = vsel %vm7935, %v7877, -inf
    %v8088 = vmax.f32 %v8084, %v8087
    %v8089 = vsel %vm7935, %v7878, -inf
    %v8090 = vmax.f32 %v8086, %v8089
    %v8091 = vsel %vm7935, %v7879, -inf
    %v8092 = vmax.f32 %v8088, %v8091
    %v8093 = vsel %vm7935, %v7880, -inf
    %v8094 = vmax.f32 %v8090, %v8093
    %v8095 = vsel %vm7935, %v7881, -inf
    %v8096 = vmax.f32 %v8092, %v8095
    %v8097 = vsel %vm7935, %v7882, -inf
    %v8098 = vmax.f32 %v8094, %v8097
    %v8099 = vsel %vm7935, %v7883, -inf
    %v8100 = vmax.f32 %v8096, %v8099
    %v8101 = vsel %vm7935, %v7884, -inf
    %v8102 = vmax.f32 %v8098, %v8101
    %v8103 = vsel %vm7935, %v7885, -inf
    %v8104 = vmax.f32 %v8100, %v8103
    %v8105 = vsel %vm7935, %v7886, -inf
    %v8106 = vmax.f32 %v8102, %v8105
    %v8107 = vsel %vm7935, %v7887, -inf
    %v8108 = vmax.f32 %v8104, %v8107
    %v8109 = vsel %vm7935, %v7888, -inf
    %v8110 = vmax.f32 %v8106, %v8109
    %v8111 = vsel %vm7935, %v7889, -inf
    %v8112 = vmax.f32 %v8108, %v8111
    %v8113 = vsel %vm7935, %v7890, -inf
    %v8114 = vmax.f32 %v8110, %v8113
    %v8115 = vsel %vm7935, %v7891, -inf
    %v8116 = vmax.f32 %v8112, %v8115
    %v8117 = vsel %vm7935, %v7892, -inf
    %v8118 = vmax.f32 %v8114, %v8117
    %v8119 = vsel %vm7935, %v7893, -inf
    %v8120 = vmax.f32 %v8116, %v8119
    %v8121 = vsel %vm7935, %v7894, -inf
    %v8122 = vmax.f32 %v8118, %v8121
    %v8123 = vsel %vm7935, %v7895, -inf
    %v8124 = vmax.f32 %v8120, %v8123
    %v8125 = vsel %vm7935, %v7896, -inf
    %v8126 = vmax.f32 %v8122, %v8125
    %v8127 = vsel %vm7935, %v7897, -inf
    %v8128 = vmax.f32 %v8124, %v8127
    %v8129 = vsel %vm7935, %v7898, -inf
    %v8130 = vmax.f32 %v8126, %v8129
    %v8131 = vsel %vm7935, %v7899, -inf
    %v8132 = vmax.f32 %v8128, %v8131
    %v8133 = vsel %vm7935, %v7900, -inf
    %v8134 = vmax.f32 %v8130, %v8133
    %v8135 = vsel %vm7935, %v7901, -inf
    %v8136 = vmax.f32 %v8132, %v8135
    %v8137 = vsel %vm7935, %v7902, -inf
    %v8138 = vmax.f32 %v8134, %v8137
    %v8139 = vmax.f32 %v8136, %v8138
    %v8140 = vrot.slane %v8139, 4
    %v8141 = vmax.f32 %v8139, %v8140
    %v8142 = vrot.slane %v8141, 2
    %v8143 = vmax.f32 %v8141, %v8142
    %v8144 = vrot.slane %v8143, 1
    %v8145 = vmax.f32 %v8143, %v8144
    %v8146 = vsel %vm7935, %v7903, -inf
    %v8147 = vsel %vm7935, %v7904, -inf
    %v8148 = vsel %vm7935, %v7905, -inf
    %v8149 = vmax.f32 %v8146, %v8148
    %v8150 = vsel %vm7935, %v7906, -inf
    %v8151 = vmax.f32 %v8147, %v8150
    %v8152 = vsel %vm7935, %v7907, -inf
    %v8153 = vmax.f32 %v8149, %v8152
    %v8154 = vsel %vm7935, %v7908, -inf
    %v8155 = vmax.f32 %v8151, %v8154
    %v8156 = vsel %vm7935, %v7909, -inf
    %v8157 = vmax.f32 %v8153, %v8156
    %v8158 = vsel %vm7935, %v7910, -inf
    %v8159 = vmax.f32 %v8155, %v8158
    %v8160 = vsel %vm7935, %v7911, -inf
    %v8161 = vmax.f32 %v8157, %v8160
    %v8162 = vsel %vm7935, %v7912, -inf
    %v8163 = vmax.f32 %v8159, %v8162
    %v8164 = vsel %vm7935, %v7913, -inf
    %v8165 = vmax.f32 %v8161, %v8164
    %v8166 = vsel %vm7935, %v7914, -inf
    %v8167 = vmax.f32 %v8163, %v8166
    %v8168 = vsel %vm7935, %v7915, -inf
    %v8169 = vmax.f32 %v8165, %v8168
    %v8170 = vsel %vm7935, %v7916, -inf
    %v8171 = vmax.f32 %v8167, %v8170
    %v8172 = vsel %vm7935, %v7917, -inf
    %v8173 = vmax.f32 %v8169, %v8172
    %v8174 = vsel %vm7935, %v7918, -inf
    %v8175 = vmax.f32 %v8171, %v8174
    %v8176 = vsel %vm7935, %v7919, -inf
    %v8177 = vmax.f32 %v8173, %v8176
    %v8178 = vsel %vm7935, %v7920, -inf
    %v8179 = vmax.f32 %v8175, %v8178
    %v8180 = vsel %vm7935, %v7921, -inf
    %v8181 = vmax.f32 %v8177, %v8180
    %v8182 = vsel %vm7935, %v7922, -inf
    %v8183 = vmax.f32 %v8179, %v8182
    %v8184 = vsel %vm7935, %v7923, -inf
    %v8185 = vmax.f32 %v8181, %v8184
    %v8186 = vsel %vm7935, %v7924, -inf
    %v8187 = vmax.f32 %v8183, %v8186
    %v8188 = vsel %vm7935, %v7925, -inf
    %v8189 = vmax.f32 %v8185, %v8188
    %v8190 = vsel %vm7935, %v7926, -inf
    %v8191 = vmax.f32 %v8187, %v8190
    %v8192 = vsel %vm7935, %v7927, -inf
    %v8193 = vmax.f32 %v8189, %v8192
    %v8194 = vsel %vm7935, %v7928, -inf
    %v8195 = vmax.f32 %v8191, %v8194
    %v8196 = vsel %vm7935, %v7929, -inf
    %v8197 = vmax.f32 %v8193, %v8196
    %v8198 = vsel %vm7935, %v7930, -inf
    %v8199 = vmax.f32 %v8195, %v8198
    %v8200 = vsel %vm7935, %v7931, -inf
    %v8201 = vmax.f32 %v8197, %v8200
    %v8202 = vsel %vm7935, %v7932, -inf
    %v8203 = vmax.f32 %v8199, %v8202
    %v8204 = vsel %vm7935, %v7933, -inf
    %v8205 = vmax.f32 %v8201, %v8204
    %v8206 = vsel %vm7935, %v7934, -inf
    %v8207 = vmax.f32 %v8203, %v8206
    %v8208 = vmax.f32 %v8205, %v8207
    %v8209 = vrot.slane %v8208, 4
    %v8210 = vmax.f32 %v8208, %v8209
    %v8211 = vrot.slane %v8210, 2
    %v8212 = vmax.f32 %v8210, %v8211
    %v8213 = vrot.slane %v8212, 1
    %v8214 = vmax.f32 %v8212, %v8213
    %v8215 = vld [vmem:[%s6] sm:$0xff]
    %v8216 = vld [vmem:[%s6 + $0x8] sm:$0xff]
    %v8217 = vld [vmem:[%s6 + $0x10] sm:$0xff]
    %v8218 = vld [vmem:[%s6 + $0x18] sm:$0xff]
    %vm8221 = vcmask 1041409
    %v8222 = vsel %vm8221, %v8076, %v8075
    %v8223 = vsel %vm7935, %v8222, 0
    %8225 = vmatprep.subr.mxu0 0.0
    %8226 = vmatpush1.msra.mxu0 0.0
    %8227 = vmatprep.subr.mxu0 0.0
    %8228 = vmatpush1.msra.mxu0 0.0
    %8229 = vmatprep.subr.mxu0 0.0
    %8230 = vmatpush1.msra.mxu0 0.0
    %8231 = vmatprep.subr.mxu0 0.0
    %8232 = vmatpush1.msra.mxu0 0.0
    %8233 = vmatprep.subr.mxu0 0.0
    %8234 = vmatpush1.msra.mxu0 0.0
    %8235 = vmatprep.subr.mxu0 0.0
    %8236 = vmatpush1.msra.mxu0 0.0
    %8237 = vmatprep.subr.mxu0 0.0
    %8238 = vmatpush1.msra.mxu0 0.0
    %8239 = vmatprep.subr.mxu0 0.0
    %8240 = vmatpush1.msra.mxu0 0.0
    %8241 = vmatprep.subr.mxu0 0.0
    %8242 = vmatpush1.msra.mxu0 0.0
    %8243 = vmatprep.subr.mxu0 0.0
    %8244 = vmatpush1.msra.mxu0 0.0
    %8245 = vmatprep.subr.mxu0 0.0
    %8246 = vmatpush1.msra.mxu0 0.0
    %8247 = vmatprep.subr.mxu0 0.0
    %8248 = vmatpush1.msra.mxu0 0.0
    %8249 = vmatprep.subr.mxu0 0.0
    %8250 = vmatpush1.msra.mxu0 %v8218
    %8251 = vmatprep.subr.mxu0 0.0
    %8252 = vmatpush1.msra.mxu0 %v8217
    %8253 = vmatprep.subr.mxu0 0.0
    %8254 = vmatpush1.msra.mxu0 %v8216
    %8255 = vmatprep.subr.mxu0 0.0
    %8256 = vmatpush1.msra.mxu0 %v8215
    %8257 = vmatprep.subr.mxu0 0.0
    %8258 = vmatpush2.msra.mxu0 0.0
    %8259 = vmatprep.subr.mxu0 0.0
    %8260 = vmatpush2.msra.mxu0 0.0
    %8261 = vmatprep.subr.mxu0 0.0
    %8262 = vmatpush2.msra.mxu0 0.0
    %8263 = vmatprep.subr.mxu0 0.0
    %8264 = vmatpush2.msra.mxu0 0.0
    %8265 = vmatprep.subr.mxu0 0.0
    %8266 = vmatpush2.msra.mxu0 0.0
    %8267 = vmatprep.subr.mxu0 0.0
    %8268 = vmatpush2.msra.mxu0 0.0
    %8269 = vmatprep.subr.mxu0 0.0
    %8270 = vmatpush2.msra.mxu0 0.0
    %8271 = vmatprep.subr.mxu0 0.0
    %8272 = vmatpush2.msra.mxu0 0.0
    %8273 = vmatprep.subr.mxu0 0.0
    %8274 = vmatpush2.msra.mxu0 0.0
    %8275 = vmatprep.subr.mxu0 0.0
    %8276 = vmatpush2.msra.mxu0 0.0
    %8277 = vmatprep.subr.mxu0 0.0
    %8278 = vmatpush2.msra.mxu0 0.0
    %8279 = vmatprep.subr.mxu0 0.0
    %8280 = vmatpush2.msra.mxu0 0.0
    %8281 = vmatprep.subr.mxu0 0.0
    %8282 = vmatpush2.msra.mxu0 0.0
    %8283 = vmatprep.subr.mxu0 0.0
    %8284 = vmatpush2.msra.mxu0 0.0
    %8285 = vmatprep.subr.mxu0 0.0
    %8286 = vmatpush2.msra.mxu0 0.0
    %8287 = vmatprep.subr.mxu0 0.0
    %8288 = vmatpush2.msra.mxu0 0.0
    %8289 = vmatprep.mubr.f32.mxu0 0.0
    %8290 = vmatmul.mubr.f32.gmra.mxu0 %v8223
    %v8291 = vpop.f32.mrf.mxu0
    %v8292 = vadd.f32 0.0, %v8291
    %v8293 = vpop.f32.mrf.mxu0
    %8294 = vdwg.mxu0
    %v8295 = vmax.f32 %v8292, 0.0
    %v8296 = vld [vmem:[%s7] sm:$0xf]
    %v8299 = vsel %vm8221, %v8214, %v8145
    %v8300 = vsel %vm7935, %v8299, 0
    %8302 = vmatprep.subr.mxu0 0.0
    %8303 = vmatpush1.msra.mxu0 0.0
    %8304 = vmatprep.subr.mxu0 0.0
    %8305 = vmatpush1.msra.mxu0 0.0
    %8306 = vmatprep.subr.mxu0 0.0
    %8307 = vmatpush1.msra.mxu0 0.0
    %8308 = vmatprep.subr.mxu0 0.0
    %8309 = vmatpush1.msra.mxu0 0.0
    %8310 = vmatprep.subr.mxu0 0.0
    %8311 = vmatpush1.msra.mxu0 0.0
    %8312 = vmatprep.subr.mxu0 0.0
    %8313 = vmatpush1.msra.mxu0 0.0
    %8314 = vmatprep.subr.mxu0 0.0
    %8315 = vmatpush1.msra.mxu0 0.0
    %8316 = vmatprep.subr.mxu0 0.0
    %8317 = vmatpush1.msra.mxu0 0.0
    %8318 = vmatprep.subr.mxu0 0.0
    %8319 = vmatpush1.msra.mxu0 0.0
    %8320 = vmatprep.subr.mxu0 0.0
    %8321 = vmatpush1.msra.mxu0 0.0
    %8322 = vmatprep.subr.mxu0 0.0
    %8323 = vmatpush1.msra.mxu0 0.0
    %8324 = vmatprep.subr.mxu0 0.0
    %8325 = vmatpush1.msra.mxu0 0.0
    %8326 = vmatprep.subr.mxu0 0.0
    %8327 = vmatpush1.msra.mxu0 %v8218
    %8328 = vmatprep.subr.mxu0 0.0
    %8329 = vmatpush1.msra.mxu0 %v8217
    %8330 = vmatprep.subr.mxu0 0.0
    %8331 = vmatpush1.msra.mxu0 %v8216
    %8332 = vmatprep.subr.mxu0 0.0
    %8333 = vmatpush1.msra.mxu0 %v8215
    %8334 = vmatprep.subr.mxu0 0.0
    %8335 = vmatpush2.msra.mxu0 0.0
    %8336 = vmatprep.subr.mxu0 0.0
    %8337 = vmatpush2.msra.mxu0 0.0
    %8338 = vmatprep.subr.mxu0 0.0
    %8339 = vmatpush2.msra.mxu0 0.0
    %8340 = vmatprep.subr.mxu0 0.0
    %8341 = vmatpush2.msra.mxu0 0.0
    %8342 = vmatprep.subr.mxu0 0.0
    %8343 = vmatpush2.msra.mxu0 0.0
    %8344 = vmatprep.subr.mxu0 0.0
    %8345 = vmatpush2.msra.mxu0 0.0
    %8346 = vmatprep.subr.mxu0 0.0
    %8347 = vmatpush2.msra.mxu0 0.0
    %8348 = vmatprep.subr.mxu0 0.0
    %8349 = vmatpush2.msra.mxu0 0.0
    %8350 = vmatprep.subr.mxu0 0.0
    %8351 = vmatpush2.msra.mxu0 0.0
    %8352 = vmatprep.subr.mxu0 0.0
    %8353 = vmatpush2.msra.mxu0 0.0
    %8354 = vmatprep.subr.mxu0 0.0
    %8355 = vmatpush2.msra.mxu0 0.0
    %8356 = vmatprep.subr.mxu0 0.0
    %8357 = vmatpush2.msra.mxu0 0.0
    %8358 = vmatprep.subr.mxu0 0.0
    %8359 = vmatpush2.msra.mxu0 0.0
    %8360 = vmatprep.subr.mxu0 0.0
    %8361 = vmatpush2.msra.mxu0 0.0
    %8362 = vmatprep.subr.mxu0 0.0
    %8363 = vmatpush2.msra.mxu0 0.0
    %8364 = vmatprep.subr.mxu0 0.0
    %8365 = vmatpush2.msra.mxu0 0.0
    %8366 = vmatprep.mubr.f32.mxu0 0.0
    %8367 = vmatmul.mubr.f32.gmra.mxu0 %v8300
    %v8368 = vpop.f32.mrf.mxu0
    %v8369 = vadd.f32 0.0, %v8368
    %v8370 = vpop.f32.mrf.mxu0
    %8371 = vdwg.mxu0
    %v8372 = vmax.f32 %v8369, 0.0
    %v8374 = vsel %vm63, %v8372, 0
    %vm8376 = vcmask 1043456
    %v8378 = vsel %vm8376, %v8296, 0
    %8380 = vmatprep.subr.mxu0 0.0
    %8381 = vmatpush1.msra.mxu0 0.0
    %8382 = vmatprep.subr.mxu0 0.0
    %8383 = vmatpush1.msra.mxu0 0.0
    %8384 = vmatprep.subr.mxu0 0.0
    %8385 = vmatpush1.msra.mxu0 0.0
    %8386 = vmatprep.subr.mxu0 0.0
    %8387 = vmatpush1.msra.mxu0 0.0
    %8388 = vmatprep.subr.mxu0 0.0
    %8389 = vmatpush1.msra.mxu0 0.0
    %8390 = vmatprep.subr.mxu0 0.0
    %8391 = vmatpush1.msra.mxu0 0.0
    %8392 = vmatprep.subr.mxu0 0.0
    %8393 = vmatpush1.msra.mxu0 0.0
    %8394 = vmatprep.subr.mxu0 0.0
    %8395 = vmatpush1.msra.mxu0 0.0
    %8396 = vmatprep.subr.mxu0 0.0
    %8397 = vmatpush1.msra.mxu0 0.0
    %8398 = vmatprep.subr.mxu0 0.0
    %8399 = vmatpush1.msra.mxu0 0.0
    %8400 = vmatprep.subr.mxu0 0.0
    %8401 = vmatpush1.msra.mxu0 0.0
    %8402 = vmatprep.subr.mxu0 0.0
    %8403 = vmatpush1.msra.mxu0 0.0
    %8404 = vmatprep.subr.mxu0 0.0
    %8405 = vmatpush1.msra.mxu0 0.0
    %8406 = vmatprep.subr.mxu0 0.0
    %8407 = vmatpush1.msra.mxu0 0.0
    %8408 = vmatprep.subr.mxu0 0.0
    %8409 = vmatpush1.msra.mxu0 0.0
    %8410 = vmatprep.subr.mxu0 0.0
    %8411 = vmatpush1.msra.mxu0 %v8378
    %8412 = vmatprep.subr.mxu0 0.0
    %8413 = vmatpush2.msra.mxu0 0.0
    %8414 = vmatprep.subr.mxu0 0.0
    %8415 = vmatpush2.msra.mxu0 0.0
    %8416 = vmatprep.subr.mxu0 0.0
    %8417 = vmatpush2.msra.mxu0 0.0
    %8418 = vmatprep.subr.mxu0 0.0
    %8419 = vmatpush2.msra.mxu0 0.0
    %8420 = vmatprep.subr.mxu0 0.0
    %8421 = vmatpush2.msra.mxu0 0.0
    %8422 = vmatprep.subr.mxu0 0.0
    %8423 = vmatpush2.msra.mxu0 0.0
    %8424 = vmatprep.subr.mxu0 0.0
    %8425 = vmatpush2.msra.mxu0 0.0
    %8426 = vmatprep.subr.mxu0 0.0
    %8427 = vmatpush2.msra.mxu0 0.0
    %8428 = vmatprep.subr.mxu0 0.0
    %8429 = vmatpush2.msra.mxu0 0.0
    %8430 = vmatprep.subr.mxu0 0.0
    %8431 = vmatpush2.msra.mxu0 0.0
    %8432 = vmatprep.subr.mxu0 0.0
    %8433 = vmatpush2.msra.mxu0 0.0
    %8434 = vmatprep.subr.mxu0 0.0
    %8435 = vmatpush2.msra.mxu0 0.0
    %8436 = vmatprep.subr.mxu0 0.0
    %8437 = vmatpush2.msra.mxu0 0.0
    %8438 = vmatprep.subr.mxu0 0.0
    %8439 = vmatpush2.msra.mxu0 0.0
    %8440 = vmatprep.subr.mxu0 0.0
    %8441 = vmatpush2.msra.mxu0 0.0
    %8442 = vmatprep.subr.mxu0 0.0
    %8443 = vmatpush2.msra.mxu0 0.0
    %8444 = vmatprep.mubr.f32.mxu0 0.0
    %8445 = vmatmul.mubr.f32.gmra.mxu0 %v8374
    %v8446 = vpop.f32.mrf.mxu0
    %v8447 = vadd.f32 0.0, %v8446
    %v8448 = vpop.f32.mrf.mxu0
    %8449 = vdwg.mxu0
    %v8451 = vsel %vm63, %v8295, 0
    %8453 = vmatprep.subr.mxu0 0.0
    %8454 = vmatpush1.msra.mxu0 0.0
    %8455 = vmatprep.subr.mxu0 0.0
    %8456 = vmatpush1.msra.mxu0 0.0
    %8457 = vmatprep.subr.mxu0 0.0
    %8458 = vmatpush1.msra.mxu0 0.0
    %8459 = vmatprep.subr.mxu0 0.0
    %8460 = vmatpush1.msra.mxu0 0.0
    %8461 = vmatprep.subr.mxu0 0.0
    %8462 = vmatpush1.msra.mxu0 0.0
    %8463 = vmatprep.subr.mxu0 0.0
    %8464 = vmatpush1.msra.mxu0 0.0
    %8465 = vmatprep.subr.mxu0 0.0
    %8466 = vmatpush1.msra.mxu0 0.0
    %8467 = vmatprep.subr.mxu0 0.0
    %8468 = vmatpush1.msra.mxu0 0.0
    %8469 = vmatprep.subr.mxu0 0.0
    %8470 = vmatpush1.msra.mxu0 0.0
    %8471 = vmatprep.subr.mxu0 0.0
    %8472 = vmatpush1.msra.mxu0 0.0
    %8473 = vmatprep.subr.mxu0 0.0
    %8474 = vmatpush1.msra.mxu0 0.0
    %8475 = vmatprep.subr.mxu0 0.0
    %8476 = vmatpush1.msra.mxu0 0.0
    %8477 = vmatprep.subr.mxu0 0.0
    %8478 = vmatpush1.msra.mxu0 0.0
    %8479 = vmatprep.subr.mxu0 0.0
    %8480 = vmatpush1.msra.mxu0 0.0
    %8481 = vmatprep.subr.mxu0 0.0
    %8482 = vmatpush1.msra.mxu0 0.0
    %8483 = vmatprep.subr.mxu0 0.0
    %8484 = vmatpush1.msra.mxu0 %v8378
    %8485 = vmatprep.subr.mxu0 0.0
    %8486 = vmatpush2.msra.mxu0 0.0
    %8487 = vmatprep.subr.mxu0 0.0
    %8488 = vmatpush2.msra.mxu0 0.0
    %8489 = vmatprep.subr.mxu0 0.0
    %8490 = vmatpush2.msra.mxu0 0.0
    %8491 = vmatprep.subr.mxu0 0.0
    %8492 = vmatpush2.msra.mxu0 0.0
    %8493 = vmatprep.subr.mxu0 0.0
    %8494 = vmatpush2.msra.mxu0 0.0
    %8495 = vmatprep.subr.mxu0 0.0
    %8496 = vmatpush2.msra.mxu0 0.0
    %8497 = vmatprep.subr.mxu0 0.0
    %8498 = vmatpush2.msra.mxu0 0.0
    %8499 = vmatprep.subr.mxu0 0.0
    %8500 = vmatpush2.msra.mxu0 0.0
    %8501 = vmatprep.subr.mxu0 0.0
    %8502 = vmatpush2.msra.mxu0 0.0
    %8503 = vmatprep.subr.mxu0 0.0
    %8504 = vmatpush2.msra.mxu0 0.0
    %8505 = vmatprep.subr.mxu0 0.0
    %8506 = vmatpush2.msra.mxu0 0.0
    %8507 = vmatprep.subr.mxu0 0.0
    %8508 = vmatpush2.msra.mxu0 0.0
    %8509 = vmatprep.subr.mxu0 0.0
    %8510 = vmatpush2.msra.mxu0 0.0
    %8511 = vmatprep.subr.mxu0 0.0
    %8512 = vmatpush2.msra.mxu0 0.0
    %8513 = vmatprep.subr.mxu0 0.0
    %8514 = vmatpush2.msra.mxu0 0.0
    %8515 = vmatprep.subr.mxu0 0.0
    %8516 = vmatpush2.msra.mxu0 0.0
    %8517 = vmatprep.mubr.f32.mxu0 0.0
    %8518 = vmatmul.mubr.f32.gmra.mxu0 %v8451
    %v8519 = vpop.f32.mrf.mxu0
    %v8520 = vadd.f32 %v8447, %v8519
    %v8521 = vpop.f32.mrf.mxu0
    %8522 = vdwg.mxu0
    %v8523 = vxor.u32 %v8520, 2147483648
    %v8524 = vmul.f32 %v8523, 1.442695
    %v8525 = vpow.pop %v8524
    %v8526 = vadd.f32 %v8525, 1.0
    %v8527 = vrcp.pop %v8526
    %v8528 = vmul.f32 1.0, %v8527
    %v8531 = vunpack.c.l.s4 1966171168
    %v8532 = vunpack.c.0.s8 %v8531
    %v8533 = vlaneseq
    %v8534 = vshrl.u32 %v8533, 7
    %v8535 = vsub.s32 %v8532, %v8534
    %v8536 = vrot.slane %v8528, %v8535
    %v8537 = vcombine.high %v8536, %v8536
    %v8539 = vunpack.c.l.s4 1966171168
    %v8540 = vunpack.c.0.s8 %v8539
    %v8541 = vlaneseq
    %v8542 = vshrl.u32 %v8541, 7
    %v8543 = vsub.s32 %v8540, %v8542
    %v8544 = vrot.slane %v8536, %v8543
    %v8546 = vunpack.c.l.s4 1966171168
    %v8547 = vunpack.c.0.s8 %v8546
    %v8548 = vlaneseq
    %v8549 = vshrl.u32 %v8548, 7
    %v8550 = vsub.s32 %v8547, %v8549
    %v8551 = vrot.slane %v8537, %v8550
    %v8552 = vlaneseq
    %v8553 = vshrl.u32 %v8552, 7
    %v8554 = vsub.s32 0, %v8553
    %v8555 = vrot.slane %v8544, %v8554
    %v8556 = vlaneseq
    %v8557 = vshrl.u32 %v8556, 7
    %v8558 = vsub.s32 0, %v8557
    %v8559 = vrot.slane %v8551, %v8558
    %v8562 = vmul.f32 %v7871, %v8555
    %v8563 = vmul.f32 %v7872, %v8555
    %v8564 = vmul.f32 %v7873, %v8555
    %v8565 = vmul.f32 %v7874, %v8555
    %v8566 = vmul.f32 %v7875, %v8555
    %v8567 = vmul.f32 %v7876, %v8555
    %v8568 = vmul.f32 %v7877, %v8555
    %v8569 = vmul.f32 %v7878, %v8555
    %v8570 = vmul.f32 %v7879, %v8555
    %v8571 = vmul.f32 %v7880, %v8555
    %v8572 = vmul.f32 %v7881, %v8555
    %v8573 = vmul.f32 %v7882, %v8555
    %v8574 = vmul.f32 %v7883, %v8555
    %v8575 = vmul.f32 %v7884, %v8555
    %v8576 = vmul.f32 %v7885, %v8555
    %v8577 = vmul.f32 %v7886, %v8555
    %v8578 = vmul.f32 %v7887, %v8555
    %v8579 = vmul.f32 %v7888, %v8555
    %v8580 = vmul.f32 %v7889, %v8555
    %v8581 = vmul.f32 %v7890, %v8555
    %v8582 = vmul.f32 %v7891, %v8555
    %v8583 = vmul.f32 %v7892, %v8555
    %v8584 = vmul.f32 %v7893, %v8555
    %v8585 = vmul.f32 %v7894, %v8555
    %v8586 = vmul.f32 %v7895, %v8555
    %v8587 = vmul.f32 %v7896, %v8555
    %v8588 = vmul.f32 %v7897, %v8555
    %v8589 = vmul.f32 %v7898, %v8555
    %v8590 = vmul.f32 %v7899, %v8555
    %v8591 = vmul.f32 %v7900, %v8555
    %v8592 = vmul.f32 %v7901, %v8555
    %v8593 = vmul.f32 %v7902, %v8555
    %v8594 = vmul.f32 %v7903, %v8559
    %v8595 = vmul.f32 %v7904, %v8559
    %v8596 = vmul.f32 %v7905, %v8559
    %v8597 = vmul.f32 %v7906, %v8559
    %v8598 = vmul.f32 %v7907, %v8559
    %v8599 = vmul.f32 %v7908, %v8559
    %v8600 = vmul.f32 %v7909, %v8559
    %v8601 = vmul.f32 %v7910, %v8559
    %v8602 = vmul.f32 %v7911, %v8559
    %v8603 = vmul.f32 %v7912, %v8559
    %v8604 = vmul.f32 %v7913, %v8559
    %v8605 = vmul.f32 %v7914, %v8559
    %v8606 = vmul.f32 %v7915, %v8559
    %v8607 = vmul.f32 %v7916, %v8559
    %v8608 = vmul.f32 %v7917, %v8559
    %v8609 = vmul.f32 %v7918, %v8559
    %v8610 = vmul.f32 %v7919, %v8559
    %v8611 = vmul.f32 %v7920, %v8559
    %v8612 = vmul.f32 %v7921, %v8559
    %v8613 = vmul.f32 %v7922, %v8559
    %v8614 = vmul.f32 %v7923, %v8559
    %v8615 = vmul.f32 %v7924, %v8559
    %v8616 = vmul.f32 %v7925, %v8559
    %v8617 = vmul.f32 %v7926, %v8559
    %v8618 = vmul.f32 %v7927, %v8559
    %v8619 = vmul.f32 %v7928, %v8559
    %v8620 = vmul.f32 %v7929, %v8559
    %v8621 = vmul.f32 %v7930, %v8559
    %v8622 = vmul.f32 %v7931, %v8559
    %v8623 = vmul.f32 %v7932, %v8559
    %v8624 = vmul.f32 %v7933, %v8559
    %v8625 = vmul.f32 %v7934, %v8559
    %v8626 = vsel %vm7935, %v8562, 0.0
    %8627 = vadd.xlane.f32.xlu0 %v8626
    %v8628 = vpop.xlane.xlu0 %8627
    %v8629 = vsel %vm7935, %v8563, 0.0
    %8630 = vadd.xlane.f32.xlu0 %v8629
    %v8631 = vpop.xlane.xlu0 %8630
    %v8632 = vsel %vm7935, %v8564, 0.0
    %8633 = vadd.xlane.f32.xlu0 %v8632
    %v8634 = vpop.xlane.xlu0 %8633
    %v8635 = vsel %vm7935, %v8565, 0.0
    %8636 = vadd.xlane.f32.xlu0 %v8635
    %v8637 = vpop.xlane.xlu0 %8636
    %v8638 = vsel %vm7935, %v8566, 0.0
    %8639 = vadd.xlane.f32.xlu0 %v8638
    %v8640 = vpop.xlane.xlu0 %8639
    %v8641 = vsel %vm7935, %v8567, 0.0
    %8642 = vadd.xlane.f32.xlu0 %v8641
    %v8643 = vpop.xlane.xlu0 %8642
    %v8644 = vsel %vm7935, %v8568, 0.0
    %8645 = vadd.xlane.f32.xlu0 %v8644
    %v8646 = vpop.xlane.xlu0 %8645
    %v8647 = vsel %vm7935, %v8569, 0.0
    %8648 = vadd.xlane.f32.xlu0 %v8647
    %v8649 = vpop.xlane.xlu0 %8648
    %v8650 = vsel %vm7935, %v8570, 0.0
    %8651 = vadd.xlane.f32.xlu0 %v8650
    %v8652 = vpop.xlane.xlu0 %8651
    %v8653 = vsel %vm7935, %v8571, 0.0
    %8654 = vadd.xlane.f32.xlu0 %v8653
    %v8655 = vpop.xlane.xlu0 %8654
    %v8656 = vsel %vm7935, %v8572, 0.0
    %8657 = vadd.xlane.f32.xlu0 %v8656
    %v8658 = vpop.xlane.xlu0 %8657
    %v8659 = vsel %vm7935, %v8573, 0.0
    %8660 = vadd.xlane.f32.xlu0 %v8659
    %v8661 = vpop.xlane.xlu0 %8660
    %v8662 = vsel %vm7935, %v8574, 0.0
    %8663 = vadd.xlane.f32.xlu0 %v8662
    %v8664 = vpop.xlane.xlu0 %8663
    %v8665 = vsel %vm7935, %v8575, 0.0
    %8666 = vadd.xlane.f32.xlu0 %v8665
    %v8667 = vpop.xlane.xlu0 %8666
    %v8668 = vsel %vm7935, %v8576, 0.0
    %8669 = vadd.xlane.f32.xlu0 %v8668
    %v8670 = vpop.xlane.xlu0 %8669
    %v8671 = vsel %vm7935, %v8577, 0.0
    %8672 = vadd.xlane.f32.xlu0 %v8671
    %v8673 = vpop.xlane.xlu0 %8672
    %v8674 = vsel %vm7935, %v8578, 0.0
    %8675 = vadd.xlane.f32.xlu0 %v8674
    %v8676 = vpop.xlane.xlu0 %8675
    %v8677 = vsel %vm7935, %v8579, 0.0
    %8678 = vadd.xlane.f32.xlu0 %v8677
    %v8679 = vpop.xlane.xlu0 %8678
    %v8680 = vsel %vm7935, %v8580, 0.0
    %8681 = vadd.xlane.f32.xlu0 %v8680
    %v8682 = vpop.xlane.xlu0 %8681
    %v8683 = vsel %vm7935, %v8581, 0.0
    %8684 = vadd.xlane.f32.xlu0 %v8683
    %v8685 = vpop.xlane.xlu0 %8684
    %v8686 = vsel %vm7935, %v8582, 0.0
    %8687 = vadd.xlane.f32.xlu0 %v8686
    %v8688 = vpop.xlane.xlu0 %8687
    %v8689 = vsel %vm7935, %v8583, 0.0
    %8690 = vadd.xlane.f32.xlu0 %v8689
    %v8691 = vpop.xlane.xlu0 %8690
    %v8692 = vsel %vm7935, %v8584, 0.0
    %8693 = vadd.xlane.f32.xlu0 %v8692
    %v8694 = vpop.xlane.xlu0 %8693
    %v8695 = vsel %vm7935, %v8585, 0.0
    %8696 = vadd.xlane.f32.xlu0 %v8695
    %v8697 = vpop.xlane.xlu0 %8696
    %v8698 = vsel %vm7935, %v8586, 0.0
    %8699 = vadd.xlane.f32.xlu0 %v8698
    %v8700 = vpop.xlane.xlu0 %8699
    %v8701 = vsel %vm7935, %v8587, 0.0
    %8702 = vadd.xlane.f32.xlu0 %v8701
    %v8703 = vpop.xlane.xlu0 %8702
    %v8704 = vsel %vm7935, %v8588, 0.0
    %8705 = vadd.xlane.f32.xlu0 %v8704
    %v8706 = vpop.xlane.xlu0 %8705
    %v8707 = vsel %vm7935, %v8589, 0.0
    %8708 = vadd.xlane.f32.xlu0 %v8707
    %v8709 = vpop.xlane.xlu0 %8708
    %v8710 = vsel %vm7935, %v8590, 0.0
    %8711 = vadd.xlane.f32.xlu0 %v8710
    %v8712 = vpop.xlane.xlu0 %8711
    %v8713 = vsel %vm7935, %v8591, 0.0
    %8714 = vadd.xlane.f32.xlu0 %v8713
    %v8715 = vpop.xlane.xlu0 %8714
    %v8716 = vsel %vm7935, %v8592, 0.0
    %8717 = vadd.xlane.f32.xlu0 %v8716
    %v8718 = vpop.xlane.xlu0 %8717
    %v8719 = vsel %vm7935, %v8593, 0.0
    %8720 = vadd.xlane.f32.xlu0 %v8719
    %v8721 = vpop.xlane.xlu0 %8720
    %v8722 = vsel %vm7935, %v8594, 0.0
    %8723 = vadd.xlane.f32.xlu0 %v8722
    %v8724 = vpop.xlane.xlu0 %8723
    %v8725 = vsel %vm7935, %v8595, 0.0
    %8726 = vadd.xlane.f32.xlu0 %v8725
    %v8727 = vpop.xlane.xlu0 %8726
    %v8728 = vsel %vm7935, %v8596, 0.0
    %8729 = vadd.xlane.f32.xlu0 %v8728
    %v8730 = vpop.xlane.xlu0 %8729
    %v8731 = vsel %vm7935, %v8597, 0.0
    %8732 = vadd.xlane.f32.xlu0 %v8731
    %v8733 = vpop.xlane.xlu0 %8732
    %v8734 = vsel %vm7935, %v8598, 0.0
    %8735 = vadd.xlane.f32.xlu0 %v8734
    %v8736 = vpop.xlane.xlu0 %8735
    %v8737 = vsel %vm7935, %v8599, 0.0
    %8738 = vadd.xlane.f32.xlu0 %v8737
    %v8739 = vpop.xlane.xlu0 %8738
    %v8740 = vsel %vm7935, %v8600, 0.0
    %8741 = vadd.xlane.f32.xlu0 %v8740
    %v8742 = vpop.xlane.xlu0 %8741
    %v8743 = vsel %vm7935, %v8601, 0.0
    %8744 = vadd.xlane.f32.xlu0 %v8743
    %v8745 = vpop.xlane.xlu0 %8744
    %v8746 = vsel %vm7935, %v8602, 0.0
    %8747 = vadd.xlane.f32.xlu0 %v8746
    %v8748 = vpop.xlane.xlu0 %8747
    %v8749 = vsel %vm7935, %v8603, 0.0
    %8750 = vadd.xlane.f32.xlu0 %v8749
    %v8751 = vpop.xlane.xlu0 %8750
    %v8752 = vsel %vm7935, %v8604, 0.0
    %8753 = vadd.xlane.f32.xlu0 %v8752
    %v8754 = vpop.xlane.xlu0 %8753
    %v8755 = vsel %vm7935, %v8605, 0.0
    %8756 = vadd.xlane.f32.xlu0 %v8755
    %v8757 = vpop.xlane.xlu0 %8756
    %v8758 = vsel %vm7935, %v8606, 0.0
    %8759 = vadd.xlane.f32.xlu0 %v8758
    %v8760 = vpop.xlane.xlu0 %8759
    %v8761 = vsel %vm7935, %v8607, 0.0
    %8762 = vadd.xlane.f32.xlu0 %v8761
    %v8763 = vpop.xlane.xlu0 %8762
    %v8764 = vsel %vm7935, %v8608, 0.0
    %8765 = vadd.xlane.f32.xlu0 %v8764
    %v8766 = vpop.xlane.xlu0 %8765
    %v8767 = vsel %vm7935, %v8609, 0.0
    %8768 = vadd.xlane.f32.xlu0 %v8767
    %v8769 = vpop.xlane.xlu0 %8768
    %v8770 = vsel %vm7935, %v8610, 0.0
    %8771 = vadd.xlane.f32.xlu0 %v8770
    %v8772 = vpop.xlane.xlu0 %8771
    %v8773 = vsel %vm7935, %v8611, 0.0
    %8774 = vadd.xlane.f32.xlu0 %v8773
    %v8775 = vpop.xlane.xlu0 %8774
    %v8776 = vsel %vm7935, %v8612, 0.0
    %8777 = vadd.xlane.f32.xlu0 %v8776
    %v8778 = vpop.xlane.xlu0 %8777
    %v8779 = vsel %vm7935, %v8613, 0.0
    %8780 = vadd.xlane.f32.xlu0 %v8779
    %v8781 = vpop.xlane.xlu0 %8780
    %v8782 = vsel %vm7935, %v8614, 0.0
    %8783 = vadd.xlane.f32.xlu0 %v8782
    %v8784 = vpop.xlane.xlu0 %8783
    %v8785 = vsel %vm7935, %v8615, 0.0
    %8786 = vadd.xlane.f32.xlu0 %v8785
    %v8787 = vpop.xlane.xlu0 %8786
    %v8788 = vsel %vm7935, %v8616, 0.0
    %8789 = vadd.xlane.f32.xlu0 %v8788
    %v8790 = vpop.xlane.xlu0 %8789
    %v8791 = vsel %vm7935, %v8617, 0.0
    %8792 = vadd.xlane.f32.xlu0 %v8791
    %v8793 = vpop.xlane.xlu0 %8792
    %v8794 = vsel %vm7935, %v8618, 0.0
    %8795 = vadd.xlane.f32.xlu0 %v8794
    %v8796 = vpop.xlane.xlu0 %8795
    %v8797 = vsel %vm7935, %v8619, 0.0
    %8798 = vadd.xlane.f32.xlu0 %v8797
    %v8799 = vpop.xlane.xlu0 %8798
    %v8800 = vsel %vm7935, %v8620, 0.0
    %8801 = vadd.xlane.f32.xlu0 %v8800
    %v8802 = vpop.xlane.xlu0 %8801
    %v8803 = vsel %vm7935, %v8621, 0.0
    %8804 = vadd.xlane.f32.xlu0 %v8803
    %v8805 = vpop.xlane.xlu0 %8804
    %v8806 = vsel %vm7935, %v8622, 0.0
    %8807 = vadd.xlane.f32.xlu0 %v8806
    %v8808 = vpop.xlane.xlu0 %8807
    %v8809 = vsel %vm7935, %v8623, 0.0
    %8810 = vadd.xlane.f32.xlu0 %v8809
    %v8811 = vpop.xlane.xlu0 %8810
    %v8812 = vsel %vm7935, %v8624, 0.0
    %8813 = vadd.xlane.f32.xlu0 %v8812
    %v8814 = vpop.xlane.xlu0 %8813
    %v8815 = vsel %vm7935, %v8625, 0.0
    %8816 = vadd.xlane.f32.xlu0 %v8815
    %v8817 = vpop.xlane.xlu0 %8816
    %v8818 = vrcp.pop 32.0
    %v8819 = vmul.f32 %v8628, %v8818
    %v8820 = vmul.f32 %v8631, %v8818
    %v8821 = vmul.f32 %v8634, %v8818
    %v8822 = vmul.f32 %v8637, %v8818
    %v8823 = vmul.f32 %v8640, %v8818
    %v8824 = vmul.f32 %v8643, %v8818
    %v8825 = vmul.f32 %v8646, %v8818
    %v8826 = vmul.f32 %v8649, %v8818
    %v8827 = vmul.f32 %v8652, %v8818
    %v8828 = vmul.f32 %v8655, %v8818
    %v8829 = vmul.f32 %v8658, %v8818
    %v8830 = vmul.f32 %v8661, %v8818
    %v8831 = vmul.f32 %v8664, %v8818
    %v8832 = vmul.f32 %v8667, %v8818
    %v8833 = vmul.f32 %v8670, %v8818
    %v8834 = vmul.f32 %v8673, %v8818
    %v8835 = vmul.f32 %v8676, %v8818
    %v8836 = vmul.f32 %v8679, %v8818
    %v8837 = vmul.f32 %v8682, %v8818
    %v8838 = vmul.f32 %v8685, %v8818
    %v8839 = vmul.f32 %v8688, %v8818
    %v8840 = vmul.f32 %v8691, %v8818
    %v8841 = vmul.f32 %v8694, %v8818
    %v8842 = vmul.f32 %v8697, %v8818
    %v8843 = vmul.f32 %v8700, %v8818
    %v8844 = vmul.f32 %v8703, %v8818
    %v8845 = vmul.f32 %v8706, %v8818
    %v8846 = vmul.f32 %v8709, %v8818
    %v8847 = vmul.f32 %v8712, %v8818
    %v8848 = vmul.f32 %v8715, %v8818
    %v8849 = vmul.f32 %v8718, %v8818
    %v8850 = vmul.f32 %v8721, %v8818
    %v8851 = vmul.f32 %v8724, %v8818
    %v8852 = vmul.f32 %v8727, %v8818
    %v8853 = vmul.f32 %v8730, %v8818
    %v8854 = vmul.f32 %v8733, %v8818
    %v8855 = vmul.f32 %v8736, %v8818
    %v8856 = vmul.f32 %v8739, %v8818
    %v8857 = vmul.f32 %v8742, %v8818
    %v8858 = vmul.f32 %v8745, %v8818
    %v8859 = vmul.f32 %v8748, %v8818
    %v8860 = vmul.f32 %v8751, %v8818
    %v8861 = vmul.f32 %v8754, %v8818
    %v8862 = vmul.f32 %v8757, %v8818
    %v8863 = vmul.f32 %v8760, %v8818
    %v8864 = vmul.f32 %v8763, %v8818
    %v8865 = vmul.f32 %v8766, %v8818
    %v8866 = vmul.f32 %v8769, %v8818
    %v8867 = vmul.f32 %v8772, %v8818
    %v8868 = vmul.f32 %v8775, %v8818
    %v8869 = vmul.f32 %v8778, %v8818
    %v8870 = vmul.f32 %v8781, %v8818
    %v8871 = vmul.f32 %v8784, %v8818
    %v8872 = vmul.f32 %v8787, %v8818
    %v8873 = vmul.f32 %v8790, %v8818
    %v8874 = vmul.f32 %v8793, %v8818
    %v8875 = vmul.f32 %v8796, %v8818
    %v8876 = vmul.f32 %v8799, %v8818
    %v8877 = vmul.f32 %v8802, %v8818
    %v8878 = vmul.f32 %v8805, %v8818
    %v8879 = vmul.f32 %v8808, %v8818
    %v8880 = vmul.f32 %v8811, %v8818
    %v8881 = vmul.f32 %v8814, %v8818
    %v8882 = vmul.f32 %v8817, %v8818
    %v8883 = vsel %vm7935, %v8562, -inf
    %8884 = vmax.xlane.f32.xlu0 %v8883
    %v8885 = vpop.xlane.xlu0 %8884
    %v8886 = vsel %vm7935, %v8563, -inf
    %8887 = vmax.xlane.f32.xlu0 %v8886
    %v8888 = vpop.xlane.xlu0 %8887
    %v8889 = vsel %vm7935, %v8564, -inf
    %8890 = vmax.xlane.f32.xlu0 %v8889
    %v8891 = vpop.xlane.xlu0 %8890
    %v8892 = vsel %vm7935, %v8565, -inf
    %8893 = vmax.xlane.f32.xlu0 %v8892
    %v8894 = vpop.xlane.xlu0 %8893
    %v8895 = vsel %vm7935, %v8566, -inf
    %8896 = vmax.xlane.f32.xlu0 %v8895
    %v8897 = vpop.xlane.xlu0 %8896
    %v8898 = vsel %vm7935, %v8567, -inf
    %8899 = vmax.xlane.f32.xlu0 %v8898
    %v8900 = vpop.xlane.xlu0 %8899
    %v8901 = vsel %vm7935, %v8568, -inf
    %8902 = vmax.xlane.f32.xlu0 %v8901
    %v8903 = vpop.xlane.xlu0 %8902
    %v8904 = vsel %vm7935, %v8569, -inf
    %8905 = vmax.xlane.f32.xlu0 %v8904
    %v8906 = vpop.xlane.xlu0 %8905
    %v8907 = vsel %vm7935, %v8570, -inf
    %8908 = vmax.xlane.f32.xlu0 %v8907
    %v8909 = vpop.xlane.xlu0 %8908
    %v8910 = vsel %vm7935, %v8571, -inf
    %8911 = vmax.xlane.f32.xlu0 %v8910
    %v8912 = vpop.xlane.xlu0 %8911
    %v8913 = vsel %vm7935, %v8572, -inf
    %8914 = vmax.xlane.f32.xlu0 %v8913
    %v8915 = vpop.xlane.xlu0 %8914
    %v8916 = vsel %vm7935, %v8573, -inf
    %8917 = vmax.xlane.f32.xlu0 %v8916
    %v8918 = vpop.xlane.xlu0 %8917
    %v8919 = vsel %vm7935, %v8574, -inf
    %8920 = vmax.xlane.f32.xlu0 %v8919
    %v8921 = vpop.xlane.xlu0 %8920
    %v8922 = vsel %vm7935, %v8575, -inf
    %8923 = vmax.xlane.f32.xlu0 %v8922
    %v8924 = vpop.xlane.xlu0 %8923
    %v8925 = vsel %vm7935, %v8576, -inf
    %8926 = vmax.xlane.f32.xlu0 %v8925
    %v8927 = vpop.xlane.xlu0 %8926
    %v8928 = vsel %vm7935, %v8577, -inf
    %8929 = vmax.xlane.f32.xlu0 %v8928
    %v8930 = vpop.xlane.xlu0 %8929
    %v8931 = vsel %vm7935, %v8578, -inf
    %8932 = vmax.xlane.f32.xlu0 %v8931
    %v8933 = vpop.xlane.xlu0 %8932
    %v8934 = vsel %vm7935, %v8579, -inf
    %8935 = vmax.xlane.f32.xlu0 %v8934
    %v8936 = vpop.xlane.xlu0 %8935
    %v8937 = vsel %vm7935, %v8580, -inf
    %8938 = vmax.xlane.f32.xlu0 %v8937
    %v8939 = vpop.xlane.xlu0 %8938
    %v8940 = vsel %vm7935, %v8581, -inf
    %8941 = vmax.xlane.f32.xlu0 %v8940
    %v8942 = vpop.xlane.xlu0 %8941
    %v8943 = vsel %vm7935, %v8582, -inf
    %8944 = vmax.xlane.f32.xlu0 %v8943
    %v8945 = vpop.xlane.xlu0 %8944
    %v8946 = vsel %vm7935, %v8583, -inf
    %8947 = vmax.xlane.f32.xlu0 %v8946
    %v8948 = vpop.xlane.xlu0 %8947
    %v8949 = vsel %vm7935, %v8584, -inf
    %8950 = vmax.xlane.f32.xlu0 %v8949
    %v8951 = vpop.xlane.xlu0 %8950
    %v8952 = vsel %vm7935, %v8585, -inf
    %8953 = vmax.xlane.f32.xlu0 %v8952
    %v8954 = vpop.xlane.xlu0 %8953
    %v8955 = vsel %vm7935, %v8586, -inf
    %8956 = vmax.xlane.f32.xlu0 %v8955
    %v8957 = vpop.xlane.xlu0 %8956
    %v8958 = vsel %vm7935, %v8587, -inf
    %8959 = vmax.xlane.f32.xlu0 %v8958
    %v8960 = vpop.xlane.xlu0 %8959
    %v8961 = vsel %vm7935, %v8588, -inf
    %8962 = vmax.xlane.f32.xlu0 %v8961
    %v8963 = vpop.xlane.xlu0 %8962
    %v8964 = vsel %vm7935, %v8589, -inf
    %8965 = vmax.xlane.f32.xlu0 %v8964
    %v8966 = vpop.xlane.xlu0 %8965
    %v8967 = vsel %vm7935, %v8590, -inf
    %8968 = vmax.xlane.f32.xlu0 %v8967
    %v8969 = vpop.xlane.xlu0 %8968
    %v8970 = vsel %vm7935, %v8591, -inf
    %8971 = vmax.xlane.f32.xlu0 %v8970
    %v8972 = vpop.xlane.xlu0 %8971
    %v8973 = vsel %vm7935, %v8592, -inf
    %8974 = vmax.xlane.f32.xlu0 %v8973
    %v8975 = vpop.xlane.xlu0 %8974
    %v8976 = vsel %vm7935, %v8593, -inf
    %8977 = vmax.xlane.f32.xlu0 %v8976
    %v8978 = vpop.xlane.xlu0 %8977
    %v8979 = vsel %vm7935, %v8594, -inf
    %8980 = vmax.xlane.f32.xlu0 %v8979
    %v8981 = vpop.xlane.xlu0 %8980
    %v8982 = vsel %vm7935, %v8595, -inf
    %8983 = vmax.xlane.f32.xlu0 %v8982
    %v8984 = vpop.xlane.xlu0 %8983
    %v8985 = vsel %vm7935, %v8596, -inf
    %8986 = vmax.xlane.f32.xlu0 %v8985
    %v8987 = vpop.xlane.xlu0 %8986
    %v8988 = vsel %vm7935, %v8597, -inf
    %8989 = vmax.xlane.f32.xlu0 %v8988
    %v8990 = vpop.xlane.xlu0 %8989
    %v8991 = vsel %vm7935, %v8598, -inf
    %8992 = vmax.xlane.f32.xlu0 %v8991
    %v8993 = vpop.xlane.xlu0 %8992
    %v8994 = vsel %vm7935, %v8599, -inf
    %8995 = vmax.xlane.f32.xlu0 %v8994
    %v8996 = vpop.xlane.xlu0 %8995
    %v8997 = vsel %vm7935, %v8600, -inf
    %8998 = vmax.xlane.f32.xlu0 %v8997
    %v8999 = vpop.xlane.xlu0 %8998
    %v9000 = vsel %vm7935, %v8601, -inf
    %9001 = vmax.xlane.f32.xlu0 %v9000
    %v9002 = vpop.xlane.xlu0 %9001
    %v9003 = vsel %vm7935, %v8602, -inf
    %9004 = vmax.xlane.f32.xlu0 %v9003
    %v9005 = vpop.xlane.xlu0 %9004
    %v9006 = vsel %vm7935, %v8603, -inf
    %9007 = vmax.xlane.f32.xlu0 %v9006
    %v9008 = vpop.xlane.xlu0 %9007
    %v9009 = vsel %vm7935, %v8604, -inf
    %9010 = vmax.xlane.f32.xlu0 %v9009
    %v9011 = vpop.xlane.xlu0 %9010
    %v9012 = vsel %vm7935, %v8605, -inf
    %9013 = vmax.xlane.f32.xlu0 %v9012
    %v9014 = vpop.xlane.xlu0 %9013
    %v9015 = vsel %vm7935, %v8606, -inf
    %9016 = vmax.xlane.f32.xlu0 %v9015
    %v9017 = vpop.xlane.xlu0 %9016
    %v9018 = vsel %vm7935, %v8607, -inf
    %9019 = vmax.xlane.f32.xlu0 %v9018
    %v9020 = vpop.xlane.xlu0 %9019
    %v9021 = vsel %vm7935, %v8608, -inf
    %9022 = vmax.xlane.f32.xlu0 %v9021
    %v9023 = vpop.xlane.xlu0 %9022
    %v9024 = vsel %vm7935, %v8609, -inf
    %9025 = vmax.xlane.f32.xlu0 %v9024
    %v9026 = vpop.xlane.xlu0 %9025
    %v9027 = vsel %vm7935, %v8610, -inf
    %9028 = vmax.xlane.f32.xlu0 %v9027
    %v9029 = vpop.xlane.xlu0 %9028
    %v9030 = vsel %vm7935, %v8611, -inf
    %9031 = vmax.xlane.f32.xlu0 %v9030
    %v9032 = vpop.xlane.xlu0 %9031
    %v9033 = vsel %vm7935, %v8612, -inf
    %9034 = vmax.xlane.f32.xlu0 %v9033
    %v9035 = vpop.xlane.xlu0 %9034
    %v9036 = vsel %vm7935, %v8613, -inf
    %9037 = vmax.xlane.f32.xlu0 %v9036
    %v9038 = vpop.xlane.xlu0 %9037
    %v9039 = vsel %vm7935, %v8614, -inf
    %9040 = vmax.xlane.f32.xlu0 %v9039
    %v9041 = vpop.xlane.xlu0 %9040
    %v9042 = vsel %vm7935, %v8615, -inf
    %9043 = vmax.xlane.f32.xlu0 %v9042
    %v9044 = vpop.xlane.xlu0 %9043
    %v9045 = vsel %vm7935, %v8616, -inf
    %9046 = vmax.xlane.f32.xlu0 %v9045
    %v9047 = vpop.xlane.xlu0 %9046
    %v9048 = vsel %vm7935, %v8617, -inf
    %9049 = vmax.xlane.f32.xlu0 %v9048
    %v9050 = vpop.xlane.xlu0 %9049
    %v9051 = vsel %vm7935, %v8618, -inf
    %9052 = vmax.xlane.f32.xlu0 %v9051
    %v9053 = vpop.xlane.xlu0 %9052
    %v9054 = vsel %vm7935, %v8619, -inf
    %9055 = vmax.xlane.f32.xlu0 %v9054
    %v9056 = vpop.xlane.xlu0 %9055
    %v9057 = vsel %vm7935, %v8620, -inf
    %9058 = vmax.xlane.f32.xlu0 %v9057
    %v9059 = vpop.xlane.xlu0 %9058
    %v9060 = vsel %vm7935, %v8621, -inf
    %9061 = vmax.xlane.f32.xlu0 %v9060
    %v9062 = vpop.xlane.xlu0 %9061
    %v9063 = vsel %vm7935, %v8622, -inf
    %9064 = vmax.xlane.f32.xlu0 %v9063
    %v9065 = vpop.xlane.xlu0 %9064
    %v9066 = vsel %vm7935, %v8623, -inf
    %9067 = vmax.xlane.f32.xlu0 %v9066
    %v9068 = vpop.xlane.xlu0 %9067
    %v9069 = vsel %vm7935, %v8624, -inf
    %9070 = vmax.xlane.f32.xlu0 %v9069
    %v9071 = vpop.xlane.xlu0 %9070
    %v9072 = vsel %vm7935, %v8625, -inf
    %9073 = vmax.xlane.f32.xlu0 %v9072
    %v9074 = vpop.xlane.xlu0 %9073
    %v9075 = vld [vmem:[%s8] sm:$0xff]
    %v9076 = vld [vmem:[%s8 + $0x8] sm:$0xff]
    %v9077 = vld [vmem:[%s8 + $0x10] sm:$0xff]
    %v9078 = vld [vmem:[%s8 + $0x18] sm:$0xff]
    %v9079 = vld [vmem:[%s8 + $0x20] sm:$0xff]
    %v9080 = vld [vmem:[%s8 + $0x28] sm:$0xff]
    %v9081 = vld [vmem:[%s8 + $0x30] sm:$0xff]
    %v9082 = vld [vmem:[%s8 + $0x38] sm:$0xff]
    %v9083 = vld [vmem:[%s8 + $0x40] sm:$0xff]
    %v9084 = vld [vmem:[%s8 + $0x48] sm:$0xff]
    %v9085 = vld [vmem:[%s8 + $0x50] sm:$0xff]
    %v9086 = vld [vmem:[%s8 + $0x58] sm:$0xff]
    %v9087 = vld [vmem:[%s8 + $0x60] sm:$0xff]
    %v9088 = vld [vmem:[%s8 + $0x68] sm:$0xff]
    %v9089 = vld [vmem:[%s8 + $0x70] sm:$0xff]
    %v9090 = vld [vmem:[%s8 + $0x78] sm:$0xff]
    %v9091 = vld [vmem:[%s8 + $0x80] sm:$0xff]
    %v9092 = vld [vmem:[%s8 + $0x88] sm:$0xff]
    %v9093 = vld [vmem:[%s8 + $0x90] sm:$0xff]
    %v9094 = vld [vmem:[%s8 + $0x98] sm:$0xff]
    %v9095 = vld [vmem:[%s8 + $0xa0] sm:$0xff]
    %v9096 = vld [vmem:[%s8 + $0xa8] sm:$0xff]
    %v9097 = vld [vmem:[%s8 + $0xb0] sm:$0xff]
    %v9098 = vld [vmem:[%s8 + $0xb8] sm:$0xff]
    %v9099 = vld [vmem:[%s8 + $0xc0] sm:$0xff]
    %v9100 = vld [vmem:[%s8 + $0xc8] sm:$0xff]
    %v9101 = vld [vmem:[%s8 + $0xd0] sm:$0xff]
    %v9102 = vld [vmem:[%s8 + $0xd8] sm:$0xff]
    %v9103 = vld [vmem:[%s8 + $0xe0] sm:$0xff]
    %v9104 = vld [vmem:[%s8 + $0xe8] sm:$0xff]
    %v9105 = vld [vmem:[%s8 + $0xf0] sm:$0xff]
    %v9106 = vld [vmem:[%s8 + $0xf8] sm:$0xff]
    %v9107 = vld [vmem:[%s8 + $0x100] sm:$0xff]
    %v9108 = vld [vmem:[%s8 + $0x108] sm:$0xff]
    %v9109 = vld [vmem:[%s8 + $0x110] sm:$0xff]
    %v9110 = vld [vmem:[%s8 + $0x118] sm:$0xff]
    %v9111 = vld [vmem:[%s8 + $0x120] sm:$0xff]
    %v9112 = vld [vmem:[%s8 + $0x128] sm:$0xff]
    %v9113 = vld [vmem:[%s8 + $0x130] sm:$0xff]
    %v9114 = vld [vmem:[%s8 + $0x138] sm:$0xff]
    %v9115 = vld [vmem:[%s8 + $0x140] sm:$0xff]
    %v9116 = vld [vmem:[%s8 + $0x148] sm:$0xff]
    %v9117 = vld [vmem:[%s8 + $0x150] sm:$0xff]
    %v9118 = vld [vmem:[%s8 + $0x158] sm:$0xff]
    %v9119 = vld [vmem:[%s8 + $0x160] sm:$0xff]
    %v9120 = vld [vmem:[%s8 + $0x168] sm:$0xff]
    %v9121 = vld [vmem:[%s8 + $0x170] sm:$0xff]
    %v9122 = vld [vmem:[%s8 + $0x178] sm:$0xff]
    %v9123 = vld [vmem:[%s8 + $0x180] sm:$0xff]
    %v9124 = vld [vmem:[%s8 + $0x188] sm:$0xff]
    %v9125 = vld [vmem:[%s8 + $0x190] sm:$0xff]
    %v9126 = vld [vmem:[%s8 + $0x198] sm:$0xff]
    %v9127 = vld [vmem:[%s8 + $0x1a0] sm:$0xff]
    %v9128 = vld [vmem:[%s8 + $0x1a8] sm:$0xff]
    %v9129 = vld [vmem:[%s8 + $0x1b0] sm:$0xff]
    %v9130 = vld [vmem:[%s8 + $0x1b8] sm:$0xff]
    %v9131 = vld [vmem:[%s8 + $0x1c0] sm:$0xff]
    %v9132 = vld [vmem:[%s8 + $0x1c8] sm:$0xff]
    %v9133 = vld [vmem:[%s8 + $0x1d0] sm:$0xff]
    %v9134 = vld [vmem:[%s8 + $0x1d8] sm:$0xff]
    %v9135 = vld [vmem:[%s8 + $0x1e0] sm:$0xff]
    %v9136 = vld [vmem:[%s8 + $0x1e8] sm:$0xff]
    %v9137 = vld [vmem:[%s8 + $0x1f0] sm:$0xff]
    %v9138 = vld [vmem:[%s8 + $0x1f8] sm:$0xff]
    %v9139 = vld [vmem:[#allocation6] sm:$0xff]
    %v9140 = vld [vmem:[#allocation6 + $0x8] sm:$0xff]
    %v9141 = vld [vmem:[#allocation6 + $0x10] sm:$0xff]
    %v9142 = vld [vmem:[#allocation6 + $0x18] sm:$0xff]
    %v9143 = vld [vmem:[#allocation6 + $0x20] sm:$0xff]
    %v9144 = vld [vmem:[#allocation6 + $0x28] sm:$0xff]
    %v9145 = vld [vmem:[#allocation6 + $0x30] sm:$0xff]
    %v9146 = vld [vmem:[#allocation6 + $0x38] sm:$0xff]
    %v9147 = vld [vmem:[#allocation6 + $0x40] sm:$0xff]
    %v9148 = vld [vmem:[#allocation6 + $0x48] sm:$0xff]
    %v9149 = vld [vmem:[#allocation6 + $0x50] sm:$0xff]
    %v9150 = vld [vmem:[#allocation6 + $0x58] sm:$0xff]
    %v9151 = vld [vmem:[#allocation6 + $0x60] sm:$0xff]
    %v9152 = vld [vmem:[#allocation6 + $0x68] sm:$0xff]
    %v9153 = vld [vmem:[#allocation6 + $0x70] sm:$0xff]
    %v9154 = vld [vmem:[#allocation6 + $0x78] sm:$0xff]
    %v9155 = vld [vmem:[#allocation6 + $0x80] sm:$0xff]
    %v9156 = vld [vmem:[#allocation6 + $0x88] sm:$0xff]
    %v9157 = vld [vmem:[#allocation6 + $0x90] sm:$0xff]
    %v9158 = vld [vmem:[#allocation6 + $0x98] sm:$0xff]
    %v9159 = vld [vmem:[#allocation6 + $0xa0] sm:$0xff]
    %v9160 = vld [vmem:[#allocation6 + $0xa8] sm:$0xff]
    %v9161 = vld [vmem:[#allocation6 + $0xb0] sm:$0xff]
    %v9162 = vld [vmem:[#allocation6 + $0xb8] sm:$0xff]
    %v9163 = vld [vmem:[#allocation6 + $0xc0] sm:$0xff]
    %v9164 = vld [vmem:[#allocation6 + $0xc8] sm:$0xff]
    %v9165 = vld [vmem:[#allocation6 + $0xd0] sm:$0xff]
    %v9166 = vld [vmem:[#allocation6 + $0xd8] sm:$0xff]
    %v9167 = vld [vmem:[#allocation6 + $0xe0] sm:$0xff]
    %v9168 = vld [vmem:[#allocation6 + $0xe8] sm:$0xff]
    %v9169 = vld [vmem:[#allocation6 + $0xf0] sm:$0xff]
    %v9170 = vld [vmem:[#allocation6 + $0xf8] sm:$0xff]
    %v9171 = vld [vmem:[#allocation6 + $0x100] sm:$0xff]
    %v9172 = vld [vmem:[#allocation6 + $0x108] sm:$0xff]
    %v9173 = vld [vmem:[#allocation6 + $0x110] sm:$0xff]
    %v9174 = vld [vmem:[#allocation6 + $0x118] sm:$0xff]
    %v9175 = vld [vmem:[#allocation6 + $0x120] sm:$0xff]
    %v9176 = vld [vmem:[#allocation6 + $0x128] sm:$0xff]
    %v9177 = vld [vmem:[#allocation6 + $0x130] sm:$0xff]
    %v9178 = vld [vmem:[#allocation6 + $0x138] sm:$0xff]
    %v9179 = vld [vmem:[#allocation6 + $0x140] sm:$0xff]
    %v9180 = vld [vmem:[#allocation6 + $0x148] sm:$0xff]
    %v9181 = vld [vmem:[#allocation6 + $0x150] sm:$0xff]
    %v9182 = vld [vmem:[#allocation6 + $0x158] sm:$0xff]
    %v9183 = vld [vmem:[#allocation6 + $0x160] sm:$0xff]
    %v9184 = vld [vmem:[#allocation6 + $0x168] sm:$0xff]
    %v9185 = vld [vmem:[#allocation6 + $0x170] sm:$0xff]
    %v9186 = vld [vmem:[#allocation6 + $0x178] sm:$0xff]
    %v9187 = vld [vmem:[#allocation6 + $0x180] sm:$0xff]
    %v9188 = vld [vmem:[#allocation6 + $0x188] sm:$0xff]
    %v9189 = vld [vmem:[#allocation6 + $0x190] sm:$0xff]
    %v9190 = vld [vmem:[#allocation6 + $0x198] sm:$0xff]
    %v9191 = vld [vmem:[#allocation6 + $0x1a0] sm:$0xff]
    %v9192 = vld [vmem:[#allocation6 + $0x1a8] sm:$0xff]
    %v9193 = vld [vmem:[#allocation6 + $0x1b0] sm:$0xff]
    %v9194 = vld [vmem:[#allocation6 + $0x1b8] sm:$0xff]
    %v9195 = vld [vmem:[#allocation6 + $0x1c0] sm:$0xff]
    %v9196 = vld [vmem:[#allocation6 + $0x1c8] sm:$0xff]
    %v9197 = vld [vmem:[#allocation6 + $0x1d0] sm:$0xff]
    %v9198 = vld [vmem:[#allocation6 + $0x1d8] sm:$0xff]
    %v9199 = vld [vmem:[#allocation6 + $0x1e0] sm:$0xff]
    %v9200 = vld [vmem:[#allocation6 + $0x1e8] sm:$0xff]
    %v9201 = vld [vmem:[#allocation6 + $0x1f0] sm:$0xff]
    %v9202 = vld [vmem:[#allocation6 + $0x1f8] sm:$0xff]
    %v9267 = vlaneseq
    %v9268 = vand.u32 %v9267, 127
    %v9269 = vlaneseq
    %v9270 = vshrl.u32 %v9269, 7
    %v9271 = vsub.s32 %v9268, %v9270
    %v9272 = vrot.slane %v8885, %v9271
    %v9273 = vadd.s32 %v9268, 4294967288
    %v9274 = vlaneseq
    %v9275 = vshrl.u32 %v9274, 7
    %v9276 = vsub.s32 %v9273, %v9275
    %v9277 = vrot.slane %v8888, %v9276
    %vm9278 = vcmask 130112
    %v9279 = vsel %vm9278, %v9277, %v9272
    %v9280 = vadd.s32 %v9268, 4294967280
    %v9281 = vlaneseq
    %v9282 = vshrl.u32 %v9281, 7
    %v9283 = vsub.s32 %v9280, %v9282
    %v9284 = vrot.slane %v8891, %v9283
    %vm9285 = vcmask 195712
    %v9286 = vsel %vm9285, %v9284, %v9279
    %v9287 = vadd.s32 %v9268, 4294967272
    %v9288 = vlaneseq
    %v9289 = vshrl.u32 %v9288, 7
    %v9290 = vsub.s32 %v9287, %v9289
    %v9291 = vrot.slane %v8894, %v9290
    %vm9292 = vcmask 261312
    %v9293 = vsel %vm9292, %v9291, %v9286
    %v9294 = vadd.s32 %v9268, 4294967264
    %v9295 = vlaneseq
    %v9296 = vshrl.u32 %v9295, 7
    %v9297 = vsub.s32 %v9294, %v9296
    %v9298 = vrot.slane %v8897, %v9297
    %vm9299 = vcmask 326912
    %v9300 = vsel %vm9299, %v9298, %v9293
    %v9301 = vadd.s32 %v9268, 4294967256
    %v9302 = vlaneseq
    %v9303 = vshrl.u32 %v9302, 7
    %v9304 = vsub.s32 %v9301, %v9303
    %v9305 = vrot.slane %v8900, %v9304
    %vm9306 = vcmask 392512
    %v9307 = vsel %vm9306, %v9305, %v9300
    %v9308 = vadd.s32 %v9268, 4294967248
    %v9309 = vlaneseq
    %v9310 = vshrl.u32 %v9309, 7
    %v9311 = vsub.s32 %v9308, %v9310
    %v9312 = vrot.slane %v8903, %v9311
    %vm9313 = vcmask 458112
    %v9314 = vsel %vm9313, %v9312, %v9307
    %v9315 = vadd.s32 %v9268, 4294967240
    %v9316 = vlaneseq
    %v9317 = vshrl.u32 %v9316, 7
    %v9318 = vsub.s32 %v9315, %v9317
    %v9319 = vrot.slane %v8906, %v9318
    %vm9320 = vcmask 523712
    %v9321 = vsel %vm9320, %v9319, %v9314
    %v9322 = vadd.s32 %v9268, 4294967232
    %v9323 = vlaneseq
    %v9324 = vshrl.u32 %v9323, 7
    %v9325 = vsub.s32 %v9322, %v9324
    %v9326 = vrot.slane %v8909, %v9325
    %vm9327 = vcmask 589312
    %v9328 = vsel %vm9327, %v9326, %v9321
    %v9329 = vadd.s32 %v9268, 4294967224
    %v9330 = vlaneseq
    %v9331 = vshrl.u32 %v9330, 7
    %v9332 = vsub.s32 %v9329, %v9331
    %v9333 = vrot.slane %v8912, %v9332
    %vm9334 = vcmask 654912
    %v9335 = vsel %vm9334, %v9333, %v9328
    %v9336 = vadd.s32 %v9268, 4294967216
    %v9337 = vlaneseq
    %v9338 = vshrl.u32 %v9337, 7
    %v9339 = vsub.s32 %v9336, %v9338
    %v9340 = vrot.slane %v8915, %v9339
    %vm9341 = vcmask 720512
    %v9342 = vsel %vm9341, %v9340, %v9335
    %v9343 = vadd.s32 %v9268, 4294967208
    %v9344 = vlaneseq
    %v9345 = vshrl.u32 %v9344, 7
    %v9346 = vsub.s32 %v9343, %v9345
    %v9347 = vrot.slane %v8918, %v9346
    %vm9348 = vcmask 786112
    %v9349 = vsel %vm9348, %v9347, %v9342
    %v9350 = vadd.s32 %v9268, 4294967200
    %v9351 = vlaneseq
    %v9352 = vshrl.u32 %v9351, 7
    %v9353 = vsub.s32 %v9350, %v9352
    %v9354 = vrot.slane %v8921, %v9353
    %vm9355 = vcmask 851712
    %v9356 = vsel %vm9355, %v9354, %v9349
    %v9357 = vadd.s32 %v9268, 4294967192
    %v9358 = vlaneseq
    %v9359 = vshrl.u32 %v9358, 7
    %v9360 = vsub.s32 %v9357, %v9359
    %v9361 = vrot.slane %v8924, %v9360
    %vm9362 = vcmask 917312
    %v9363 = vsel %vm9362, %v9361, %v9356
    %v9364 = vadd.s32 %v9268, 4294967184
    %v9365 = vlaneseq
    %v9366 = vshrl.u32 %v9365, 7
    %v9367 = vsub.s32 %v9364, %v9366
    %v9368 = vrot.slane %v8927, %v9367
    %vm9369 = vcmask 982912
    %v9370 = vsel %vm9369, %v9368, %v9363
    %v9371 = vadd.s32 %v9268, 4294967176
    %v9372 = vlaneseq
    %v9373 = vshrl.u32 %v9372, 7
    %v9374 = vsub.s32 %v9371, %v9373
    %v9375 = vrot.slane %v8930, %v9374
    %vm9376 = vcmask 1048512
    %v9377 = vsel %vm9376, %v9375, %v9370
    %v9378 = vlaneseq
    %v9379 = vshrl.u32 %v9378, 7
    %v9380 = vsub.s32 %v9268, %v9379
    %v9381 = vrot.slane %v8933, %v9380
    %v9382 = vlaneseq
    %v9383 = vshrl.u32 %v9382, 7
    %v9384 = vsub.s32 %v9273, %v9383
    %v9385 = vrot.slane %v8936, %v9384
    %v9386 = vsel %vm9278, %v9385, %v9381
    %v9387 = vlaneseq
    %v9388 = vshrl.u32 %v9387, 7
    %v9389 = vsub.s32 %v9280, %v9388
    %v9390 = vrot.slane %v8939, %v9389
    %v9391 = vsel %vm9285, %v9390, %v9386
    %v9392 = vlaneseq
    %v9393 = vshrl.u32 %v9392, 7
    %v9394 = vsub.s32 %v9287, %v9393
    %v9395 = vrot.slane %v8942, %v9394
    %v9396 = vsel %vm9292, %v9395, %v9391
    %v9397 = vlaneseq
    %v9398 = vshrl.u32 %v9397, 7
    %v9399 = vsub.s32 %v9294, %v9398
    %v9400 = vrot.slane %v8945, %v9399
    %v9401 = vsel %vm9299, %v9400, %v9396
    %v9402 = vlaneseq
    %v9403 = vshrl.u32 %v9402, 7
    %v9404 = vsub.s32 %v9301, %v9403
    %v9405 = vrot.slane %v8948, %v9404
    %v9406 = vsel %vm9306, %v9405, %v9401
    %v9407 = vlaneseq
    %v9408 = vshrl.u32 %v9407, 7
    %v9409 = vsub.s32 %v9308, %v9408
    %v9410 = vrot.slane %v8951, %v9409
    %v9411 = vsel %vm9313, %v9410, %v9406
    %v9412 = vlaneseq
    %v9413 = vshrl.u32 %v9412, 7
    %v9414 = vsub.s32 %v9315, %v9413
    %v9415 = vrot.slane %v8954, %v9414
    %v9416 = vsel %vm9320, %v9415, %v9411
    %v9417 = vlaneseq
    %v9418 = vshrl.u32 %v9417, 7
    %v9419 = vsub.s32 %v9322, %v9418
    %v9420 = vrot.slane %v8957, %v9419
    %v9421 = vsel %vm9327, %v9420, %v9416
    %v9422 = vlaneseq
    %v9423 = vshrl.u32 %v9422, 7
    %v9424 = vsub.s32 %v9329, %v9423
    %v9425 = vrot.slane %v8960, %v9424
    %v9426 = vsel %vm9334, %v9425, %v9421
    %v9427 = vlaneseq
    %v9428 = vshrl.u32 %v9427, 7
    %v9429 = vsub.s32 %v9336, %v9428
    %v9430 = vrot.slane %v8963, %v9429
    %v9431 = vsel %vm9341, %v9430, %v9426
    %v9432 = vlaneseq
    %v9433 = vshrl.u32 %v9432, 7
    %v9434 = vsub.s32 %v9343, %v9433
    %v9435 = vrot.slane %v8966, %v9434
    %v9436 = vsel %vm9348, %v9435, %v9431
    %v9437 = vlaneseq
    %v9438 = vshrl.u32 %v9437, 7
    %v9439 = vsub.s32 %v9350, %v9438
    %v9440 = vrot.slane %v8969, %v9439
    %v9441 = vsel %vm9355, %v9440, %v9436
    %v9442 = vlaneseq
    %v9443 = vshrl.u32 %v9442, 7
    %v9444 = vsub.s32 %v9357, %v9443
    %v9445 = vrot.slane %v8972, %v9444
    %v9446 = vsel %vm9362, %v9445, %v9441
    %v9447 = vlaneseq
    %v9448 = vshrl.u32 %v9447, 7
    %v9449 = vsub.s32 %v9364, %v9448
    %v9450 = vrot.slane %v8975, %v9449
    %v9451 = vsel %vm9369, %v9450, %v9446
    %v9452 = vlaneseq
    %v9453 = vshrl.u32 %v9452, 7
    %v9454 = vsub.s32 %v9371, %v9453
    %v9455 = vrot.slane %v8978, %v9454
    %v9456 = vsel %vm9376, %v9455, %v9451
    %v9457 = vlaneseq
    %v9458 = vshrl.u32 %v9457, 7
    %v9459 = vsub.s32 %v9268, %v9458
    %v9460 = vrot.slane %v8981, %v9459
    %v9461 = vlaneseq
    %v9462 = vshrl.u32 %v9461, 7
    %v9463 = vsub.s32 %v9273, %v9462
    %v9464 = vrot.slane %v8984, %v9463
    %v9465 = vsel %vm9278, %v9464, %v9460
    %v9466 = vlaneseq
    %v9467 = vshrl.u32 %v9466, 7
    %v9468 = vsub.s32 %v9280, %v9467
    %v9469 = vrot.slane %v8987, %v9468
    %v9470 = vsel %vm9285, %v9469, %v9465
    %v9471 = vlaneseq
    %v9472 = vshrl.u32 %v9471, 7
    %v9473 = vsub.s32 %v9287, %v9472
    %v9474 = vrot.slane %v8990, %v9473
    %v9475 = vsel %vm9292, %v9474, %v9470
    %v9476 = vlaneseq
    %v9477 = vshrl.u32 %v9476, 7
    %v9478 = vsub.s32 %v9294, %v9477
    %v9479 = vrot.slane %v8993, %v9478
    %v9480 = vsel %vm9299, %v9479, %v9475
    %v9481 = vlaneseq
    %v9482 = vshrl.u32 %v9481, 7
    %v9483 = vsub.s32 %v9301, %v9482
    %v9484 = vrot.slane %v8996, %v9483
    %v9485 = vsel %vm9306, %v9484, %v9480
    %v9486 = vlaneseq
    %v9487 = vshrl.u32 %v9486, 7
    %v9488 = vsub.s32 %v9308, %v9487
    %v9489 = vrot.slane %v8999, %v9488
    %v9490 = vsel %vm9313, %v9489, %v9485
    %v9491 = vlaneseq
    %v9492 = vshrl.u32 %v9491, 7
    %v9493 = vsub.s32 %v9315, %v9492
    %v9494 = vrot.slane %v9002, %v9493
    %v9495 = vsel %vm9320, %v9494, %v9490
    %v9496 = vlaneseq
    %v9497 = vshrl.u32 %v9496, 7
    %v9498 = vsub.s32 %v9322, %v9497
    %v9499 = vrot.slane %v9005, %v9498
    %v9500 = vsel %vm9327, %v9499, %v9495
    %v9501 = vlaneseq
    %v9502 = vshrl.u32 %v9501, 7
    %v9503 = vsub.s32 %v9329, %v9502
    %v9504 = vrot.slane %v9008, %v9503
    %v9505 = vsel %vm9334, %v9504, %v9500
    %v9506 = vlaneseq
    %v9507 = vshrl.u32 %v9506, 7
    %v9508 = vsub.s32 %v9336, %v9507
    %v9509 = vrot.slane %v9011, %v9508
    %v9510 = vsel %vm9341, %v9509, %v9505
    %v9511 = vlaneseq
    %v9512 = vshrl.u32 %v9511, 7
    %v9513 = vsub.s32 %v9343, %v9512
    %v9514 = vrot.slane %v9014, %v9513
    %v9515 = vsel %vm9348, %v9514, %v9510
    %v9516 = vlaneseq
    %v9517 = vshrl.u32 %v9516, 7
    %v9518 = vsub.s32 %v9350, %v9517
    %v9519 = vrot.slane %v9017, %v9518
    %v9520 = vsel %vm9355, %v9519, %v9515
    %v9521 = vlaneseq
    %v9522 = vshrl.u32 %v9521, 7
    %v9523 = vsub.s32 %v9357, %v9522
    %v9524 = vrot.slane %v9020, %v9523
    %v9525 = vsel %vm9362, %v9524, %v9520
    %v9526 = vlaneseq
    %v9527 = vshrl.u32 %v9526, 7
    %v9528 = vsub.s32 %v9364, %v9527
    %v9529 = vrot.slane %v9023, %v9528
    %v9530 = vsel %vm9369, %v9529, %v9525
    %v9531 = vlaneseq
    %v9532 = vshrl.u32 %v9531, 7
    %v9533 = vsub.s32 %v9371, %v9532
    %v9534 = vrot.slane %v9026, %v9533
    %v9535 = vsel %vm9376, %v9534, %v9530
    %v9536 = vlaneseq
    %v9537 = vshrl.u32 %v9536, 7
    %v9538 = vsub.s32 %v9268, %v9537
    %v9539 = vrot.slane %v9029, %v9538
    %v9540 = vlaneseq
    %v9541 = vshrl.u32 %v9540, 7
    %v9542 = vsub.s32 %v9273, %v9541
    %v9543 = vrot.slane %v9032, %v9542
    %v9544 = vsel %vm9278, %v9543, %v9539
    %v9545 = vlaneseq
    %v9546 = vshrl.u32 %v9545, 7
    %v9547 = vsub.s32 %v9280, %v9546
    %v9548 = vrot.slane %v9035, %v9547
    %v9549 = vsel %vm9285, %v9548, %v9544
    %v9550 = vlaneseq
    %v9551 = vshrl.u32 %v9550, 7
    %v9552 = vsub.s32 %v9287, %v9551
    %v9553 = vrot.slane %v9038, %v9552
    %v9554 = vsel %vm9292, %v9553, %v9549
    %v9555 = vlaneseq
    %v9556 = vshrl.u32 %v9555, 7
    %v9557 = vsub.s32 %v9294, %v9556
    %v9558 = vrot.slane %v9041, %v9557
    %v9559 = vsel %vm9299, %v9558, %v9554
    %v9560 = vlaneseq
    %v9561 = vshrl.u32 %v9560, 7
    %v9562 = vsub.s32 %v9301, %v9561
    %v9563 = vrot.slane %v9044, %v9562
    %v9564 = vsel %vm9306, %v9563, %v9559
    %v9565 = vlaneseq
    %v9566 = vshrl.u32 %v9565, 7
    %v9567 = vsub.s32 %v9308, %v9566
    %v9568 = vrot.slane %v9047, %v9567
    %v9569 = vsel %vm9313, %v9568, %v9564
    %v9570 = vlaneseq
    %v9571 = vshrl.u32 %v9570, 7
    %v9572 = vsub.s32 %v9315, %v9571
    %v9573 = vrot.slane %v9050, %v9572
    %v9574 = vsel %vm9320, %v9573, %v9569
    %v9575 = vlaneseq
    %v9576 = vshrl.u32 %v9575, 7
    %v9577 = vsub.s32 %v9322, %v9576
    %v9578 = vrot.slane %v9053, %v9577
    %v9579 = vsel %vm9327, %v9578, %v9574
    %v9580 = vlaneseq
    %v9581 = vshrl.u32 %v9580, 7
    %v9582 = vsub.s32 %v9329, %v9581
    %v9583 = vrot.slane %v9056, %v9582
    %v9584 = vsel %vm9334, %v9583, %v9579
    %v9585 = vlaneseq
    %v9586 = vshrl.u32 %v9585, 7
    %v9587 = vsub.s32 %v9336, %v9586
    %v9588 = vrot.slane %v9059, %v9587
    %v9589 = vsel %vm9341, %v9588, %v9584
    %v9590 = vlaneseq
    %v9591 = vshrl.u32 %v9590, 7
    %v9592 = vsub.s32 %v9343, %v9591
    %v9593 = vrot.slane %v9062, %v9592
    %v9594 = vsel %vm9348, %v9593, %v9589
    %v9595 = vlaneseq
    %v9596 = vshrl.u32 %v9595, 7
    %v9597 = vsub.s32 %v9350, %v9596
    %v9598 = vrot.slane %v9065, %v9597
    %v9599 = vsel %vm9355, %v9598, %v9594
    %v9600 = vlaneseq
    %v9601 = vshrl.u32 %v9600, 7
    %v9602 = vsub.s32 %v9357, %v9601
    %v9603 = vrot.slane %v9068, %v9602
    %v9604 = vsel %vm9362, %v9603, %v9599
    %v9605 = vlaneseq
    %v9606 = vshrl.u32 %v9605, 7
    %v9607 = vsub.s32 %v9364, %v9606
    %v9608 = vrot.slane %v9071, %v9607
    %v9609 = vsel %vm9369, %v9608, %v9604
    %v9610 = vlaneseq
    %v9611 = vshrl.u32 %v9610, 7
    %v9612 = vsub.s32 %v9371, %v9611
    %v9613 = vrot.slane %v9074, %v9612
    %v9614 = vsel %vm9376, %v9613, %v9609
    %v9615 = vsel %vm8221, %v9535, %v9377
    %v9616 = vsel %vm8221, %v9614, %v9456
    %9619 = vmatprep.subr.mxu0 %v9170
    %9620 = vmatpush1.msra.mxu0 %v9169
    %9621 = vmatprep.subr.mxu0 %v9168
    %9622 = vmatpush1.msra.mxu0 %v9167
    %9623 = vmatprep.subr.mxu0 %v9166
    %9624 = vmatpush1.msra.mxu0 %v9165
    %9625 = vmatprep.subr.mxu0 %v9164
    %9626 = vmatpush1.msra.mxu0 %v9163
    %9627 = vmatprep.subr.mxu0 %v9162
    %9628 = vmatpush1.msra.mxu0 %v9161
    %9629 = vmatprep.subr.mxu0 %v9160
    %9630 = vmatpush1.msra.mxu0 %v9159
    %9631 = vmatprep.subr.mxu0 %v9158
    %9632 = vmatpush1.msra.mxu0 %v9157
    %9633 = vmatprep.subr.mxu0 %v9156
    %9634 = vmatpush1.msra.mxu0 %v9155
    %9635 = vmatprep.subr.mxu0 %v9154
    %9636 = vmatpush1.msra.mxu0 %v9153
    %9637 = vmatprep.subr.mxu0 %v9152
    %9638 = vmatpush1.msra.mxu0 %v9151
    %9639 = vmatprep.subr.mxu0 %v9150
    %9640 = vmatpush1.msra.mxu0 %v9149
    %9641 = vmatprep.subr.mxu0 %v9148
    %9642 = vmatpush1.msra.mxu0 %v9147
    %9643 = vmatprep.subr.mxu0 %v9146
    %9644 = vmatpush1.msra.mxu0 %v9145
    %9645 = vmatprep.subr.mxu0 %v9144
    %9646 = vmatpush1.msra.mxu0 %v9143
    %9647 = vmatprep.subr.mxu0 %v9142
    %9648 = vmatpush1.msra.mxu0 %v9141
    %9649 = vmatprep.subr.mxu0 %v9140
    %9650 = vmatpush1.msra.mxu0 %v9139
    %9651 = vmatprep.subr.mxu0 %v9202
    %9652 = vmatpush2.msra.mxu0 %v9201
    %9653 = vmatprep.subr.mxu0 %v9200
    %9654 = vmatpush2.msra.mxu0 %v9199
    %9655 = vmatprep.subr.mxu0 %v9198
    %9656 = vmatpush2.msra.mxu0 %v9197
    %9657 = vmatprep.subr.mxu0 %v9196
    %9658 = vmatpush2.msra.mxu0 %v9195
    %9659 = vmatprep.subr.mxu0 %v9194
    %9660 = vmatpush2.msra.mxu0 %v9193
    %9661 = vmatprep.subr.mxu0 %v9192
    %9662 = vmatpush2.msra.mxu0 %v9191
    %9663 = vmatprep.subr.mxu0 %v9190
    %9664 = vmatpush2.msra.mxu0 %v9189
    %9665 = vmatprep.subr.mxu0 %v9188
    %9666 = vmatpush2.msra.mxu0 %v9187
    %9667 = vmatprep.subr.mxu0 %v9186
    %9668 = vmatpush2.msra.mxu0 %v9185
    %9669 = vmatprep.subr.mxu0 %v9184
    %9670 = vmatpush2.msra.mxu0 %v9183
    %9671 = vmatprep.subr.mxu0 %v9182
    %9672 = vmatpush2.msra.mxu0 %v9181
    %9673 = vmatprep.subr.mxu0 %v9180
    %9674 = vmatpush2.msra.mxu0 %v9179
    %9675 = vmatprep.subr.mxu0 %v9178
    %9676 = vmatpush2.msra.mxu0 %v9177
    %9677 = vmatprep.subr.mxu0 %v9176
    %9678 = vmatpush2.msra.mxu0 %v9175
    %9679 = vmatprep.subr.mxu0 %v9174
    %9680 = vmatpush2.msra.mxu0 %v9173
    %9681 = vmatprep.subr.mxu0 %v9172
    %9682 = vmatpush2.msra.mxu0 %v9171
    %9683 = vmatprep.mubr.f32.mxu0 %v9616
    %9684 = vmatmul.mubr.f32.gmra.mxu0 %v9615
    %v9685 = vpop.f32.mrf.mxu0
    %v9686 = vadd.f32 0.0, %v9685
    %v9687 = vpop.f32.mrf.mxu0
    %v9688 = vadd.f32 0.0, %v9687
    %9689 = vdwg.mxu0
    %v9754 = vlaneseq
    %v9755 = vshrl.u32 %v9754, 7
    %v9756 = vsub.s32 %v9268, %v9755
    %v9757 = vrot.slane %v8819, %v9756
    %v9758 = vlaneseq
    %v9759 = vshrl.u32 %v9758, 7
    %v9760 = vsub.s32 %v9273, %v9759
    %v9761 = vrot.slane %v8820, %v9760
    %v9762 = vsel %vm9278, %v9761, %v9757
    %v9763 = vlaneseq
    %v9764 = vshrl.u32 %v9763, 7
    %v9765 = vsub.s32 %v9280, %v9764
    %v9766 = vrot.slane %v8821, %v9765
    %v9767 = vsel %vm9285, %v9766, %v9762
    %v9768 = vlaneseq
    %v9769 = vshrl.u32 %v9768, 7
    %v9770 = vsub.s32 %v9287, %v9769
    %v9771 = vrot.slane %v8822, %v9770
    %v9772 = vsel %vm9292, %v9771, %v9767
    %v9773 = vlaneseq
    %v9774 = vshrl.u32 %v9773, 7
    %v9775 = vsub.s32 %v9294, %v9774
    %v9776 = vrot.slane %v8823, %v9775
    %v9777 = vsel %vm9299, %v9776, %v9772
    %v9778 = vlaneseq
    %v9779 = vshrl.u32 %v9778, 7
    %v9780 = vsub.s32 %v9301, %v9779
    %v9781 = vrot.slane %v8824, %v9780
    %v9782 = vsel %vm9306, %v9781, %v9777
    %v9783 = vlaneseq
    %v9784 = vshrl.u32 %v9783, 7
    %v9785 = vsub.s32 %v9308, %v9784
    %v9786 = vrot.slane %v8825, %v9785
    %v9787 = vsel %vm9313, %v9786, %v9782
    %v9788 = vlaneseq
    %v9789 = vshrl.u32 %v9788, 7
    %v9790 = vsub.s32 %v9315, %v9789
    %v9791 = vrot.slane %v8826, %v9790
    %v9792 = vsel %vm9320, %v9791, %v9787
    %v9793 = vlaneseq
    %v9794 = vshrl.u32 %v9793, 7
    %v9795 = vsub.s32 %v9322, %v9794
    %v9796 = vrot.slane %v8827, %v9795
    %v9797 = vsel %vm9327, %v9796, %v9792
    %v9798 = vlaneseq
    %v9799 = vshrl.u32 %v9798, 7
    %v9800 = vsub.s32 %v9329, %v9799
    %v9801 = vrot.slane %v8828, %v9800
    %v9802 = vsel %vm9334, %v9801, %v9797
    %v9803 = vlaneseq
    %v9804 = vshrl.u32 %v9803, 7
    %v9805 = vsub.s32 %v9336, %v9804
    %v9806 = vrot.slane %v8829, %v9805
    %v9807 = vsel %vm9341, %v9806, %v9802
    %v9808 = vlaneseq
    %v9809 = vshrl.u32 %v9808, 7
    %v9810 = vsub.s32 %v9343, %v9809
    %v9811 = vrot.slane %v8830, %v9810
    %v9812 = vsel %vm9348, %v9811, %v9807
    %v9813 = vlaneseq
    %v9814 = vshrl.u32 %v9813, 7
    %v9815 = vsub.s32 %v9350, %v9814
    %v9816 = vrot.slane %v8831, %v9815
    %v9817 = vsel %vm9355, %v9816, %v9812
    %v9818 = vlaneseq
    %v9819 = vshrl.u32 %v9818, 7
    %v9820 = vsub.s32 %v9357, %v9819
    %v9821 = vrot.slane %v8832, %v9820
    %v9822 = vsel %vm9362, %v9821, %v9817
    %v9823 = vlaneseq
    %v9824 = vshrl.u32 %v9823, 7
    %v9825 = vsub.s32 %v9364, %v9824
    %v9826 = vrot.slane %v8833, %v9825
    %v9827 = vsel %vm9369, %v9826, %v9822
    %v9828 = vlaneseq
    %v9829 = vshrl.u32 %v9828, 7
    %v9830 = vsub.s32 %v9371, %v9829
    %v9831 = vrot.slane %v8834, %v9830
    %v9832 = vsel %vm9376, %v9831, %v9827
    %v9833 = vlaneseq
    %v9834 = vshrl.u32 %v9833, 7
    %v9835 = vsub.s32 %v9268, %v9834
    %v9836 = vrot.slane %v8835, %v9835
    %v9837 = vlaneseq
    %v9838 = vshrl.u32 %v9837, 7
    %v9839 = vsub.s32 %v9273, %v9838
    %v9840 = vrot.slane %v8836, %v9839
    %v9841 = vsel %vm9278, %v9840, %v9836
    %v9842 = vlaneseq
    %v9843 = vshrl.u32 %v9842, 7
    %v9844 = vsub.s32 %v9280, %v9843
    %v9845 = vrot.slane %v8837, %v9844
    %v9846 = vsel %vm9285, %v9845, %v9841
    %v9847 = vlaneseq
    %v9848 = vshrl.u32 %v9847, 7
    %v9849 = vsub.s32 %v9287, %v9848
    %v9850 = vrot.slane %v8838, %v9849
    %v9851 = vsel %vm9292, %v9850, %v9846
    %v9852 = vlaneseq
    %v9853 = vshrl.u32 %v9852, 7
    %v9854 = vsub.s32 %v9294, %v9853
    %v9855 = vrot.slane %v8839, %v9854
    %v9856 = vsel %vm9299, %v9855, %v9851
    %v9857 = vlaneseq
    %v9858 = vshrl.u32 %v9857, 7
    %v9859 = vsub.s32 %v9301, %v9858
    %v9860 = vrot.slane %v8840, %v9859
    %v9861 = vsel %vm9306, %v9860, %v9856
    %v9862 = vlaneseq
    %v9863 = vshrl.u32 %v9862, 7
    %v9864 = vsub.s32 %v9308, %v9863
    %v9865 = vrot.slane %v8841, %v9864
    %v9866 = vsel %vm9313, %v9865, %v9861
    %v9867 = vlaneseq
    %v9868 = vshrl.u32 %v9867, 7
    %v9869 = vsub.s32 %v9315, %v9868
    %v9870 = vrot.slane %v8842, %v9869
    %v9871 = vsel %vm9320, %v9870, %v9866
    %v9872 = vlaneseq
    %v9873 = vshrl.u32 %v9872, 7
    %v9874 = vsub.s32 %v9322, %v9873
    %v9875 = vrot.slane %v8843, %v9874
    %v9876 = vsel %vm9327, %v9875, %v9871
    %v9877 = vlaneseq
    %v9878 = vshrl.u32 %v9877, 7
    %v9879 = vsub.s32 %v9329, %v9878
    %v9880 = vrot.slane %v8844, %v9879
    %v9881 = vsel %vm9334, %v9880, %v9876
    %v9882 = vlaneseq
    %v9883 = vshrl.u32 %v9882, 7
    %v9884 = vsub.s32 %v9336, %v9883
    %v9885 = vrot.slane %v8845, %v9884
    %v9886 = vsel %vm9341, %v9885, %v9881
    %v9887 = vlaneseq
    %v9888 = vshrl.u32 %v9887, 7
    %v9889 = vsub.s32 %v9343, %v9888
    %v9890 = vrot.slane %v8846, %v9889
    %v9891 = vsel %vm9348, %v9890, %v9886
    %v9892 = vlaneseq
    %v9893 = vshrl.u32 %v9892, 7
    %v9894 = vsub.s32 %v9350, %v9893
    %v9895 = vrot.slane %v8847, %v9894
    %v9896 = vsel %vm9355, %v9895, %v9891
    %v9897 = vlaneseq
    %v9898 = vshrl.u32 %v9897, 7
    %v9899 = vsub.s32 %v9357, %v9898
    %v9900 = vrot.slane %v8848, %v9899
    %v9901 = vsel %vm9362, %v9900, %v9896
    %v9902 = vlaneseq
    %v9903 = vshrl.u32 %v9902, 7
    %v9904 = vsub.s32 %v9364, %v9903
    %v9905 = vrot.slane %v8849, %v9904
    %v9906 = vsel %vm9369, %v9905, %v9901
    %v9907 = vlaneseq
    %v9908 = vshrl.u32 %v9907, 7
    %v9909 = vsub.s32 %v9371, %v9908
    %v9910 = vrot.slane %v8850, %v9909
    %v9911 = vsel %vm9376, %v9910, %v9906
    %v9912 = vlaneseq
    %v9913 = vshrl.u32 %v9912, 7
    %v9914 = vsub.s32 %v9268, %v9913
    %v9915 = vrot.slane %v8851, %v9914
    %v9916 = vlaneseq
    %v9917 = vshrl.u32 %v9916, 7
    %v9918 = vsub.s32 %v9273, %v9917
    %v9919 = vrot.slane %v8852, %v9918
    %v9920 = vsel %vm9278, %v9919, %v9915
    %v9921 = vlaneseq
    %v9922 = vshrl.u32 %v9921, 7
    %v9923 = vsub.s32 %v9280, %v9922
    %v9924 = vrot.slane %v8853, %v9923
    %v9925 = vsel %vm9285, %v9924, %v9920
    %v9926 = vlaneseq
    %v9927 = vshrl.u32 %v9926, 7
    %v9928 = vsub.s32 %v9287, %v9927
    %v9929 = vrot.slane %v8854, %v9928
    %v9930 = vsel %vm9292, %v9929, %v9925
    %v9931 = vlaneseq
    %v9932 = vshrl.u32 %v9931, 7
    %v9933 = vsub.s32 %v9294, %v9932
    %v9934 = vrot.slane %v8855, %v9933
    %v9935 = vsel %vm9299, %v9934, %v9930
    %v9936 = vlaneseq
    %v9937 = vshrl.u32 %v9936, 7
    %v9938 = vsub.s32 %v9301, %v9937
    %v9939 = vrot.slane %v8856, %v9938
    %v9940 = vsel %vm9306, %v9939, %v9935
    %v9941 = vlaneseq
    %v9942 = vshrl.u32 %v9941, 7
    %v9943 = vsub.s32 %v9308, %v9942
    %v9944 = vrot.slane %v8857, %v9943
    %v9945 = vsel %vm9313, %v9944, %v9940
    %v9946 = vlaneseq
    %v9947 = vshrl.u32 %v9946, 7
    %v9948 = vsub.s32 %v9315, %v9947
    %v9949 = vrot.slane %v8858, %v9948
    %v9950 = vsel %vm9320, %v9949, %v9945
    %v9951 = vlaneseq
    %v9952 = vshrl.u32 %v9951, 7
    %v9953 = vsub.s32 %v9322, %v9952
    %v9954 = vrot.slane %v8859, %v9953
    %v9955 = vsel %vm9327, %v9954, %v9950
    %v9956 = vlaneseq
    %v9957 = vshrl.u32 %v9956, 7
    %v9958 = vsub.s32 %v9329, %v9957
    %v9959 = vrot.slane %v8860, %v9958
    %v9960 = vsel %vm9334, %v9959, %v9955
    %v9961 = vlaneseq
    %v9962 = vshrl.u32 %v9961, 7
    %v9963 = vsub.s32 %v9336, %v9962
    %v9964 = vrot.slane %v8861, %v9963
    %v9965 = vsel %vm9341, %v9964, %v9960
    %v9966 = vlaneseq
    %v9967 = vshrl.u32 %v9966, 7
    %v9968 = vsub.s32 %v9343, %v9967
    %v9969 = vrot.slane %v8862, %v9968
    %v9970 = vsel %vm9348, %v9969, %v9965
    %v9971 = vlaneseq
    %v9972 = vshrl.u32 %v9971, 7
    %v9973 = vsub.s32 %v9350, %v9972
    %v9974 = vrot.slane %v8863, %v9973
    %v9975 = vsel %vm9355, %v9974, %v9970
    %v9976 = vlaneseq
    %v9977 = vshrl.u32 %v9976, 7
    %v9978 = vsub.s32 %v9357, %v9977
    %v9979 = vrot.slane %v8864, %v9978
    %v9980 = vsel %vm9362, %v9979, %v9975
    %v9981 = vlaneseq
    %v9982 = vshrl.u32 %v9981, 7
    %v9983 = vsub.s32 %v9364, %v9982
    %v9984 = vrot.slane %v8865, %v9983
    %v9985 = vsel %vm9369, %v9984, %v9980
    %v9986 = vlaneseq
    %v9987 = vshrl.u32 %v9986, 7
    %v9988 = vsub.s32 %v9371, %v9987
    %v9989 = vrot.slane %v8866, %v9988
    %v9990 = vsel %vm9376, %v9989, %v9985
    %v9991 = vlaneseq
    %v9992 = vshrl.u32 %v9991, 7
    %v9993 = vsub.s32 %v9268, %v9992
    %v9994 = vrot.slane %v8867, %v9993
    %v9995 = vlaneseq
    %v9996 = vshrl.u32 %v9995, 7
    %v9997 = vsub.s32 %v9273, %v9996
    %v9998 = vrot.slane %v8868, %v9997
    %v9999 = vsel %vm9278, %v9998, %v9994
    %v10000 = vlaneseq
    %v10001 = vshrl.u32 %v10000, 7
    %v10002 = vsub.s32 %v9280, %v10001
    %v10003 = vrot.slane %v8869, %v10002
    %v10004 = vsel %vm9285, %v10003, %v9999
    %v10005 = vlaneseq
    %v10006 = vshrl.u32 %v10005, 7
    %v10007 = vsub.s32 %v9287, %v10006
    %v10008 = vrot.slane %v8870, %v10007
    %v10009 = vsel %vm9292, %v10008, %v10004
    %v10010 = vlaneseq
    %v10011 = vshrl.u32 %v10010, 7
    %v10012 = vsub.s32 %v9294, %v10011
    %v10013 = vrot.slane %v8871, %v10012
    %v10014 = vsel %vm9299, %v10013, %v10009
    %v10015 = vlaneseq
    %v10016 = vshrl.u32 %v10015, 7
    %v10017 = vsub.s32 %v9301, %v10016
    %v10018 = vrot.slane %v8872, %v10017
    %v10019 = vsel %vm9306, %v10018, %v10014
    %v10020 = vlaneseq
    %v10021 = vshrl.u32 %v10020, 7
    %v10022 = vsub.s32 %v9308, %v10021
    %v10023 = vrot.slane %v8873, %v10022
    %v10024 = vsel %vm9313, %v10023, %v10019
    %v10025 = vlaneseq
    %v10026 = vshrl.u32 %v10025, 7
    %v10027 = vsub.s32 %v9315, %v10026
    %v10028 = vrot.slane %v8874, %v10027
    %v10029 = vsel %vm9320, %v10028, %v10024
    %v10030 = vlaneseq
    %v10031 = vshrl.u32 %v10030, 7
    %v10032 = vsub.s32 %v9322, %v10031
    %v10033 = vrot.slane %v8875, %v10032
    %v10034 = vsel %vm9327, %v10033, %v10029
    %v10035 = vlaneseq
    %v10036 = vshrl.u32 %v10035, 7
    %v10037 = vsub.s32 %v9329, %v10036
    %v10038 = vrot.slane %v8876, %v10037
    %v10039 = vsel %vm9334, %v10038, %v10034
    %v10040 = vlaneseq
    %v10041 = vshrl.u32 %v10040, 7
    %v10042 = vsub.s32 %v9336, %v10041
    %v10043 = vrot.slane %v8877, %v10042
    %v10044 = vsel %vm9341, %v10043, %v10039
    %v10045 = vlaneseq
    %v10046 = vshrl.u32 %v10045, 7
    %v10047 = vsub.s32 %v9343, %v10046
    %v10048 = vrot.slane %v8878, %v10047
    %v10049 = vsel %vm9348, %v10048, %v10044
    %v10050 = vlaneseq
    %v10051 = vshrl.u32 %v10050, 7
    %v10052 = vsub.s32 %v9350, %v10051
    %v10053 = vrot.slane %v8879, %v10052
    %v10054 = vsel %vm9355, %v10053, %v10049
    %v10055 = vlaneseq
    %v10056 = vshrl.u32 %v10055, 7
    %v10057 = vsub.s32 %v9357, %v10056
    %v10058 = vrot.slane %v8880, %v10057
    %v10059 = vsel %vm9362, %v10058, %v10054
    %v10060 = vlaneseq
    %v10061 = vshrl.u32 %v10060, 7
    %v10062 = vsub.s32 %v9364, %v10061
    %v10063 = vrot.slane %v8881, %v10062
    %v10064 = vsel %vm9369, %v10063, %v10059
    %v10065 = vlaneseq
    %v10066 = vshrl.u32 %v10065, 7
    %v10067 = vsub.s32 %v9371, %v10066
    %v10068 = vrot.slane %v8882, %v10067
    %v10069 = vsel %vm9376, %v10068, %v10064
    %v10070 = vsel %vm8221, %v9990, %v9832
    %v10071 = vsel %vm8221, %v10069, %v9911
    %10074 = vmatprep.subr.mxu0 %v9106
    %10075 = vmatpush1.msra.mxu0 %v9105
    %10076 = vmatprep.subr.mxu0 %v9104
    %10077 = vmatpush1.msra.mxu0 %v9103
    %10078 = vmatprep.subr.mxu0 %v9102
    %10079 = vmatpush1.msra.mxu0 %v9101
    %10080 = vmatprep.subr.mxu0 %v9100
    %10081 = vmatpush1.msra.mxu0 %v9099
    %10082 = vmatprep.subr.mxu0 %v9098
    %10083 = vmatpush1.msra.mxu0 %v9097
    %10084 = vmatprep.subr.mxu0 %v9096
    %10085 = vmatpush1.msra.mxu0 %v9095
    %10086 = vmatprep.subr.mxu0 %v9094
    %10087 = vmatpush1.msra.mxu0 %v9093
    %10088 = vmatprep.subr.mxu0 %v9092
    %10089 = vmatpush1.msra.mxu0 %v9091
    %10090 = vmatprep.subr.mxu0 %v9090
    %10091 = vmatpush1.msra.mxu0 %v9089
    %10092 = vmatprep.subr.mxu0 %v9088
    %10093 = vmatpush1.msra.mxu0 %v9087
    %10094 = vmatprep.subr.mxu0 %v9086
    %10095 = vmatpush1.msra.mxu0 %v9085
    %10096 = vmatprep.subr.mxu0 %v9084
    %10097 = vmatpush1.msra.mxu0 %v9083
    %10098 = vmatprep.subr.mxu0 %v9082
    %10099 = vmatpush1.msra.mxu0 %v9081
    %10100 = vmatprep.subr.mxu0 %v9080
    %10101 = vmatpush1.msra.mxu0 %v9079
    %10102 = vmatprep.subr.mxu0 %v9078
    %10103 = vmatpush1.msra.mxu0 %v9077
    %10104 = vmatprep.subr.mxu0 %v9076
    %10105 = vmatpush1.msra.mxu0 %v9075
    %10106 = vmatprep.subr.mxu0 %v9138
    %10107 = vmatpush2.msra.mxu0 %v9137
    %10108 = vmatprep.subr.mxu0 %v9136
    %10109 = vmatpush2.msra.mxu0 %v9135
    %10110 = vmatprep.subr.mxu0 %v9134
    %10111 = vmatpush2.msra.mxu0 %v9133
    %10112 = vmatprep.subr.mxu0 %v9132
    %10113 = vmatpush2.msra.mxu0 %v9131
    %10114 = vmatprep.subr.mxu0 %v9130
    %10115 = vmatpush2.msra.mxu0 %v9129
    %10116 = vmatprep.subr.mxu0 %v9128
    %10117 = vmatpush2.msra.mxu0 %v9127
    %10118 = vmatprep.subr.mxu0 %v9126
    %10119 = vmatpush2.msra.mxu0 %v9125
    %10120 = vmatprep.subr.mxu0 %v9124
    %10121 = vmatpush2.msra.mxu0 %v9123
    %10122 = vmatprep.subr.mxu0 %v9122
    %10123 = vmatpush2.msra.mxu0 %v9121
    %10124 = vmatprep.subr.mxu0 %v9120
    %10125 = vmatpush2.msra.mxu0 %v9119
    %10126 = vmatprep.subr.mxu0 %v9118
    %10127 = vmatpush2.msra.mxu0 %v9117
    %10128 = vmatprep.subr.mxu0 %v9116
    %10129 = vmatpush2.msra.mxu0 %v9115
    %10130 = vmatprep.subr.mxu0 %v9114
    %10131 = vmatpush2.msra.mxu0 %v9113
    %10132 = vmatprep.subr.mxu0 %v9112
    %10133 = vmatpush2.msra.mxu0 %v9111
    %10134 = vmatprep.subr.mxu0 %v9110
    %10135 = vmatpush2.msra.mxu0 %v9109
    %10136 = vmatprep.subr.mxu0 %v9108
    %10137 = vmatpush2.msra.mxu0 %v9107
    %10138 = vmatprep.mubr.f32.mxu0 %v10071
    %10139 = vmatmul.mubr.f32.gmra.mxu0 %v10070
    %v10140 = vpop.f32.mrf.mxu0
    %v10141 = vadd.f32 %v9686, %v10140
    %v10142 = vpop.f32.mrf.mxu0
    %v10143 = vadd.f32 %v9688, %v10142
    %10144 = vdwg.mxu0
    %v10145 = vxor.u32 %v10141, 2147483648
    %v10146 = vxor.u32 %v10143, 2147483648
    %v10147 = vmul.f32 %v10145, 1.442695
    %v10148 = vpow.pop %v10147
    %v10149 = vmul.f32 %v10146, 1.442695
    %v10150 = vpow.pop %v10149
    %v10151 = vadd.f32 %v10148, 1.0
    %v10152 = vadd.f32 %v10150, 1.0
    %v10153 = vrcp.pop %v10151
    %v10154 = vmul.f32 1.0, %v10153
    %v10155 = vrcp.pop %v10152
    %v10156 = vmul.f32 1.0, %v10155
    %v10157 = vlaneseq
    %v10158 = vshrl.u32 %v10157, 7
    %v10159 = vsub.s32 0, %v10158
    %v10160 = vrot.slane %v10154, %v10159
    %10162 = vbcast.lane.b32.xlu0 %v10160, 256
    %v10163 = vpop.permute.xlu0 %10162
    %s10165 = sor.u32 256, 8
    %10166 = vbcast.lane.b32.xlu0 %v10160, %s10165
    %v10167 = vpop.permute.xlu0 %10166
    %s10169 = sor.u32 256, 16
    %10170 = vbcast.lane.b32.xlu0 %v10160, %s10169
    %v10171 = vpop.permute.xlu0 %10170
    %s10173 = sor.u32 256, 24
    %10174 = vbcast.lane.b32.xlu0 %v10160, %s10173
    %v10175 = vpop.permute.xlu0 %10174
    %s10177 = sor.u32 256, 32
    %10178 = vbcast.lane.b32.xlu0 %v10160, %s10177
    %v10179 = vpop.permute.xlu0 %10178
    %s10181 = sor.u32 256, 40
    %10182 = vbcast.lane.b32.xlu0 %v10160, %s10181
    %v10183 = vpop.permute.xlu0 %10182
    %s10185 = sor.u32 256, 48
    %10186 = vbcast.lane.b32.xlu0 %v10160, %s10185
    %v10187 = vpop.permute.xlu0 %10186
    %s10189 = sor.u32 256, 56
    %10190 = vbcast.lane.b32.xlu0 %v10160, %s10189
    %v10191 = vpop.permute.xlu0 %10190
    %s10193 = sor.u32 256, 64
    %10194 = vbcast.lane.b32.xlu0 %v10160, %s10193
    %v10195 = vpop.permute.xlu0 %10194
    %s10197 = sor.u32 256, 72
    %10198 = vbcast.lane.b32.xlu0 %v10160, %s10197
    %v10199 = vpop.permute.xlu0 %10198
    %s10201 = sor.u32 256, 80
    %10202 = vbcast.lane.b32.xlu0 %v10160, %s10201
    %v10203 = vpop.permute.xlu0 %10202
    %s10205 = sor.u32 256, 88
    %10206 = vbcast.lane.b32.xlu0 %v10160, %s10205
    %v10207 = vpop.permute.xlu0 %10206
    %s10209 = sor.u32 256, 96
    %10210 = vbcast.lane.b32.xlu0 %v10160, %s10209
    %v10211 = vpop.permute.xlu0 %10210
    %s10213 = sor.u32 256, 104
    %10214 = vbcast.lane.b32.xlu0 %v10160, %s10213
    %v10215 = vpop.permute.xlu0 %10214
    %s10217 = sor.u32 256, 112
    %10218 = vbcast.lane.b32.xlu0 %v10160, %s10217
    %v10219 = vpop.permute.xlu0 %10218
    %s10221 = sor.u32 256, 120
    %10222 = vbcast.lane.b32.xlu0 %v10160, %s10221
    %v10223 = vpop.permute.xlu0 %10222
    %v10224 = vlaneseq
    %v10225 = vshrl.u32 %v10224, 7
    %v10226 = vsub.s32 0, %v10225
    %v10227 = vrot.slane %v10156, %v10226
    %10229 = vbcast.lane.b32.xlu0 %v10227, 256
    %v10230 = vpop.permute.xlu0 %10229
    %s10232 = sor.u32 256, 8
    %10233 = vbcast.lane.b32.xlu0 %v10227, %s10232
    %v10234 = vpop.permute.xlu0 %10233
    %s10236 = sor.u32 256, 16
    %10237 = vbcast.lane.b32.xlu0 %v10227, %s10236
    %v10238 = vpop.permute.xlu0 %10237
    %s10240 = sor.u32 256, 24
    %10241 = vbcast.lane.b32.xlu0 %v10227, %s10240
    %v10242 = vpop.permute.xlu0 %10241
    %s10244 = sor.u32 256, 32
    %10245 = vbcast.lane.b32.xlu0 %v10227, %s10244
    %v10246 = vpop.permute.xlu0 %10245
    %s10248 = sor.u32 256, 40
    %10249 = vbcast.lane.b32.xlu0 %v10227, %s10248
    %v10250 = vpop.permute.xlu0 %10249
    %s10252 = sor.u32 256, 48
    %10253 = vbcast.lane.b32.xlu0 %v10227, %s10252
    %v10254 = vpop.permute.xlu0 %10253
    %s10256 = sor.u32 256, 56
    %10257 = vbcast.lane.b32.xlu0 %v10227, %s10256
    %v10258 = vpop.permute.xlu0 %10257
    %s10260 = sor.u32 256, 64
    %10261 = vbcast.lane.b32.xlu0 %v10227, %s10260
    %v10262 = vpop.permute.xlu0 %10261
    %s10264 = sor.u32 256, 72
    %10265 = vbcast.lane.b32.xlu0 %v10227, %s10264
    %v10266 = vpop.permute.xlu0 %10265
    %s10268 = sor.u32 256, 80
    %10269 = vbcast.lane.b32.xlu0 %v10227, %s10268
    %v10270 = vpop.permute.xlu0 %10269
    %s10272 = sor.u32 256, 88
    %10273 = vbcast.lane.b32.xlu0 %v10227, %s10272
    %v10274 = vpop.permute.xlu0 %10273
    %s10276 = sor.u32 256, 96
    %10277 = vbcast.lane.b32.xlu0 %v10227, %s10276
    %v10278 = vpop.permute.xlu0 %10277
    %s10280 = sor.u32 256, 104
    %10281 = vbcast.lane.b32.xlu0 %v10227, %s10280
    %v10282 = vpop.permute.xlu0 %10281
    %s10284 = sor.u32 256, 112
    %10285 = vbcast.lane.b32.xlu0 %v10227, %s10284
    %v10286 = vpop.permute.xlu0 %10285
    %s10288 = sor.u32 256, 120
    %10289 = vbcast.lane.b32.xlu0 %v10227, %s10288
    %v10290 = vpop.permute.xlu0 %10289
    %v10291 = vlaneseq
    %v10292 = vshrl.u32 %v10291, 7
    %v10293 = vsub.s32 1, %v10292
    %v10294 = vrot.slane %v10154, %v10293
    %10296 = vbcast.lane.b32.xlu0 %v10294, 256
    %v10297 = vpop.permute.xlu0 %10296
    %s10299 = sor.u32 256, 8
    %10300 = vbcast.lane.b32.xlu0 %v10294, %s10299
    %v10301 = vpop.permute.xlu0 %10300
    %s10303 = sor.u32 256, 16
    %10304 = vbcast.lane.b32.xlu0 %v10294, %s10303
    %v10305 = vpop.permute.xlu0 %10304
    %s10307 = sor.u32 256, 24
    %10308 = vbcast.lane.b32.xlu0 %v10294, %s10307
    %v10309 = vpop.permute.xlu0 %10308
    %s10311 = sor.u32 256, 32
    %10312 = vbcast.lane.b32.xlu0 %v10294, %s10311
    %v10313 = vpop.permute.xlu0 %10312
    %s10315 = sor.u32 256, 40
    %10316 = vbcast.lane.b32.xlu0 %v10294, %s10315
    %v10317 = vpop.permute.xlu0 %10316
    %s10319 = sor.u32 256, 48
    %10320 = vbcast.lane.b32.xlu0 %v10294, %s10319
    %v10321 = vpop.permute.xlu0 %10320
    %s10323 = sor.u32 256, 56
    %10324 = vbcast.lane.b32.xlu0 %v10294, %s10323
    %v10325 = vpop.permute.xlu0 %10324
    %s10327 = sor.u32 256, 64
    %10328 = vbcast.lane.b32.xlu0 %v10294, %s10327
    %v10329 = vpop.permute.xlu0 %10328
    %s10331 = sor.u32 256, 72
    %10332 = vbcast.lane.b32.xlu0 %v10294, %s10331
    %v10333 = vpop.permute.xlu0 %10332
    %s10335 = sor.u32 256, 80
    %10336 = vbcast.lane.b32.xlu0 %v10294, %s10335
    %v10337 = vpop.permute.xlu0 %10336
    %s10339 = sor.u32 256, 88
    %10340 = vbcast.lane.b32.xlu0 %v10294, %s10339
    %v10341 = vpop.permute.xlu0 %10340
    %s10343 = sor.u32 256, 96
    %10344 = vbcast.lane.b32.xlu0 %v10294, %s10343
    %v10345 = vpop.permute.xlu0 %10344
    %s10347 = sor.u32 256, 104
    %10348 = vbcast.lane.b32.xlu0 %v10294, %s10347
    %v10349 = vpop.permute.xlu0 %10348
    %s10351 = sor.u32 256, 112
    %10352 = vbcast.lane.b32.xlu0 %v10294, %s10351
    %v10353 = vpop.permute.xlu0 %10352
    %s10355 = sor.u32 256, 120
    %10356 = vbcast.lane.b32.xlu0 %v10294, %s10355
    %v10357 = vpop.permute.xlu0 %10356
    %v10358 = vlaneseq
    %v10359 = vshrl.u32 %v10358, 7
    %v10360 = vsub.s32 1, %v10359
    %v10361 = vrot.slane %v10156, %v10360
    %10363 = vbcast.lane.b32.xlu0 %v10361, 256
    %v10364 = vpop.permute.xlu0 %10363
    %s10366 = sor.u32 256, 8
    %10367 = vbcast.lane.b32.xlu0 %v10361, %s10366
    %v10368 = vpop.permute.xlu0 %10367
    %s10370 = sor.u32 256, 16
    %10371 = vbcast.lane.b32.xlu0 %v10361, %s10370
    %v10372 = vpop.permute.xlu0 %10371
    %s10374 = sor.u32 256, 24
    %10375 = vbcast.lane.b32.xlu0 %v10361, %s10374
    %v10376 = vpop.permute.xlu0 %10375
    %s10378 = sor.u32 256, 32
    %10379 = vbcast.lane.b32.xlu0 %v10361, %s10378
    %v10380 = vpop.permute.xlu0 %10379
    %s10382 = sor.u32 256, 40
    %10383 = vbcast.lane.b32.xlu0 %v10361, %s10382
    %v10384 = vpop.permute.xlu0 %10383
    %s10386 = sor.u32 256, 48
    %10387 = vbcast.lane.b32.xlu0 %v10361, %s10386
    %v10388 = vpop.permute.xlu0 %10387
    %s10390 = sor.u32 256, 56
    %10391 = vbcast.lane.b32.xlu0 %v10361, %s10390
    %v10392 = vpop.permute.xlu0 %10391
    %s10394 = sor.u32 256, 64
    %10395 = vbcast.lane.b32.xlu0 %v10361, %s10394
    %v10396 = vpop.permute.xlu0 %10395
    %s10398 = sor.u32 256, 72
    %10399 = vbcast.lane.b32.xlu0 %v10361, %s10398
    %v10400 = vpop.permute.xlu0 %10399
    %s10402 = sor.u32 256, 80
    %10403 = vbcast.lane.b32.xlu0 %v10361, %s10402
    %v10404 = vpop.permute.xlu0 %10403
    %s10406 = sor.u32 256, 88
    %10407 = vbcast.lane.b32.xlu0 %v10361, %s10406
    %v10408 = vpop.permute.xlu0 %10407
    %s10410 = sor.u32 256, 96
    %10411 = vbcast.lane.b32.xlu0 %v10361, %s10410
    %v10412 = vpop.permute.xlu0 %10411
    %s10414 = sor.u32 256, 104
    %10415 = vbcast.lane.b32.xlu0 %v10361, %s10414
    %v10416 = vpop.permute.xlu0 %10415
    %s10418 = sor.u32 256, 112
    %10419 = vbcast.lane.b32.xlu0 %v10361, %s10418
    %v10420 = vpop.permute.xlu0 %10419
    %s10422 = sor.u32 256, 120
    %10423 = vbcast.lane.b32.xlu0 %v10361, %s10422
    %v10424 = vpop.permute.xlu0 %10423
    %v10425 = vmul.f32 %v8562, %v10163
    %v10426 = vmul.f32 %v8563, %v10167
    %v10427 = vmul.f32 %v8564, %v10171
    %v10428 = vmul.f32 %v8565, %v10175
    %v10429 = vmul.f32 %v8566, %v10179
    %v10430 = vmul.f32 %v8567, %v10183
    %v10431 = vmul.f32 %v8568, %v10187
    %v10432 = vmul.f32 %v8569, %v10191
    %v10433 = vmul.f32 %v8570, %v10195
    %v10434 = vmul.f32 %v8571, %v10199
    %v10435 = vmul.f32 %v8572, %v10203
    %v10436 = vmul.f32 %v8573, %v10207
    %v10437 = vmul.f32 %v8574, %v10211
    %v10438 = vmul.f32 %v8575, %v10215
    %v10439 = vmul.f32 %v8576, %v10219
    %v10440 = vmul.f32 %v8577, %v10223
    %v10441 = vmul.f32 %v8578, %v10230
    %v10442 = vmul.f32 %v8579, %v10234
    %v10443 = vmul.f32 %v8580, %v10238
    %v10444 = vmul.f32 %v8581, %v10242
    %v10445 = vmul.f32 %v8582, %v10246
    %v10446 = vmul.f32 %v8583, %v10250
    %v10447 = vmul.f32 %v8584, %v10254
    %v10448 = vmul.f32 %v8585, %v10258
    %v10449 = vmul.f32 %v8586, %v10262
    %v10450 = vmul.f32 %v8587, %v10266
    %v10451 = vmul.f32 %v8588, %v10270
    %v10452 = vmul.f32 %v8589, %v10274
    %v10453 = vmul.f32 %v8590, %v10278
    %v10454 = vmul.f32 %v8591, %v10282
    %v10455 = vmul.f32 %v8592, %v10286
    %v10456 = vmul.f32 %v8593, %v10290
    %v10457 = vmul.f32 %v8594, %v10297
    %v10458 = vmul.f32 %v8595, %v10301
    %v10459 = vmul.f32 %v8596, %v10305
    %v10460 = vmul.f32 %v8597, %v10309
    %v10461 = vmul.f32 %v8598, %v10313
    %v10462 = vmul.f32 %v8599, %v10317
    %v10463 = vmul.f32 %v8600, %v10321
    %v10464 = vmul.f32 %v8601, %v10325
    %v10465 = vmul.f32 %v8602, %v10329
    %v10466 = vmul.f32 %v8603, %v10333
    %v10467 = vmul.f32 %v8604, %v10337
    %v10468 = vmul.f32 %v8605, %v10341
    %v10469 = vmul.f32 %v8606, %v10345
    %v10470 = vmul.f32 %v8607, %v10349
    %v10471 = vmul.f32 %v8608, %v10353
    %v10472 = vmul.f32 %v8609, %v10357
    %v10473 = vmul.f32 %v8610, %v10364
    %v10474 = vmul.f32 %v8611, %v10368
    %v10475 = vmul.f32 %v8612, %v10372
    %v10476 = vmul.f32 %v8613, %v10376
    %v10477 = vmul.f32 %v8614, %v10380
    %v10478 = vmul.f32 %v8615, %v10384
    %v10479 = vmul.f32 %v8616, %v10388
    %v10480 = vmul.f32 %v8617, %v10392
    %v10481 = vmul.f32 %v8618, %v10396
    %v10482 = vmul.f32 %v8619, %v10400
    %v10483 = vmul.f32 %v8620, %v10404
    %v10484 = vmul.f32 %v8621, %v10408
    %v10485 = vmul.f32 %v8622, %v10412
    %v10486 = vmul.f32 %v8623, %v10416
    %v10487 = vmul.f32 %v8624, %v10420
    %v10488 = vmul.f32 %v8625, %v10424
    %v10489 = vsel %vm7935, %v10425, 0.0
    %v10490 = vsel %vm7935, %v10426, 0.0
    %v10491 = vadd.f32 %v10489, %v10490
    %v10492 = vsel %vm7935, %v10427, 0.0
    %v10493 = vadd.f32 %v10491, %v10492
    %v10494 = vsel %vm7935, %v10428, 0.0
    %v10495 = vadd.f32 %v10493, %v10494
    %v10496 = vsel %vm7935, %v10429, 0.0
    %v10497 = vadd.f32 %v10495, %v10496
    %v10498 = vsel %vm7935, %v10430, 0.0
    %v10499 = vadd.f32 %v10497, %v10498
    %v10500 = vsel %vm7935, %v10431, 0.0
    %v10501 = vadd.f32 %v10499, %v10500
    %v10502 = vsel %vm7935, %v10432, 0.0
    %v10503 = vadd.f32 %v10501, %v10502
    %v10504 = vsel %vm7935, %v10433, 0.0
    %v10505 = vadd.f32 %v10503, %v10504
    %v10506 = vsel %vm7935, %v10434, 0.0
    %v10507 = vadd.f32 %v10505, %v10506
    %v10508 = vsel %vm7935, %v10435, 0.0
    %v10509 = vadd.f32 %v10507, %v10508
    %v10510 = vsel %vm7935, %v10436, 0.0
    %v10511 = vadd.f32 %v10509, %v10510
    %v10512 = vsel %vm7935, %v10437, 0.0
    %v10513 = vadd.f32 %v10511, %v10512
    %v10514 = vsel %vm7935, %v10438, 0.0
    %v10515 = vadd.f32 %v10513, %v10514
    %v10516 = vsel %vm7935, %v10439, 0.0
    %v10517 = vadd.f32 %v10515, %v10516
    %v10518 = vsel %vm7935, %v10440, 0.0
    %v10519 = vadd.f32 %v10517, %v10518
    %v10520 = vsel %vm7935, %v10441, 0.0
    %v10521 = vadd.f32 %v10519, %v10520
    %v10522 = vsel %vm7935, %v10442, 0.0
    %v10523 = vadd.f32 %v10521, %v10522
    %v10524 = vsel %vm7935, %v10443, 0.0
    %v10525 = vadd.f32 %v10523, %v10524
    %v10526 = vsel %vm7935, %v10444, 0.0
    %v10527 = vadd.f32 %v10525, %v10526
    %v10528 = vsel %vm7935, %v10445, 0.0
    %v10529 = vadd.f32 %v10527, %v10528
    %v10530 = vsel %vm7935, %v10446, 0.0
    %v10531 = vadd.f32 %v10529, %v10530
    %v10532 = vsel %vm7935, %v10447, 0.0
    %v10533 = vadd.f32 %v10531, %v10532
    %v10534 = vsel %vm7935, %v10448, 0.0
    %v10535 = vadd.f32 %v10533, %v10534
    %v10536 = vsel %vm7935, %v10449, 0.0
    %v10537 = vadd.f32 %v10535, %v10536
    %v10538 = vsel %vm7935, %v10450, 0.0
    %v10539 = vadd.f32 %v10537, %v10538
    %v10540 = vsel %vm7935, %v10451, 0.0
    %v10541 = vadd.f32 %v10539, %v10540
    %v10542 = vsel %vm7935, %v10452, 0.0
    %v10543 = vadd.f32 %v10541, %v10542
    %v10544 = vsel %vm7935, %v10453, 0.0
    %v10545 = vadd.f32 %v10543, %v10544
    %v10546 = vsel %vm7935, %v10454, 0.0
    %v10547 = vadd.f32 %v10545, %v10546
    %v10548 = vsel %vm7935, %v10455, 0.0
    %v10549 = vadd.f32 %v10547, %v10548
    %v10550 = vsel %vm7935, %v10456, 0.0
    %v10551 = vadd.f32 %v10549, %v10550
    %v10552 = vrot.slane %v10551, 4
    %v10553 = vadd.f32 %v10551, %v10552
    %v10554 = vrot.slane %v10553, 2
    %v10555 = vadd.f32 %v10553, %v10554
    %v10556 = vrot.slane %v10555, 1
    %v10557 = vadd.f32 %v10555, %v10556
    %v10558 = vsel %vm7935, %v10457, 0.0
    %v10559 = vsel %vm7935, %v10458, 0.0
    %v10560 = vadd.f32 %v10558, %v10559
    %v10561 = vsel %vm7935, %v10459, 0.0
    %v10562 = vadd.f32 %v10560, %v10561
    %v10563 = vsel %vm7935, %v10460, 0.0
    %v10564 = vadd.f32 %v10562, %v10563
    %v10565 = vsel %vm7935, %v10461, 0.0
    %v10566 = vadd.f32 %v10564, %v10565
    %v10567 = vsel %vm7935, %v10462, 0.0
    %v10568 = vadd.f32 %v10566, %v10567
    %v10569 = vsel %vm7935, %v10463, 0.0
    %v10570 = vadd.f32 %v10568, %v10569
    %v10571 = vsel %vm7935, %v10464, 0.0
    %v10572 = vadd.f32 %v10570, %v10571
    %v10573 = vsel %vm7935, %v10465, 0.0
    %v10574 = vadd.f32 %v10572, %v10573
    %v10575 = vsel %vm7935, %v10466, 0.0
    %v10576 = vadd.f32 %v10574, %v10575
    %v10577 = vsel %vm7935, %v10467, 0.0
    %v10578 = vadd.f32 %v10576, %v10577
    %v10579 = vsel %vm7935, %v10468, 0.0
    %v10580 = vadd.f32 %v10578, %v10579
    %v10581 = vsel %vm7935, %v10469, 0.0
    %v10582 = vadd.f32 %v10580, %v10581
    %v10583 = vsel %vm7935, %v10470, 0.0
    %v10584 = vadd.f32 %v10582, %v10583
    %v10585 = vsel %vm7935, %v10471, 0.0
    %v10586 = vadd.f32 %v10584, %v10585
    %v10587 = vsel %vm7935, %v10472, 0.0
    %v10588 = vadd.f32 %v10586, %v10587
    %v10589 = vsel %vm7935, %v10473, 0.0
    %v10590 = vadd.f32 %v10588, %v10589
    %v10591 = vsel %vm7935, %v10474, 0.0
    %v10592 = vadd.f32 %v10590, %v10591
    %v10593 = vsel %vm7935, %v10475, 0.0
    %v10594 = vadd.f32 %v10592, %v10593
    %v10595 = vsel %vm7935, %v10476, 0.0
    %v10596 = vadd.f32 %v10594, %v10595
    %v10597 = vsel %vm7935, %v10477, 0.0
    %v10598 = vadd.f32 %v10596, %v10597
    %v10599 = vsel %vm7935, %v10478, 0.0
    %v10600 = vadd.f32 %v10598, %v10599
    %v10601 = vsel %vm7935, %v10479, 0.0
    %v10602 = vadd.f32 %v10600, %v10601
    %v10603 = vsel %vm7935, %v10480, 0.0
    %v10604 = vadd.f32 %v10602, %v10603
    %v10605 = vsel %vm7935, %v10481, 0.0
    %v10606 = vadd.f32 %v10604, %v10605
    %v10607 = vsel %vm7935, %v10482, 0.0
    %v10608 = vadd.f32 %v10606, %v10607
    %v10609 = vsel %vm7935, %v10483, 0.0
    %v10610 = vadd.f32 %v10608, %v10609
    %v10611 = vsel %vm7935, %v10484, 0.0
    %v10612 = vadd.f32 %v10610, %v10611
    %v10613 = vsel %vm7935, %v10485, 0.0
    %v10614 = vadd.f32 %v10612, %v10613
    %v10615 = vsel %vm7935, %v10486, 0.0
    %v10616 = vadd.f32 %v10614, %v10615
    %v10617 = vsel %vm7935, %v10487, 0.0
    %v10618 = vadd.f32 %v10616, %v10617
    %v10619 = vsel %vm7935, %v10488, 0.0
    %v10620 = vadd.f32 %v10618, %v10619
    %v10621 = vrot.slane %v10620, 4
    %v10622 = vadd.f32 %v10620, %v10621
    %v10623 = vrot.slane %v10622, 2
    %v10624 = vadd.f32 %v10622, %v10623
    %v10625 = vrot.slane %v10624, 1
    %v10626 = vadd.f32 %v10624, %v10625
    %v10627 = vmul.f32 %v10557, %v8074
    %v10628 = vmul.f32 %v10626, %v8074
    %v10629 = vld [vmem:[%s1] sm:$0x3]
    %v10630 = vld [vmem:[%s10] sm:$0xff]
    %v10631 = vld [vmem:[%s10 + $0x8] sm:$0xff]
    %v10632 = vld [vmem:[%s10 + $0x10] sm:$0xff]
    %v10633 = vld [vmem:[%s10 + $0x18] sm:$0xff]
    %v10634 = vld [vmem:[%s10 + $0x20] sm:$0xff]
    %vm10635 = vcmask 64512
    %v10637 = vsel %vm10635, %v10629, 0
    %10639 = vmatprep.subr.mxu0 0.0
    %10640 = vmatpush1.msra.mxu0 0.0
    %10641 = vmatprep.subr.mxu0 0.0
    %10642 = vmatpush1.msra.mxu0 0.0
    %10643 = vmatprep.subr.mxu0 0.0
    %10644 = vmatpush1.msra.mxu0 0.0
    %10645 = vmatprep.subr.mxu0 0.0
    %10646 = vmatpush1.msra.mxu0 0.0
    %10647 = vmatprep.subr.mxu0 0.0
    %10648 = vmatpush1.msra.mxu0 0.0
    %10649 = vmatprep.subr.mxu0 0.0
    %10650 = vmatpush1.msra.mxu0 0.0
    %10651 = vmatprep.subr.mxu0 0.0
    %10652 = vmatpush1.msra.mxu0 0.0
    %10653 = vmatprep.subr.mxu0 0.0
    %10654 = vmatpush1.msra.mxu0 0.0
    %10655 = vmatprep.subr.mxu0 0.0
    %10656 = vmatpush1.msra.mxu0 0.0
    %10657 = vmatprep.subr.mxu0 0.0
    %10658 = vmatpush1.msra.mxu0 0.0
    %10659 = vmatprep.subr.mxu0 0.0
    %10660 = vmatpush1.msra.mxu0 0.0
    %10661 = vmatprep.subr.mxu0 0.0
    %10662 = vmatpush1.msra.mxu0 0.0
    %10663 = vmatprep.subr.mxu0 0.0
    %10664 = vmatpush1.msra.mxu0 0.0
    %10665 = vmatprep.subr.mxu0 0.0
    %10666 = vmatpush1.msra.mxu0 0.0
    %10667 = vmatprep.subr.mxu0 0.0
    %10668 = vmatpush1.msra.mxu0 0.0
    %10669 = vmatprep.subr.mxu0 0.0
    %10670 = vmatpush1.msra.mxu0 %v10634
    %10671 = vmatprep.subr.mxu0 0.0
    %10672 = vmatpush2.msra.mxu0 0.0
    %10673 = vmatprep.subr.mxu0 0.0
    %10674 = vmatpush2.msra.mxu0 0.0
    %10675 = vmatprep.subr.mxu0 0.0
    %10676 = vmatpush2.msra.mxu0 0.0
    %10677 = vmatprep.subr.mxu0 0.0
    %10678 = vmatpush2.msra.mxu0 0.0
    %10679 = vmatprep.subr.mxu0 0.0
    %10680 = vmatpush2.msra.mxu0 0.0
    %10681 = vmatprep.subr.mxu0 0.0
    %10682 = vmatpush2.msra.mxu0 0.0
    %10683 = vmatprep.subr.mxu0 0.0
    %10684 = vmatpush2.msra.mxu0 0.0
    %10685 = vmatprep.subr.mxu0 0.0
    %10686 = vmatpush2.msra.mxu0 0.0
    %10687 = vmatprep.subr.mxu0 0.0
    %10688 = vmatpush2.msra.mxu0 0.0
    %10689 = vmatprep.subr.mxu0 0.0
    %10690 = vmatpush2.msra.mxu0 0.0
    %10691 = vmatprep.subr.mxu0 0.0
    %10692 = vmatpush2.msra.mxu0 0.0
    %10693 = vmatprep.subr.mxu0 0.0
    %10694 = vmatpush2.msra.mxu0 0.0
    %10695 = vmatprep.subr.mxu0 0.0
    %10696 = vmatpush2.msra.mxu0 0.0
    %10697 = vmatprep.subr.mxu0 0.0
    %10698 = vmatpush2.msra.mxu0 0.0
    %10699 = vmatprep.subr.mxu0 0.0
    %10700 = vmatpush2.msra.mxu0 0.0
    %10701 = vmatprep.subr.mxu0 0.0
    %10702 = vmatpush2.msra.mxu0 0.0
    %10703 = vmatprep.mubr.f32.mxu0 0.0
    %10704 = vmatmul.mubr.f32.gmra.mxu0 %v10637
    %v10705 = vpop.f32.mrf.mxu0
    %v10706 = vadd.f32 0.0, %v10705
    %v10707 = vpop.f32.mrf.mxu0
    %10708 = vdwg.mxu0
    %v10711 = vsel %vm8221, %v10628, %v10627
    %v10712 = vsel %vm7935, %v10711, 0
    %10714 = vmatprep.subr.mxu0 0.0
    %10715 = vmatpush1.msra.mxu0 0.0
    %10716 = vmatprep.subr.mxu0 0.0
    %10717 = vmatpush1.msra.mxu0 0.0
    %10718 = vmatprep.subr.mxu0 0.0
    %10719 = vmatpush1.msra.mxu0 0.0
    %10720 = vmatprep.subr.mxu0 0.0
    %10721 = vmatpush1.msra.mxu0 0.0
    %10722 = vmatprep.subr.mxu0 0.0
    %10723 = vmatpush1.msra.mxu0 0.0
    %10724 = vmatprep.subr.mxu0 0.0
    %10725 = vmatpush1.msra.mxu0 0.0
    %10726 = vmatprep.subr.mxu0 0.0
    %10727 = vmatpush1.msra.mxu0 0.0
    %10728 = vmatprep.subr.mxu0 0.0
    %10729 = vmatpush1.msra.mxu0 0.0
    %10730 = vmatprep.subr.mxu0 0.0
    %10731 = vmatpush1.msra.mxu0 0.0
    %10732 = vmatprep.subr.mxu0 0.0
    %10733 = vmatpush1.msra.mxu0 0.0
    %10734 = vmatprep.subr.mxu0 0.0
    %10735 = vmatpush1.msra.mxu0 0.0
    %10736 = vmatprep.subr.mxu0 0.0
    %10737 = vmatpush1.msra.mxu0 0.0
    %10738 = vmatprep.subr.mxu0 0.0
    %10739 = vmatpush1.msra.mxu0 %v10633
    %10740 = vmatprep.subr.mxu0 0.0
    %10741 = vmatpush1.msra.mxu0 %v10632
    %10742 = vmatprep.subr.mxu0 0.0
    %10743 = vmatpush1.msra.mxu0 %v10631
    %10744 = vmatprep.subr.mxu0 0.0
    %10745 = vmatpush1.msra.mxu0 %v10630
    %10746 = vmatprep.subr.mxu0 0.0
    %10747 = vmatpush2.msra.mxu0 0.0
    %10748 = vmatprep.subr.mxu0 0.0
    %10749 = vmatpush2.msra.mxu0 0.0
    %10750 = vmatprep.subr.mxu0 0.0
    %10751 = vmatpush2.msra.mxu0 0.0
    %10752 = vmatprep.subr.mxu0 0.0
    %10753 = vmatpush2.msra.mxu0 0.0
    %10754 = vmatprep.subr.mxu0 0.0
    %10755 = vmatpush2.msra.mxu0 0.0
    %10756 = vmatprep.subr.mxu0 0.0
    %10757 = vmatpush2.msra.mxu0 0.0
    %10758 = vmatprep.subr.mxu0 0.0
    %10759 = vmatpush2.msra.mxu0 0.0
    %10760 = vmatprep.subr.mxu0 0.0
    %10761 = vmatpush2.msra.mxu0 0.0
    %10762 = vmatprep.subr.mxu0 0.0
    %10763 = vmatpush2.msra.mxu0 0.0
    %10764 = vmatprep.subr.mxu0 0.0
    %10765 = vmatpush2.msra.mxu0 0.0
    %10766 = vmatprep.subr.mxu0 0.0
    %10767 = vmatpush2.msra.mxu0 0.0
    %10768 = vmatprep.subr.mxu0 0.0
    %10769 = vmatpush2.msra.mxu0 0.0
    %10770 = vmatprep.subr.mxu0 0.0
    %10771 = vmatpush2.msra.mxu0 0.0
    %10772 = vmatprep.subr.mxu0 0.0
    %10773 = vmatpush2.msra.mxu0 0.0
    %10774 = vmatprep.subr.mxu0 0.0
    %10775 = vmatpush2.msra.mxu0 0.0
    %10776 = vmatprep.subr.mxu0 0.0
    %10777 = vmatpush2.msra.mxu0 0.0
    %10778 = vmatprep.mubr.f32.mxu0 0.0
    %10779 = vmatmul.mubr.f32.gmra.mxu0 %v10712
    %v10780 = vpop.f32.mrf.mxu0
    %v10781 = vadd.f32 %v10706, %v10780
    %v10782 = vpop.f32.mrf.mxu0
    %10783 = vdwg.mxu0
    %v10784 = vld [vmem:[%s11] sm:$0x1]
    %v10786 = vlaneseq
    %v10787 = vshrl.u32 %v10786, 7
    %v10788 = vsub.s32 0, %v10787
    %v10789 = vrot.slane %v10784, %v10788
    %v10791 = vadd.f32 %v10781, %v10789
    %v10792 = vmax.f32 %v10791, 0.0
    %v10793 = vld [vmem:[%s12] sm:$0xff]
    %v10794 = vld [vmem:[%s12 + $0x8] sm:$0xff]
    %v10795 = vld [vmem:[%s12 + $0x10] sm:$0xff]
    %v10796 = vld [vmem:[%s12 + $0x18] sm:$0xff]
    %v10797 = vld [vmem:[%s13] sm:$0x1]
    %v10799 = vlaneseq
    %v10800 = vshrl.u32 %v10799, 7
    %v10801 = vsub.s32 0, %v10800
    %v10802 = vrot.slane %v10797, %v10801
    %v10805 = vsel %vm7935, %v10792, 0
    %10807 = vmatprep.subr.mxu0 0.0
    %10808 = vmatpush1.msra.mxu0 0.0
    %10809 = vmatprep.subr.mxu0 0.0
    %10810 = vmatpush1.msra.mxu0 0.0
    %10811 = vmatprep.subr.mxu0 0.0
    %10812 = vmatpush1.msra.mxu0 0.0
    %10813 = vmatprep.subr.mxu0 0.0
    %10814 = vmatpush1.msra.mxu0 0.0
    %10815 = vmatprep.subr.mxu0 0.0
    %10816 = vmatpush1.msra.mxu0 0.0
    %10817 = vmatprep.subr.mxu0 0.0
    %10818 = vmatpush1.msra.mxu0 0.0
    %10819 = vmatprep.subr.mxu0 0.0
    %10820 = vmatpush1.msra.mxu0 0.0
    %10821 = vmatprep.subr.mxu0 0.0
    %10822 = vmatpush1.msra.mxu0 0.0
    %10823 = vmatprep.subr.mxu0 0.0
    %10824 = vmatpush1.msra.mxu0 0.0
    %10825 = vmatprep.subr.mxu0 0.0
    %10826 = vmatpush1.msra.mxu0 0.0
    %10827 = vmatprep.subr.mxu0 0.0
    %10828 = vmatpush1.msra.mxu0 0.0
    %10829 = vmatprep.subr.mxu0 0.0
    %10830 = vmatpush1.msra.mxu0 0.0
    %10831 = vmatprep.subr.mxu0 0.0
    %10832 = vmatpush1.msra.mxu0 %v10796
    %10833 = vmatprep.subr.mxu0 0.0
    %10834 = vmatpush1.msra.mxu0 %v10795
    %10835 = vmatprep.subr.mxu0 0.0
    %10836 = vmatpush1.msra.mxu0 %v10794
    %10837 = vmatprep.subr.mxu0 0.0
    %10838 = vmatpush1.msra.mxu0 %v10793
    %10839 = vmatprep.subr.mxu0 0.0
    %10840 = vmatpush2.msra.mxu0 0.0
    %10841 = vmatprep.subr.mxu0 0.0
    %10842 = vmatpush2.msra.mxu0 0.0
    %10843 = vmatprep.subr.mxu0 0.0
    %10844 = vmatpush2.msra.mxu0 0.0
    %10845 = vmatprep.subr.mxu0 0.0
    %10846 = vmatpush2.msra.mxu0 0.0
    %10847 = vmatprep.subr.mxu0 0.0
    %10848 = vmatpush2.msra.mxu0 0.0
    %10849 = vmatprep.subr.mxu0 0.0
    %10850 = vmatpush2.msra.mxu0 0.0
    %10851 = vmatprep.subr.mxu0 0.0
    %10852 = vmatpush2.msra.mxu0 0.0
    %10853 = vmatprep.subr.mxu0 0.0
    %10854 = vmatpush2.msra.mxu0 0.0
    %10855 = vmatprep.subr.mxu0 0.0
    %10856 = vmatpush2.msra.mxu0 0.0
    %10857 = vmatprep.subr.mxu0 0.0
    %10858 = vmatpush2.msra.mxu0 0.0
    %10859 = vmatprep.subr.mxu0 0.0
    %10860 = vmatpush2.msra.mxu0 0.0
    %10861 = vmatprep.subr.mxu0 0.0
    %10862 = vmatpush2.msra.mxu0 0.0
    %10863 = vmatprep.subr.mxu0 0.0
    %10864 = vmatpush2.msra.mxu0 0.0
    %10865 = vmatprep.subr.mxu0 0.0
    %10866 = vmatpush2.msra.mxu0 0.0
    %10867 = vmatprep.subr.mxu0 0.0
    %10868 = vmatpush2.msra.mxu0 0.0
    %10869 = vmatprep.subr.mxu0 0.0
    %10870 = vmatpush2.msra.mxu0 0.0
    %10871 = vmatprep.mubr.f32.mxu0 0.0
    %10872 = vmatmul.mubr.f32.gmra.mxu0 %v10805
    %v10873 = vpop.f32.mrf.mxu0
    %v10874 = vadd.f32 %v10802, %v10873
    %v10875 = vpop.f32.mrf.mxu0
    %10876 = vdwg.mxu0
    %vm10877 = vcmask 17408
    %10878 = vst.msk [vmem:[#allocation9] sm:$0x3] %vm10877, %v10874
    // Predicated region
    $region62: #{tpu_custom_call.1} parent=1 // pred_check
      _
    $region63: #{tpu_custom_call.1} parent=1 // pred_check_branch
      %10880 = sbr.rel (0) target = $region65
    $region64: #{tpu_custom_call.1} parent=1 // pred_region
      %s10882 = ssub.s32 32, 32
      %10883 = vsyncadd [#allocation8], %s10882
      %s10885 = sshll.u32 [#allocation9], 4
      %s10886 = int_to_ptr.vmem [resolvable:$true] %s10885
      %10888 = dma.vmem_to_hbm [thread:$0]  %s10886, 32, %s14, [#allocation8]
    $region65: #{tpu_custom_call.1} parent=1 // pred_fallthru
      _
    // Predicated region
    $region66: #{tpu_custom_call.1} parent=1 // pred_check
      _
    $region67: #{tpu_custom_call.1} parent=1 // pred_check_branch
      %10890 = sbr.rel (0) target = $region69
    $region68: #{tpu_custom_call.1} parent=1 // pred_region
      %10891 = dma.done [#allocation8], 32
    $region69: #{tpu_custom_call.1} parent=1 // pred_fallthru
      _
    %10892 = vsyncpa [#allocation7], 1
    %10893 = vsyncpa [#allocation8], 1

</llo_original>
